<compile_context>
chip_gen: v7x
topology: tpu7x:2x2x1
jax: 0.10.0
libtpu: 0.0.40
codegen_flags: <defaults>
</compile_context>

<pallas_src>
import functools

import jax
import jax.numpy as jnp
import numpy as np
from jax import lax
from jax.experimental import pallas as pl
from jax.experimental.pallas import tpu as pltpu

CP = 128          # lane-padded channel width used by every intermediate
C0 = 8            # interior column offset inside the padded buffer (8-aligned)


def gdfn_kernel(xp_ref, w_init_ref, b_init_ref, w_dw_ref, w_pw_ref,
                w_fc_ref, b_fc_ref, w_out_ref,
                w_r1_ref, b_r1_ref, w_r2_ref, b_r2_ref, w_r3_ref, b_r3_ref,
                out_ref, pad_ref, shift_ref, *, H, W):
    f32 = jnp.float32
    HW = H * W

    def build_slabs():
        # Pre-shift the padded buffer along W once per kx so every tap read is
        # a leading-axis slice + no-op reshape (no per-tap sublane relayout).
        for kx in range(3):
            a = C0 - 1 + kx
            shift_ref[kx] = pad_ref[:, a:a + W, :]

    def tap(ky, kx):
        return shift_ref[kx, ky:ky + H].reshape(HW, CP)

    def conv3x3(w_flat_ref):
        # im2col: one (HW, 9*CP) x (9*CP, CP) matmul; taps accumulate on the
        # MXU K axis instead of through 8 VPU adds.
        cols = jnp.concatenate([tap(k // 3, k % 3) for k in range(9)], axis=1)
        return jnp.dot(cols, w_flat_ref[...], preferred_element_type=f32)

    def write_interior(v):
        # sublane-aligned (offset 8) unmasked interior store; zero ring stays.
        pad_ref[1:H + 1, C0:C0 + W, :] = v.reshape(H, W, CP)

    def sigmoid(v):
        return 1.0 / (1.0 + jnp.exp(-v))

    # stage 0: padded input image (zero ring + zero channels >= 3 built host-side)
    pad_ref[...] = xp_ref[0]

    # ---- initial_conv: 3x3, 3 -> c_in, with bias ----
    build_slabs()
    y = conv3x3(w_init_ref) + b_init_ref[...]                      # (HW, CP)

    # ---- depthwise 3x3 conv (no bias) + ReLU ----
    write_interior(y)
    build_slabs()
    d = tap(0, 0) * w_dw_ref[0]
    for k in range(1, 9):
        d = d + tap(k // 3, k % 3) * w_dw_ref[k]
    d = jnp.maximum(d, 0.0)

    # ---- pointwise 1x1 conv: c_in -> c_hid (no bias) ----
    z = jnp.dot(d, w_pw_ref[...], preferred_element_type=f32)

    # ---- gate: global average pool -> Linear(c_hid, 1) -> sigmoid ----
    gmean = jnp.mean(z, axis=0, keepdims=True)                      # (1, CP)
    gate = (jnp.sum(gmean * w_fc_ref[...], axis=1, keepdims=True)
            + b_fc_ref[...])                                        # (1, 1)
    z = z * sigmoid(gate)

    # ---- output 1x1 conv: c_hid -> c_out (no bias) ----
    o = jnp.dot(z, w_out_ref[...], preferred_element_type=f32)

    # ---- reconstruction conv1: 3x3, c_out -> 128, bias + ReLU ----
    write_interior(o)
    build_slabs()
    r1 = jnp.maximum(conv3x3(w_r1_ref) + b_r1_ref[...], 0.0)

    # ---- reconstruction conv2: 3x3, 128 -> 64, bias + ReLU ----
    write_interior(r1)
    build_slabs()
    r2 = jnp.maximum(conv3x3(w_r2_ref) + b_r2_ref[...], 0.0)

    # ---- reconstruction conv3: 1x1, 64 -> 3, bias + sigmoid ----
    r3 = jnp.dot(r2, w_r3_ref[...], preferred_element_type=f32) + b_r3_ref[...]
    out_ref[0] = sigmoid(r3)                                        # (HW, 3)


def _pad_to(a, shape):
    return jnp.pad(a, [(0, t - s) for s, t in zip(a.shape, shape)])


def _full_spec(shape):
    ndim = len(shape)

    def index_map(b):
        return (0,) * ndim

    return pl.BlockSpec(shape, index_map)


def gdfn_forward(x, params, *, c_in, c_hid, c_out):
    (w_init, b_init, w_dw, w_pw, w_fc, b_fc, w_out,
     w_r1, b_r1, w_r2, b_r2, w_r3, b_r3) = params
    B, H, W, _ = x.shape
    assert H % 8 == 0 and W % 8 == 0, "kernel assumes 8-aligned spatial dims"
    WP = W + 2 * C0                                   # padded buffer width

    # ---- host-side layout glue: lane-pad channels, build padded image,
    #      flatten 3x3 weights into the im2col (9*CP, C_out) layout ----
    xp = jnp.pad(x, ((0, 0), (1, 1), (C0, C0), (0, CP - 3)))   # (B,H+2,WP,128)

    pparams = (
        _pad_to(w_init, (9, CP, CP)).reshape(9 * CP, CP),
        _pad_to(b_init, (1, CP)),
        _pad_to(w_dw.reshape(9, 1, c_in), (9, 1, CP)),
        _pad_to(w_pw, (CP, CP)),
        _pad_to(w_fc.reshape(1, c_hid), (1, CP)),     # row vector for VPU dot
        b_fc,                                         # (1, 1)
        _pad_to(w_out, (CP, CP)),
        _pad_to(w_r1, (9, CP, 128)).reshape(9 * CP, 128),
        b_r1,                                         # (1, 128)
        _pad_to(w_r2, (9, 128, CP)).reshape(9 * 128, CP),
        _pad_to(b_r2, (1, CP)),
        _pad_to(w_r3, (CP, 3)),
        b_r3,                                         # (1, 3)
    )

    flops_per_img = 2 * H * W * (9 * 3 * c_in + 9 * c_in + c_in * c_hid
                                 + c_hid * c_out + 9 * c_out * 128
                                 + 9 * 128 * 64 + 64 * 3)
    cost = pl.CostEstimate(
        flops=B * flops_per_img,
        transcendentals=B * (H * W * 3 + 1),
        bytes_accessed=int(4 * (xp.size + sum(int(a.size) for a in pparams)
                                + B * H * W * 3)))

    kernel = functools.partial(gdfn_kernel, H=H, W=W)
    out = pl.pallas_call(
        kernel,
        out_shape=jax.ShapeDtypeStruct((B, H * W, 3), jnp.float32),
        grid_spec=pltpu.PrefetchScalarGridSpec(
            num_scalar_prefetch=0,
            grid=(B,),
            in_specs=[pl.BlockSpec((1, H + 2, WP, CP),
                                   lambda b: (b, 0, 0, 0))]
                     + [_full_spec(a.shape) for a in pparams],
            out_specs=pl.BlockSpec((1, H * W, 3), lambda b: (b, 0, 0)),
            scratch_shapes=[
                pltpu.VMEM((H + 2, WP, CP), jnp.float32),      # padded buffer
                pltpu.VMEM((3, H + 2, W, CP), jnp.float32),    # kx-shift slabs
            ],
        ),
        compiler_params=pltpu.CompilerParams(
            dimension_semantics=("parallel",)),      # v7x: batch over 2 TCs
        cost_estimate=cost,
    )(xp, *pparams)
    return out.reshape(B, H, W, 3)


def ref_forward(x, params, *, c_in, c_hid, c_out):
    """Pure-JAX f32 reference (NHWC) mirroring the PyTorch forward exactly."""
    (w_init, b_init, w_dw, w_pw, w_fc, b_fc, w_out,
     w_r1, b_r1, w_r2, b_r2, w_r3, b_r3) = params
    dn = ('NHWC', 'HWIO', 'NHWC')
    hp = lax.Precision.HIGHEST

    def conv3(inp, w, groups=1):
        return lax.conv_general_dilated(inp, w, (1, 1), [(1, 1), (1, 1)],
                                        dimension_numbers=dn,
                                        feature_group_count=groups,
                                        precision=hp)

    y = conv3(x, w_init.reshape(3, 3, 3, c_in)) + b_init.reshape(1, 1, 1, c_in)
    y = conv3(y, w_dw.reshape(3, 3, 1, c_in), groups=c_in)
    y = jnp.maximum(y, 0.0)
    z = jnp.einsum('bhwc,cd->bhwd', y, w_pw, precision=hp)
    gate = jnp.einsum('bc,cd->bd', jnp.mean(z, axis=(1, 2)), w_fc,
                      precision=hp) + b_fc                         # (B, 1)
    gate = jax.nn.sigmoid(gate)[:, None, None, :]
    z = z * gate
    o = jnp.einsum('bhwc,cd->bhwd', z, w_out, precision=hp)
    r1 = jnp.maximum(conv3(o, w_r1.reshape(3, 3, c_out, 128))
                     + b_r1.reshape(1, 1, 1, 128), 0.0)
    r2 = jnp.maximum(conv3(r1, w_r2.reshape(3, 3, 128, 64))
                     + b_r2.reshape(1, 1, 1, 64), 0.0)
    r3 = jnp.einsum('bhwc,cd->bhwd', r2, w_r3, precision=hp) \
        + b_r3.reshape(1, 1, 1, 3)
    return jax.nn.sigmoid(r3)


def make_params(key, c_in, c_hid, c_out):
    ks = jax.random.split(key, 13)

    def rnd(k, shape, fan_in):
        return jax.random.normal(k, shape, jnp.float32) / np.sqrt(fan_in)

    w_init = rnd(ks[0], (9, 3, c_in), 9 * 3)
    b_init = rnd(ks[1], (1, c_in), 9 * 3)
    w_dw = rnd(ks[2], (9, c_in), 9)
    w_pw = rnd(ks[3], (c_in, c_hid), c_in)
    w_fc = rnd(ks[4], (c_hid, 1), c_hid)
    b_fc = rnd(ks[5], (1, 1), c_hid)
    w_out = rnd(ks[6], (c_hid, c_out), c_hid)
    w_r1 = rnd(ks[7], (9, c_out, 128), 9 * c_out)
    b_r1 = rnd(ks[8], (1, 128), 9 * c_out)
    w_r2 = rnd(ks[9], (9, 128, 64), 9 * 128)
    b_r2 = rnd(ks[10], (1, 64), 9 * 128)
    w_r3 = rnd(ks[11], (64, 3), 64)
    b_r3 = rnd(ks[12], (1, 3), 64)
    return (w_init, b_init, w_dw, w_pw, w_fc, b_fc, w_out,
            w_r1, b_r1, w_r2, b_r2, w_r3, b_r3)


if __name__ == "__main__":
    B, H, W = 2, 16, 16
    c_in, c_hid, c_out = 4, 8, 4

    key = jax.random.PRNGKey(0)
    k_x, k_p = jax.random.split(key)
    x = jax.random.uniform(k_x, (B, H, W, 3), jnp.float32)   # NHWC input image
    params = make_params(k_p, c_in, c_hid, c_out)

    out = jax.block_until_ready(
        gdfn_forward(x, params, c_in=c_in, c_hid=c_hid, c_out=c_out))
    ref = jax.block_until_ready(
        ref_forward(x, params, c_in=c_in, c_hid=c_hid, c_out=c_out))

    np.testing.assert_allclose(np.asarray(out), np.asarray(ref),
                               rtol=1e-3, atol=5e-4)
    print("KERNEL_OK")
</pallas_src>

<mosaic_0001>
module attributes {stable_mosaic.version = 11 : i64} {
  func.func @gdfn_kernel(%arg0: i32, %arg1: memref<1x18x32x128xf32, #tpu.memory_space<vmem>>, %arg2: memref<1152x128xf32, #tpu.memory_space<vmem>>, %arg3: memref<1x128xf32, #tpu.memory_space<vmem>>, %arg4: memref<9x1x128xf32, #tpu.memory_space<vmem>>, %arg5: memref<128x128xf32, #tpu.memory_space<vmem>>, %arg6: memref<1x128xf32, #tpu.memory_space<vmem>>, %arg7: memref<1x1xf32, #tpu.memory_space<vmem>>, %arg8: memref<128x128xf32, #tpu.memory_space<vmem>>, %arg9: memref<1152x128xf32, #tpu.memory_space<vmem>>, %arg10: memref<1x128xf32, #tpu.memory_space<vmem>>, %arg11: memref<1152x128xf32, #tpu.memory_space<vmem>>, %arg12: memref<1x128xf32, #tpu.memory_space<vmem>>, %arg13: memref<128x3xf32, #tpu.memory_space<vmem>>, %arg14: memref<1x3xf32, #tpu.memory_space<vmem>>, %arg15: memref<1x256x3xf32, #tpu.memory_space<vmem>>, %arg16: memref<18x32x128xf32, #tpu.memory_space<vmem>>, %arg17: memref<3x18x16x128xf32, #tpu.memory_space<vmem>>) attributes {dimension_semantics = [#tpu.dimension_semantics<parallel>], iteration_bounds = array<i64: 2>, scalar_prefetch = 0 : i64, scratch_operands = 2 : i64, tpu.core_type = #tpu.core_type<tc>, window_params = [{transform_indices = @transform_0, window_bounds = array<i64: 1, 18, 32, 128>}, {pipeline_mode = #tpu.pipeline_mode<synchronous>, transform_indices = @transform_1, window_bounds = array<i64: 1152, 128>}, {pipeline_mode = #tpu.pipeline_mode<synchronous>, transform_indices = @transform_2, window_bounds = array<i64: 1, 128>}, {pipeline_mode = #tpu.pipeline_mode<synchronous>, transform_indices = @transform_3, window_bounds = array<i64: 9, 1, 128>}, {pipeline_mode = #tpu.pipeline_mode<synchronous>, transform_indices = @transform_4, window_bounds = array<i64: 128, 128>}, {pipeline_mode = #tpu.pipeline_mode<synchronous>, transform_indices = @transform_5, window_bounds = array<i64: 1, 128>}, {pipeline_mode = #tpu.pipeline_mode<synchronous>, transform_indices = @transform_6, window_bounds = array<i64: 1, 1>}, {pipeline_mode = #tpu.pipeline_mode<synchronous>, transform_indices = @transform_7, window_bounds = array<i64: 128, 128>}, {pipeline_mode = #tpu.pipeline_mode<synchronous>, transform_indices = @transform_8, window_bounds = array<i64: 1152, 128>}, {pipeline_mode = #tpu.pipeline_mode<synchronous>, transform_indices = @transform_9, window_bounds = array<i64: 1, 128>}, {pipeline_mode = #tpu.pipeline_mode<synchronous>, transform_indices = @transform_10, window_bounds = array<i64: 1152, 128>}, {pipeline_mode = #tpu.pipeline_mode<synchronous>, transform_indices = @transform_11, window_bounds = array<i64: 1, 128>}, {pipeline_mode = #tpu.pipeline_mode<synchronous>, transform_indices = @transform_12, window_bounds = array<i64: 128, 3>}, {pipeline_mode = #tpu.pipeline_mode<synchronous>, transform_indices = @transform_13, window_bounds = array<i64: 1, 3>}, {transform_indices = @transform_14, window_bounds = array<i64: 1, 256, 3>}]} {
    %c0 = arith.constant 0 : index
    %c0_0 = arith.constant 0 : index
    %c0_1 = arith.constant 0 : index
    %c0_2 = arith.constant 0 : index
    %0 = vector.load %arg1[%c0, %c0_0, %c0_1, %c0_2] : memref<1x18x32x128xf32, #tpu.memory_space<vmem>>, vector<1x18x32x128xf32>
    %1 = vector.shape_cast %0 : vector<1x18x32x128xf32> to vector<18x32x128xf32>
    %c0_3 = arith.constant 0 : index
    %c0_4 = arith.constant 0 : index
    %c0_5 = arith.constant 0 : index
    %2 = vector.load %arg16[%c0_3, %c0_4, %c0_5] : memref<18x32x128xf32, #tpu.memory_space<vmem>>, vector<18x32x128xf32>
    tpu.vector_store %arg16[%c0_3, %c0_4, %c0_5], %1 {strides = array<i32>} : memref<18x32x128xf32, #tpu.memory_space<vmem>>, vector<18x32x128xf32>,
    %c0_6 = arith.constant 0 : index
    %c7 = arith.constant 7 : index
    %c0_7 = arith.constant 0 : index
    %3 = vector.load %arg16[%c0_6, %c7, %c0_7] : memref<18x32x128xf32, #tpu.memory_space<vmem>>, vector<18x16x128xf32>
    %c0_8 = arith.constant 0 : index
    %c0_9 = arith.constant 0 : index
    %c0_10 = arith.constant 0 : index
    %c0_11 = arith.constant 0 : index
    %4 = vector.load %arg17[%c0_8, %c0_9, %c0_10, %c0_11] : memref<3x18x16x128xf32, #tpu.memory_space<vmem>>, vector<1x18x16x128xf32>
    %5 = vector.shape_cast %4 : vector<1x18x16x128xf32> to vector<18x16x128xf32>
    %6 = vector.shape_cast %3 : vector<18x16x128xf32> to vector<1x18x16x128xf32>
    tpu.vector_store %arg17[%c0_8, %c0_9, %c0_10, %c0_11], %6 {strides = array<i32>} : memref<3x18x16x128xf32, #tpu.memory_space<vmem>>, vector<1x18x16x128xf32>,
    %c0_12 = arith.constant 0 : index
    %c8 = arith.constant 8 : index
    %c0_13 = arith.constant 0 : index
    %7 = vector.load %arg16[%c0_12, %c8, %c0_13] : memref<18x32x128xf32, #tpu.memory_space<vmem>>, vector<18x16x128xf32>
    %c1 = arith.constant 1 : index
    %c0_14 = arith.constant 0 : index
    %c0_15 = arith.constant 0 : index
    %c0_16 = arith.constant 0 : index
    %8 = vector.load %arg17[%c1, %c0_14, %c0_15, %c0_16] : memref<3x18x16x128xf32, #tpu.memory_space<vmem>>, vector<1x18x16x128xf32>
    %9 = vector.shape_cast %8 : vector<1x18x16x128xf32> to vector<18x16x128xf32>
    %10 = vector.shape_cast %7 : vector<18x16x128xf32> to vector<1x18x16x128xf32>
    tpu.vector_store %arg17[%c1, %c0_14, %c0_15, %c0_16], %10 {strides = array<i32>} : memref<3x18x16x128xf32, #tpu.memory_space<vmem>>, vector<1x18x16x128xf32>,
    %c0_17 = arith.constant 0 : index
    %c9 = arith.constant 9 : index
    %c0_18 = arith.constant 0 : index
    %11 = vector.load %arg16[%c0_17, %c9, %c0_18] : memref<18x32x128xf32, #tpu.memory_space<vmem>>, vector<18x16x128xf32>
    %c2 = arith.constant 2 : index
    %c0_19 = arith.constant 0 : index
    %c0_20 = arith.constant 0 : index
    %c0_21 = arith.constant 0 : index
    %12 = vector.load %arg17[%c2, %c0_19, %c0_20, %c0_21] : memref<3x18x16x128xf32, #tpu.memory_space<vmem>>, vector<1x18x16x128xf32>
    %13 = vector.shape_cast %12 : vector<1x18x16x128xf32> to vector<18x16x128xf32>
    %14 = vector.shape_cast %11 : vector<18x16x128xf32> to vector<1x18x16x128xf32>
    tpu.vector_store %arg17[%c2, %c0_19, %c0_20, %c0_21], %14 {strides = array<i32>} : memref<3x18x16x128xf32, #tpu.memory_space<vmem>>, vector<1x18x16x128xf32>,
    %c0_22 = arith.constant 0 : index
    %c0_23 = arith.constant 0 : index
    %c0_24 = arith.constant 0 : index
    %c0_25 = arith.constant 0 : index
    %15 = vector.load %arg17[%c0_22, %c0_23, %c0_24, %c0_25] : memref<3x18x16x128xf32, #tpu.memory_space<vmem>>, vector<1x16x16x128xf32>
    %16 = vector.shape_cast %15 : vector<1x16x16x128xf32> to vector<16x16x128xf32>
    %17 = vector.shape_cast %16 : vector<16x16x128xf32> to vector<256x128xf32>
    %c1_26 = arith.constant 1 : index
    %c0_27 = arith.constant 0 : index
    %c0_28 = arith.constant 0 : index
    %c0_29 = arith.constant 0 : index
    %18 = vector.load %arg17[%c1_26, %c0_27, %c0_28, %c0_29] : memref<3x18x16x128xf32, #tpu.memory_space<vmem>>, vector<1x16x16x128xf32>
    %19 = vector.shape_cast %18 : vector<1x16x16x128xf32> to vector<16x16x128xf32>
    %20 = vector.shape_cast %19 : vector<16x16x128xf32> to vector<256x128xf32>
    %c2_30 = arith.constant 2 : index
    %c0_31 = arith.constant 0 : index
    %c0_32 = arith.constant 0 : index
    %c0_33 = arith.constant 0 : index
    %21 = vector.load %arg17[%c2_30, %c0_31, %c0_32, %c0_33] : memref<3x18x16x128xf32, #tpu.memory_space<vmem>>, vector<1x16x16x128xf32>
    %22 = vector.shape_cast %21 : vector<1x16x16x128xf32> to vector<16x16x128xf32>
    %23 = vector.shape_cast %22 : vector<16x16x128xf32> to vector<256x128xf32>
    %c0_34 = arith.constant 0 : index
    %c1_35 = arith.constant 1 : index
    %c0_36 = arith.constant 0 : index
    %c0_37 = arith.constant 0 : index
    %24 = vector.load %arg17[%c0_34, %c1_35, %c0_36, %c0_37] : memref<3x18x16x128xf32, #tpu.memory_space<vmem>>, vector<1x16x16x128xf32>
    %25 = vector.shape_cast %24 : vector<1x16x16x128xf32> to vector<16x16x128xf32>
    %26 = vector.shape_cast %25 : vector<16x16x128xf32> to vector<256x128xf32>
    %c1_38 = arith.constant 1 : index
    %c1_39 = arith.constant 1 : index
    %c0_40 = arith.constant 0 : index
    %c0_41 = arith.constant 0 : index
    %27 = vector.load %arg17[%c1_38, %c1_39, %c0_40, %c0_41] : memref<3x18x16x128xf32, #tpu.memory_space<vmem>>, vector<1x16x16x128xf32>
    %28 = vector.shape_cast %27 : vector<1x16x16x128xf32> to vector<16x16x128xf32>
    %29 = vector.shape_cast %28 : vector<16x16x128xf32> to vector<256x128xf32>
    %c2_42 = arith.constant 2 : index
    %c1_43 = arith.constant 1 : index
    %c0_44 = arith.constant 0 : index
    %c0_45 = arith.constant 0 : index
    %30 = vector.load %arg17[%c2_42, %c1_43, %c0_44, %c0_45] : memref<3x18x16x128xf32, #tpu.memory_space<vmem>>, vector<1x16x16x128xf32>
    %31 = vector.shape_cast %30 : vector<1x16x16x128xf32> to vector<16x16x128xf32>
    %32 = vector.shape_cast %31 : vector<16x16x128xf32> to vector<256x128xf32>
    %c0_46 = arith.constant 0 : index
    %c2_47 = arith.constant 2 : index
    %c0_48 = arith.constant 0 : index
    %c0_49 = arith.constant 0 : index
    %33 = vector.load %arg17[%c0_46, %c2_47, %c0_48, %c0_49] : memref<3x18x16x128xf32, #tpu.memory_space<vmem>>, vector<1x16x16x128xf32>
    %34 = vector.shape_cast %33 : vector<1x16x16x128xf32> to vector<16x16x128xf32>
    %35 = vector.shape_cast %34 : vector<16x16x128xf32> to vector<256x128xf32>
    %c1_50 = arith.constant 1 : index
    %c2_51 = arith.constant 2 : index
    %c0_52 = arith.constant 0 : index
    %c0_53 = arith.constant 0 : index
    %36 = vector.load %arg17[%c1_50, %c2_51, %c0_52, %c0_53] : memref<3x18x16x128xf32, #tpu.memory_space<vmem>>, vector<1x16x16x128xf32>
    %37 = vector.shape_cast %36 : vector<1x16x16x128xf32> to vector<16x16x128xf32>
    %38 = vector.shape_cast %37 : vector<16x16x128xf32> to vector<256x128xf32>
    %c2_54 = arith.constant 2 : index
    %c2_55 = arith.constant 2 : index
    %c0_56 = arith.constant 0 : index
    %c0_57 = arith.constant 0 : index
    %39 = vector.load %arg17[%c2_54, %c2_55, %c0_56, %c0_57] : memref<3x18x16x128xf32, #tpu.memory_space<vmem>>, vector<1x16x16x128xf32>
    %40 = vector.shape_cast %39 : vector<1x16x16x128xf32> to vector<16x16x128xf32>
    %41 = vector.shape_cast %40 : vector<16x16x128xf32> to vector<256x128xf32>
    %42 = tpu.concatenate %17, %20, %23, %26, %29, %32, %35, %38, %41 in 1 : vector<256x128xf32>, vector<256x128xf32>, vector<256x128xf32>, vector<256x128xf32>, vector<256x128xf32>, vector<256x128xf32>, vector<256x128xf32>, vector<256x128xf32>, vector<256x128xf32> -> vector<256x1152xf32>
    %c0_58 = arith.constant 0 : index
    %c0_59 = arith.constant 0 : index
    %43 = vector.load %arg2[%c0_58, %c0_59] : memref<1152x128xf32, #tpu.memory_space<vmem>>, vector<1152x128xf32>
    %cst = arith.constant dense<0.000000e+00> : vector<256x128xf32>
    %44 = tpu.matmul %42, %43, %cst {dimension_numbers = #tpu.dot_dimension_numbers<[1], [0], [0], [1], [0, 0, 1, 1], [], []>} : vector<256x1152xf32>, vector<1152x128xf32>, vector<256x128xf32> -> vector<256x128xf32>
    %c0_60 = arith.constant 0 : index
    %c0_61 = arith.constant 0 : index
    %45 = vector.load %arg3[%c0_60, %c0_61] : memref<1x128xf32, #tpu.memory_space<vmem>>, vector<1x128xf32>
    %46 = vector.broadcast %45 : vector<1x128xf32> to vector<256x128xf32>
    %47 = arith.addf %44, %46 : vector<256x128xf32>
    %48 = vector.shape_cast %47 : vector<256x128xf32> to vector<16x16x128xf32>
    %c1_62 = arith.constant 1 : index
    %c8_63 = arith.constant 8 : index
    %c0_64 = arith.constant 0 : index
    %49 = vector.load %arg16[%c1_62, %c8_63, %c0_64] : memref<18x32x128xf32, #tpu.memory_space<vmem>>, vector<16x16x128xf32>
    tpu.vector_store %arg16[%c1_62, %c8_63, %c0_64], %48 {strides = array<i32>} : memref<18x32x128xf32, #tpu.memory_space<vmem>>, vector<16x16x128xf32>,
    %c0_65 = arith.constant 0 : index
    %c7_66 = arith.constant 7 : index
    %c0_67 = arith.constant 0 : index
    %50 = vector.load %arg16[%c0_65, %c7_66, %c0_67] : memref<18x32x128xf32, #tpu.memory_space<vmem>>, vector<18x16x128xf32>
    %c0_68 = arith.constant 0 : index
    %c0_69 = arith.constant 0 : index
    %c0_70 = arith.constant 0 : index
    %c0_71 = arith.constant 0 : index
    %51 = vector.load %arg17[%c0_68, %c0_69, %c0_70, %c0_71] : memref<3x18x16x128xf32, #tpu.memory_space<vmem>>, vector<1x18x16x128xf32>
    %52 = vector.shape_cast %51 : vector<1x18x16x128xf32> to vector<18x16x128xf32>
    %53 = vector.shape_cast %50 : vector<18x16x128xf32> to vector<1x18x16x128xf32>
    tpu.vector_store %arg17[%c0_68, %c0_69, %c0_70, %c0_71], %53 {strides = array<i32>} : memref<3x18x16x128xf32, #tpu.memory_space<vmem>>, vector<1x18x16x128xf32>,
    %c0_72 = arith.constant 0 : index
    %c8_73 = arith.constant 8 : index
    %c0_74 = arith.constant 0 : index
    %54 = vector.load %arg16[%c0_72, %c8_73, %c0_74] : memref<18x32x128xf32, #tpu.memory_space<vmem>>, vector<18x16x128xf32>
    %c1_75 = arith.constant 1 : index
    %c0_76 = arith.constant 0 : index
    %c0_77 = arith.constant 0 : index
    %c0_78 = arith.constant 0 : index
    %55 = vector.load %arg17[%c1_75, %c0_76, %c0_77, %c0_78] : memref<3x18x16x128xf32, #tpu.memory_space<vmem>>, vector<1x18x16x128xf32>
    %56 = vector.shape_cast %55 : vector<1x18x16x128xf32> to vector<18x16x128xf32>
    %57 = vector.shape_cast %54 : vector<18x16x128xf32> to vector<1x18x16x128xf32>
    tpu.vector_store %arg17[%c1_75, %c0_76, %c0_77, %c0_78], %57 {strides = array<i32>} : memref<3x18x16x128xf32, #tpu.memory_space<vmem>>, vector<1x18x16x128xf32>,
    %c0_79 = arith.constant 0 : index
    %c9_80 = arith.constant 9 : index
    %c0_81 = arith.constant 0 : index
    %58 = vector.load %arg16[%c0_79, %c9_80, %c0_81] : memref<18x32x128xf32, #tpu.memory_space<vmem>>, vector<18x16x128xf32>
    %c2_82 = arith.constant 2 : index
    %c0_83 = arith.constant 0 : index
    %c0_84 = arith.constant 0 : index
    %c0_85 = arith.constant 0 : index
    %59 = vector.load %arg17[%c2_82, %c0_83, %c0_84, %c0_85] : memref<3x18x16x128xf32, #tpu.memory_space<vmem>>, vector<1x18x16x128xf32>
    %60 = vector.shape_cast %59 : vector<1x18x16x128xf32> to vector<18x16x128xf32>
    %61 = vector.shape_cast %58 : vector<18x16x128xf32> to vector<1x18x16x128xf32>
    tpu.vector_store %arg17[%c2_82, %c0_83, %c0_84, %c0_85], %61 {strides = array<i32>} : memref<3x18x16x128xf32, #tpu.memory_space<vmem>>, vector<1x18x16x128xf32>,
    %c0_86 = arith.constant 0 : index
    %c0_87 = arith.constant 0 : index
    %c0_88 = arith.constant 0 : index
    %c0_89 = arith.constant 0 : index
    %62 = vector.load %arg17[%c0_86, %c0_87, %c0_88, %c0_89] : memref<3x18x16x128xf32, #tpu.memory_space<vmem>>, vector<1x16x16x128xf32>
    %63 = vector.shape_cast %62 : vector<1x16x16x128xf32> to vector<16x16x128xf32>
    %64 = vector.shape_cast %63 : vector<16x16x128xf32> to vector<256x128xf32>
    %c0_90 = arith.constant 0 : index
    %c0_91 = arith.constant 0 : index
    %c0_92 = arith.constant 0 : index
    %65 = vector.load %arg4[%c0_90, %c0_91, %c0_92] : memref<9x1x128xf32, #tpu.memory_space<vmem>>, vector<1x1x128xf32>
    %66 = vector.shape_cast %65 : vector<1x1x128xf32> to vector<1x128xf32>
    %67 = vector.broadcast %66 : vector<1x128xf32> to vector<256x128xf32>
    %68 = arith.mulf %64, %67 : vector<256x128xf32>
    %c1_93 = arith.constant 1 : index
    %c0_94 = arith.constant 0 : index
    %c0_95 = arith.constant 0 : index
    %c0_96 = arith.constant 0 : index
    %69 = vector.load %arg17[%c1_93, %c0_94, %c0_95, %c0_96] : memref<3x18x16x128xf32, #tpu.memory_space<vmem>>, vector<1x16x16x128xf32>
    %70 = vector.shape_cast %69 : vector<1x16x16x128xf32> to vector<16x16x128xf32>
    %71 = vector.shape_cast %70 : vector<16x16x128xf32> to vector<256x128xf32>
    %c1_97 = arith.constant 1 : index
    %c0_98 = arith.constant 0 : index
    %c0_99 = arith.constant 0 : index
    %72 = vector.load %arg4[%c1_97, %c0_98, %c0_99] : memref<9x1x128xf32, #tpu.memory_space<vmem>>, vector<1x1x128xf32>
    %73 = vector.shape_cast %72 : vector<1x1x128xf32> to vector<1x128xf32>
    %74 = vector.broadcast %73 : vector<1x128xf32> to vector<256x128xf32>
    %75 = arith.mulf %71, %74 : vector<256x128xf32>
    %76 = arith.addf %68, %75 : vector<256x128xf32>
    %c2_100 = arith.constant 2 : index
    %c0_101 = arith.constant 0 : index
    %c0_102 = arith.constant 0 : index
    %c0_103 = arith.constant 0 : index
    %77 = vector.load %arg17[%c2_100, %c0_101, %c0_102, %c0_103] : memref<3x18x16x128xf32, #tpu.memory_space<vmem>>, vector<1x16x16x128xf32>
    %78 = vector.shape_cast %77 : vector<1x16x16x128xf32> to vector<16x16x128xf32>
    %79 = vector.shape_cast %78 : vector<16x16x128xf32> to vector<256x128xf32>
    %c2_104 = arith.constant 2 : index
    %c0_105 = arith.constant 0 : index
    %c0_106 = arith.constant 0 : index
    %80 = vector.load %arg4[%c2_104, %c0_105, %c0_106] : memref<9x1x128xf32, #tpu.memory_space<vmem>>, vector<1x1x128xf32>
    %81 = vector.shape_cast %80 : vector<1x1x128xf32> to vector<1x128xf32>
    %82 = vector.broadcast %81 : vector<1x128xf32> to vector<256x128xf32>
    %83 = arith.mulf %79, %82 : vector<256x128xf32>
    %84 = arith.addf %76, %83 : vector<256x128xf32>
    %c0_107 = arith.constant 0 : index
    %c1_108 = arith.constant 1 : index
    %c0_109 = arith.constant 0 : index
    %c0_110 = arith.constant 0 : index
    %85 = vector.load %arg17[%c0_107, %c1_108, %c0_109, %c0_110] : memref<3x18x16x128xf32, #tpu.memory_space<vmem>>, vector<1x16x16x128xf32>
    %86 = vector.shape_cast %85 : vector<1x16x16x128xf32> to vector<16x16x128xf32>
    %87 = vector.shape_cast %86 : vector<16x16x128xf32> to vector<256x128xf32>
    %c3 = arith.constant 3 : index
    %c0_111 = arith.constant 0 : index
    %c0_112 = arith.constant 0 : index
    %88 = vector.load %arg4[%c3, %c0_111, %c0_112] : memref<9x1x128xf32, #tpu.memory_space<vmem>>, vector<1x1x128xf32>
    %89 = vector.shape_cast %88 : vector<1x1x128xf32> to vector<1x128xf32>
    %90 = vector.broadcast %89 : vector<1x128xf32> to vector<256x128xf32>
    %91 = arith.mulf %87, %90 : vector<256x128xf32>
    %92 = arith.addf %84, %91 : vector<256x128xf32>
    %c1_113 = arith.constant 1 : index
    %c1_114 = arith.constant 1 : index
    %c0_115 = arith.constant 0 : index
    %c0_116 = arith.constant 0 : index
    %93 = vector.load %arg17[%c1_113, %c1_114, %c0_115, %c0_116] : memref<3x18x16x128xf32, #tpu.memory_space<vmem>>, vector<1x16x16x128xf32>
    %94 = vector.shape_cast %93 : vector<1x16x16x128xf32> to vector<16x16x128xf32>
    %95 = vector.shape_cast %94 : vector<16x16x128xf32> to vector<256x128xf32>
    %c4 = arith.constant 4 : index
    %c0_117 = arith.constant 0 : index
    %c0_118 = arith.constant 0 : index
    %96 = vector.load %arg4[%c4, %c0_117, %c0_118] : memref<9x1x128xf32, #tpu.memory_space<vmem>>, vector<1x1x128xf32>
    %97 = vector.shape_cast %96 : vector<1x1x128xf32> to vector<1x128xf32>
    %98 = vector.broadcast %97 : vector<1x128xf32> to vector<256x128xf32>
    %99 = arith.mulf %95, %98 : vector<256x128xf32>
    %100 = arith.addf %92, %99 : vector<256x128xf32>
    %c2_119 = arith.constant 2 : index
    %c1_120 = arith.constant 1 : index
    %c0_121 = arith.constant 0 : index
    %c0_122 = arith.constant 0 : index
    %101 = vector.load %arg17[%c2_119, %c1_120, %c0_121, %c0_122] : memref<3x18x16x128xf32, #tpu.memory_space<vmem>>, vector<1x16x16x128xf32>
    %102 = vector.shape_cast %101 : vector<1x16x16x128xf32> to vector<16x16x128xf32>
    %103 = vector.shape_cast %102 : vector<16x16x128xf32> to vector<256x128xf32>
    %c5 = arith.constant 5 : index
    %c0_123 = arith.constant 0 : index
    %c0_124 = arith.constant 0 : index
    %104 = vector.load %arg4[%c5, %c0_123, %c0_124] : memref<9x1x128xf32, #tpu.memory_space<vmem>>, vector<1x1x128xf32>
    %105 = vector.shape_cast %104 : vector<1x1x128xf32> to vector<1x128xf32>
    %106 = vector.broadcast %105 : vector<1x128xf32> to vector<256x128xf32>
    %107 = arith.mulf %103, %106 : vector<256x128xf32>
    %108 = arith.addf %100, %107 : vector<256x128xf32>
    %c0_125 = arith.constant 0 : index
    %c2_126 = arith.constant 2 : index
    %c0_127 = arith.constant 0 : index
    %c0_128 = arith.constant 0 : index
    %109 = vector.load %arg17[%c0_125, %c2_126, %c0_127, %c0_128] : memref<3x18x16x128xf32, #tpu.memory_space<vmem>>, vector<1x16x16x128xf32>
    %110 = vector.shape_cast %109 : vector<1x16x16x128xf32> to vector<16x16x128xf32>
    %111 = vector.shape_cast %110 : vector<16x16x128xf32> to vector<256x128xf32>
    %c6 = arith.constant 6 : index
    %c0_129 = arith.constant 0 : index
    %c0_130 = arith.constant 0 : index
    %112 = vector.load %arg4[%c6, %c0_129, %c0_130] : memref<9x1x128xf32, #tpu.memory_space<vmem>>, vector<1x1x128xf32>
    %113 = vector.shape_cast %112 : vector<1x1x128xf32> to vector<1x128xf32>
    %114 = vector.broadcast %113 : vector<1x128xf32> to vector<256x128xf32>
    %115 = arith.mulf %111, %114 : vector<256x128xf32>
    %116 = arith.addf %108, %115 : vector<256x128xf32>
    %c1_131 = arith.constant 1 : index
    %c2_132 = arith.constant 2 : index
    %c0_133 = arith.constant 0 : index
    %c0_134 = arith.constant 0 : index
    %117 = vector.load %arg17[%c1_131, %c2_132, %c0_133, %c0_134] : memref<3x18x16x128xf32, #tpu.memory_space<vmem>>, vector<1x16x16x128xf32>
    %118 = vector.shape_cast %117 : vector<1x16x16x128xf32> to vector<16x16x128xf32>
    %119 = vector.shape_cast %118 : vector<16x16x128xf32> to vector<256x128xf32>
    %c7_135 = arith.constant 7 : index
    %c0_136 = arith.constant 0 : index
    %c0_137 = arith.constant 0 : index
    %120 = vector.load %arg4[%c7_135, %c0_136, %c0_137] : memref<9x1x128xf32, #tpu.memory_space<vmem>>, vector<1x1x128xf32>
    %121 = vector.shape_cast %120 : vector<1x1x128xf32> to vector<1x128xf32>
    %122 = vector.broadcast %121 : vector<1x128xf32> to vector<256x128xf32>
    %123 = arith.mulf %119, %122 : vector<256x128xf32>
    %124 = arith.addf %116, %123 : vector<256x128xf32>
    %c2_138 = arith.constant 2 : index
    %c2_139 = arith.constant 2 : index
    %c0_140 = arith.constant 0 : index
    %c0_141 = arith.constant 0 : index
    %125 = vector.load %arg17[%c2_138, %c2_139, %c0_140, %c0_141] : memref<3x18x16x128xf32, #tpu.memory_space<vmem>>, vector<1x16x16x128xf32>
    %126 = vector.shape_cast %125 : vector<1x16x16x128xf32> to vector<16x16x128xf32>
    %127 = vector.shape_cast %126 : vector<16x16x128xf32> to vector<256x128xf32>
    %c8_142 = arith.constant 8 : index
    %c0_143 = arith.constant 0 : index
    %c0_144 = arith.constant 0 : index
    %128 = vector.load %arg4[%c8_142, %c0_143, %c0_144] : memref<9x1x128xf32, #tpu.memory_space<vmem>>, vector<1x1x128xf32>
    %129 = vector.shape_cast %128 : vector<1x1x128xf32> to vector<1x128xf32>
    %130 = vector.broadcast %129 : vector<1x128xf32> to vector<256x128xf32>
    %131 = arith.mulf %127, %130 : vector<256x128xf32>
    %132 = arith.addf %124, %131 : vector<256x128xf32>
    %cst_145 = arith.constant 0.000000e+00 : f32
    %133 = vector.broadcast %cst_145 : f32 to vector<256x128xf32>
    %134 = arith.maximumf %132, %133 : vector<256x128xf32>
    %c0_146 = arith.constant 0 : index
    %c0_147 = arith.constant 0 : index
    %135 = vector.load %arg5[%c0_146, %c0_147] : memref<128x128xf32, #tpu.memory_space<vmem>>, vector<128x128xf32>
    %cst_148 = arith.constant dense<0.000000e+00> : vector<256x128xf32>
    %136 = tpu.matmul %134, %135, %cst_148 {dimension_numbers = #tpu.dot_dimension_numbers<[1], [0], [0], [1], [0, 0, 1, 1], [], []>} : vector<256x128xf32>, vector<128x128xf32>, vector<256x128xf32> -> vector<256x128xf32>
    %cst_149 = arith.constant dense<0.000000e+00> : vector<128xf32>
    %137 = vector.multi_reduction <add>, %136, %cst_149 [0] : vector<256x128xf32> to vector<128xf32>
    %138 = vector.shape_cast %137 : vector<128xf32> to vector<1x128xf32>
    %cst_150 = arith.constant 2.560000e+02 : f32
    %139 = vector.broadcast %cst_150 : f32 to vector<1x128xf32>
    %140 = arith.divf %138, %139 : vector<1x128xf32>
    %c0_151 = arith.constant 0 : index
    %c0_152 = arith.constant 0 : index
    %141 = vector.load %arg6[%c0_151, %c0_152] : memref<1x128xf32, #tpu.memory_space<vmem>>, vector<1x128xf32>
    %142 = arith.mulf %140, %141 : vector<1x128xf32>
    %cst_153 = arith.constant dense<0.000000e+00> : vector<1xf32>
    %143 = vector.multi_reduction <add>, %142, %cst_153 [1] : vector<1x128xf32> to vector<1xf32>
    %144 = vector.shape_cast %143 : vector<1xf32> to vector<1x1xf32>
    %c0_154 = arith.constant 0 : index
    %c0_155 = arith.constant 0 : index
    %145 = vector.load %arg7[%c0_154, %c0_155] : memref<1x1xf32, #tpu.memory_space<vmem>>, vector<1x1xf32>
    %146 = arith.addf %144, %145 : vector<1x1xf32>
    %cst_156 = arith.constant 0.000000e+00 : f32
    %147 = vector.broadcast %cst_156 : f32 to vector<1x1xf32>
    %148 = arith.subf %147, %146 : vector<1x1xf32>
    %149 = math.exp %148 : vector<1x1xf32>
    %cst_157 = arith.constant 1.000000e+00 : f32
    %150 = vector.broadcast %cst_157 : f32 to vector<1x1xf32>
    %151 = arith.addf %150, %149 : vector<1x1xf32>
    %cst_158 = arith.constant 1.000000e+00 : f32
    %152 = vector.broadcast %cst_158 : f32 to vector<1x1xf32>
    %153 = arith.divf %152, %151 : vector<1x1xf32>
    %154 = vector.broadcast %153 : vector<1x1xf32> to vector<256x128xf32>
    %155 = arith.mulf %136, %154 : vector<256x128xf32>
    %c0_159 = arith.constant 0 : index
    %c0_160 = arith.constant 0 : index
    %156 = vector.load %arg8[%c0_159, %c0_160] : memref<128x128xf32, #tpu.memory_space<vmem>>, vector<128x128xf32>
    %cst_161 = arith.constant dense<0.000000e+00> : vector<256x128xf32>
    %157 = tpu.matmul %155, %156, %cst_161 {dimension_numbers = #tpu.dot_dimension_numbers<[1], [0], [0], [1], [0, 0, 1, 1], [], []>} : vector<256x128xf32>, vector<128x128xf32>, vector<256x128xf32> -> vector<256x128xf32>
    %158 = vector.shape_cast %157 : vector<256x128xf32> to vector<16x16x128xf32>
    %c1_162 = arith.constant 1 : index
    %c8_163 = arith.constant 8 : index
    %c0_164 = arith.constant 0 : index
    %159 = vector.load %arg16[%c1_162, %c8_163, %c0_164] : memref<18x32x128xf32, #tpu.memory_space<vmem>>, vector<16x16x128xf32>
    tpu.vector_store %arg16[%c1_162, %c8_163, %c0_164], %158 {strides = array<i32>} : memref<18x32x128xf32, #tpu.memory_space<vmem>>, vector<16x16x128xf32>,
    %c0_165 = arith.constant 0 : index
    %c7_166 = arith.constant 7 : index
    %c0_167 = arith.constant 0 : index
    %160 = vector.load %arg16[%c0_165, %c7_166, %c0_167] : memref<18x32x128xf32, #tpu.memory_space<vmem>>, vector<18x16x128xf32>
    %c0_168 = arith.constant 0 : index
    %c0_169 = arith.constant 0 : index
    %c0_170 = arith.constant 0 : index
    %c0_171 = arith.constant 0 : index
    %161 = vector.load %arg17[%c0_168, %c0_169, %c0_170, %c0_171] : memref<3x18x16x128xf32, #tpu.memory_space<vmem>>, vector<1x18x16x128xf32>
    %162 = vector.shape_cast %161 : vector<1x18x16x128xf32> to vector<18x16x128xf32>
    %163 = vector.shape_cast %160 : vector<18x16x128xf32> to vector<1x18x16x128xf32>
    tpu.vector_store %arg17[%c0_168, %c0_169, %c0_170, %c0_171], %163 {strides = array<i32>} : memref<3x18x16x128xf32, #tpu.memory_space<vmem>>, vector<1x18x16x128xf32>,
    %c0_172 = arith.constant 0 : index
    %c8_173 = arith.constant 8 : index
    %c0_174 = arith.constant 0 : index
    %164 = vector.load %arg16[%c0_172, %c8_173, %c0_174] : memref<18x32x128xf32, #tpu.memory_space<vmem>>, vector<18x16x128xf32>
    %c1_175 = arith.constant 1 : index
    %c0_176 = arith.constant 0 : index
    %c0_177 = arith.constant 0 : index
    %c0_178 = arith.constant 0 : index
    %165 = vector.load %arg17[%c1_175, %c0_176, %c0_177, %c0_178] : memref<3x18x16x128xf32, #tpu.memory_space<vmem>>, vector<1x18x16x128xf32>
    %166 = vector.shape_cast %165 : vector<1x18x16x128xf32> to vector<18x16x128xf32>
    %167 = vector.shape_cast %164 : vector<18x16x128xf32> to vector<1x18x16x128xf32>
    tpu.vector_store %arg17[%c1_175, %c0_176, %c0_177, %c0_178], %167 {strides = array<i32>} : memref<3x18x16x128xf32, #tpu.memory_space<vmem>>, vector<1x18x16x128xf32>,
    %c0_179 = arith.constant 0 : index
    %c9_180 = arith.constant 9 : index
    %c0_181 = arith.constant 0 : index
    %168 = vector.load %arg16[%c0_179, %c9_180, %c0_181] : memref<18x32x128xf32, #tpu.memory_space<vmem>>, vector<18x16x128xf32>
    %c2_182 = arith.constant 2 : index
    %c0_183 = arith.constant 0 : index
    %c0_184 = arith.constant 0 : index
    %c0_185 = arith.constant 0 : index
    %169 = vector.load %arg17[%c2_182, %c0_183, %c0_184, %c0_185] : memref<3x18x16x128xf32, #tpu.memory_space<vmem>>, vector<1x18x16x128xf32>
    %170 = vector.shape_cast %169 : vector<1x18x16x128xf32> to vector<18x16x128xf32>
    %171 = vector.shape_cast %168 : vector<18x16x128xf32> to vector<1x18x16x128xf32>
    tpu.vector_store %arg17[%c2_182, %c0_183, %c0_184, %c0_185], %171 {strides = array<i32>} : memref<3x18x16x128xf32, #tpu.memory_space<vmem>>, vector<1x18x16x128xf32>,
    %c0_186 = arith.constant 0 : index
    %c0_187 = arith.constant 0 : index
    %c0_188 = arith.constant 0 : index
    %c0_189 = arith.constant 0 : index
    %172 = vector.load %arg17[%c0_186, %c0_187, %c0_188, %c0_189] : memref<3x18x16x128xf32, #tpu.memory_space<vmem>>, vector<1x16x16x128xf32>
    %173 = vector.shape_cast %172 : vector<1x16x16x128xf32> to vector<16x16x128xf32>
    %174 = vector.shape_cast %173 : vector<16x16x128xf32> to vector<256x128xf32>
    %c1_190 = arith.constant 1 : index
    %c0_191 = arith.constant 0 : index
    %c0_192 = arith.constant 0 : index
    %c0_193 = arith.constant 0 : index
    %175 = vector.load %arg17[%c1_190, %c0_191, %c0_192, %c0_193] : memref<3x18x16x128xf32, #tpu.memory_space<vmem>>, vector<1x16x16x128xf32>
    %176 = vector.shape_cast %175 : vector<1x16x16x128xf32> to vector<16x16x128xf32>
    %177 = vector.shape_cast %176 : vector<16x16x128xf32> to vector<256x128xf32>
    %c2_194 = arith.constant 2 : index
    %c0_195 = arith.constant 0 : index
    %c0_196 = arith.constant 0 : index
    %c0_197 = arith.constant 0 : index
    %178 = vector.load %arg17[%c2_194, %c0_195, %c0_196, %c0_197] : memref<3x18x16x128xf32, #tpu.memory_space<vmem>>, vector<1x16x16x128xf32>
    %179 = vector.shape_cast %178 : vector<1x16x16x128xf32> to vector<16x16x128xf32>
    %180 = vector.shape_cast %179 : vector<16x16x128xf32> to vector<256x128xf32>
    %c0_198 = arith.constant 0 : index
    %c1_199 = arith.constant 1 : index
    %c0_200 = arith.constant 0 : index
    %c0_201 = arith.constant 0 : index
    %181 = vector.load %arg17[%c0_198, %c1_199, %c0_200, %c0_201] : memref<3x18x16x128xf32, #tpu.memory_space<vmem>>, vector<1x16x16x128xf32>
    %182 = vector.shape_cast %181 : vector<1x16x16x128xf32> to vector<16x16x128xf32>
    %183 = vector.shape_cast %182 : vector<16x16x128xf32> to vector<256x128xf32>
    %c1_202 = arith.constant 1 : index
    %c1_203 = arith.constant 1 : index
    %c0_204 = arith.constant 0 : index
    %c0_205 = arith.constant 0 : index
    %184 = vector.load %arg17[%c1_202, %c1_203, %c0_204, %c0_205] : memref<3x18x16x128xf32, #tpu.memory_space<vmem>>, vector<1x16x16x128xf32>
    %185 = vector.shape_cast %184 : vector<1x16x16x128xf32> to vector<16x16x128xf32>
    %186 = vector.shape_cast %185 : vector<16x16x128xf32> to vector<256x128xf32>
    %c2_206 = arith.constant 2 : index
    %c1_207 = arith.constant 1 : index
    %c0_208 = arith.constant 0 : index
    %c0_209 = arith.constant 0 : index
    %187 = vector.load %arg17[%c2_206, %c1_207, %c0_208, %c0_209] : memref<3x18x16x128xf32, #tpu.memory_space<vmem>>, vector<1x16x16x128xf32>
    %188 = vector.shape_cast %187 : vector<1x16x16x128xf32> to vector<16x16x128xf32>
    %189 = vector.shape_cast %188 : vector<16x16x128xf32> to vector<256x128xf32>
    %c0_210 = arith.constant 0 : index
    %c2_211 = arith.constant 2 : index
    %c0_212 = arith.constant 0 : index
    %c0_213 = arith.constant 0 : index
    %190 = vector.load %arg17[%c0_210, %c2_211, %c0_212, %c0_213] : memref<3x18x16x128xf32, #tpu.memory_space<vmem>>, vector<1x16x16x128xf32>
    %191 = vector.shape_cast %190 : vector<1x16x16x128xf32> to vector<16x16x128xf32>
    %192 = vector.shape_cast %191 : vector<16x16x128xf32> to vector<256x128xf32>
    %c1_214 = arith.constant 1 : index
    %c2_215 = arith.constant 2 : index
    %c0_216 = arith.constant 0 : index
    %c0_217 = arith.constant 0 : index
    %193 = vector.load %arg17[%c1_214, %c2_215, %c0_216, %c0_217] : memref<3x18x16x128xf32, #tpu.memory_space<vmem>>, vector<1x16x16x128xf32>
    %194 = vector.shape_cast %193 : vector<1x16x16x128xf32> to vector<16x16x128xf32>
    %195 = vector.shape_cast %194 : vector<16x16x128xf32> to vector<256x128xf32>
    %c2_218 = arith.constant 2 : index
    %c2_219 = arith.constant 2 : index
    %c0_220 = arith.constant 0 : index
    %c0_221 = arith.constant 0 : index
    %196 = vector.load %arg17[%c2_218, %c2_219, %c0_220, %c0_221] : memref<3x18x16x128xf32, #tpu.memory_space<vmem>>, vector<1x16x16x128xf32>
    %197 = vector.shape_cast %196 : vector<1x16x16x128xf32> to vector<16x16x128xf32>
    %198 = vector.shape_cast %197 : vector<16x16x128xf32> to vector<256x128xf32>
    %199 = tpu.concatenate %174, %177, %180, %183, %186, %189, %192, %195, %198 in 1 : vector<256x128xf32>, vector<256x128xf32>, vector<256x128xf32>, vector<256x128xf32>, vector<256x128xf32>, vector<256x128xf32>, vector<256x128xf32>, vector<256x128xf32>, vector<256x128xf32> -> vector<256x1152xf32>
    %c0_222 = arith.constant 0 : index
    %c0_223 = arith.constant 0 : index
    %200 = vector.load %arg9[%c0_222, %c0_223] : memref<1152x128xf32, #tpu.memory_space<vmem>>, vector<1152x128xf32>
    %cst_224 = arith.constant dense<0.000000e+00> : vector<256x128xf32>
    %201 = tpu.matmul %199, %200, %cst_224 {dimension_numbers = #tpu.dot_dimension_numbers<[1], [0], [0], [1], [0, 0, 1, 1], [], []>} : vector<256x1152xf32>, vector<1152x128xf32>, vector<256x128xf32> -> vector<256x128xf32>
    %c0_225 = arith.constant 0 : index
    %c0_226 = arith.constant 0 : index
    %202 = vector.load %arg10[%c0_225, %c0_226] : memref<1x128xf32, #tpu.memory_space<vmem>>, vector<1x128xf32>
    %203 = vector.broadcast %202 : vector<1x128xf32> to vector<256x128xf32>
    %204 = arith.addf %201, %203 : vector<256x128xf32>
    %cst_227 = arith.constant 0.000000e+00 : f32
    %205 = vector.broadcast %cst_227 : f32 to vector<256x128xf32>
    %206 = arith.maximumf %204, %205 : vector<256x128xf32>
    %207 = vector.shape_cast %206 : vector<256x128xf32> to vector<16x16x128xf32>
    %c1_228 = arith.constant 1 : index
    %c8_229 = arith.constant 8 : index
    %c0_230 = arith.constant 0 : index
    %208 = vector.load %arg16[%c1_228, %c8_229, %c0_230] : memref<18x32x128xf32, #tpu.memory_space<vmem>>, vector<16x16x128xf32>
    tpu.vector_store %arg16[%c1_228, %c8_229, %c0_230], %207 {strides = array<i32>} : memref<18x32x128xf32, #tpu.memory_space<vmem>>, vector<16x16x128xf32>,
    %c0_231 = arith.constant 0 : index
    %c7_232 = arith.constant 7 : index
    %c0_233 = arith.constant 0 : index
    %209 = vector.load %arg16[%c0_231, %c7_232, %c0_233] : memref<18x32x128xf32, #tpu.memory_space<vmem>>, vector<18x16x128xf32>
    %c0_234 = arith.constant 0 : index
    %c0_235 = arith.constant 0 : index
    %c0_236 = arith.constant 0 : index
    %c0_237 = arith.constant 0 : index
    %210 = vector.load %arg17[%c0_234, %c0_235, %c0_236, %c0_237] : memref<3x18x16x128xf32, #tpu.memory_space<vmem>>, vector<1x18x16x128xf32>
    %211 = vector.shape_cast %210 : vector<1x18x16x128xf32> to vector<18x16x128xf32>
    %212 = vector.shape_cast %209 : vector<18x16x128xf32> to vector<1x18x16x128xf32>
    tpu.vector_store %arg17[%c0_234, %c0_235, %c0_236, %c0_237], %212 {strides = array<i32>} : memref<3x18x16x128xf32, #tpu.memory_space<vmem>>, vector<1x18x16x128xf32>,
    %c0_238 = arith.constant 0 : index
    %c8_239 = arith.constant 8 : index
    %c0_240 = arith.constant 0 : index
    %213 = vector.load %arg16[%c0_238, %c8_239, %c0_240] : memref<18x32x128xf32, #tpu.memory_space<vmem>>, vector<18x16x128xf32>
    %c1_241 = arith.constant 1 : index
    %c0_242 = arith.constant 0 : index
    %c0_243 = arith.constant 0 : index
    %c0_244 = arith.constant 0 : index
    %214 = vector.load %arg17[%c1_241, %c0_242, %c0_243, %c0_244] : memref<3x18x16x128xf32, #tpu.memory_space<vmem>>, vector<1x18x16x128xf32>
    %215 = vector.shape_cast %214 : vector<1x18x16x128xf32> to vector<18x16x128xf32>
    %216 = vector.shape_cast %213 : vector<18x16x128xf32> to vector<1x18x16x128xf32>
    tpu.vector_store %arg17[%c1_241, %c0_242, %c0_243, %c0_244], %216 {strides = array<i32>} : memref<3x18x16x128xf32, #tpu.memory_space<vmem>>, vector<1x18x16x128xf32>,
    %c0_245 = arith.constant 0 : index
    %c9_246 = arith.constant 9 : index
    %c0_247 = arith.constant 0 : index
    %217 = vector.load %arg16[%c0_245, %c9_246, %c0_247] : memref<18x32x128xf32, #tpu.memory_space<vmem>>, vector<18x16x128xf32>
    %c2_248 = arith.constant 2 : index
    %c0_249 = arith.constant 0 : index
    %c0_250 = arith.constant 0 : index
    %c0_251 = arith.constant 0 : index
    %218 = vector.load %arg17[%c2_248, %c0_249, %c0_250, %c0_251] : memref<3x18x16x128xf32, #tpu.memory_space<vmem>>, vector<1x18x16x128xf32>
    %219 = vector.shape_cast %218 : vector<1x18x16x128xf32> to vector<18x16x128xf32>
    %220 = vector.shape_cast %217 : vector<18x16x128xf32> to vector<1x18x16x128xf32>
    tpu.vector_store %arg17[%c2_248, %c0_249, %c0_250, %c0_251], %220 {strides = array<i32>} : memref<3x18x16x128xf32, #tpu.memory_space<vmem>>, vector<1x18x16x128xf32>,
    %c0_252 = arith.constant 0 : index
    %c0_253 = arith.constant 0 : index
    %c0_254 = arith.constant 0 : index
    %c0_255 = arith.constant 0 : index
    %221 = vector.load %arg17[%c0_252, %c0_253, %c0_254, %c0_255] : memref<3x18x16x128xf32, #tpu.memory_space<vmem>>, vector<1x16x16x128xf32>
    %222 = vector.shape_cast %221 : vector<1x16x16x128xf32> to vector<16x16x128xf32>
    %223 = vector.shape_cast %222 : vector<16x16x128xf32> to vector<256x128xf32>
    %c1_256 = arith.constant 1 : index
    %c0_257 = arith.constant 0 : index
    %c0_258 = arith.constant 0 : index
    %c0_259 = arith.constant 0 : index
    %224 = vector.load %arg17[%c1_256, %c0_257, %c0_258, %c0_259] : memref<3x18x16x128xf32, #tpu.memory_space<vmem>>, vector<1x16x16x128xf32>
    %225 = vector.shape_cast %224 : vector<1x16x16x128xf32> to vector<16x16x128xf32>
    %226 = vector.shape_cast %225 : vector<16x16x128xf32> to vector<256x128xf32>
    %c2_260 = arith.constant 2 : index
    %c0_261 = arith.constant 0 : index
    %c0_262 = arith.constant 0 : index
    %c0_263 = arith.constant 0 : index
    %227 = vector.load %arg17[%c2_260, %c0_261, %c0_262, %c0_263] : memref<3x18x16x128xf32, #tpu.memory_space<vmem>>, vector<1x16x16x128xf32>
    %228 = vector.shape_cast %227 : vector<1x16x16x128xf32> to vector<16x16x128xf32>
    %229 = vector.shape_cast %228 : vector<16x16x128xf32> to vector<256x128xf32>
    %c0_264 = arith.constant 0 : index
    %c1_265 = arith.constant 1 : index
    %c0_266 = arith.constant 0 : index
    %c0_267 = arith.constant 0 : index
    %230 = vector.load %arg17[%c0_264, %c1_265, %c0_266, %c0_267] : memref<3x18x16x128xf32, #tpu.memory_space<vmem>>, vector<1x16x16x128xf32>
    %231 = vector.shape_cast %230 : vector<1x16x16x128xf32> to vector<16x16x128xf32>
    %232 = vector.shape_cast %231 : vector<16x16x128xf32> to vector<256x128xf32>
    %c1_268 = arith.constant 1 : index
    %c1_269 = arith.constant 1 : index
    %c0_270 = arith.constant 0 : index
    %c0_271 = arith.constant 0 : index
    %233 = vector.load %arg17[%c1_268, %c1_269, %c0_270, %c0_271] : memref<3x18x16x128xf32, #tpu.memory_space<vmem>>, vector<1x16x16x128xf32>
    %234 = vector.shape_cast %233 : vector<1x16x16x128xf32> to vector<16x16x128xf32>
    %235 = vector.shape_cast %234 : vector<16x16x128xf32> to vector<256x128xf32>
    %c2_272 = arith.constant 2 : index
    %c1_273 = arith.constant 1 : index
    %c0_274 = arith.constant 0 : index
    %c0_275 = arith.constant 0 : index
    %236 = vector.load %arg17[%c2_272, %c1_273, %c0_274, %c0_275] : memref<3x18x16x128xf32, #tpu.memory_space<vmem>>, vector<1x16x16x128xf32>
    %237 = vector.shape_cast %236 : vector<1x16x16x128xf32> to vector<16x16x128xf32>
    %238 = vector.shape_cast %237 : vector<16x16x128xf32> to vector<256x128xf32>
    %c0_276 = arith.constant 0 : index
    %c2_277 = arith.constant 2 : index
    %c0_278 = arith.constant 0 : index
    %c0_279 = arith.constant 0 : index
    %239 = vector.load %arg17[%c0_276, %c2_277, %c0_278, %c0_279] : memref<3x18x16x128xf32, #tpu.memory_space<vmem>>, vector<1x16x16x128xf32>
    %240 = vector.shape_cast %239 : vector<1x16x16x128xf32> to vector<16x16x128xf32>
    %241 = vector.shape_cast %240 : vector<16x16x128xf32> to vector<256x128xf32>
    %c1_280 = arith.constant 1 : index
    %c2_281 = arith.constant 2 : index
    %c0_282 = arith.constant 0 : index
    %c0_283 = arith.constant 0 : index
    %242 = vector.load %arg17[%c1_280, %c2_281, %c0_282, %c0_283] : memref<3x18x16x128xf32, #tpu.memory_space<vmem>>, vector<1x16x16x128xf32>
    %243 = vector.shape_cast %242 : vector<1x16x16x128xf32> to vector<16x16x128xf32>
    %244 = vector.shape_cast %243 : vector<16x16x128xf32> to vector<256x128xf32>
    %c2_284 = arith.constant 2 : index
    %c2_285 = arith.constant 2 : index
    %c0_286 = arith.constant 0 : index
    %c0_287 = arith.constant 0 : index
    %245 = vector.load %arg17[%c2_284, %c2_285, %c0_286, %c0_287] : memref<3x18x16x128xf32, #tpu.memory_space<vmem>>, vector<1x16x16x128xf32>
    %246 = vector.shape_cast %245 : vector<1x16x16x128xf32> to vector<16x16x128xf32>
    %247 = vector.shape_cast %246 : vector<16x16x128xf32> to vector<256x128xf32>
    %248 = tpu.concatenate %223, %226, %229, %232, %235, %238, %241, %244, %247 in 1 : vector<256x128xf32>, vector<256x128xf32>, vector<256x128xf32>, vector<256x128xf32>, vector<256x128xf32>, vector<256x128xf32>, vector<256x128xf32>, vector<256x128xf32>, vector<256x128xf32> -> vector<256x1152xf32>
    %c0_288 = arith.constant 0 : index
    %c0_289 = arith.constant 0 : index
    %249 = vector.load %arg11[%c0_288, %c0_289] : memref<1152x128xf32, #tpu.memory_space<vmem>>, vector<1152x128xf32>
    %cst_290 = arith.constant dense<0.000000e+00> : vector<256x128xf32>
    %250 = tpu.matmul %248, %249, %cst_290 {dimension_numbers = #tpu.dot_dimension_numbers<[1], [0], [0], [1], [0, 0, 1, 1], [], []>} : vector<256x1152xf32>, vector<1152x128xf32>, vector<256x128xf32> -> vector<256x128xf32>
    %c0_291 = arith.constant 0 : index
    %c0_292 = arith.constant 0 : index
    %251 = vector.load %arg12[%c0_291, %c0_292] : memref<1x128xf32, #tpu.memory_space<vmem>>, vector<1x128xf32>
    %252 = vector.broadcast %251 : vector<1x128xf32> to vector<256x128xf32>
    %253 = arith.addf %250, %252 : vector<256x128xf32>
    %cst_293 = arith.constant 0.000000e+00 : f32
    %254 = vector.broadcast %cst_293 : f32 to vector<256x128xf32>
    %255 = arith.maximumf %253, %254 : vector<256x128xf32>
    %c0_294 = arith.constant 0 : index
    %c0_295 = arith.constant 0 : index
    %256 = vector.load %arg13[%c0_294, %c0_295] : memref<128x3xf32, #tpu.memory_space<vmem>>, vector<128x3xf32>
    %cst_296 = arith.constant dense<0.000000e+00> : vector<256x3xf32>
    %257 = tpu.matmul %255, %256, %cst_296 {dimension_numbers = #tpu.dot_dimension_numbers<[1], [0], [0], [1], [0, 0, 1, 1], [], []>} : vector<256x128xf32>, vector<128x3xf32>, vector<256x3xf32> -> vector<256x3xf32>
    %c0_297 = arith.constant 0 : index
    %c0_298 = arith.constant 0 : index
    %258 = vector.load %arg14[%c0_297, %c0_298] : memref<1x3xf32, #tpu.memory_space<vmem>>, vector<1x3xf32>
    %259 = vector.broadcast %258 : vector<1x3xf32> to vector<256x3xf32>
    %260 = arith.addf %257, %259 : vector<256x3xf32>
    %cst_299 = arith.constant 0.000000e+00 : f32
    %261 = vector.broadcast %cst_299 : f32 to vector<256x3xf32>
    %262 = arith.subf %261, %260 : vector<256x3xf32>
    %263 = math.exp %262 : vector<256x3xf32>
    %cst_300 = arith.constant 1.000000e+00 : f32
    %264 = vector.broadcast %cst_300 : f32 to vector<256x3xf32>
    %265 = arith.addf %264, %263 : vector<256x3xf32>
    %cst_301 = arith.constant 1.000000e+00 : f32
    %266 = vector.broadcast %cst_301 : f32 to vector<256x3xf32>
    %267 = arith.divf %266, %265 : vector<256x3xf32>
    %c0_302 = arith.constant 0 : index
    %c0_303 = arith.constant 0 : index
    %c0_304 = arith.constant 0 : index
    %268 = vector.load %arg15[%c0_302, %c0_303, %c0_304] : memref<1x256x3xf32, #tpu.memory_space<vmem>>, vector<1x256x3xf32>
    %269 = vector.shape_cast %268 : vector<1x256x3xf32> to vector<256x3xf32>
    %270 = vector.shape_cast %267 : vector<256x3xf32> to vector<1x256x3xf32>
    tpu.vector_store %arg15[%c0_302, %c0_303, %c0_304], %270 {strides = array<i32>} : memref<1x256x3xf32, #tpu.memory_space<vmem>>, vector<1x256x3xf32>,
    return
  }
  func.func @transform_0(%arg0: i32) -> (i32, i32, i32, i32) {
    %c0_i32 = arith.constant 0 : i32
    %c0_i32_0 = arith.constant 0 : i32
    %c0_i32_1 = arith.constant 0 : i32
    %c0_i32_2 = arith.constant 0 : i32
    return %arg0, %c0_i32, %c0_i32_0, %c0_i32_1 : i32, i32, i32, i32
  }
  func.func @transform_1(%arg0: i32) -> (i32, i32) {
    %c0_i32 = arith.constant 0 : i32
    %c0_i32_0 = arith.constant 0 : i32
    %c0_i32_1 = arith.constant 0 : i32
    return %c0_i32, %c0_i32_0 : i32, i32
  }
  func.func @transform_2(%arg0: i32) -> (i32, i32) {
    %c0_i32 = arith.constant 0 : i32
    %c0_i32_0 = arith.constant 0 : i32
    %c0_i32_1 = arith.constant 0 : i32
    return %c0_i32, %c0_i32_0 : i32, i32
  }
  func.func @transform_3(%arg0: i32) -> (i32, i32, i32) {
    %c0_i32 = arith.constant 0 : i32
    %c0_i32_0 = arith.constant 0 : i32
    %c0_i32_1 = arith.constant 0 : i32
    %c0_i32_2 = arith.constant 0 : i32
    return %c0_i32, %c0_i32_0, %c0_i32_1 : i32, i32, i32
  }
  func.func @transform_4(%arg0: i32) -> (i32, i32) {
    %c0_i32 = arith.constant 0 : i32
    %c0_i32_0 = arith.constant 0 : i32
    %c0_i32_1 = arith.constant 0 : i32
    return %c0_i32, %c0_i32_0 : i32, i32
  }
  func.func @transform_5(%arg0: i32) -> (i32, i32) {
    %c0_i32 = arith.constant 0 : i32
    %c0_i32_0 = arith.constant 0 : i32
    %c0_i32_1 = arith.constant 0 : i32
    return %c0_i32, %c0_i32_0 : i32, i32
  }
  func.func @transform_6(%arg0: i32) -> (i32, i32) {
    %c0_i32 = arith.constant 0 : i32
    %c0_i32_0 = arith.constant 0 : i32
    %c0_i32_1 = arith.constant 0 : i32
    return %c0_i32, %c0_i32_0 : i32, i32
  }
  func.func @transform_7(%arg0: i32) -> (i32, i32) {
    %c0_i32 = arith.constant 0 : i32
    %c0_i32_0 = arith.constant 0 : i32
    %c0_i32_1 = arith.constant 0 : i32
    return %c0_i32, %c0_i32_0 : i32, i32
  }
  func.func @transform_8(%arg0: i32) -> (i32, i32) {
    %c0_i32 = arith.constant 0 : i32
    %c0_i32_0 = arith.constant 0 : i32
    %c0_i32_1 = arith.constant 0 : i32
    return %c0_i32, %c0_i32_0 : i32, i32
  }
  func.func @transform_9(%arg0: i32) -> (i32, i32) {
    %c0_i32 = arith.constant 0 : i32
    %c0_i32_0 = arith.constant 0 : i32
    %c0_i32_1 = arith.constant 0 : i32
    return %c0_i32, %c0_i32_0 : i32, i32
  }
  func.func @transform_10(%arg0: i32) -> (i32, i32) {
    %c0_i32 = arith.constant 0 : i32
    %c0_i32_0 = arith.constant 0 : i32
    %c0_i32_1 = arith.constant 0 : i32
    return %c0_i32, %c0_i32_0 : i32, i32
  }
  func.func @transform_11(%arg0: i32) -> (i32, i32) {
    %c0_i32 = arith.constant 0 : i32
    %c0_i32_0 = arith.constant 0 : i32
    %c0_i32_1 = arith.constant 0 : i32
    return %c0_i32, %c0_i32_0 : i32, i32
  }
  func.func @transform_12(%arg0: i32) -> (i32, i32) {
    %c0_i32 = arith.constant 0 : i32
    %c0_i32_0 = arith.constant 0 : i32
    %c0_i32_1 = arith.constant 0 : i32
    return %c0_i32, %c0_i32_0 : i32, i32
  }
  func.func @transform_13(%arg0: i32) -> (i32, i32) {
    %c0_i32 = arith.constant 0 : i32
    %c0_i32_0 = arith.constant 0 : i32
    %c0_i32_1 = arith.constant 0 : i32
    return %c0_i32, %c0_i32_0 : i32, i32
  }
  func.func @transform_14(%arg0: i32) -> (i32, i32, i32) {
    %c0_i32 = arith.constant 0 : i32
    %c0_i32_0 = arith.constant 0 : i32
    %c0_i32_1 = arith.constant 0 : i32
    return %arg0, %c0_i32, %c0_i32_0 : i32, i32, i32
  }
}

</mosaic_0001>

<llo_original>
// kernel: tpu_custom_call.1
$region0: #{tpu_custom_call.1}
  #allocation0 [shape = 'u32[]', space=smem, size = 0x4, offset = 0x4, fixed_abs, tag = 'smem constant byte address 0x4 - core index']
  #allocation1 [shape = 'u32[144,128]{1,0:T(1,128)}', space=vmem, size = 0x12000, scoped, tag = 'internal scratch']
  #allocation2 [shape = 'f32[18,32,128]{2,1,0:T(8,128)}', space=vmem, size = 0x48000, scoped, tag = 'scratch operand']
  #allocation3 [shape = 'f32[3,18,16,128]{3,2,1,0:T(8,128)}', space=vmem, size = 0x6c000, scoped, tag = 'scratch operand']
  #allocation4 [shape = 'f32[1,1]{1,0:T(1,128)S(1)}', space=vmem, size = 0x200, scoped, tag = 'scoped memory for tpu_custom_call.1']
  %s0 = inlined_call_operand.hbm [shape: f32[2,18,32,128], index: 0, kind: input, shape index: {}]
  %s1 = inlined_call_operand.hbm [shape: f32[1152,128], index: 1, kind: input, shape index: {}]
  %s2 = inlined_call_operand.vmem [shape: f32[1,128], index: 2, kind: input, shape index: {}]
  %s3 = inlined_call_operand.vmem [shape: f32[9,1,128], index: 3, kind: input, shape index: {}]
  %s4 = inlined_call_operand.vmem [shape: f32[128,128], index: 4, kind: input, shape index: {}]
  %s5 = inlined_call_operand.vmem [shape: f32[1,128], index: 5, kind: input, shape index: {}]
  %s6 = inlined_call_operand.<no memory space> [shape: f32[1,1], index: 6, kind: input, shape index: {}]
  %s7 = inlined_call_operand.hbm [shape: f32[128,128], index: 7, kind: input, shape index: {}]
  %s8 = inlined_call_operand.hbm [shape: f32[1152,128], index: 8, kind: input, shape index: {}]
  %s9 = inlined_call_operand.vmem [shape: f32[1,128], index: 9, kind: input, shape index: {}]
  %s10 = inlined_call_operand.hbm [shape: f32[1152,128], index: 10, kind: input, shape index: {}]
  %s11 = inlined_call_operand.vmem [shape: f32[1,128], index: 11, kind: input, shape index: {}]
  %s12 = inlined_call_operand.vmem [shape: f32[128,3], index: 12, kind: input, shape index: {}]
  %s13 = inlined_call_operand.vmem [shape: f32[1,3], index: 13, kind: input, shape index: {}]
  %s14 = inlined_call_operand.vmem [shape: f32[2,256,3], index: 14, kind: output, shape index: {}]
  %s15 = sld [smem:[#allocation0]]
  $region109: #{tpu_custom_call.1} parent=0
    _
  %s17 = ssub.s32 1, %s15
  %s18 = scalar_select 0, %s17, %s15
  %v19 = vstv %s6
  %20 = vst [vmem:[#allocation4] sm:$0x1] %v19
  $region1: #{tpu_custom_call.1} parent=0
    #allocation5 [shape = 'u8[589824]{0}', space=vmem, size = 0x90000, scoped, tag = 'input window, operand 0']
    #allocation6 [shape = 's32[2]{0}', space=sflag, size = 0x8, scoped, tag = 'scoped memory for tpu_custom_call.1']
    #allocation7 [shape = 'u8[589824]{0}', space=vmem, size = 0x90000, scoped, tag = 'input window, operand 1, single buffered']
    #allocation8 [shape = 's32[1]{0}', space=sflag, size = 0x4, scoped, tag = 'scoped memory for tpu_custom_call.1']
    #allocation9 [shape = 'u8[65536]{0}', space=vmem, size = 0x10000, scoped, tag = 'input window, operand 7, single buffered']
    #allocation10 [shape = 'u8[589824]{0}', space=vmem, size = 0x90000, scoped, tag = 'input window, operand 8, single buffered']
    #allocation11 [shape = 's32[1]{0}', space=sflag, size = 0x4, scoped, tag = 'scoped memory for tpu_custom_call.1']
    #allocation12 [shape = 'u8[589824]{0}', space=vmem, size = 0x90000, scoped, tag = 'input window, operand 10, single buffered']
    %21 = vsyncpa [#allocation6], 0
    %s22 = scalar_lea.sflag [#allocation6], 1
    %23 = vsyncpa %s22, 0
    %24 = vsyncpa [#allocation8], 0
    %25 = vsyncpa [#allocation11], 0
    loop: start=0, step=1, limit=4
    $region2: #{tpu_custom_call.1} parent=1 // loop_pre_header
      _
    $region3: #{tpu_custom_call.1} parent=1 // loop_header
      %s27 = sphi 0, %s31
      %p28 = scmp.ge.s32.totalorder %s27, 4
      %s37 = sphi 0, %s39
      %s40 = sphi 0, %s37
      %s41 = sphi 0, %s40
      %s57 = sphi 0, %s41
      %s61 = sphi 0, %s61
      %s63 = sphi 0, %s61
      %s64 = sphi 0, %s63
      %s78 = sphi 0, %s64
      %s82 = sphi 0, %s82
      %s84 = sphi 0, %s82
      %s85 = sphi 0, %s84
      %s99 = sphi 0, %s85
      %s103 = sphi 0, %s103
      %s105 = sphi 0, %s103
      %s106 = sphi 0, %s105
      %s120 = sphi 0, %s106
      %s124 = sphi 0, %s124
      %s126 = sphi 0, %s124
      %s127 = sphi 0, %s126
      %s141 = sphi 0, %s127
      %s145 = sphi 0, %s145
      %s147 = sphi 0, %s145
      %s148 = sphi 0, %s147
      %s162 = sphi 0, %s148
      %s166 = sphi 0, %s166
      %s168 = sphi 0, %s166
      %s169 = sphi 0, %s168
      %s183 = sphi 0, %s169
      %s187 = sphi 0, %s187
      %s189 = sphi 0, %s187
      %s190 = sphi 0, %s189
      %s204 = sphi 0, %s190
      %s208 = sphi 0, %s208
      %s210 = sphi 0, %s208
      %s211 = sphi 0, %s210
      %s225 = sphi 0, %s211
      %s229 = sphi 0, %s229
      %s231 = sphi 0, %s229
      %s232 = sphi 0, %s231
      %s246 = sphi 0, %s232
      %s250 = sphi 0, %s250
      %s252 = sphi 0, %s250
      %s253 = sphi 0, %s252
      %s267 = sphi 0, %s253
      %s271 = sphi 0, %s271
      %s273 = sphi 0, %s271
      %s274 = sphi 0, %s273
      %s288 = sphi 0, %s274
      %s292 = sphi 0, %s292
      %s294 = sphi 0, %s292
      %s295 = sphi 0, %s294
      %s309 = sphi 0, %s295
      %s313 = sphi 0, %s313
      %s315 = sphi 0, %s313
      %s316 = sphi 0, %s315
      %s330 = sphi 0, %s316
      %s336 = sphi 0, %s338
      %s339 = sphi 0, %s336
      %s340 = sphi 0, %s339
      %s356 = sphi 0, %s340
    $region4: #{tpu_custom_call.1} parent=1 // loop_header_branch
      %30 = sbr.rel (%p28) target = $region8
    $region5: #{tpu_custom_call.1} parent=1 // loop_body
      %s32 = ssub.s32 %s27, 1
      %s33 = ssub.s32 %s27, 2
      %s34 = sadd.s32 %s27, 1
      %s35 = ssub.s32 %s27, %s34
      %p36 = scmp.eq.s32.totalorder %s35, 0
      %s38 = sadd.s32 %s37, 1
      %s39 = scalar_select %p36, %s37, %s38
      %p42 = pneg %p36
      %p43 = scmp.eq.s32.totalorder %s27, 1
      %p44 = por %p42, %p43
      %p45 = scmp.ne.s32.totalorder %s37, %s40
      %p46 = scmp.eq.s32.totalorder %s27, 0
      %p47 = por %p45, %p46
      %p48 = scmp.ne.s32.totalorder %s37, %s40
      %p49 = scmp.eq.s32.totalorder %s32, 1
      %p50 = por %p48, %p49
      %p51 = scmp.ne.s32.totalorder %s40, %s41
      %p52 = scmp.eq.s32.totalorder %s32, 0
      %p53 = por %p51, %p52
      %p54 = scmp.ne.s32.totalorder %s40, %s41
      %p55 = scmp.eq.s32.totalorder %s33, 1
      %p56 = por %p54, %p55
      %p58 = scmp.ne.s32.totalorder %s41, %s57
      %p59 = scmp.eq.s32.totalorder %s33, 0
      %p60 = por %p58, %p59
      %s62 = sadd.s32 %s61, 1
      %p65 = scmp.eq.s32.totalorder %s27, 1
      %p66 = scmp.ne.s32.totalorder %s61, %s63
      %p67 = scmp.eq.s32.totalorder %s27, 0
      %p68 = por %p66, %p67
      %p69 = scmp.ne.s32.totalorder %s61, %s63
      %p70 = scmp.eq.s32.totalorder %s32, 1
      %p71 = por %p69, %p70
      %p72 = scmp.ne.s32.totalorder %s63, %s64
      %p73 = scmp.eq.s32.totalorder %s32, 0
      %p74 = por %p72, %p73
      %p75 = scmp.ne.s32.totalorder %s63, %s64
      %p76 = scmp.eq.s32.totalorder %s33, 1
      %p77 = por %p75, %p76
      %p79 = scmp.ne.s32.totalorder %s64, %s78
      %p80 = scmp.eq.s32.totalorder %s33, 0
      %p81 = por %p79, %p80
      %s83 = sadd.s32 %s82, 1
      %p86 = scmp.eq.s32.totalorder %s27, 1
      %p87 = scmp.ne.s32.totalorder %s82, %s84
      %p88 = scmp.eq.s32.totalorder %s27, 0
      %p89 = por %p87, %p88
      %p90 = scmp.ne.s32.totalorder %s82, %s84
      %p91 = scmp.eq.s32.totalorder %s32, 1
      %p92 = por %p90, %p91
      %p93 = scmp.ne.s32.totalorder %s84, %s85
      %p94 = scmp.eq.s32.totalorder %s32, 0
      %p95 = por %p93, %p94
      %p96 = scmp.ne.s32.totalorder %s84, %s85
      %p97 = scmp.eq.s32.totalorder %s33, 1
      %p98 = por %p96, %p97
      %p100 = scmp.ne.s32.totalorder %s85, %s99
      %p101 = scmp.eq.s32.totalorder %s33, 0
      %p102 = por %p100, %p101
      %s104 = sadd.s32 %s103, 1
      %p107 = scmp.eq.s32.totalorder %s27, 1
      %p108 = scmp.ne.s32.totalorder %s103, %s105
      %p109 = scmp.eq.s32.totalorder %s27, 0
      %p110 = por %p108, %p109
      %p111 = scmp.ne.s32.totalorder %s103, %s105
      %p112 = scmp.eq.s32.totalorder %s32, 1
      %p113 = por %p111, %p112
      %p114 = scmp.ne.s32.totalorder %s105, %s106
      %p115 = scmp.eq.s32.totalorder %s32, 0
      %p116 = por %p114, %p115
      %p117 = scmp.ne.s32.totalorder %s105, %s106
      %p118 = scmp.eq.s32.totalorder %s33, 1
      %p119 = por %p117, %p118
      %p121 = scmp.ne.s32.totalorder %s106, %s120
      %p122 = scmp.eq.s32.totalorder %s33, 0
      %p123 = por %p121, %p122
      %s125 = sadd.s32 %s124, 1
      %p128 = scmp.eq.s32.totalorder %s27, 1
      %p129 = scmp.ne.s32.totalorder %s124, %s126
      %p130 = scmp.eq.s32.totalorder %s27, 0
      %p131 = por %p129, %p130
      %p132 = scmp.ne.s32.totalorder %s124, %s126
      %p133 = scmp.eq.s32.totalorder %s32, 1
      %p134 = por %p132, %p133
      %p135 = scmp.ne.s32.totalorder %s126, %s127
      %p136 = scmp.eq.s32.totalorder %s32, 0
      %p137 = por %p135, %p136
      %p138 = scmp.ne.s32.totalorder %s126, %s127
      %p139 = scmp.eq.s32.totalorder %s33, 1
      %p140 = por %p138, %p139
      %p142 = scmp.ne.s32.totalorder %s127, %s141
      %p143 = scmp.eq.s32.totalorder %s33, 0
      %p144 = por %p142, %p143
      %s146 = sadd.s32 %s145, 1
      %p149 = scmp.eq.s32.totalorder %s27, 1
      %p150 = scmp.ne.s32.totalorder %s145, %s147
      %p151 = scmp.eq.s32.totalorder %s27, 0
      %p152 = por %p150, %p151
      %p153 = scmp.ne.s32.totalorder %s145, %s147
      %p154 = scmp.eq.s32.totalorder %s32, 1
      %p155 = por %p153, %p154
      %p156 = scmp.ne.s32.totalorder %s147, %s148
      %p157 = scmp.eq.s32.totalorder %s32, 0
      %p158 = por %p156, %p157
      %p159 = scmp.ne.s32.totalorder %s147, %s148
      %p160 = scmp.eq.s32.totalorder %s33, 1
      %p161 = por %p159, %p160
      %p163 = scmp.ne.s32.totalorder %s148, %s162
      %p164 = scmp.eq.s32.totalorder %s33, 0
      %p165 = por %p163, %p164
      %s167 = sadd.s32 %s166, 1
      %p170 = scmp.eq.s32.totalorder %s27, 1
      %p171 = scmp.ne.s32.totalorder %s166, %s168
      %p172 = scmp.eq.s32.totalorder %s27, 0
      %p173 = por %p171, %p172
      %p174 = scmp.ne.s32.totalorder %s166, %s168
      %p175 = scmp.eq.s32.totalorder %s32, 1
      %p176 = por %p174, %p175
      %p177 = scmp.ne.s32.totalorder %s168, %s169
      %p178 = scmp.eq.s32.totalorder %s32, 0
      %p179 = por %p177, %p178
      %p180 = scmp.ne.s32.totalorder %s168, %s169
      %p181 = scmp.eq.s32.totalorder %s33, 1
      %p182 = por %p180, %p181
      %p184 = scmp.ne.s32.totalorder %s169, %s183
      %p185 = scmp.eq.s32.totalorder %s33, 0
      %p186 = por %p184, %p185
      %s188 = sadd.s32 %s187, 1
      %p191 = scmp.eq.s32.totalorder %s27, 1
      %p192 = scmp.ne.s32.totalorder %s187, %s189
      %p193 = scmp.eq.s32.totalorder %s27, 0
      %p194 = por %p192, %p193
      %p195 = scmp.ne.s32.totalorder %s187, %s189
      %p196 = scmp.eq.s32.totalorder %s32, 1
      %p197 = por %p195, %p196
      %p198 = scmp.ne.s32.totalorder %s189, %s190
      %p199 = scmp.eq.s32.totalorder %s32, 0
      %p200 = por %p198, %p199
      %p201 = scmp.ne.s32.totalorder %s189, %s190
      %p202 = scmp.eq.s32.totalorder %s33, 1
      %p203 = por %p201, %p202
      %p205 = scmp.ne.s32.totalorder %s190, %s204
      %p206 = scmp.eq.s32.totalorder %s33, 0
      %p207 = por %p205, %p206
      %s209 = sadd.s32 %s208, 1
      %p212 = scmp.eq.s32.totalorder %s27, 1
      %p213 = scmp.ne.s32.totalorder %s208, %s210
      %p214 = scmp.eq.s32.totalorder %s27, 0
      %p215 = por %p213, %p214
      %p216 = scmp.ne.s32.totalorder %s208, %s210
      %p217 = scmp.eq.s32.totalorder %s32, 1
      %p218 = por %p216, %p217
      %p219 = scmp.ne.s32.totalorder %s210, %s211
      %p220 = scmp.eq.s32.totalorder %s32, 0
      %p221 = por %p219, %p220
      %p222 = scmp.ne.s32.totalorder %s210, %s211
      %p223 = scmp.eq.s32.totalorder %s33, 1
      %p224 = por %p222, %p223
      %p226 = scmp.ne.s32.totalorder %s211, %s225
      %p227 = scmp.eq.s32.totalorder %s33, 0
      %p228 = por %p226, %p227
      %s230 = sadd.s32 %s229, 1
      %p233 = scmp.eq.s32.totalorder %s27, 1
      %p234 = scmp.ne.s32.totalorder %s229, %s231
      %p235 = scmp.eq.s32.totalorder %s27, 0
      %p236 = por %p234, %p235
      %p237 = scmp.ne.s32.totalorder %s229, %s231
      %p238 = scmp.eq.s32.totalorder %s32, 1
      %p239 = por %p237, %p238
      %p240 = scmp.ne.s32.totalorder %s231, %s232
      %p241 = scmp.eq.s32.totalorder %s32, 0
      %p242 = por %p240, %p241
      %p243 = scmp.ne.s32.totalorder %s231, %s232
      %p244 = scmp.eq.s32.totalorder %s33, 1
      %p245 = por %p243, %p244
      %p247 = scmp.ne.s32.totalorder %s232, %s246
      %p248 = scmp.eq.s32.totalorder %s33, 0
      %p249 = por %p247, %p248
      %s251 = sadd.s32 %s250, 1
      %p254 = scmp.eq.s32.totalorder %s27, 1
      %p255 = scmp.ne.s32.totalorder %s250, %s252
      %p256 = scmp.eq.s32.totalorder %s27, 0
      %p257 = por %p255, %p256
      %p258 = scmp.ne.s32.totalorder %s250, %s252
      %p259 = scmp.eq.s32.totalorder %s32, 1
      %p260 = por %p258, %p259
      %p261 = scmp.ne.s32.totalorder %s252, %s253
      %p262 = scmp.eq.s32.totalorder %s32, 0
      %p263 = por %p261, %p262
      %p264 = scmp.ne.s32.totalorder %s252, %s253
      %p265 = scmp.eq.s32.totalorder %s33, 1
      %p266 = por %p264, %p265
      %p268 = scmp.ne.s32.totalorder %s253, %s267
      %p269 = scmp.eq.s32.totalorder %s33, 0
      %p270 = por %p268, %p269
      %s272 = sadd.s32 %s271, 1
      %p275 = scmp.eq.s32.totalorder %s27, 1
      %p276 = scmp.ne.s32.totalorder %s271, %s273
      %p277 = scmp.eq.s32.totalorder %s27, 0
      %p278 = por %p276, %p277
      %p279 = scmp.ne.s32.totalorder %s271, %s273
      %p280 = scmp.eq.s32.totalorder %s32, 1
      %p281 = por %p279, %p280
      %p282 = scmp.ne.s32.totalorder %s273, %s274
      %p283 = scmp.eq.s32.totalorder %s32, 0
      %p284 = por %p282, %p283
      %p285 = scmp.ne.s32.totalorder %s273, %s274
      %p286 = scmp.eq.s32.totalorder %s33, 1
      %p287 = por %p285, %p286
      %p289 = scmp.ne.s32.totalorder %s274, %s288
      %p290 = scmp.eq.s32.totalorder %s33, 0
      %p291 = por %p289, %p290
      %s293 = sadd.s32 %s292, 1
      %p296 = scmp.eq.s32.totalorder %s27, 1
      %p297 = scmp.ne.s32.totalorder %s292, %s294
      %p298 = scmp.eq.s32.totalorder %s27, 0
      %p299 = por %p297, %p298
      %p300 = scmp.ne.s32.totalorder %s292, %s294
      %p301 = scmp.eq.s32.totalorder %s32, 1
      %p302 = por %p300, %p301
      %p303 = scmp.ne.s32.totalorder %s294, %s295
      %p304 = scmp.eq.s32.totalorder %s32, 0
      %p305 = por %p303, %p304
      %p306 = scmp.ne.s32.totalorder %s294, %s295
      %p307 = scmp.eq.s32.totalorder %s33, 1
      %p308 = por %p306, %p307
      %p310 = scmp.ne.s32.totalorder %s295, %s309
      %p311 = scmp.eq.s32.totalorder %s33, 0
      %p312 = por %p310, %p311
      %s314 = sadd.s32 %s313, 1
      %p317 = scmp.eq.s32.totalorder %s27, 1
      %p318 = scmp.ne.s32.totalorder %s313, %s315
      %p319 = scmp.eq.s32.totalorder %s27, 0
      %p320 = por %p318, %p319
      %p321 = scmp.ne.s32.totalorder %s313, %s315
      %p322 = scmp.eq.s32.totalorder %s32, 1
      %p323 = por %p321, %p322
      %p324 = scmp.ne.s32.totalorder %s315, %s316
      %p325 = scmp.eq.s32.totalorder %s32, 0
      %p326 = por %p324, %p325
      %p327 = scmp.ne.s32.totalorder %s315, %s316
      %p328 = scmp.eq.s32.totalorder %s33, 1
      %p329 = por %p327, %p328
      %p331 = scmp.ne.s32.totalorder %s316, %s330
      %p332 = scmp.eq.s32.totalorder %s33, 0
      %p333 = por %p331, %p332
      %s334 = ssub.s32 %s27, %s34
      %p335 = scmp.eq.s32.totalorder %s334, 0
      %s337 = sadd.s32 %s336, 1
      %s338 = scalar_select %p335, %s336, %s337
      %p341 = pneg %p335
      %p342 = scmp.eq.s32.totalorder %s27, 1
      %p343 = por %p341, %p342
      %p344 = scmp.ne.s32.totalorder %s336, %s339
      %p345 = scmp.eq.s32.totalorder %s27, 0
      %p346 = por %p344, %p345
      %p347 = scmp.ne.s32.totalorder %s336, %s339
      %p348 = scmp.eq.s32.totalorder %s32, 1
      %p349 = por %p347, %p348
      %p350 = scmp.ne.s32.totalorder %s339, %s340
      %p351 = scmp.eq.s32.totalorder %s32, 0
      %p352 = por %p350, %p351
      %p353 = scmp.ne.s32.totalorder %s339, %s340
      %p354 = scmp.eq.s32.totalorder %s33, 1
      %p355 = por %p353, %p354
      %p357 = scmp.ne.s32.totalorder %s340, %s356
      %p358 = scmp.eq.s32.totalorder %s33, 0
      %p359 = por %p357, %p358
      %p360 = scmp.le.s32.totalorder 1, %s27
      %p361 = scmp.lt.s32.totalorder %s27, 3
      %p362 = pnand %p360, %p361
      %p363 = pneg %p362
      // Predicated region
      $region9: #{tpu_custom_call.1} parent=5 // pred_check
        _
      $region10: #{tpu_custom_call.1} parent=5 // pred_check_branch
        %365 = sbr.rel (%p362) target = $region12
      $region11: #{tpu_custom_call.1} parent=5 // pred_region
        %s366 = ssub.s32 %s27, 1
        // Predicated region
        $region13: #{tpu_custom_call.1} parent=11 // pred_check
          %p367 = pneg %p74
        $region14: #{tpu_custom_call.1} parent=11 // pred_check_branch
          %369 = sbr.rel (%p367) target = $region16
        $region15: #{tpu_custom_call.1} parent=11 // pred_region
          %s371 = ssub.s32 18432, 18432
          %372 = vsyncadd [#allocation8], %s371
          %s373 = sshll.u32 [#allocation7], 4
          %s374 = int_to_ptr.vmem [resolvable:$true] %s373
          %379 = dma.hbm_to_vmem [thread:$0]  %s1, 18432, %s374, [#allocation8], 128, 128, 8
        $region16: #{tpu_custom_call.1} parent=11 // pred_fallthru
          _
        // Predicated region
        $region17: #{tpu_custom_call.1} parent=11 // pred_check
          %p380 = pneg %p95
        $region18: #{tpu_custom_call.1} parent=11 // pred_check_branch
          %382 = sbr.rel (%p380) target = $region20
        $region19: #{tpu_custom_call.1} parent=11 // pred_region
          _
        $region20: #{tpu_custom_call.1} parent=11 // pred_fallthru
          _
        // Predicated region
        $region21: #{tpu_custom_call.1} parent=11 // pred_check
          %p383 = pneg %p116
        $region22: #{tpu_custom_call.1} parent=11 // pred_check_branch
          %385 = sbr.rel (%p383) target = $region24
        $region23: #{tpu_custom_call.1} parent=11 // pred_region
          _
        $region24: #{tpu_custom_call.1} parent=11 // pred_fallthru
          _
        // Predicated region
        $region25: #{tpu_custom_call.1} parent=11 // pred_check
          %p386 = pneg %p137
        $region26: #{tpu_custom_call.1} parent=11 // pred_check_branch
          %388 = sbr.rel (%p386) target = $region28
        $region27: #{tpu_custom_call.1} parent=11 // pred_region
          _
        $region28: #{tpu_custom_call.1} parent=11 // pred_fallthru
          _
        // Predicated region
        $region29: #{tpu_custom_call.1} parent=11 // pred_check
          %p389 = pneg %p158
        $region30: #{tpu_custom_call.1} parent=11 // pred_check_branch
          %391 = sbr.rel (%p389) target = $region32
        $region31: #{tpu_custom_call.1} parent=11 // pred_region
          _
        $region32: #{tpu_custom_call.1} parent=11 // pred_fallthru
          _
        // Predicated region
        $region33: #{tpu_custom_call.1} parent=11 // pred_check
          %p392 = pneg %p179
        $region34: #{tpu_custom_call.1} parent=11 // pred_check_branch
          %394 = sbr.rel (%p392) target = $region36
        $region35: #{tpu_custom_call.1} parent=11 // pred_region
          _
        $region36: #{tpu_custom_call.1} parent=11 // pred_fallthru
          _
        // Predicated region
        $region37: #{tpu_custom_call.1} parent=11 // pred_check
          %p395 = pneg %p200
        $region38: #{tpu_custom_call.1} parent=11 // pred_check_branch
          %397 = sbr.rel (%p395) target = $region40
        $region39: #{tpu_custom_call.1} parent=11 // pred_region
          %s399 = ssub.s32 2048, 2048
          %400 = vsyncadd [#allocation8], %s399
          %s401 = sshll.u32 [#allocation9], 4
          %s402 = int_to_ptr.vmem [resolvable:$true] %s401
          %407 = dma.hbm_to_vmem [thread:$0]  %s7, 2048, %s402, [#allocation8], 128, 128, 8
        $region40: #{tpu_custom_call.1} parent=11 // pred_fallthru
          _
        // Predicated region
        $region41: #{tpu_custom_call.1} parent=11 // pred_check
          %p408 = pneg %p221
        $region42: #{tpu_custom_call.1} parent=11 // pred_check_branch
          %410 = sbr.rel (%p408) target = $region44
        $region43: #{tpu_custom_call.1} parent=11 // pred_region
          %s412 = ssub.s32 18432, 18432
          %413 = vsyncadd [#allocation11], %s412
          %s414 = sshll.u32 [#allocation10], 4
          %s415 = int_to_ptr.vmem [resolvable:$true] %s414
          %420 = dma.hbm_to_vmem [thread:$0]  %s8, 18432, %s415, [#allocation11], 128, 128, 8
        $region44: #{tpu_custom_call.1} parent=11 // pred_fallthru
          _
        // Predicated region
        $region45: #{tpu_custom_call.1} parent=11 // pred_check
          %p421 = pneg %p242
        $region46: #{tpu_custom_call.1} parent=11 // pred_check_branch
          %423 = sbr.rel (%p421) target = $region48
        $region47: #{tpu_custom_call.1} parent=11 // pred_region
          _
        $region48: #{tpu_custom_call.1} parent=11 // pred_fallthru
          _
        // Predicated region
        $region49: #{tpu_custom_call.1} parent=11 // pred_check
          %p424 = pneg %p263
        $region50: #{tpu_custom_call.1} parent=11 // pred_check_branch
          %426 = sbr.rel (%p424) target = $region52
        $region51: #{tpu_custom_call.1} parent=11 // pred_region
          %s428 = ssub.s32 18432, 18432
          %429 = vsyncadd [#allocation11], %s428
          %s430 = sshll.u32 [#allocation12], 4
          %s431 = int_to_ptr.vmem [resolvable:$true] %s430
          %436 = dma.hbm_to_vmem [thread:$0]  %s10, 18432, %s431, [#allocation11], 128, 128, 8
        $region52: #{tpu_custom_call.1} parent=11 // pred_fallthru
          _
        // Predicated region
        $region53: #{tpu_custom_call.1} parent=11 // pred_check
          %p437 = pneg %p284
        $region54: #{tpu_custom_call.1} parent=11 // pred_check_branch
          %439 = sbr.rel (%p437) target = $region56
        $region55: #{tpu_custom_call.1} parent=11 // pred_region
          _
        $region56: #{tpu_custom_call.1} parent=11 // pred_fallthru
          _
        // Predicated region
        $region57: #{tpu_custom_call.1} parent=11 // pred_check
          %p440 = pneg %p305
        $region58: #{tpu_custom_call.1} parent=11 // pred_check_branch
          %442 = sbr.rel (%p440) target = $region60
        $region59: #{tpu_custom_call.1} parent=11 // pred_region
          _
        $region60: #{tpu_custom_call.1} parent=11 // pred_fallthru
          _
        // Predicated region
        $region61: #{tpu_custom_call.1} parent=11 // pred_check
          %p443 = pneg %p326
        $region62: #{tpu_custom_call.1} parent=11 // pred_check_branch
          %445 = sbr.rel (%p443) target = $region64
        $region63: #{tpu_custom_call.1} parent=11 // pred_region
          _
        $region64: #{tpu_custom_call.1} parent=11 // pred_fallthru
          _
      $region12: #{tpu_custom_call.1} parent=5 // pred_fallthru
        _
      %p446 = scmp.lt.s32.totalorder %s27, 2
      // Predicated region
      $region65: #{tpu_custom_call.1} parent=5 // pred_check
        %p447 = pneg %p446
      $region66: #{tpu_custom_call.1} parent=5 // pred_check_branch
        %449 = sbr.rel (%p447) target = $region68
      $region67: #{tpu_custom_call.1} parent=5 // pred_region
        // Predicated region
        $region69: #{tpu_custom_call.1} parent=67 // pred_check
          %p450 = pneg %p47
        $region70: #{tpu_custom_call.1} parent=67 // pred_check_branch
          %452 = sbr.rel (%p450) target = $region72
        $region71: #{tpu_custom_call.1} parent=67 // pred_region
          %s453 = sand.u32 %s37, 1
          %s454 = scalar_lea.sflag [#allocation6], %s453
          %s455 = sand.u32 %s37, 1
          %s456 = smul.addr %s455, 576
          %s457 = scalar_lea.vmem [#allocation5], %s456
          %s459 = ssub.s32 9216, 9216
          %460 = vsyncadd %s454, %s459
          %s461 = smul.addr %s27, 72
          %s462 = smul.addr %s461, 128
          %s463 = scalar_lea.hbm %s0, %s462
          %s464 = sshll.u32 %s457, 4
          %s465 = int_to_ptr.vmem [resolvable:$true] %s464
          %470 = dma.hbm_to_vmem [thread:$0]  %s463, 9216, %s465, %s454, 128, 128, 8
        $region72: #{tpu_custom_call.1} parent=67 // pred_fallthru
          _
      $region68: #{tpu_custom_call.1} parent=5 // pred_fallthru
        _
      %p471 = scmp.le.s32.totalorder 1, %s27
      %p472 = scmp.lt.s32.totalorder %s27, 3
      %p473 = pnand %p471, %p472
      %p474 = pneg %p473
      // Predicated region
      $region73: #{tpu_custom_call.1} parent=5 // pred_check
        _
      $region74: #{tpu_custom_call.1} parent=5 // pred_check_branch
        %476 = sbr.rel (%p473) target = $region76
      $region75: #{tpu_custom_call.1} parent=5 // pred_region
        %s477 = ssub.s32 %s27, 1
        %s478 = sand.u32 %s40, 1
        %s479 = scalar_lea.sflag [#allocation6], %s478
        %s480 = sand.u32 %s40, 1
        %s481 = smul.addr %s480, 576
        %s482 = scalar_lea.vmem [#allocation5], %s481
        // Predicated region
        $region77: #{tpu_custom_call.1} parent=75 // pred_check
          %p483 = pneg %p53
        $region78: #{tpu_custom_call.1} parent=75 // pred_check_branch
          %485 = sbr.rel (%p483) target = $region80
        $region79: #{tpu_custom_call.1} parent=75 // pred_region
          %486 = dma.done %s479, 9216
        $region80: #{tpu_custom_call.1} parent=75 // pred_fallthru
          _
        // Predicated region
        $region81: #{tpu_custom_call.1} parent=75 // pred_check
          %p487 = pneg %p74
        $region82: #{tpu_custom_call.1} parent=75 // pred_check_branch
          %489 = sbr.rel (%p487) target = $region84
        $region83: #{tpu_custom_call.1} parent=75 // pred_region
          %490 = dma.done [#allocation8], 18432
        $region84: #{tpu_custom_call.1} parent=75 // pred_fallthru
          _
        // Predicated region
        $region85: #{tpu_custom_call.1} parent=75 // pred_check
          %p491 = pneg %p200
        $region86: #{tpu_custom_call.1} parent=75 // pred_check_branch
          %493 = sbr.rel (%p491) target = $region88
        $region87: #{tpu_custom_call.1} parent=75 // pred_region
          %494 = dma.done [#allocation8], 2048
        $region88: #{tpu_custom_call.1} parent=75 // pred_fallthru
          _
        // Predicated region
        $region89: #{tpu_custom_call.1} parent=75 // pred_check
          %p495 = pneg %p221
        $region90: #{tpu_custom_call.1} parent=75 // pred_check_branch
          %497 = sbr.rel (%p495) target = $region92
        $region91: #{tpu_custom_call.1} parent=75 // pred_region
          %498 = dma.done [#allocation11], 18432
        $region92: #{tpu_custom_call.1} parent=75 // pred_fallthru
          _
        // Predicated region
        $region93: #{tpu_custom_call.1} parent=75 // pred_check
          %p499 = pneg %p263
        $region94: #{tpu_custom_call.1} parent=75 // pred_check_branch
          %501 = sbr.rel (%p499) target = $region96
        $region95: #{tpu_custom_call.1} parent=75 // pred_region
          %502 = dma.done [#allocation11], 18432
        $region96: #{tpu_custom_call.1} parent=75 // pred_fallthru
          _
        %s503 = sand.u32 %s40, 1
        %s504 = scalar_lea.sflag [#allocation6], %s503
        %s505 = sand.u32 %s40, 1
        %s506 = smul.addr %s505, 576
        %s507 = scalar_lea.vmem [#allocation5], %s506
        %p508 = pneg %p53
        %p509 = pneg %p50
        %p510 = pneg %p74
        %p511 = pneg %p71
        %p512 = pneg %p95
        %p513 = pneg %p92
        %p514 = pneg %p116
        %p515 = pneg %p113
        %p516 = pneg %p137
        %p517 = pneg %p134
        %p518 = pneg %p158
        %p519 = pneg %p155
        %p520 = pneg %p179
        %p521 = pneg %p176
        %p522 = pneg %p200
        %p523 = pneg %p197
        %p524 = pneg %p221
        %p525 = pneg %p218
        %p526 = pneg %p242
        %p527 = pneg %p239
        %p528 = pneg %p263
        %p529 = pneg %p260
        %p530 = pneg %p284
        %p531 = pneg %p281
        %p532 = pneg %p305
        %p533 = pneg %p302
        %p534 = pneg %p326
        %p535 = pneg %p323
        %p536 = pneg %p352
        %p537 = pneg %p349
        %p538 = scmp.lt.s32.totalorder %s32, 1
        %s539 = scalar_select %p538, %s32, 1
        %s540 = smul.addr %s539, 32
        %s541 = smul.addr %s540, 8
        %s542 = scalar_lea.vmem %s14, %s541
        %p543 = scmp.lt.s32.totalorder %s32, 1
        %s544 = scalar_select %p543, %s32, 1
        %s545 = smul.addr %s544, 32
        %s546 = smul.addr %s545, 8
        %s547 = scalar_lea.vmem %s14, %s546
        %v548 = vld [vmem:[%s482] sm:$0xff]
        %v549 = vld [vmem:[%s482 + $0x8] sm:$0xff]
        %v550 = vld [vmem:[%s482 + $0x10] sm:$0xff]
        %v551 = vld [vmem:[%s482 + $0x18] sm:$0xff]
        %v552 = vld [vmem:[%s482 + $0x20] sm:$0xff]
        %v553 = vld [vmem:[%s482 + $0x28] sm:$0xff]
        %v554 = vld [vmem:[%s482 + $0x30] sm:$0xff]
        %v555 = vld [vmem:[%s482 + $0x38] sm:$0xff]
        %v556 = vld [vmem:[%s482 + $0x40] sm:$0xff]
        %v557 = vld [vmem:[%s482 + $0x48] sm:$0xff]
        %v558 = vld [vmem:[%s482 + $0x50] sm:$0xff]
        %v559 = vld [vmem:[%s482 + $0x58] sm:$0xff]
        %v560 = vld [vmem:[%s482 + $0x60] sm:$0xff]
        %v561 = vld [vmem:[%s482 + $0x68] sm:$0xff]
        %v562 = vld [vmem:[%s482 + $0x70] sm:$0xff]
        %v563 = vld [vmem:[%s482 + $0x78] sm:$0xff]
        %v564 = vld [vmem:[%s482 + $0x80] sm:$0xff]
        %v565 = vld [vmem:[%s482 + $0x88] sm:$0xff]
        %v566 = vld [vmem:[%s482 + $0x90] sm:$0xff]
        %v567 = vld [vmem:[%s482 + $0x98] sm:$0xff]
        %v568 = vld [vmem:[%s482 + $0xa0] sm:$0xff]
        %v569 = vld [vmem:[%s482 + $0xa8] sm:$0xff]
        %v570 = vld [vmem:[%s482 + $0xb0] sm:$0xff]
        %v571 = vld [vmem:[%s482 + $0xb8] sm:$0xff]
        %v572 = vld [vmem:[%s482 + $0xc0] sm:$0xff]
        %v573 = vld [vmem:[%s482 + $0xc8] sm:$0xff]
        %v574 = vld [vmem:[%s482 + $0xd0] sm:$0xff]
        %v575 = vld [vmem:[%s482 + $0xd8] sm:$0xff]
        %v576 = vld [vmem:[%s482 + $0xe0] sm:$0xff]
        %v577 = vld [vmem:[%s482 + $0xe8] sm:$0xff]
        %v578 = vld [vmem:[%s482 + $0xf0] sm:$0xff]
        %v579 = vld [vmem:[%s482 + $0xf8] sm:$0xff]
        %v580 = vld [vmem:[%s482 + $0x100] sm:$0xff]
        %v581 = vld [vmem:[%s482 + $0x108] sm:$0xff]
        %v582 = vld [vmem:[%s482 + $0x110] sm:$0xff]
        %v583 = vld [vmem:[%s482 + $0x118] sm:$0xff]
        %v584 = vld [vmem:[%s482 + $0x120] sm:$0xff]
        %v585 = vld [vmem:[%s482 + $0x128] sm:$0xff]
        %v586 = vld [vmem:[%s482 + $0x130] sm:$0xff]
        %v587 = vld [vmem:[%s482 + $0x138] sm:$0xff]
        %v588 = vld [vmem:[%s482 + $0x140] sm:$0xff]
        %v589 = vld [vmem:[%s482 + $0x148] sm:$0xff]
        %v590 = vld [vmem:[%s482 + $0x150] sm:$0xff]
        %v591 = vld [vmem:[%s482 + $0x158] sm:$0xff]
        %v592 = vld [vmem:[%s482 + $0x160] sm:$0xff]
        %v593 = vld [vmem:[%s482 + $0x168] sm:$0xff]
        %v594 = vld [vmem:[%s482 + $0x170] sm:$0xff]
        %v595 = vld [vmem:[%s482 + $0x178] sm:$0xff]
        %v596 = vld [vmem:[%s482 + $0x180] sm:$0xff]
        %v597 = vld [vmem:[%s482 + $0x188] sm:$0xff]
        %v598 = vld [vmem:[%s482 + $0x190] sm:$0xff]
        %v599 = vld [vmem:[%s482 + $0x198] sm:$0xff]
        %v600 = vld [vmem:[%s482 + $0x1a0] sm:$0xff]
        %v601 = vld [vmem:[%s482 + $0x1a8] sm:$0xff]
        %v602 = vld [vmem:[%s482 + $0x1b0] sm:$0xff]
        %v603 = vld [vmem:[%s482 + $0x1b8] sm:$0xff]
        %v604 = vld [vmem:[%s482 + $0x1c0] sm:$0xff]
        %v605 = vld [vmem:[%s482 + $0x1c8] sm:$0xff]
        %v606 = vld [vmem:[%s482 + $0x1d0] sm:$0xff]
        %v607 = vld [vmem:[%s482 + $0x1d8] sm:$0xff]
        %v608 = vld [vmem:[%s482 + $0x1e0] sm:$0xff]
        %v609 = vld [vmem:[%s482 + $0x1e8] sm:$0xff]
        %v610 = vld [vmem:[%s482 + $0x1f0] sm:$0xff]
        %v611 = vld [vmem:[%s482 + $0x1f8] sm:$0xff]
        %v612 = vld [vmem:[%s482 + $0x200] sm:$0xff]
        %v613 = vld [vmem:[%s482 + $0x208] sm:$0xff]
        %v614 = vld [vmem:[%s482 + $0x210] sm:$0xff]
        %v615 = vld [vmem:[%s482 + $0x218] sm:$0xff]
        %v616 = vld [vmem:[%s482 + $0x220] sm:$0xff]
        %v617 = vld [vmem:[%s482 + $0x228] sm:$0xff]
        %v618 = vld [vmem:[%s482 + $0x230] sm:$0xff]
        %v619 = vld [vmem:[%s482 + $0x238] sm:$0xff]
        %620 = vst [vmem:[#allocation2] sm:$0xff] %v548
        %621 = vst [vmem:[#allocation2 + $0x8] sm:$0xff] %v549
        %622 = vst [vmem:[#allocation2 + $0x10] sm:$0xff] %v550
        %623 = vst [vmem:[#allocation2 + $0x18] sm:$0xff] %v551
        %624 = vst [vmem:[#allocation2 + $0x20] sm:$0xff] %v552
        %625 = vst [vmem:[#allocation2 + $0x28] sm:$0xff] %v553
        %626 = vst [vmem:[#allocation2 + $0x30] sm:$0xff] %v554
        %627 = vst [vmem:[#allocation2 + $0x38] sm:$0xff] %v555
        %628 = vst [vmem:[#allocation2 + $0x40] sm:$0xff] %v556
        %629 = vst [vmem:[#allocation2 + $0x48] sm:$0xff] %v557
        %630 = vst [vmem:[#allocation2 + $0x50] sm:$0xff] %v558
        %631 = vst [vmem:[#allocation2 + $0x58] sm:$0xff] %v559
        %632 = vst [vmem:[#allocation2 + $0x60] sm:$0xff] %v560
        %633 = vst [vmem:[#allocation2 + $0x68] sm:$0xff] %v561
        %634 = vst [vmem:[#allocation2 + $0x70] sm:$0xff] %v562
        %635 = vst [vmem:[#allocation2 + $0x78] sm:$0xff] %v563
        %636 = vst [vmem:[#allocation2 + $0x80] sm:$0xff] %v564
        %637 = vst [vmem:[#allocation2 + $0x88] sm:$0xff] %v565
        %638 = vst [vmem:[#allocation2 + $0x90] sm:$0xff] %v566
        %639 = vst [vmem:[#allocation2 + $0x98] sm:$0xff] %v567
        %640 = vst [vmem:[#allocation2 + $0xa0] sm:$0xff] %v568
        %641 = vst [vmem:[#allocation2 + $0xa8] sm:$0xff] %v569
        %642 = vst [vmem:[#allocation2 + $0xb0] sm:$0xff] %v570
        %643 = vst [vmem:[#allocation2 + $0xb8] sm:$0xff] %v571
        %644 = vst [vmem:[#allocation2 + $0xc0] sm:$0xff] %v572
        %645 = vst [vmem:[#allocation2 + $0xc8] sm:$0xff] %v573
        %646 = vst [vmem:[#allocation2 + $0xd0] sm:$0xff] %v574
        %647 = vst [vmem:[#allocation2 + $0xd8] sm:$0xff] %v575
        %648 = vst [vmem:[#allocation2 + $0xe0] sm:$0xff] %v576
        %649 = vst [vmem:[#allocation2 + $0xe8] sm:$0xff] %v577
        %650 = vst [vmem:[#allocation2 + $0xf0] sm:$0xff] %v578
        %651 = vst [vmem:[#allocation2 + $0xf8] sm:$0xff] %v579
        %652 = vst [vmem:[#allocation2 + $0x100] sm:$0xff] %v580
        %653 = vst [vmem:[#allocation2 + $0x108] sm:$0xff] %v581
        %654 = vst [vmem:[#allocation2 + $0x110] sm:$0xff] %v582
        %655 = vst [vmem:[#allocation2 + $0x118] sm:$0xff] %v583
        %656 = vst [vmem:[#allocation2 + $0x120] sm:$0xff] %v584
        %657 = vst [vmem:[#allocation2 + $0x128] sm:$0xff] %v585
        %658 = vst [vmem:[#allocation2 + $0x130] sm:$0xff] %v586
        %659 = vst [vmem:[#allocation2 + $0x138] sm:$0xff] %v587
        %660 = vst [vmem:[#allocation2 + $0x140] sm:$0xff] %v588
        %661 = vst [vmem:[#allocation2 + $0x148] sm:$0xff] %v589
        %662 = vst [vmem:[#allocation2 + $0x150] sm:$0xff] %v590
        %663 = vst [vmem:[#allocation2 + $0x158] sm:$0xff] %v591
        %664 = vst [vmem:[#allocation2 + $0x160] sm:$0xff] %v592
        %665 = vst [vmem:[#allocation2 + $0x168] sm:$0xff] %v593
        %666 = vst [vmem:[#allocation2 + $0x170] sm:$0xff] %v594
        %667 = vst [vmem:[#allocation2 + $0x178] sm:$0xff] %v595
        %668 = vst [vmem:[#allocation2 + $0x180] sm:$0xff] %v596
        %669 = vst [vmem:[#allocation2 + $0x188] sm:$0xff] %v597
        %670 = vst [vmem:[#allocation2 + $0x190] sm:$0xff] %v598
        %671 = vst [vmem:[#allocation2 + $0x198] sm:$0xff] %v599
        %672 = vst [vmem:[#allocation2 + $0x1a0] sm:$0xff] %v600
        %673 = vst [vmem:[#allocation2 + $0x1a8] sm:$0xff] %v601
        %674 = vst [vmem:[#allocation2 + $0x1b0] sm:$0xff] %v602
        %675 = vst [vmem:[#allocation2 + $0x1b8] sm:$0xff] %v603
        %676 = vst [vmem:[#allocation2 + $0x1c0] sm:$0xff] %v604
        %677 = vst [vmem:[#allocation2 + $0x1c8] sm:$0xff] %v605
        %678 = vst [vmem:[#allocation2 + $0x1d0] sm:$0xff] %v606
        %679 = vst [vmem:[#allocation2 + $0x1d8] sm:$0xff] %v607
        %680 = vst [vmem:[#allocation2 + $0x1e0] sm:$0xff] %v608
        %681 = vst [vmem:[#allocation2 + $0x1e8] sm:$0xff] %v609
        %682 = vst [vmem:[#allocation2 + $0x1f0] sm:$0xff] %v610
        %683 = vst [vmem:[#allocation2 + $0x1f8] sm:$0xff] %v611
        %684 = vst [vmem:[#allocation2 + $0x200] sm:$0xff] %v612
        %685 = vst [vmem:[#allocation2 + $0x208] sm:$0xff] %v613
        %686 = vst [vmem:[#allocation2 + $0x210] sm:$0xff] %v614
        %687 = vst [vmem:[#allocation2 + $0x218] sm:$0xff] %v615
        %688 = vst [vmem:[#allocation2 + $0x220] sm:$0xff] %v616
        %689 = vst [vmem:[#allocation2 + $0x228] sm:$0xff] %v617
        %690 = vst [vmem:[#allocation2 + $0x230] sm:$0xff] %v618
        %691 = vst [vmem:[#allocation2 + $0x238] sm:$0xff] %v619
        %v692 = vld [vmem:[#allocation2 + $0x7] sm:$0xff]
        %v693 = vld [vmem:[#allocation2 + $0xf] sm:$0xff]
        %v694 = vld [vmem:[#allocation2 + $0x27] sm:$0xff]
        %v695 = vld [vmem:[#allocation2 + $0x2f] sm:$0xff]
        %v696 = vld [vmem:[#allocation2 + $0x47] sm:$0xff]
        %v697 = vld [vmem:[#allocation2 + $0x4f] sm:$0xff]
        %v698 = vld [vmem:[#allocation2 + $0x67] sm:$0xff]
        %v699 = vld [vmem:[#allocation2 + $0x6f] sm:$0xff]
        %v700 = vld [vmem:[#allocation2 + $0x87] sm:$0xff]
        %v701 = vld [vmem:[#allocation2 + $0x8f] sm:$0xff]
        %v702 = vld [vmem:[#allocation2 + $0xa7] sm:$0xff]
        %v703 = vld [vmem:[#allocation2 + $0xaf] sm:$0xff]
        %v704 = vld [vmem:[#allocation2 + $0xc7] sm:$0xff]
        %v705 = vld [vmem:[#allocation2 + $0xcf] sm:$0xff]
        %v706 = vld [vmem:[#allocation2 + $0xe7] sm:$0xff]
        %v707 = vld [vmem:[#allocation2 + $0xef] sm:$0xff]
        %v708 = vld [vmem:[#allocation2 + $0x107] sm:$0xff]
        %v709 = vld [vmem:[#allocation2 + $0x10f] sm:$0xff]
        %v710 = vld [vmem:[#allocation2 + $0x127] sm:$0xff]
        %v711 = vld [vmem:[#allocation2 + $0x12f] sm:$0xff]
        %v712 = vld [vmem:[#allocation2 + $0x147] sm:$0xff]
        %v713 = vld [vmem:[#allocation2 + $0x14f] sm:$0xff]
        %v714 = vld [vmem:[#allocation2 + $0x167] sm:$0xff]
        %v715 = vld [vmem:[#allocation2 + $0x16f] sm:$0xff]
        %v716 = vld [vmem:[#allocation2 + $0x187] sm:$0xff]
        %v717 = vld [vmem:[#allocation2 + $0x18f] sm:$0xff]
        %v718 = vld [vmem:[#allocation2 + $0x1a7] sm:$0xff]
        %v719 = vld [vmem:[#allocation2 + $0x1af] sm:$0xff]
        %v720 = vld [vmem:[#allocation2 + $0x1c7] sm:$0xff]
        %v721 = vld [vmem:[#allocation2 + $0x1cf] sm:$0xff]
        %v722 = vld [vmem:[#allocation2 + $0x1e7] sm:$0xff]
        %v723 = vld [vmem:[#allocation2 + $0x1ef] sm:$0xff]
        %v724 = vld [vmem:[#allocation2 + $0x207] sm:$0xff]
        %v725 = vld [vmem:[#allocation2 + $0x20f] sm:$0xff]
        %v726 = vld [vmem:[#allocation2 + $0x227] sm:$0xff]
        %v727 = vld [vmem:[#allocation2 + $0x22f] sm:$0xff]
        %728 = vst [vmem:[#allocation3] sm:$0xff] %v692
        %729 = vst [vmem:[#allocation3 + $0x8] sm:$0xff] %v693
        %730 = vst [vmem:[#allocation3 + $0x10] sm:$0xff] %v694
        %731 = vst [vmem:[#allocation3 + $0x18] sm:$0xff] %v695
        %732 = vst [vmem:[#allocation3 + $0x20] sm:$0xff] %v696
        %733 = vst [vmem:[#allocation3 + $0x28] sm:$0xff] %v697
        %734 = vst [vmem:[#allocation3 + $0x30] sm:$0xff] %v698
        %735 = vst [vmem:[#allocation3 + $0x38] sm:$0xff] %v699
        %736 = vst [vmem:[#allocation3 + $0x40] sm:$0xff] %v700
        %737 = vst [vmem:[#allocation3 + $0x48] sm:$0xff] %v701
        %738 = vst [vmem:[#allocation3 + $0x50] sm:$0xff] %v702
        %739 = vst [vmem:[#allocation3 + $0x58] sm:$0xff] %v703
        %740 = vst [vmem:[#allocation3 + $0x60] sm:$0xff] %v704
        %741 = vst [vmem:[#allocation3 + $0x68] sm:$0xff] %v705
        %742 = vst [vmem:[#allocation3 + $0x70] sm:$0xff] %v706
        %743 = vst [vmem:[#allocation3 + $0x78] sm:$0xff] %v707
        %744 = vst [vmem:[#allocation3 + $0x80] sm:$0xff] %v708
        %745 = vst [vmem:[#allocation3 + $0x88] sm:$0xff] %v709
        %746 = vst [vmem:[#allocation3 + $0x90] sm:$0xff] %v710
        %747 = vst [vmem:[#allocation3 + $0x98] sm:$0xff] %v711
        %748 = vst [vmem:[#allocation3 + $0xa0] sm:$0xff] %v712
        %749 = vst [vmem:[#allocation3 + $0xa8] sm:$0xff] %v713
        %750 = vst [vmem:[#allocation3 + $0xb0] sm:$0xff] %v714
        %751 = vst [vmem:[#allocation3 + $0xb8] sm:$0xff] %v715
        %752 = vst [vmem:[#allocation3 + $0xc0] sm:$0xff] %v716
        %753 = vst [vmem:[#allocation3 + $0xc8] sm:$0xff] %v717
        %754 = vst [vmem:[#allocation3 + $0xd0] sm:$0xff] %v718
        %755 = vst [vmem:[#allocation3 + $0xd8] sm:$0xff] %v719
        %756 = vst [vmem:[#allocation3 + $0xe0] sm:$0xff] %v720
        %757 = vst [vmem:[#allocation3 + $0xe8] sm:$0xff] %v721
        %758 = vst [vmem:[#allocation3 + $0xf0] sm:$0xff] %v722
        %759 = vst [vmem:[#allocation3 + $0xf8] sm:$0xff] %v723
        %760 = vst [vmem:[#allocation3 + $0x100] sm:$0xff] %v724
        %761 = vst [vmem:[#allocation3 + $0x108] sm:$0xff] %v725
        %762 = vst [vmem:[#allocation3 + $0x110] sm:$0xff] %v726
        %763 = vst [vmem:[#allocation3 + $0x118] sm:$0xff] %v727
        %v764 = vld [vmem:[#allocation2 + $0x8] sm:$0xff]
        %v765 = vld [vmem:[#allocation2 + $0x10] sm:$0xff]
        %v766 = vld [vmem:[#allocation2 + $0x28] sm:$0xff]
        %v767 = vld [vmem:[#allocation2 + $0x30] sm:$0xff]
        %v768 = vld [vmem:[#allocation2 + $0x48] sm:$0xff]
        %v769 = vld [vmem:[#allocation2 + $0x50] sm:$0xff]
        %v770 = vld [vmem:[#allocation2 + $0x68] sm:$0xff]
        %v771 = vld [vmem:[#allocation2 + $0x70] sm:$0xff]
        %v772 = vld [vmem:[#allocation2 + $0x88] sm:$0xff]
        %v773 = vld [vmem:[#allocation2 + $0x90] sm:$0xff]
        %v774 = vld [vmem:[#allocation2 + $0xa8] sm:$0xff]
        %v775 = vld [vmem:[#allocation2 + $0xb0] sm:$0xff]
        %v776 = vld [vmem:[#allocation2 + $0xc8] sm:$0xff]
        %v777 = vld [vmem:[#allocation2 + $0xd0] sm:$0xff]
        %v778 = vld [vmem:[#allocation2 + $0xe8] sm:$0xff]
        %v779 = vld [vmem:[#allocation2 + $0xf0] sm:$0xff]
        %v780 = vld [vmem:[#allocation2 + $0x108] sm:$0xff]
        %v781 = vld [vmem:[#allocation2 + $0x110] sm:$0xff]
        %v782 = vld [vmem:[#allocation2 + $0x128] sm:$0xff]
        %v783 = vld [vmem:[#allocation2 + $0x130] sm:$0xff]
        %v784 = vld [vmem:[#allocation2 + $0x148] sm:$0xff]
        %v785 = vld [vmem:[#allocation2 + $0x150] sm:$0xff]
        %v786 = vld [vmem:[#allocation2 + $0x168] sm:$0xff]
        %v787 = vld [vmem:[#allocation2 + $0x170] sm:$0xff]
        %v788 = vld [vmem:[#allocation2 + $0x188] sm:$0xff]
        %v789 = vld [vmem:[#allocation2 + $0x190] sm:$0xff]
        %v790 = vld [vmem:[#allocation2 + $0x1a8] sm:$0xff]
        %v791 = vld [vmem:[#allocation2 + $0x1b0] sm:$0xff]
        %v792 = vld [vmem:[#allocation2 + $0x1c8] sm:$0xff]
        %v793 = vld [vmem:[#allocation2 + $0x1d0] sm:$0xff]
        %v794 = vld [vmem:[#allocation2 + $0x1e8] sm:$0xff]
        %v795 = vld [vmem:[#allocation2 + $0x1f0] sm:$0xff]
        %v796 = vld [vmem:[#allocation2 + $0x208] sm:$0xff]
        %v797 = vld [vmem:[#allocation2 + $0x210] sm:$0xff]
        %v798 = vld [vmem:[#allocation2 + $0x228] sm:$0xff]
        %v799 = vld [vmem:[#allocation2 + $0x230] sm:$0xff]
        %s800 = scalar_lea.vmem [#allocation3], 288
        %801 = vst [vmem:[%s800] sm:$0xff] %v764
        %802 = vst [vmem:[%s800 + $0x8] sm:$0xff] %v765
        %803 = vst [vmem:[%s800 + $0x10] sm:$0xff] %v766
        %804 = vst [vmem:[%s800 + $0x18] sm:$0xff] %v767
        %805 = vst [vmem:[%s800 + $0x20] sm:$0xff] %v768
        %806 = vst [vmem:[%s800 + $0x28] sm:$0xff] %v769
        %807 = vst [vmem:[%s800 + $0x30] sm:$0xff] %v770
        %808 = vst [vmem:[%s800 + $0x38] sm:$0xff] %v771
        %809 = vst [vmem:[%s800 + $0x40] sm:$0xff] %v772
        %810 = vst [vmem:[%s800 + $0x48] sm:$0xff] %v773
        %811 = vst [vmem:[%s800 + $0x50] sm:$0xff] %v774
        %812 = vst [vmem:[%s800 + $0x58] sm:$0xff] %v775
        %813 = vst [vmem:[%s800 + $0x60] sm:$0xff] %v776
        %814 = vst [vmem:[%s800 + $0x68] sm:$0xff] %v777
        %815 = vst [vmem:[%s800 + $0x70] sm:$0xff] %v778
        %816 = vst [vmem:[%s800 + $0x78] sm:$0xff] %v779
        %817 = vst [vmem:[%s800 + $0x80] sm:$0xff] %v780
        %818 = vst [vmem:[%s800 + $0x88] sm:$0xff] %v781
        %819 = vst [vmem:[%s800 + $0x90] sm:$0xff] %v782
        %820 = vst [vmem:[%s800 + $0x98] sm:$0xff] %v783
        %821 = vst [vmem:[%s800 + $0xa0] sm:$0xff] %v784
        %822 = vst [vmem:[%s800 + $0xa8] sm:$0xff] %v785
        %823 = vst [vmem:[%s800 + $0xb0] sm:$0xff] %v786
        %824 = vst [vmem:[%s800 + $0xb8] sm:$0xff] %v787
        %825 = vst [vmem:[%s800 + $0xc0] sm:$0xff] %v788
        %826 = vst [vmem:[%s800 + $0xc8] sm:$0xff] %v789
        %827 = vst [vmem:[%s800 + $0xd0] sm:$0xff] %v790
        %828 = vst [vmem:[%s800 + $0xd8] sm:$0xff] %v791
        %829 = vst [vmem:[%s800 + $0xe0] sm:$0xff] %v792
        %830 = vst [vmem:[%s800 + $0xe8] sm:$0xff] %v793
        %831 = vst [vmem:[%s800 + $0xf0] sm:$0xff] %v794
        %832 = vst [vmem:[%s800 + $0xf8] sm:$0xff] %v795
        %833 = vst [vmem:[%s800 + $0x100] sm:$0xff] %v796
        %834 = vst [vmem:[%s800 + $0x108] sm:$0xff] %v797
        %835 = vst [vmem:[%s800 + $0x110] sm:$0xff] %v798
        %836 = vst [vmem:[%s800 + $0x118] sm:$0xff] %v799
        %v837 = vld [vmem:[#allocation2 + $0x9] sm:$0xff]
        %v838 = vld [vmem:[#allocation2 + $0x11] sm:$0xff]
        %v839 = vld [vmem:[#allocation2 + $0x29] sm:$0xff]
        %v840 = vld [vmem:[#allocation2 + $0x31] sm:$0xff]
        %v841 = vld [vmem:[#allocation2 + $0x49] sm:$0xff]
        %v842 = vld [vmem:[#allocation2 + $0x51] sm:$0xff]
        %v843 = vld [vmem:[#allocation2 + $0x69] sm:$0xff]
        %v844 = vld [vmem:[#allocation2 + $0x71] sm:$0xff]
        %v845 = vld [vmem:[#allocation2 + $0x89] sm:$0xff]
        %v846 = vld [vmem:[#allocation2 + $0x91] sm:$0xff]
        %v847 = vld [vmem:[#allocation2 + $0xa9] sm:$0xff]
        %v848 = vld [vmem:[#allocation2 + $0xb1] sm:$0xff]
        %v849 = vld [vmem:[#allocation2 + $0xc9] sm:$0xff]
        %v850 = vld [vmem:[#allocation2 + $0xd1] sm:$0xff]
        %v851 = vld [vmem:[#allocation2 + $0xe9] sm:$0xff]
        %v852 = vld [vmem:[#allocation2 + $0xf1] sm:$0xff]
        %v853 = vld [vmem:[#allocation2 + $0x109] sm:$0xff]
        %v854 = vld [vmem:[#allocation2 + $0x111] sm:$0xff]
        %v855 = vld [vmem:[#allocation2 + $0x129] sm:$0xff]
        %v856 = vld [vmem:[#allocation2 + $0x131] sm:$0xff]
        %v857 = vld [vmem:[#allocation2 + $0x149] sm:$0xff]
        %v858 = vld [vmem:[#allocation2 + $0x151] sm:$0xff]
        %v859 = vld [vmem:[#allocation2 + $0x169] sm:$0xff]
        %v860 = vld [vmem:[#allocation2 + $0x171] sm:$0xff]
        %v861 = vld [vmem:[#allocation2 + $0x189] sm:$0xff]
        %v862 = vld [vmem:[#allocation2 + $0x191] sm:$0xff]
        %v863 = vld [vmem:[#allocation2 + $0x1a9] sm:$0xff]
        %v864 = vld [vmem:[#allocation2 + $0x1b1] sm:$0xff]
        %v865 = vld [vmem:[#allocation2 + $0x1c9] sm:$0xff]
        %v866 = vld [vmem:[#allocation2 + $0x1d1] sm:$0xff]
        %v867 = vld [vmem:[#allocation2 + $0x1e9] sm:$0xff]
        %v868 = vld [vmem:[#allocation2 + $0x1f1] sm:$0xff]
        %v869 = vld [vmem:[#allocation2 + $0x209] sm:$0xff]
        %v870 = vld [vmem:[#allocation2 + $0x211] sm:$0xff]
        %v871 = vld [vmem:[#allocation2 + $0x229] sm:$0xff]
        %v872 = vld [vmem:[#allocation2 + $0x231] sm:$0xff]
        %s873 = scalar_lea.vmem [#allocation3], 576
        %874 = vst [vmem:[%s873] sm:$0xff] %v837
        %875 = vst [vmem:[%s873 + $0x8] sm:$0xff] %v838
        %876 = vst [vmem:[%s873 + $0x10] sm:$0xff] %v839
        %877 = vst [vmem:[%s873 + $0x18] sm:$0xff] %v840
        %878 = vst [vmem:[%s873 + $0x20] sm:$0xff] %v841
        %879 = vst [vmem:[%s873 + $0x28] sm:$0xff] %v842
        %880 = vst [vmem:[%s873 + $0x30] sm:$0xff] %v843
        %881 = vst [vmem:[%s873 + $0x38] sm:$0xff] %v844
        %882 = vst [vmem:[%s873 + $0x40] sm:$0xff] %v845
        %883 = vst [vmem:[%s873 + $0x48] sm:$0xff] %v846
        %884 = vst [vmem:[%s873 + $0x50] sm:$0xff] %v847
        %885 = vst [vmem:[%s873 + $0x58] sm:$0xff] %v848
        %886 = vst [vmem:[%s873 + $0x60] sm:$0xff] %v849
        %887 = vst [vmem:[%s873 + $0x68] sm:$0xff] %v850
        %888 = vst [vmem:[%s873 + $0x70] sm:$0xff] %v851
        %889 = vst [vmem:[%s873 + $0x78] sm:$0xff] %v852
        %890 = vst [vmem:[%s873 + $0x80] sm:$0xff] %v853
        %891 = vst [vmem:[%s873 + $0x88] sm:$0xff] %v854
        %892 = vst [vmem:[%s873 + $0x90] sm:$0xff] %v855
        %893 = vst [vmem:[%s873 + $0x98] sm:$0xff] %v856
        %894 = vst [vmem:[%s873 + $0xa0] sm:$0xff] %v857
        %895 = vst [vmem:[%s873 + $0xa8] sm:$0xff] %v858
        %896 = vst [vmem:[%s873 + $0xb0] sm:$0xff] %v859
        %897 = vst [vmem:[%s873 + $0xb8] sm:$0xff] %v860
        %898 = vst [vmem:[%s873 + $0xc0] sm:$0xff] %v861
        %899 = vst [vmem:[%s873 + $0xc8] sm:$0xff] %v862
        %900 = vst [vmem:[%s873 + $0xd0] sm:$0xff] %v863
        %901 = vst [vmem:[%s873 + $0xd8] sm:$0xff] %v864
        %902 = vst [vmem:[%s873 + $0xe0] sm:$0xff] %v865
        %903 = vst [vmem:[%s873 + $0xe8] sm:$0xff] %v866
        %904 = vst [vmem:[%s873 + $0xf0] sm:$0xff] %v867
        %905 = vst [vmem:[%s873 + $0xf8] sm:$0xff] %v868
        %906 = vst [vmem:[%s873 + $0x100] sm:$0xff] %v869
        %907 = vst [vmem:[%s873 + $0x108] sm:$0xff] %v870
        %908 = vst [vmem:[%s873 + $0x110] sm:$0xff] %v871
        %909 = vst [vmem:[%s873 + $0x118] sm:$0xff] %v872
        %v910 = vld [vmem:[#allocation3] sm:$0xff]
        %v911 = vld [vmem:[#allocation3 + $0x8] sm:$0xff]
        %v912 = vld [vmem:[#allocation3 + $0x10] sm:$0xff]
        %v913 = vld [vmem:[#allocation3 + $0x18] sm:$0xff]
        %v914 = vld [vmem:[#allocation3 + $0x20] sm:$0xff]
        %v915 = vld [vmem:[#allocation3 + $0x28] sm:$0xff]
        %v916 = vld [vmem:[#allocation3 + $0x30] sm:$0xff]
        %v917 = vld [vmem:[#allocation3 + $0x38] sm:$0xff]
        %v918 = vld [vmem:[#allocation3 + $0x40] sm:$0xff]
        %v919 = vld [vmem:[#allocation3 + $0x48] sm:$0xff]
        %v920 = vld [vmem:[#allocation3 + $0x50] sm:$0xff]
        %v921 = vld [vmem:[#allocation3 + $0x58] sm:$0xff]
        %v922 = vld [vmem:[#allocation3 + $0x60] sm:$0xff]
        %v923 = vld [vmem:[#allocation3 + $0x68] sm:$0xff]
        %v924 = vld [vmem:[#allocation3 + $0x70] sm:$0xff]
        %v925 = vld [vmem:[#allocation3 + $0x78] sm:$0xff]
        %v926 = vld [vmem:[#allocation3 + $0x80] sm:$0xff]
        %v927 = vld [vmem:[#allocation3 + $0x88] sm:$0xff]
        %v928 = vld [vmem:[#allocation3 + $0x90] sm:$0xff]
        %v929 = vld [vmem:[#allocation3 + $0x98] sm:$0xff]
        %v930 = vld [vmem:[#allocation3 + $0xa0] sm:$0xff]
        %v931 = vld [vmem:[#allocation3 + $0xa8] sm:$0xff]
        %v932 = vld [vmem:[#allocation3 + $0xb0] sm:$0xff]
        %v933 = vld [vmem:[#allocation3 + $0xb8] sm:$0xff]
        %v934 = vld [vmem:[#allocation3 + $0xc0] sm:$0xff]
        %v935 = vld [vmem:[#allocation3 + $0xc8] sm:$0xff]
        %v936 = vld [vmem:[#allocation3 + $0xd0] sm:$0xff]
        %v937 = vld [vmem:[#allocation3 + $0xd8] sm:$0xff]
        %v938 = vld [vmem:[#allocation3 + $0xe0] sm:$0xff]
        %v939 = vld [vmem:[#allocation3 + $0xe8] sm:$0xff]
        %v940 = vld [vmem:[#allocation3 + $0xf0] sm:$0xff]
        %v941 = vld [vmem:[#allocation3 + $0xf8] sm:$0xff]
        %v942 = vld [vmem:[%s800] sm:$0xff]
        %v943 = vld [vmem:[%s800 + $0x8] sm:$0xff]
        %v944 = vld [vmem:[%s800 + $0x10] sm:$0xff]
        %v945 = vld [vmem:[%s800 + $0x18] sm:$0xff]
        %v946 = vld [vmem:[%s800 + $0x20] sm:$0xff]
        %v947 = vld [vmem:[%s800 + $0x28] sm:$0xff]
        %v948 = vld [vmem:[%s800 + $0x30] sm:$0xff]
        %v949 = vld [vmem:[%s800 + $0x38] sm:$0xff]
        %v950 = vld [vmem:[%s800 + $0x40] sm:$0xff]
        %v951 = vld [vmem:[%s800 + $0x48] sm:$0xff]
        %v952 = vld [vmem:[%s800 + $0x50] sm:$0xff]
        %v953 = vld [vmem:[%s800 + $0x58] sm:$0xff]
        %v954 = vld [vmem:[%s800 + $0x60] sm:$0xff]
        %v955 = vld [vmem:[%s800 + $0x68] sm:$0xff]
        %v956 = vld [vmem:[%s800 + $0x70] sm:$0xff]
        %v957 = vld [vmem:[%s800 + $0x78] sm:$0xff]
        %v958 = vld [vmem:[%s800 + $0x80] sm:$0xff]
        %v959 = vld [vmem:[%s800 + $0x88] sm:$0xff]
        %v960 = vld [vmem:[%s800 + $0x90] sm:$0xff]
        %v961 = vld [vmem:[%s800 + $0x98] sm:$0xff]
        %v962 = vld [vmem:[%s800 + $0xa0] sm:$0xff]
        %v963 = vld [vmem:[%s800 + $0xa8] sm:$0xff]
        %v964 = vld [vmem:[%s800 + $0xb0] sm:$0xff]
        %v965 = vld [vmem:[%s800 + $0xb8] sm:$0xff]
        %v966 = vld [vmem:[%s800 + $0xc0] sm:$0xff]
        %v967 = vld [vmem:[%s800 + $0xc8] sm:$0xff]
        %v968 = vld [vmem:[%s800 + $0xd0] sm:$0xff]
        %v969 = vld [vmem:[%s800 + $0xd8] sm:$0xff]
        %v970 = vld [vmem:[%s800 + $0xe0] sm:$0xff]
        %v971 = vld [vmem:[%s800 + $0xe8] sm:$0xff]
        %v972 = vld [vmem:[%s800 + $0xf0] sm:$0xff]
        %v973 = vld [vmem:[%s800 + $0xf8] sm:$0xff]
        %v974 = vld [vmem:[%s873] sm:$0xff]
        %v975 = vld [vmem:[%s873 + $0x8] sm:$0xff]
        %v976 = vld [vmem:[%s873 + $0x10] sm:$0xff]
        %v977 = vld [vmem:[%s873 + $0x18] sm:$0xff]
        %v978 = vld [vmem:[%s873 + $0x20] sm:$0xff]
        %v979 = vld [vmem:[%s873 + $0x28] sm:$0xff]
        %v980 = vld [vmem:[%s873 + $0x30] sm:$0xff]
        %v981 = vld [vmem:[%s873 + $0x38] sm:$0xff]
        %v982 = vld [vmem:[%s873 + $0x40] sm:$0xff]
        %v983 = vld [vmem:[%s873 + $0x48] sm:$0xff]
        %v984 = vld [vmem:[%s873 + $0x50] sm:$0xff]
        %v985 = vld [vmem:[%s873 + $0x58] sm:$0xff]
        %v986 = vld [vmem:[%s873 + $0x60] sm:$0xff]
        %v987 = vld [vmem:[%s873 + $0x68] sm:$0xff]
        %v988 = vld [vmem:[%s873 + $0x70] sm:$0xff]
        %v989 = vld [vmem:[%s873 + $0x78] sm:$0xff]
        %v990 = vld [vmem:[%s873 + $0x80] sm:$0xff]
        %v991 = vld [vmem:[%s873 + $0x88] sm:$0xff]
        %v992 = vld [vmem:[%s873 + $0x90] sm:$0xff]
        %v993 = vld [vmem:[%s873 + $0x98] sm:$0xff]
        %v994 = vld [vmem:[%s873 + $0xa0] sm:$0xff]
        %v995 = vld [vmem:[%s873 + $0xa8] sm:$0xff]
        %v996 = vld [vmem:[%s873 + $0xb0] sm:$0xff]
        %v997 = vld [vmem:[%s873 + $0xb8] sm:$0xff]
        %v998 = vld [vmem:[%s873 + $0xc0] sm:$0xff]
        %v999 = vld [vmem:[%s873 + $0xc8] sm:$0xff]
        %v1000 = vld [vmem:[%s873 + $0xd0] sm:$0xff]
        %v1001 = vld [vmem:[%s873 + $0xd8] sm:$0xff]
        %v1002 = vld [vmem:[%s873 + $0xe0] sm:$0xff]
        %v1003 = vld [vmem:[%s873 + $0xe8] sm:$0xff]
        %v1004 = vld [vmem:[%s873 + $0xf0] sm:$0xff]
        %v1005 = vld [vmem:[%s873 + $0xf8] sm:$0xff]
        %s1006 = scalar_lea.vmem [#allocation3], 16
        %v1007 = vld [vmem:[%s1006] sm:$0xff]
        %v1008 = vld [vmem:[%s1006 + $0x8] sm:$0xff]
        %v1009 = vld [vmem:[%s1006 + $0x10] sm:$0xff]
        %v1010 = vld [vmem:[%s1006 + $0x18] sm:$0xff]
        %v1011 = vld [vmem:[%s1006 + $0x20] sm:$0xff]
        %v1012 = vld [vmem:[%s1006 + $0x28] sm:$0xff]
        %v1013 = vld [vmem:[%s1006 + $0x30] sm:$0xff]
        %v1014 = vld [vmem:[%s1006 + $0x38] sm:$0xff]
        %v1015 = vld [vmem:[%s1006 + $0x40] sm:$0xff]
        %v1016 = vld [vmem:[%s1006 + $0x48] sm:$0xff]
        %v1017 = vld [vmem:[%s1006 + $0x50] sm:$0xff]
        %v1018 = vld [vmem:[%s1006 + $0x58] sm:$0xff]
        %v1019 = vld [vmem:[%s1006 + $0x60] sm:$0xff]
        %v1020 = vld [vmem:[%s1006 + $0x68] sm:$0xff]
        %v1021 = vld [vmem:[%s1006 + $0x70] sm:$0xff]
        %v1022 = vld [vmem:[%s1006 + $0x78] sm:$0xff]
        %v1023 = vld [vmem:[%s1006 + $0x80] sm:$0xff]
        %v1024 = vld [vmem:[%s1006 + $0x88] sm:$0xff]
        %v1025 = vld [vmem:[%s1006 + $0x90] sm:$0xff]
        %v1026 = vld [vmem:[%s1006 + $0x98] sm:$0xff]
        %v1027 = vld [vmem:[%s1006 + $0xa0] sm:$0xff]
        %v1028 = vld [vmem:[%s1006 + $0xa8] sm:$0xff]
        %v1029 = vld [vmem:[%s1006 + $0xb0] sm:$0xff]
        %v1030 = vld [vmem:[%s1006 + $0xb8] sm:$0xff]
        %v1031 = vld [vmem:[%s1006 + $0xc0] sm:$0xff]
        %v1032 = vld [vmem:[%s1006 + $0xc8] sm:$0xff]
        %v1033 = vld [vmem:[%s1006 + $0xd0] sm:$0xff]
        %v1034 = vld [vmem:[%s1006 + $0xd8] sm:$0xff]
        %v1035 = vld [vmem:[%s1006 + $0xe0] sm:$0xff]
        %v1036 = vld [vmem:[%s1006 + $0xe8] sm:$0xff]
        %v1037 = vld [vmem:[%s1006 + $0xf0] sm:$0xff]
        %v1038 = vld [vmem:[%s1006 + $0xf8] sm:$0xff]
        %s1039 = scalar_lea.vmem [#allocation3], 304
        %v1040 = vld [vmem:[%s1039] sm:$0xff]
        %v1041 = vld [vmem:[%s1039 + $0x8] sm:$0xff]
        %v1042 = vld [vmem:[%s1039 + $0x10] sm:$0xff]
        %v1043 = vld [vmem:[%s1039 + $0x18] sm:$0xff]
        %v1044 = vld [vmem:[%s1039 + $0x20] sm:$0xff]
        %v1045 = vld [vmem:[%s1039 + $0x28] sm:$0xff]
        %v1046 = vld [vmem:[%s1039 + $0x30] sm:$0xff]
        %v1047 = vld [vmem:[%s1039 + $0x38] sm:$0xff]
        %v1048 = vld [vmem:[%s1039 + $0x40] sm:$0xff]
        %v1049 = vld [vmem:[%s1039 + $0x48] sm:$0xff]
        %v1050 = vld [vmem:[%s1039 + $0x50] sm:$0xff]
        %v1051 = vld [vmem:[%s1039 + $0x58] sm:$0xff]
        %v1052 = vld [vmem:[%s1039 + $0x60] sm:$0xff]
        %v1053 = vld [vmem:[%s1039 + $0x68] sm:$0xff]
        %v1054 = vld [vmem:[%s1039 + $0x70] sm:$0xff]
        %v1055 = vld [vmem:[%s1039 + $0x78] sm:$0xff]
        %v1056 = vld [vmem:[%s1039 + $0x80] sm:$0xff]
        %v1057 = vld [vmem:[%s1039 + $0x88] sm:$0xff]
        %v1058 = vld [vmem:[%s1039 + $0x90] sm:$0xff]
        %v1059 = vld [vmem:[%s1039 + $0x98] sm:$0xff]
        %v1060 = vld [vmem:[%s1039 + $0xa0] sm:$0xff]
        %v1061 = vld [vmem:[%s1039 + $0xa8] sm:$0xff]
        %v1062 = vld [vmem:[%s1039 + $0xb0] sm:$0xff]
        %v1063 = vld [vmem:[%s1039 + $0xb8] sm:$0xff]
        %v1064 = vld [vmem:[%s1039 + $0xc0] sm:$0xff]
        %v1065 = vld [vmem:[%s1039 + $0xc8] sm:$0xff]
        %v1066 = vld [vmem:[%s1039 + $0xd0] sm:$0xff]
        %v1067 = vld [vmem:[%s1039 + $0xd8] sm:$0xff]
        %v1068 = vld [vmem:[%s1039 + $0xe0] sm:$0xff]
        %v1069 = vld [vmem:[%s1039 + $0xe8] sm:$0xff]
        %v1070 = vld [vmem:[%s1039 + $0xf0] sm:$0xff]
        %v1071 = vld [vmem:[%s1039 + $0xf8] sm:$0xff]
        %s1072 = scalar_lea.vmem [#allocation3], 592
        %v1073 = vld [vmem:[%s1072] sm:$0xff]
        %v1074 = vld [vmem:[%s1072 + $0x8] sm:$0xff]
        %v1075 = vld [vmem:[%s1072 + $0x10] sm:$0xff]
        %v1076 = vld [vmem:[%s1072 + $0x18] sm:$0xff]
        %v1077 = vld [vmem:[%s1072 + $0x20] sm:$0xff]
        %v1078 = vld [vmem:[%s1072 + $0x28] sm:$0xff]
        %v1079 = vld [vmem:[%s1072 + $0x30] sm:$0xff]
        %v1080 = vld [vmem:[%s1072 + $0x38] sm:$0xff]
        %v1081 = vld [vmem:[%s1072 + $0x40] sm:$0xff]
        %v1082 = vld [vmem:[%s1072 + $0x48] sm:$0xff]
        %v1083 = vld [vmem:[%s1072 + $0x50] sm:$0xff]
        %v1084 = vld [vmem:[%s1072 + $0x58] sm:$0xff]
        %v1085 = vld [vmem:[%s1072 + $0x60] sm:$0xff]
        %v1086 = vld [vmem:[%s1072 + $0x68] sm:$0xff]
        %v1087 = vld [vmem:[%s1072 + $0x70] sm:$0xff]
        %v1088 = vld [vmem:[%s1072 + $0x78] sm:$0xff]
        %v1089 = vld [vmem:[%s1072 + $0x80] sm:$0xff]
        %v1090 = vld [vmem:[%s1072 + $0x88] sm:$0xff]
        %v1091 = vld [vmem:[%s1072 + $0x90] sm:$0xff]
        %v1092 = vld [vmem:[%s1072 + $0x98] sm:$0xff]
        %v1093 = vld [vmem:[%s1072 + $0xa0] sm:$0xff]
        %v1094 = vld [vmem:[%s1072 + $0xa8] sm:$0xff]
        %v1095 = vld [vmem:[%s1072 + $0xb0] sm:$0xff]
        %v1096 = vld [vmem:[%s1072 + $0xb8] sm:$0xff]
        %v1097 = vld [vmem:[%s1072 + $0xc0] sm:$0xff]
        %v1098 = vld [vmem:[%s1072 + $0xc8] sm:$0xff]
        %v1099 = vld [vmem:[%s1072 + $0xd0] sm:$0xff]
        %v1100 = vld [vmem:[%s1072 + $0xd8] sm:$0xff]
        %v1101 = vld [vmem:[%s1072 + $0xe0] sm:$0xff]
        %v1102 = vld [vmem:[%s1072 + $0xe8] sm:$0xff]
        %v1103 = vld [vmem:[%s1072 + $0xf0] sm:$0xff]
        %v1104 = vld [vmem:[%s1072 + $0xf8] sm:$0xff]
        %s1105 = scalar_lea.vmem [#allocation3], 32
        %v1106 = vld [vmem:[%s1105] sm:$0xff]
        %v1107 = vld [vmem:[%s1105 + $0x8] sm:$0xff]
        %v1108 = vld [vmem:[%s1105 + $0x10] sm:$0xff]
        %v1109 = vld [vmem:[%s1105 + $0x18] sm:$0xff]
        %v1110 = vld [vmem:[%s1105 + $0x20] sm:$0xff]
        %v1111 = vld [vmem:[%s1105 + $0x28] sm:$0xff]
        %v1112 = vld [vmem:[%s1105 + $0x30] sm:$0xff]
        %v1113 = vld [vmem:[%s1105 + $0x38] sm:$0xff]
        %v1114 = vld [vmem:[%s1105 + $0x40] sm:$0xff]
        %v1115 = vld [vmem:[%s1105 + $0x48] sm:$0xff]
        %v1116 = vld [vmem:[%s1105 + $0x50] sm:$0xff]
        %v1117 = vld [vmem:[%s1105 + $0x58] sm:$0xff]
        %v1118 = vld [vmem:[%s1105 + $0x60] sm:$0xff]
        %v1119 = vld [vmem:[%s1105 + $0x68] sm:$0xff]
        %v1120 = vld [vmem:[%s1105 + $0x70] sm:$0xff]
        %v1121 = vld [vmem:[%s1105 + $0x78] sm:$0xff]
        %v1122 = vld [vmem:[%s1105 + $0x80] sm:$0xff]
        %v1123 = vld [vmem:[%s1105 + $0x88] sm:$0xff]
        %v1124 = vld [vmem:[%s1105 + $0x90] sm:$0xff]
        %v1125 = vld [vmem:[%s1105 + $0x98] sm:$0xff]
        %v1126 = vld [vmem:[%s1105 + $0xa0] sm:$0xff]
        %v1127 = vld [vmem:[%s1105 + $0xa8] sm:$0xff]
        %v1128 = vld [vmem:[%s1105 + $0xb0] sm:$0xff]
        %v1129 = vld [vmem:[%s1105 + $0xb8] sm:$0xff]
        %v1130 = vld [vmem:[%s1105 + $0xc0] sm:$0xff]
        %v1131 = vld [vmem:[%s1105 + $0xc8] sm:$0xff]
        %v1132 = vld [vmem:[%s1105 + $0xd0] sm:$0xff]
        %v1133 = vld [vmem:[%s1105 + $0xd8] sm:$0xff]
        %v1134 = vld [vmem:[%s1105 + $0xe0] sm:$0xff]
        %v1135 = vld [vmem:[%s1105 + $0xe8] sm:$0xff]
        %v1136 = vld [vmem:[%s1105 + $0xf0] sm:$0xff]
        %v1137 = vld [vmem:[%s1105 + $0xf8] sm:$0xff]
        %s1138 = scalar_lea.vmem [#allocation3], 320
        %v1139 = vld [vmem:[%s1138] sm:$0xff]
        %v1140 = vld [vmem:[%s1138 + $0x8] sm:$0xff]
        %v1141 = vld [vmem:[%s1138 + $0x10] sm:$0xff]
        %v1142 = vld [vmem:[%s1138 + $0x18] sm:$0xff]
        %v1143 = vld [vmem:[%s1138 + $0x20] sm:$0xff]
        %v1144 = vld [vmem:[%s1138 + $0x28] sm:$0xff]
        %v1145 = vld [vmem:[%s1138 + $0x30] sm:$0xff]
        %v1146 = vld [vmem:[%s1138 + $0x38] sm:$0xff]
        %v1147 = vld [vmem:[%s1138 + $0x40] sm:$0xff]
        %v1148 = vld [vmem:[%s1138 + $0x48] sm:$0xff]
        %v1149 = vld [vmem:[%s1138 + $0x50] sm:$0xff]
        %v1150 = vld [vmem:[%s1138 + $0x58] sm:$0xff]
        %v1151 = vld [vmem:[%s1138 + $0x60] sm:$0xff]
        %v1152 = vld [vmem:[%s1138 + $0x68] sm:$0xff]
        %v1153 = vld [vmem:[%s1138 + $0x70] sm:$0xff]
        %v1154 = vld [vmem:[%s1138 + $0x78] sm:$0xff]
        %v1155 = vld [vmem:[%s1138 + $0x80] sm:$0xff]
        %v1156 = vld [vmem:[%s1138 + $0x88] sm:$0xff]
        %v1157 = vld [vmem:[%s1138 + $0x90] sm:$0xff]
        %v1158 = vld [vmem:[%s1138 + $0x98] sm:$0xff]
        %v1159 = vld [vmem:[%s1138 + $0xa0] sm:$0xff]
        %v1160 = vld [vmem:[%s1138 + $0xa8] sm:$0xff]
        %v1161 = vld [vmem:[%s1138 + $0xb0] sm:$0xff]
        %v1162 = vld [vmem:[%s1138 + $0xb8] sm:$0xff]
        %v1163 = vld [vmem:[%s1138 + $0xc0] sm:$0xff]
        %v1164 = vld [vmem:[%s1138 + $0xc8] sm:$0xff]
        %v1165 = vld [vmem:[%s1138 + $0xd0] sm:$0xff]
        %v1166 = vld [vmem:[%s1138 + $0xd8] sm:$0xff]
        %v1167 = vld [vmem:[%s1138 + $0xe0] sm:$0xff]
        %v1168 = vld [vmem:[%s1138 + $0xe8] sm:$0xff]
        %v1169 = vld [vmem:[%s1138 + $0xf0] sm:$0xff]
        %v1170 = vld [vmem:[%s1138 + $0xf8] sm:$0xff]
        %s1171 = scalar_lea.vmem [#allocation3], 608
        %v1172 = vld [vmem:[%s1171] sm:$0xff]
        %v1173 = vld [vmem:[%s1171 + $0x8] sm:$0xff]
        %v1174 = vld [vmem:[%s1171 + $0x10] sm:$0xff]
        %v1175 = vld [vmem:[%s1171 + $0x18] sm:$0xff]
        %v1176 = vld [vmem:[%s1171 + $0x20] sm:$0xff]
        %v1177 = vld [vmem:[%s1171 + $0x28] sm:$0xff]
        %v1178 = vld [vmem:[%s1171 + $0x30] sm:$0xff]
        %v1179 = vld [vmem:[%s1171 + $0x38] sm:$0xff]
        %v1180 = vld [vmem:[%s1171 + $0x40] sm:$0xff]
        %v1181 = vld [vmem:[%s1171 + $0x48] sm:$0xff]
        %v1182 = vld [vmem:[%s1171 + $0x50] sm:$0xff]
        %v1183 = vld [vmem:[%s1171 + $0x58] sm:$0xff]
        %v1184 = vld [vmem:[%s1171 + $0x60] sm:$0xff]
        %v1185 = vld [vmem:[%s1171 + $0x68] sm:$0xff]
        %v1186 = vld [vmem:[%s1171 + $0x70] sm:$0xff]
        %v1187 = vld [vmem:[%s1171 + $0x78] sm:$0xff]
        %v1188 = vld [vmem:[%s1171 + $0x80] sm:$0xff]
        %v1189 = vld [vmem:[%s1171 + $0x88] sm:$0xff]
        %v1190 = vld [vmem:[%s1171 + $0x90] sm:$0xff]
        %v1191 = vld [vmem:[%s1171 + $0x98] sm:$0xff]
        %v1192 = vld [vmem:[%s1171 + $0xa0] sm:$0xff]
        %v1193 = vld [vmem:[%s1171 + $0xa8] sm:$0xff]
        %v1194 = vld [vmem:[%s1171 + $0xb0] sm:$0xff]
        %v1195 = vld [vmem:[%s1171 + $0xb8] sm:$0xff]
        %v1196 = vld [vmem:[%s1171 + $0xc0] sm:$0xff]
        %v1197 = vld [vmem:[%s1171 + $0xc8] sm:$0xff]
        %v1198 = vld [vmem:[%s1171 + $0xd0] sm:$0xff]
        %v1199 = vld [vmem:[%s1171 + $0xd8] sm:$0xff]
        %v1200 = vld [vmem:[%s1171 + $0xe0] sm:$0xff]
        %v1201 = vld [vmem:[%s1171 + $0xe8] sm:$0xff]
        %v1202 = vld [vmem:[%s1171 + $0xf0] sm:$0xff]
        %v1203 = vld [vmem:[%s1171 + $0xf8] sm:$0xff]
        %v1204 = vld [vmem:[#allocation7] sm:$0xff]
        %v1205 = vld [vmem:[#allocation7 + $0x8] sm:$0xff]
        %v1206 = vld [vmem:[#allocation7 + $0x10] sm:$0xff]
        %v1207 = vld [vmem:[#allocation7 + $0x18] sm:$0xff]
        %v1208 = vld [vmem:[#allocation7 + $0x20] sm:$0xff]
        %v1209 = vld [vmem:[#allocation7 + $0x28] sm:$0xff]
        %v1210 = vld [vmem:[#allocation7 + $0x30] sm:$0xff]
        %v1211 = vld [vmem:[#allocation7 + $0x38] sm:$0xff]
        %v1212 = vld [vmem:[#allocation7 + $0x40] sm:$0xff]
        %v1213 = vld [vmem:[#allocation7 + $0x48] sm:$0xff]
        %v1214 = vld [vmem:[#allocation7 + $0x50] sm:$0xff]
        %v1215 = vld [vmem:[#allocation7 + $0x58] sm:$0xff]
        %v1216 = vld [vmem:[#allocation7 + $0x60] sm:$0xff]
        %v1217 = vld [vmem:[#allocation7 + $0x68] sm:$0xff]
        %v1218 = vld [vmem:[#allocation7 + $0x70] sm:$0xff]
        %v1219 = vld [vmem:[#allocation7 + $0x78] sm:$0xff]
        %v1220 = vld [vmem:[#allocation7 + $0x80] sm:$0xff]
        %v1221 = vld [vmem:[#allocation7 + $0x88] sm:$0xff]
        %v1222 = vld [vmem:[#allocation7 + $0x90] sm:$0xff]
        %v1223 = vld [vmem:[#allocation7 + $0x98] sm:$0xff]
        %v1224 = vld [vmem:[#allocation7 + $0xa0] sm:$0xff]
        %v1225 = vld [vmem:[#allocation7 + $0xa8] sm:$0xff]
        %v1226 = vld [vmem:[#allocation7 + $0xb0] sm:$0xff]
        %v1227 = vld [vmem:[#allocation7 + $0xb8] sm:$0xff]
        %v1228 = vld [vmem:[#allocation7 + $0xc0] sm:$0xff]
        %v1229 = vld [vmem:[#allocation7 + $0xc8] sm:$0xff]
        %v1230 = vld [vmem:[#allocation7 + $0xd0] sm:$0xff]
        %v1231 = vld [vmem:[#allocation7 + $0xd8] sm:$0xff]
        %v1232 = vld [vmem:[#allocation7 + $0xe0] sm:$0xff]
        %v1233 = vld [vmem:[#allocation7 + $0xe8] sm:$0xff]
        %v1234 = vld [vmem:[#allocation7 + $0xf0] sm:$0xff]
        %v1235 = vld [vmem:[#allocation7 + $0xf8] sm:$0xff]
        %v1236 = vld [vmem:[#allocation7 + $0x100] sm:$0xff]
        %v1237 = vld [vmem:[#allocation7 + $0x108] sm:$0xff]
        %v1238 = vld [vmem:[#allocation7 + $0x110] sm:$0xff]
        %v1239 = vld [vmem:[#allocation7 + $0x118] sm:$0xff]
        %v1240 = vld [vmem:[#allocation7 + $0x120] sm:$0xff]
        %v1241 = vld [vmem:[#allocation7 + $0x128] sm:$0xff]
        %v1242 = vld [vmem:[#allocation7 + $0x130] sm:$0xff]
        %v1243 = vld [vmem:[#allocation7 + $0x138] sm:$0xff]
        %v1244 = vld [vmem:[#allocation7 + $0x140] sm:$0xff]
        %v1245 = vld [vmem:[#allocation7 + $0x148] sm:$0xff]
        %v1246 = vld [vmem:[#allocation7 + $0x150] sm:$0xff]
        %v1247 = vld [vmem:[#allocation7 + $0x158] sm:$0xff]
        %v1248 = vld [vmem:[#allocation7 + $0x160] sm:$0xff]
        %v1249 = vld [vmem:[#allocation7 + $0x168] sm:$0xff]
        %v1250 = vld [vmem:[#allocation7 + $0x170] sm:$0xff]
        %v1251 = vld [vmem:[#allocation7 + $0x178] sm:$0xff]
        %v1252 = vld [vmem:[#allocation7 + $0x180] sm:$0xff]
        %v1253 = vld [vmem:[#allocation7 + $0x188] sm:$0xff]
        %v1254 = vld [vmem:[#allocation7 + $0x190] sm:$0xff]
        %v1255 = vld [vmem:[#allocation7 + $0x198] sm:$0xff]
        %v1256 = vld [vmem:[#allocation7 + $0x1a0] sm:$0xff]
        %v1257 = vld [vmem:[#allocation7 + $0x1a8] sm:$0xff]
        %v1258 = vld [vmem:[#allocation7 + $0x1b0] sm:$0xff]
        %v1259 = vld [vmem:[#allocation7 + $0x1b8] sm:$0xff]
        %v1260 = vld [vmem:[#allocation7 + $0x1c0] sm:$0xff]
        %v1261 = vld [vmem:[#allocation7 + $0x1c8] sm:$0xff]
        %v1262 = vld [vmem:[#allocation7 + $0x1d0] sm:$0xff]
        %v1263 = vld [vmem:[#allocation7 + $0x1d8] sm:$0xff]
        %v1264 = vld [vmem:[#allocation7 + $0x1e0] sm:$0xff]
        %v1265 = vld [vmem:[#allocation7 + $0x1e8] sm:$0xff]
        %v1266 = vld [vmem:[#allocation7 + $0x1f0] sm:$0xff]
        %v1267 = vld [vmem:[#allocation7 + $0x1f8] sm:$0xff]
        %v1268 = vld [vmem:[#allocation7 + $0x200] sm:$0xff]
        %v1269 = vld [vmem:[#allocation7 + $0x208] sm:$0xff]
        %v1270 = vld [vmem:[#allocation7 + $0x210] sm:$0xff]
        %v1271 = vld [vmem:[#allocation7 + $0x218] sm:$0xff]
        %v1272 = vld [vmem:[#allocation7 + $0x220] sm:$0xff]
        %v1273 = vld [vmem:[#allocation7 + $0x228] sm:$0xff]
        %v1274 = vld [vmem:[#allocation7 + $0x230] sm:$0xff]
        %v1275 = vld [vmem:[#allocation7 + $0x238] sm:$0xff]
        %v1276 = vld [vmem:[#allocation7 + $0x240] sm:$0xff]
        %v1277 = vld [vmem:[#allocation7 + $0x248] sm:$0xff]
        %v1278 = vld [vmem:[#allocation7 + $0x250] sm:$0xff]
        %v1279 = vld [vmem:[#allocation7 + $0x258] sm:$0xff]
        %v1280 = vld [vmem:[#allocation7 + $0x260] sm:$0xff]
        %v1281 = vld [vmem:[#allocation7 + $0x268] sm:$0xff]
        %v1282 = vld [vmem:[#allocation7 + $0x270] sm:$0xff]
        %v1283 = vld [vmem:[#allocation7 + $0x278] sm:$0xff]
        %v1284 = vld [vmem:[#allocation7 + $0x280] sm:$0xff]
        %v1285 = vld [vmem:[#allocation7 + $0x288] sm:$0xff]
        %v1286 = vld [vmem:[#allocation7 + $0x290] sm:$0xff]
        %v1287 = vld [vmem:[#allocation7 + $0x298] sm:$0xff]
        %v1288 = vld [vmem:[#allocation7 + $0x2a0] sm:$0xff]
        %v1289 = vld [vmem:[#allocation7 + $0x2a8] sm:$0xff]
        %v1290 = vld [vmem:[#allocation7 + $0x2b0] sm:$0xff]
        %v1291 = vld [vmem:[#allocation7 + $0x2b8] sm:$0xff]
        %v1292 = vld [vmem:[#allocation7 + $0x2c0] sm:$0xff]
        %v1293 = vld [vmem:[#allocation7 + $0x2c8] sm:$0xff]
        %v1294 = vld [vmem:[#allocation7 + $0x2d0] sm:$0xff]
        %v1295 = vld [vmem:[#allocation7 + $0x2d8] sm:$0xff]
        %v1296 = vld [vmem:[#allocation7 + $0x2e0] sm:$0xff]
        %v1297 = vld [vmem:[#allocation7 + $0x2e8] sm:$0xff]
        %v1298 = vld [vmem:[#allocation7 + $0x2f0] sm:$0xff]
        %v1299 = vld [vmem:[#allocation7 + $0x2f8] sm:$0xff]
        %v1300 = vld [vmem:[#allocation7 + $0x300] sm:$0xff]
        %v1301 = vld [vmem:[#allocation7 + $0x308] sm:$0xff]
        %v1302 = vld [vmem:[#allocation7 + $0x310] sm:$0xff]
        %v1303 = vld [vmem:[#allocation7 + $0x318] sm:$0xff]
        %v1304 = vld [vmem:[#allocation7 + $0x320] sm:$0xff]
        %v1305 = vld [vmem:[#allocation7 + $0x328] sm:$0xff]
        %v1306 = vld [vmem:[#allocation7 + $0x330] sm:$0xff]
        %v1307 = vld [vmem:[#allocation7 + $0x338] sm:$0xff]
        %v1308 = vld [vmem:[#allocation7 + $0x340] sm:$0xff]
        %v1309 = vld [vmem:[#allocation7 + $0x348] sm:$0xff]
        %v1310 = vld [vmem:[#allocation7 + $0x350] sm:$0xff]
        %v1311 = vld [vmem:[#allocation7 + $0x358] sm:$0xff]
        %v1312 = vld [vmem:[#allocation7 + $0x360] sm:$0xff]
        %v1313 = vld [vmem:[#allocation7 + $0x368] sm:$0xff]
        %v1314 = vld [vmem:[#allocation7 + $0x370] sm:$0xff]
        %v1315 = vld [vmem:[#allocation7 + $0x378] sm:$0xff]
        %v1316 = vld [vmem:[#allocation7 + $0x380] sm:$0xff]
        %v1317 = vld [vmem:[#allocation7 + $0x388] sm:$0xff]
        %v1318 = vld [vmem:[#allocation7 + $0x390] sm:$0xff]
        %v1319 = vld [vmem:[#allocation7 + $0x398] sm:$0xff]
        %v1320 = vld [vmem:[#allocation7 + $0x3a0] sm:$0xff]
        %v1321 = vld [vmem:[#allocation7 + $0x3a8] sm:$0xff]
        %v1322 = vld [vmem:[#allocation7 + $0x3b0] sm:$0xff]
        %v1323 = vld [vmem:[#allocation7 + $0x3b8] sm:$0xff]
        %v1324 = vld [vmem:[#allocation7 + $0x3c0] sm:$0xff]
        %v1325 = vld [vmem:[#allocation7 + $0x3c8] sm:$0xff]
        %v1326 = vld [vmem:[#allocation7 + $0x3d0] sm:$0xff]
        %v1327 = vld [vmem:[#allocation7 + $0x3d8] sm:$0xff]
        %v1328 = vld [vmem:[#allocation7 + $0x3e0] sm:$0xff]
        %v1329 = vld [vmem:[#allocation7 + $0x3e8] sm:$0xff]
        %v1330 = vld [vmem:[#allocation7 + $0x3f0] sm:$0xff]
        %v1331 = vld [vmem:[#allocation7 + $0x3f8] sm:$0xff]
        %v1332 = vld [vmem:[#allocation7 + $0x400] sm:$0xff]
        %v1333 = vld [vmem:[#allocation7 + $0x408] sm:$0xff]
        %v1334 = vld [vmem:[#allocation7 + $0x410] sm:$0xff]
        %v1335 = vld [vmem:[#allocation7 + $0x418] sm:$0xff]
        %v1336 = vld [vmem:[#allocation7 + $0x420] sm:$0xff]
        %v1337 = vld [vmem:[#allocation7 + $0x428] sm:$0xff]
        %v1338 = vld [vmem:[#allocation7 + $0x430] sm:$0xff]
        %v1339 = vld [vmem:[#allocation7 + $0x438] sm:$0xff]
        %v1340 = vld [vmem:[#allocation7 + $0x440] sm:$0xff]
        %v1341 = vld [vmem:[#allocation7 + $0x448] sm:$0xff]
        %v1342 = vld [vmem:[#allocation7 + $0x450] sm:$0xff]
        %v1343 = vld [vmem:[#allocation7 + $0x458] sm:$0xff]
        %v1344 = vld [vmem:[#allocation7 + $0x460] sm:$0xff]
        %v1345 = vld [vmem:[#allocation7 + $0x468] sm:$0xff]
        %v1346 = vld [vmem:[#allocation7 + $0x470] sm:$0xff]
        %v1347 = vld [vmem:[#allocation7 + $0x478] sm:$0xff]
        %v1348 = vld [vmem:[%s2] sm:$0x1]
        %v1350 = vlaneseq
        %v1351 = vshrl.u32 %v1350, 7
        %v1352 = vsub.s32 0, %v1351
        %v1353 = vrot.slane %v1348, %v1352
        %1355 = vmatprep.subr.mxu0 0.0
        %1356 = vmatpush1.msra.mxu0 %v1204
        %1357 = vmatprep.subr.mxu0 0.0
        %1358 = vmatpush1.msra.mxu0 %v1205
        %1359 = vmatprep.subr.mxu0 0.0
        %1360 = vmatpush1.msra.mxu0 %v1206
        %1361 = vmatprep.subr.mxu0 0.0
        %1362 = vmatpush1.msra.mxu0 %v1207
        %1363 = vmatprep.subr.mxu0 0.0
        %1364 = vmatpush1.msra.mxu0 %v1208
        %1365 = vmatprep.subr.mxu0 0.0
        %1366 = vmatpush1.msra.mxu0 %v1209
        %1367 = vmatprep.subr.mxu0 0.0
        %1368 = vmatpush1.msra.mxu0 %v1210
        %1369 = vmatprep.subr.mxu0 0.0
        %1370 = vmatpush1.msra.mxu0 %v1211
        %1371 = vmatprep.subr.mxu0 0.0
        %1372 = vmatpush1.msra.mxu0 %v1212
        %1373 = vmatprep.subr.mxu0 0.0
        %1374 = vmatpush1.msra.mxu0 %v1213
        %1375 = vmatprep.subr.mxu0 0.0
        %1376 = vmatpush1.msra.mxu0 %v1214
        %1377 = vmatprep.subr.mxu0 0.0
        %1378 = vmatpush1.msra.mxu0 %v1215
        %1379 = vmatprep.subr.mxu0 0.0
        %1380 = vmatpush1.msra.mxu0 %v1216
        %1381 = vmatprep.subr.mxu0 0.0
        %1382 = vmatpush1.msra.mxu0 %v1217
        %1383 = vmatprep.subr.mxu0 0.0
        %1384 = vmatpush1.msra.mxu0 %v1218
        %1385 = vmatprep.subr.mxu0 0.0
        %1386 = vmatpush1.msra.mxu0 %v1219
        %1387 = vmatprep.subr.mxu0 0.0
        %1388 = vmatpush1.msra.mxu0 %v1220
        %1389 = vmatprep.subr.mxu0 0.0
        %1390 = vmatpush1.msra.mxu0 %v1221
        %1391 = vmatprep.subr.mxu0 0.0
        %1392 = vmatpush1.msra.mxu0 %v1222
        %1393 = vmatprep.subr.mxu0 0.0
        %1394 = vmatpush1.msra.mxu0 %v1223
        %1395 = vmatprep.subr.mxu0 0.0
        %1396 = vmatpush1.msra.mxu0 %v1224
        %1397 = vmatprep.subr.mxu0 0.0
        %1398 = vmatpush1.msra.mxu0 %v1225
        %1399 = vmatprep.subr.mxu0 0.0
        %1400 = vmatpush1.msra.mxu0 %v1226
        %1401 = vmatprep.subr.mxu0 0.0
        %1402 = vmatpush1.msra.mxu0 %v1227
        %1403 = vmatprep.subr.mxu0 0.0
        %1404 = vmatpush1.msra.mxu0 %v1228
        %1405 = vmatprep.subr.mxu0 0.0
        %1406 = vmatpush1.msra.mxu0 %v1229
        %1407 = vmatprep.subr.mxu0 0.0
        %1408 = vmatpush1.msra.mxu0 %v1230
        %1409 = vmatprep.subr.mxu0 0.0
        %1410 = vmatpush1.msra.mxu0 %v1231
        %1411 = vmatprep.subr.mxu0 0.0
        %1412 = vmatpush1.msra.mxu0 %v1232
        %1413 = vmatprep.subr.mxu0 0.0
        %1414 = vmatpush1.msra.mxu0 %v1233
        %1415 = vmatprep.subr.mxu0 0.0
        %1416 = vmatpush1.msra.mxu0 %v1234
        %1417 = vmatprep.subr.mxu0 0.0
        %1418 = vmatpush1.msra.mxu0 %v1235
        %1419 = vmatprep.mubr.f32.mxu0 %v942
        %1420 = vmatmul.mubr.f32.gmra.mrb[0].mxu0 %v910
        %v1421 = vpop.f32.mrb[0].mxu0
        %v1422 = vadd.f32 %v1353, %v1421
        %v1423 = vpop.f32.mrb[0].mxu0
        %1424 = vmatprep.mubr.f32.mxu0 %v943
        %1425 = vmatmul.mubr.f32.gmra.mrb[0].mxu0 %v911
        %v1426 = vpop.f32.mrb[0].mxu0
        %v1427 = vadd.f32 %v1353, %v1426
        %v1428 = vpop.f32.mrb[0].mxu0
        %1429 = vmatprep.mubr.f32.mxu0 %v944
        %1430 = vmatmul.mubr.f32.gmra.mrb[0].mxu0 %v912
        %v1431 = vpop.f32.mrb[0].mxu0
        %v1432 = vadd.f32 %v1353, %v1431
        %v1433 = vpop.f32.mrb[0].mxu0
        %1434 = vmatprep.mubr.f32.mxu0 %v945
        %1435 = vmatmul.mubr.f32.gmra.mrb[0].mxu0 %v913
        %v1436 = vpop.f32.mrb[0].mxu0
        %v1437 = vadd.f32 %v1353, %v1436
        %v1438 = vpop.f32.mrb[0].mxu0
        %1439 = vmatprep.mubr.f32.mxu0 %v946
        %1440 = vmatmul.mubr.f32.gmra.mrb[0].mxu0 %v914
        %v1441 = vpop.f32.mrb[0].mxu0
        %v1442 = vadd.f32 %v1353, %v1441
        %v1443 = vpop.f32.mrb[0].mxu0
        %1444 = vmatprep.mubr.f32.mxu0 %v947
        %1445 = vmatmul.mubr.f32.gmra.mrb[0].mxu0 %v915
        %v1446 = vpop.f32.mrb[0].mxu0
        %v1447 = vadd.f32 %v1353, %v1446
        %v1448 = vpop.f32.mrb[0].mxu0
        %1449 = vmatprep.mubr.f32.mxu0 %v948
        %1450 = vmatmul.mubr.f32.gmra.mrb[0].mxu0 %v916
        %v1451 = vpop.f32.mrb[0].mxu0
        %v1452 = vadd.f32 %v1353, %v1451
        %v1453 = vpop.f32.mrb[0].mxu0
        %1454 = vmatprep.mubr.f32.mxu0 %v949
        %1455 = vmatmul.mubr.f32.gmra.mrb[0].mxu0 %v917
        %v1456 = vpop.f32.mrb[0].mxu0
        %v1457 = vadd.f32 %v1353, %v1456
        %v1458 = vpop.f32.mrb[0].mxu0
        %1459 = vmatprep.mubr.f32.mxu0 %v950
        %1460 = vmatmul.mubr.f32.gmra.mrb[0].mxu0 %v918
        %v1461 = vpop.f32.mrb[0].mxu0
        %v1462 = vadd.f32 %v1353, %v1461
        %v1463 = vpop.f32.mrb[0].mxu0
        %1464 = vmatprep.mubr.f32.mxu0 %v951
        %1465 = vmatmul.mubr.f32.gmra.mrb[0].mxu0 %v919
        %v1466 = vpop.f32.mrb[0].mxu0
        %v1467 = vadd.f32 %v1353, %v1466
        %v1468 = vpop.f32.mrb[0].mxu0
        %1469 = vmatprep.mubr.f32.mxu0 %v952
        %1470 = vmatmul.mubr.f32.gmra.mrb[0].mxu0 %v920
        %v1471 = vpop.f32.mrb[0].mxu0
        %v1472 = vadd.f32 %v1353, %v1471
        %v1473 = vpop.f32.mrb[0].mxu0
        %1474 = vmatprep.mubr.f32.mxu0 %v953
        %1475 = vmatmul.mubr.f32.gmra.mrb[0].mxu0 %v921
        %v1476 = vpop.f32.mrb[0].mxu0
        %v1477 = vadd.f32 %v1353, %v1476
        %v1478 = vpop.f32.mrb[0].mxu0
        %1479 = vmatprep.mubr.f32.mxu0 %v954
        %1480 = vmatmul.mubr.f32.gmra.mrb[0].mxu0 %v922
        %v1481 = vpop.f32.mrb[0].mxu0
        %v1482 = vadd.f32 %v1353, %v1481
        %v1483 = vpop.f32.mrb[0].mxu0
        %1484 = vmatprep.mubr.f32.mxu0 %v955
        %1485 = vmatmul.mubr.f32.gmra.mrb[0].mxu0 %v923
        %v1486 = vpop.f32.mrb[0].mxu0
        %v1487 = vadd.f32 %v1353, %v1486
        %v1488 = vpop.f32.mrb[0].mxu0
        %1489 = vmatprep.mubr.f32.mxu0 %v956
        %1490 = vmatmul.mubr.f32.gmra.mrb[0].mxu0 %v924
        %v1491 = vpop.f32.mrb[0].mxu0
        %v1492 = vadd.f32 %v1353, %v1491
        %v1493 = vpop.f32.mrb[0].mxu0
        %1494 = vmatprep.mubr.f32.mxu0 %v957
        %1495 = vmatmul.mubr.f32.gmra.mrb[0].mxu0 %v925
        %v1496 = vpop.f32.mrb[0].mxu0
        %v1497 = vadd.f32 %v1353, %v1496
        %v1498 = vpop.f32.mrb[0].mxu0
        %1499 = vmatprep.mubr.f32.mxu0 %v958
        %1500 = vmatmul.mubr.f32.gmra.mrb[0].mxu0 %v926
        %v1501 = vpop.f32.mrb[0].mxu0
        %v1502 = vadd.f32 %v1353, %v1501
        %v1503 = vpop.f32.mrb[0].mxu0
        %1504 = vmatprep.mubr.f32.mxu0 %v959
        %1505 = vmatmul.mubr.f32.gmra.mrb[0].mxu0 %v927
        %v1506 = vpop.f32.mrb[0].mxu0
        %v1507 = vadd.f32 %v1353, %v1506
        %v1508 = vpop.f32.mrb[0].mxu0
        %1509 = vmatprep.mubr.f32.mxu0 %v960
        %1510 = vmatmul.mubr.f32.gmra.mrb[0].mxu0 %v928
        %v1511 = vpop.f32.mrb[0].mxu0
        %v1512 = vadd.f32 %v1353, %v1511
        %v1513 = vpop.f32.mrb[0].mxu0
        %1514 = vmatprep.mubr.f32.mxu0 %v961
        %1515 = vmatmul.mubr.f32.gmra.mrb[0].mxu0 %v929
        %v1516 = vpop.f32.mrb[0].mxu0
        %v1517 = vadd.f32 %v1353, %v1516
        %v1518 = vpop.f32.mrb[0].mxu0
        %1519 = vmatprep.mubr.f32.mxu0 %v962
        %1520 = vmatmul.mubr.f32.gmra.mrb[0].mxu0 %v930
        %v1521 = vpop.f32.mrb[0].mxu0
        %v1522 = vadd.f32 %v1353, %v1521
        %v1523 = vpop.f32.mrb[0].mxu0
        %1524 = vmatprep.mubr.f32.mxu0 %v963
        %1525 = vmatmul.mubr.f32.gmra.mrb[0].mxu0 %v931
        %v1526 = vpop.f32.mrb[0].mxu0
        %v1527 = vadd.f32 %v1353, %v1526
        %v1528 = vpop.f32.mrb[0].mxu0
        %1529 = vmatprep.mubr.f32.mxu0 %v964
        %1530 = vmatmul.mubr.f32.gmra.mrb[0].mxu0 %v932
        %v1531 = vpop.f32.mrb[0].mxu0
        %v1532 = vadd.f32 %v1353, %v1531
        %v1533 = vpop.f32.mrb[0].mxu0
        %1534 = vmatprep.mubr.f32.mxu0 %v965
        %1535 = vmatmul.mubr.f32.gmra.mrb[0].mxu0 %v933
        %v1536 = vpop.f32.mrb[0].mxu0
        %v1537 = vadd.f32 %v1353, %v1536
        %v1538 = vpop.f32.mrb[0].mxu0
        %1539 = vmatprep.mubr.f32.mxu0 %v966
        %1540 = vmatmul.mubr.f32.gmra.mrb[0].mxu0 %v934
        %v1541 = vpop.f32.mrb[0].mxu0
        %v1542 = vadd.f32 %v1353, %v1541
        %v1543 = vpop.f32.mrb[0].mxu0
        %1544 = vmatprep.mubr.f32.mxu0 %v967
        %1545 = vmatmul.mubr.f32.gmra.mrb[0].mxu0 %v935
        %v1546 = vpop.f32.mrb[0].mxu0
        %v1547 = vadd.f32 %v1353, %v1546
        %v1548 = vpop.f32.mrb[0].mxu0
        %1549 = vmatprep.mubr.f32.mxu0 %v968
        %1550 = vmatmul.mubr.f32.gmra.mrb[0].mxu0 %v936
        %v1551 = vpop.f32.mrb[0].mxu0
        %v1552 = vadd.f32 %v1353, %v1551
        %v1553 = vpop.f32.mrb[0].mxu0
        %1554 = vmatprep.mubr.f32.mxu0 %v969
        %1555 = vmatmul.mubr.f32.gmra.mrb[0].mxu0 %v937
        %v1556 = vpop.f32.mrb[0].mxu0
        %v1557 = vadd.f32 %v1353, %v1556
        %v1558 = vpop.f32.mrb[0].mxu0
        %1559 = vmatprep.mubr.f32.mxu0 %v970
        %1560 = vmatmul.mubr.f32.gmra.mrb[0].mxu0 %v938
        %v1561 = vpop.f32.mrb[0].mxu0
        %v1562 = vadd.f32 %v1353, %v1561
        %v1563 = vpop.f32.mrb[0].mxu0
        %1564 = vmatprep.mubr.f32.mxu0 %v971
        %1565 = vmatmul.mubr.f32.gmra.mrb[0].mxu0 %v939
        %v1566 = vpop.f32.mrb[0].mxu0
        %v1567 = vadd.f32 %v1353, %v1566
        %v1568 = vpop.f32.mrb[0].mxu0
        %1569 = vmatprep.mubr.f32.mxu0 %v972
        %1570 = vmatmul.mubr.f32.gmra.mrb[0].mxu0 %v940
        %v1571 = vpop.f32.mrb[0].mxu0
        %v1572 = vadd.f32 %v1353, %v1571
        %v1573 = vpop.f32.mrb[0].mxu0
        %1574 = vmatprep.mubr.f32.mxu0 %v973
        %1575 = vmatmul.mubr.f32.gmra.mrb[0].mxu0 %v941
        %v1576 = vpop.f32.mrb[0].mxu0
        %v1577 = vadd.f32 %v1353, %v1576
        %v1578 = vpop.f32.mrb[0].mxu0
        %1579 = vdwg.mxu0
        %1580 = vmatprep.subr.mxu0 0.0
        %1581 = vmatpush1.msra.mxu0 %v1236
        %1582 = vmatprep.subr.mxu0 0.0
        %1583 = vmatpush1.msra.mxu0 %v1237
        %1584 = vmatprep.subr.mxu0 0.0
        %1585 = vmatpush1.msra.mxu0 %v1238
        %1586 = vmatprep.subr.mxu0 0.0
        %1587 = vmatpush1.msra.mxu0 %v1239
        %1588 = vmatprep.subr.mxu0 0.0
        %1589 = vmatpush1.msra.mxu0 %v1240
        %1590 = vmatprep.subr.mxu0 0.0
        %1591 = vmatpush1.msra.mxu0 %v1241
        %1592 = vmatprep.subr.mxu0 0.0
        %1593 = vmatpush1.msra.mxu0 %v1242
        %1594 = vmatprep.subr.mxu0 0.0
        %1595 = vmatpush1.msra.mxu0 %v1243
        %1596 = vmatprep.subr.mxu0 0.0
        %1597 = vmatpush1.msra.mxu0 %v1244
        %1598 = vmatprep.subr.mxu0 0.0
        %1599 = vmatpush1.msra.mxu0 %v1245
        %1600 = vmatprep.subr.mxu0 0.0
        %1601 = vmatpush1.msra.mxu0 %v1246
        %1602 = vmatprep.subr.mxu0 0.0
        %1603 = vmatpush1.msra.mxu0 %v1247
        %1604 = vmatprep.subr.mxu0 0.0
        %1605 = vmatpush1.msra.mxu0 %v1248
        %1606 = vmatprep.subr.mxu0 0.0
        %1607 = vmatpush1.msra.mxu0 %v1249
        %1608 = vmatprep.subr.mxu0 0.0
        %1609 = vmatpush1.msra.mxu0 %v1250
        %1610 = vmatprep.subr.mxu0 0.0
        %1611 = vmatpush1.msra.mxu0 %v1251
        %1612 = vmatprep.subr.mxu0 0.0
        %1613 = vmatpush1.msra.mxu0 %v1252
        %1614 = vmatprep.subr.mxu0 0.0
        %1615 = vmatpush1.msra.mxu0 %v1253
        %1616 = vmatprep.subr.mxu0 0.0
        %1617 = vmatpush1.msra.mxu0 %v1254
        %1618 = vmatprep.subr.mxu0 0.0
        %1619 = vmatpush1.msra.mxu0 %v1255
        %1620 = vmatprep.subr.mxu0 0.0
        %1621 = vmatpush1.msra.mxu0 %v1256
        %1622 = vmatprep.subr.mxu0 0.0
        %1623 = vmatpush1.msra.mxu0 %v1257
        %1624 = vmatprep.subr.mxu0 0.0
        %1625 = vmatpush1.msra.mxu0 %v1258
        %1626 = vmatprep.subr.mxu0 0.0
        %1627 = vmatpush1.msra.mxu0 %v1259
        %1628 = vmatprep.subr.mxu0 0.0
        %1629 = vmatpush1.msra.mxu0 %v1260
        %1630 = vmatprep.subr.mxu0 0.0
        %1631 = vmatpush1.msra.mxu0 %v1261
        %1632 = vmatprep.subr.mxu0 0.0
        %1633 = vmatpush1.msra.mxu0 %v1262
        %1634 = vmatprep.subr.mxu0 0.0
        %1635 = vmatpush1.msra.mxu0 %v1263
        %1636 = vmatprep.subr.mxu0 0.0
        %1637 = vmatpush1.msra.mxu0 %v1264
        %1638 = vmatprep.subr.mxu0 0.0
        %1639 = vmatpush1.msra.mxu0 %v1265
        %1640 = vmatprep.subr.mxu0 0.0
        %1641 = vmatpush1.msra.mxu0 %v1266
        %1642 = vmatprep.subr.mxu0 0.0
        %1643 = vmatpush1.msra.mxu0 %v1267
        %1644 = vmatprep.mubr.f32.mxu0 %v1007
        %1645 = vmatmul.mubr.f32.gmra.mrb[0].mxu0 %v974
        %v1646 = vpop.f32.mrb[0].mxu0
        %v1647 = vadd.f32 %v1422, %v1646
        %v1648 = vpop.f32.mrb[0].mxu0
        %1649 = vmatprep.mubr.f32.mxu0 %v1008
        %1650 = vmatmul.mubr.f32.gmra.mrb[0].mxu0 %v975
        %v1651 = vpop.f32.mrb[0].mxu0
        %v1652 = vadd.f32 %v1427, %v1651
        %v1653 = vpop.f32.mrb[0].mxu0
        %1654 = vmatprep.mubr.f32.mxu0 %v1009
        %1655 = vmatmul.mubr.f32.gmra.mrb[0].mxu0 %v976
        %v1656 = vpop.f32.mrb[0].mxu0
        %v1657 = vadd.f32 %v1432, %v1656
        %v1658 = vpop.f32.mrb[0].mxu0
        %1659 = vmatprep.mubr.f32.mxu0 %v1010
        %1660 = vmatmul.mubr.f32.gmra.mrb[0].mxu0 %v977
        %v1661 = vpop.f32.mrb[0].mxu0
        %v1662 = vadd.f32 %v1437, %v1661
        %v1663 = vpop.f32.mrb[0].mxu0
        %1664 = vmatprep.mubr.f32.mxu0 %v1011
        %1665 = vmatmul.mubr.f32.gmra.mrb[0].mxu0 %v978
        %v1666 = vpop.f32.mrb[0].mxu0
        %v1667 = vadd.f32 %v1442, %v1666
        %v1668 = vpop.f32.mrb[0].mxu0
        %1669 = vmatprep.mubr.f32.mxu0 %v1012
        %1670 = vmatmul.mubr.f32.gmra.mrb[0].mxu0 %v979
        %v1671 = vpop.f32.mrb[0].mxu0
        %v1672 = vadd.f32 %v1447, %v1671
        %v1673 = vpop.f32.mrb[0].mxu0
        %1674 = vmatprep.mubr.f32.mxu0 %v1013
        %1675 = vmatmul.mubr.f32.gmra.mrb[0].mxu0 %v980
        %v1676 = vpop.f32.mrb[0].mxu0
        %v1677 = vadd.f32 %v1452, %v1676
        %v1678 = vpop.f32.mrb[0].mxu0
        %1679 = vmatprep.mubr.f32.mxu0 %v1014
        %1680 = vmatmul.mubr.f32.gmra.mrb[0].mxu0 %v981
        %v1681 = vpop.f32.mrb[0].mxu0
        %v1682 = vadd.f32 %v1457, %v1681
        %v1683 = vpop.f32.mrb[0].mxu0
        %1684 = vmatprep.mubr.f32.mxu0 %v1015
        %1685 = vmatmul.mubr.f32.gmra.mrb[0].mxu0 %v982
        %v1686 = vpop.f32.mrb[0].mxu0
        %v1687 = vadd.f32 %v1462, %v1686
        %v1688 = vpop.f32.mrb[0].mxu0
        %1689 = vmatprep.mubr.f32.mxu0 %v1016
        %1690 = vmatmul.mubr.f32.gmra.mrb[0].mxu0 %v983
        %v1691 = vpop.f32.mrb[0].mxu0
        %v1692 = vadd.f32 %v1467, %v1691
        %v1693 = vpop.f32.mrb[0].mxu0
        %1694 = vmatprep.mubr.f32.mxu0 %v1017
        %1695 = vmatmul.mubr.f32.gmra.mrb[0].mxu0 %v984
        %v1696 = vpop.f32.mrb[0].mxu0
        %v1697 = vadd.f32 %v1472, %v1696
        %v1698 = vpop.f32.mrb[0].mxu0
        %1699 = vmatprep.mubr.f32.mxu0 %v1018
        %1700 = vmatmul.mubr.f32.gmra.mrb[0].mxu0 %v985
        %v1701 = vpop.f32.mrb[0].mxu0
        %v1702 = vadd.f32 %v1477, %v1701
        %v1703 = vpop.f32.mrb[0].mxu0
        %1704 = vmatprep.mubr.f32.mxu0 %v1019
        %1705 = vmatmul.mubr.f32.gmra.mrb[0].mxu0 %v986
        %v1706 = vpop.f32.mrb[0].mxu0
        %v1707 = vadd.f32 %v1482, %v1706
        %v1708 = vpop.f32.mrb[0].mxu0
        %1709 = vmatprep.mubr.f32.mxu0 %v1020
        %1710 = vmatmul.mubr.f32.gmra.mrb[0].mxu0 %v987
        %v1711 = vpop.f32.mrb[0].mxu0
        %v1712 = vadd.f32 %v1487, %v1711
        %v1713 = vpop.f32.mrb[0].mxu0
        %1714 = vmatprep.mubr.f32.mxu0 %v1021
        %1715 = vmatmul.mubr.f32.gmra.mrb[0].mxu0 %v988
        %v1716 = vpop.f32.mrb[0].mxu0
        %v1717 = vadd.f32 %v1492, %v1716
        %v1718 = vpop.f32.mrb[0].mxu0
        %1719 = vmatprep.mubr.f32.mxu0 %v1022
        %1720 = vmatmul.mubr.f32.gmra.mrb[0].mxu0 %v989
        %v1721 = vpop.f32.mrb[0].mxu0
        %v1722 = vadd.f32 %v1497, %v1721
        %v1723 = vpop.f32.mrb[0].mxu0
        %1724 = vmatprep.mubr.f32.mxu0 %v1023
        %1725 = vmatmul.mubr.f32.gmra.mrb[0].mxu0 %v990
        %v1726 = vpop.f32.mrb[0].mxu0
        %v1727 = vadd.f32 %v1502, %v1726
        %v1728 = vpop.f32.mrb[0].mxu0
        %1729 = vmatprep.mubr.f32.mxu0 %v1024
        %1730 = vmatmul.mubr.f32.gmra.mrb[0].mxu0 %v991
        %v1731 = vpop.f32.mrb[0].mxu0
        %v1732 = vadd.f32 %v1507, %v1731
        %v1733 = vpop.f32.mrb[0].mxu0
        %1734 = vmatprep.mubr.f32.mxu0 %v1025
        %1735 = vmatmul.mubr.f32.gmra.mrb[0].mxu0 %v992
        %v1736 = vpop.f32.mrb[0].mxu0
        %v1737 = vadd.f32 %v1512, %v1736
        %v1738 = vpop.f32.mrb[0].mxu0
        %1739 = vmatprep.mubr.f32.mxu0 %v1026
        %1740 = vmatmul.mubr.f32.gmra.mrb[0].mxu0 %v993
        %v1741 = vpop.f32.mrb[0].mxu0
        %v1742 = vadd.f32 %v1517, %v1741
        %v1743 = vpop.f32.mrb[0].mxu0
        %1744 = vmatprep.mubr.f32.mxu0 %v1027
        %1745 = vmatmul.mubr.f32.gmra.mrb[0].mxu0 %v994
        %v1746 = vpop.f32.mrb[0].mxu0
        %v1747 = vadd.f32 %v1522, %v1746
        %v1748 = vpop.f32.mrb[0].mxu0
        %1749 = vmatprep.mubr.f32.mxu0 %v1028
        %1750 = vmatmul.mubr.f32.gmra.mrb[0].mxu0 %v995
        %v1751 = vpop.f32.mrb[0].mxu0
        %v1752 = vadd.f32 %v1527, %v1751
        %v1753 = vpop.f32.mrb[0].mxu0
        %1754 = vmatprep.mubr.f32.mxu0 %v1029
        %1755 = vmatmul.mubr.f32.gmra.mrb[0].mxu0 %v996
        %v1756 = vpop.f32.mrb[0].mxu0
        %v1757 = vadd.f32 %v1532, %v1756
        %v1758 = vpop.f32.mrb[0].mxu0
        %1759 = vmatprep.mubr.f32.mxu0 %v1030
        %1760 = vmatmul.mubr.f32.gmra.mrb[0].mxu0 %v997
        %v1761 = vpop.f32.mrb[0].mxu0
        %v1762 = vadd.f32 %v1537, %v1761
        %v1763 = vpop.f32.mrb[0].mxu0
        %1764 = vmatprep.mubr.f32.mxu0 %v1031
        %1765 = vmatmul.mubr.f32.gmra.mrb[0].mxu0 %v998
        %v1766 = vpop.f32.mrb[0].mxu0
        %v1767 = vadd.f32 %v1542, %v1766
        %v1768 = vpop.f32.mrb[0].mxu0
        %1769 = vmatprep.mubr.f32.mxu0 %v1032
        %1770 = vmatmul.mubr.f32.gmra.mrb[0].mxu0 %v999
        %v1771 = vpop.f32.mrb[0].mxu0
        %v1772 = vadd.f32 %v1547, %v1771
        %v1773 = vpop.f32.mrb[0].mxu0
        %1774 = vmatprep.mubr.f32.mxu0 %v1033
        %1775 = vmatmul.mubr.f32.gmra.mrb[0].mxu0 %v1000
        %v1776 = vpop.f32.mrb[0].mxu0
        %v1777 = vadd.f32 %v1552, %v1776
        %v1778 = vpop.f32.mrb[0].mxu0
        %1779 = vmatprep.mubr.f32.mxu0 %v1034
        %1780 = vmatmul.mubr.f32.gmra.mrb[0].mxu0 %v1001
        %v1781 = vpop.f32.mrb[0].mxu0
        %v1782 = vadd.f32 %v1557, %v1781
        %v1783 = vpop.f32.mrb[0].mxu0
        %1784 = vmatprep.mubr.f32.mxu0 %v1035
        %1785 = vmatmul.mubr.f32.gmra.mrb[0].mxu0 %v1002
        %v1786 = vpop.f32.mrb[0].mxu0
        %v1787 = vadd.f32 %v1562, %v1786
        %v1788 = vpop.f32.mrb[0].mxu0
        %1789 = vmatprep.mubr.f32.mxu0 %v1036
        %1790 = vmatmul.mubr.f32.gmra.mrb[0].mxu0 %v1003
        %v1791 = vpop.f32.mrb[0].mxu0
        %v1792 = vadd.f32 %v1567, %v1791
        %v1793 = vpop.f32.mrb[0].mxu0
        %1794 = vmatprep.mubr.f32.mxu0 %v1037
        %1795 = vmatmul.mubr.f32.gmra.mrb[0].mxu0 %v1004
        %v1796 = vpop.f32.mrb[0].mxu0
        %v1797 = vadd.f32 %v1572, %v1796
        %v1798 = vpop.f32.mrb[0].mxu0
        %1799 = vmatprep.mubr.f32.mxu0 %v1038
        %1800 = vmatmul.mubr.f32.gmra.mrb[0].mxu0 %v1005
        %v1801 = vpop.f32.mrb[0].mxu0
        %v1802 = vadd.f32 %v1577, %v1801
        %v1803 = vpop.f32.mrb[0].mxu0
        %1804 = vdwg.mxu0
        %1805 = vmatprep.subr.mxu0 0.0
        %1806 = vmatpush1.msra.mxu0 %v1268
        %1807 = vmatprep.subr.mxu0 0.0
        %1808 = vmatpush1.msra.mxu0 %v1269
        %1809 = vmatprep.subr.mxu0 0.0
        %1810 = vmatpush1.msra.mxu0 %v1270
        %1811 = vmatprep.subr.mxu0 0.0
        %1812 = vmatpush1.msra.mxu0 %v1271
        %1813 = vmatprep.subr.mxu0 0.0
        %1814 = vmatpush1.msra.mxu0 %v1272
        %1815 = vmatprep.subr.mxu0 0.0
        %1816 = vmatpush1.msra.mxu0 %v1273
        %1817 = vmatprep.subr.mxu0 0.0
        %1818 = vmatpush1.msra.mxu0 %v1274
        %1819 = vmatprep.subr.mxu0 0.0
        %1820 = vmatpush1.msra.mxu0 %v1275
        %1821 = vmatprep.subr.mxu0 0.0
        %1822 = vmatpush1.msra.mxu0 %v1276
        %1823 = vmatprep.subr.mxu0 0.0
        %1824 = vmatpush1.msra.mxu0 %v1277
        %1825 = vmatprep.subr.mxu0 0.0
        %1826 = vmatpush1.msra.mxu0 %v1278
        %1827 = vmatprep.subr.mxu0 0.0
        %1828 = vmatpush1.msra.mxu0 %v1279
        %1829 = vmatprep.subr.mxu0 0.0
        %1830 = vmatpush1.msra.mxu0 %v1280
        %1831 = vmatprep.subr.mxu0 0.0
        %1832 = vmatpush1.msra.mxu0 %v1281
        %1833 = vmatprep.subr.mxu0 0.0
        %1834 = vmatpush1.msra.mxu0 %v1282
        %1835 = vmatprep.subr.mxu0 0.0
        %1836 = vmatpush1.msra.mxu0 %v1283
        %1837 = vmatprep.subr.mxu0 0.0
        %1838 = vmatpush1.msra.mxu0 %v1284
        %1839 = vmatprep.subr.mxu0 0.0
        %1840 = vmatpush1.msra.mxu0 %v1285
        %1841 = vmatprep.subr.mxu0 0.0
        %1842 = vmatpush1.msra.mxu0 %v1286
        %1843 = vmatprep.subr.mxu0 0.0
        %1844 = vmatpush1.msra.mxu0 %v1287
        %1845 = vmatprep.subr.mxu0 0.0
        %1846 = vmatpush1.msra.mxu0 %v1288
        %1847 = vmatprep.subr.mxu0 0.0
        %1848 = vmatpush1.msra.mxu0 %v1289
        %1849 = vmatprep.subr.mxu0 0.0
        %1850 = vmatpush1.msra.mxu0 %v1290
        %1851 = vmatprep.subr.mxu0 0.0
        %1852 = vmatpush1.msra.mxu0 %v1291
        %1853 = vmatprep.subr.mxu0 0.0
        %1854 = vmatpush1.msra.mxu0 %v1292
        %1855 = vmatprep.subr.mxu0 0.0
        %1856 = vmatpush1.msra.mxu0 %v1293
        %1857 = vmatprep.subr.mxu0 0.0
        %1858 = vmatpush1.msra.mxu0 %v1294
        %1859 = vmatprep.subr.mxu0 0.0
        %1860 = vmatpush1.msra.mxu0 %v1295
        %1861 = vmatprep.subr.mxu0 0.0
        %1862 = vmatpush1.msra.mxu0 %v1296
        %1863 = vmatprep.subr.mxu0 0.0
        %1864 = vmatpush1.msra.mxu0 %v1297
        %1865 = vmatprep.subr.mxu0 0.0
        %1866 = vmatpush1.msra.mxu0 %v1298
        %1867 = vmatprep.subr.mxu0 0.0
        %1868 = vmatpush1.msra.mxu0 %v1299
        %1869 = vmatprep.mubr.f32.mxu0 %v1073
        %1870 = vmatmul.mubr.f32.gmra.mrb[0].mxu0 %v1040
        %v1871 = vpop.f32.mrb[0].mxu0
        %v1872 = vadd.f32 %v1647, %v1871
        %v1873 = vpop.f32.mrb[0].mxu0
        %1874 = vmatprep.mubr.f32.mxu0 %v1074
        %1875 = vmatmul.mubr.f32.gmra.mrb[0].mxu0 %v1041
        %v1876 = vpop.f32.mrb[0].mxu0
        %v1877 = vadd.f32 %v1652, %v1876
        %v1878 = vpop.f32.mrb[0].mxu0
        %1879 = vmatprep.mubr.f32.mxu0 %v1075
        %1880 = vmatmul.mubr.f32.gmra.mrb[0].mxu0 %v1042
        %v1881 = vpop.f32.mrb[0].mxu0
        %v1882 = vadd.f32 %v1657, %v1881
        %v1883 = vpop.f32.mrb[0].mxu0
        %1884 = vmatprep.mubr.f32.mxu0 %v1076
        %1885 = vmatmul.mubr.f32.gmra.mrb[0].mxu0 %v1043
        %v1886 = vpop.f32.mrb[0].mxu0
        %v1887 = vadd.f32 %v1662, %v1886
        %v1888 = vpop.f32.mrb[0].mxu0
        %1889 = vmatprep.mubr.f32.mxu0 %v1077
        %1890 = vmatmul.mubr.f32.gmra.mrb[0].mxu0 %v1044
        %v1891 = vpop.f32.mrb[0].mxu0
        %v1892 = vadd.f32 %v1667, %v1891
        %v1893 = vpop.f32.mrb[0].mxu0
        %1894 = vmatprep.mubr.f32.mxu0 %v1078
        %1895 = vmatmul.mubr.f32.gmra.mrb[0].mxu0 %v1045
        %v1896 = vpop.f32.mrb[0].mxu0
        %v1897 = vadd.f32 %v1672, %v1896
        %v1898 = vpop.f32.mrb[0].mxu0
        %1899 = vmatprep.mubr.f32.mxu0 %v1079
        %1900 = vmatmul.mubr.f32.gmra.mrb[0].mxu0 %v1046
        %v1901 = vpop.f32.mrb[0].mxu0
        %v1902 = vadd.f32 %v1677, %v1901
        %v1903 = vpop.f32.mrb[0].mxu0
        %1904 = vmatprep.mubr.f32.mxu0 %v1080
        %1905 = vmatmul.mubr.f32.gmra.mrb[0].mxu0 %v1047
        %v1906 = vpop.f32.mrb[0].mxu0
        %v1907 = vadd.f32 %v1682, %v1906
        %v1908 = vpop.f32.mrb[0].mxu0
        %1909 = vmatprep.mubr.f32.mxu0 %v1081
        %1910 = vmatmul.mubr.f32.gmra.mrb[0].mxu0 %v1048
        %v1911 = vpop.f32.mrb[0].mxu0
        %v1912 = vadd.f32 %v1687, %v1911
        %v1913 = vpop.f32.mrb[0].mxu0
        %1914 = vmatprep.mubr.f32.mxu0 %v1082
        %1915 = vmatmul.mubr.f32.gmra.mrb[0].mxu0 %v1049
        %v1916 = vpop.f32.mrb[0].mxu0
        %v1917 = vadd.f32 %v1692, %v1916
        %v1918 = vpop.f32.mrb[0].mxu0
        %1919 = vmatprep.mubr.f32.mxu0 %v1083
        %1920 = vmatmul.mubr.f32.gmra.mrb[0].mxu0 %v1050
        %v1921 = vpop.f32.mrb[0].mxu0
        %v1922 = vadd.f32 %v1697, %v1921
        %v1923 = vpop.f32.mrb[0].mxu0
        %1924 = vmatprep.mubr.f32.mxu0 %v1084
        %1925 = vmatmul.mubr.f32.gmra.mrb[0].mxu0 %v1051
        %v1926 = vpop.f32.mrb[0].mxu0
        %v1927 = vadd.f32 %v1702, %v1926
        %v1928 = vpop.f32.mrb[0].mxu0
        %1929 = vmatprep.mubr.f32.mxu0 %v1085
        %1930 = vmatmul.mubr.f32.gmra.mrb[0].mxu0 %v1052
        %v1931 = vpop.f32.mrb[0].mxu0
        %v1932 = vadd.f32 %v1707, %v1931
        %v1933 = vpop.f32.mrb[0].mxu0
        %1934 = vmatprep.mubr.f32.mxu0 %v1086
        %1935 = vmatmul.mubr.f32.gmra.mrb[0].mxu0 %v1053
        %v1936 = vpop.f32.mrb[0].mxu0
        %v1937 = vadd.f32 %v1712, %v1936
        %v1938 = vpop.f32.mrb[0].mxu0
        %1939 = vmatprep.mubr.f32.mxu0 %v1087
        %1940 = vmatmul.mubr.f32.gmra.mrb[0].mxu0 %v1054
        %v1941 = vpop.f32.mrb[0].mxu0
        %v1942 = vadd.f32 %v1717, %v1941
        %v1943 = vpop.f32.mrb[0].mxu0
        %1944 = vmatprep.mubr.f32.mxu0 %v1088
        %1945 = vmatmul.mubr.f32.gmra.mrb[0].mxu0 %v1055
        %v1946 = vpop.f32.mrb[0].mxu0
        %v1947 = vadd.f32 %v1722, %v1946
        %v1948 = vpop.f32.mrb[0].mxu0
        %1949 = vmatprep.mubr.f32.mxu0 %v1089
        %1950 = vmatmul.mubr.f32.gmra.mrb[0].mxu0 %v1056
        %v1951 = vpop.f32.mrb[0].mxu0
        %v1952 = vadd.f32 %v1727, %v1951
        %v1953 = vpop.f32.mrb[0].mxu0
        %1954 = vmatprep.mubr.f32.mxu0 %v1090
        %1955 = vmatmul.mubr.f32.gmra.mrb[0].mxu0 %v1057
        %v1956 = vpop.f32.mrb[0].mxu0
        %v1957 = vadd.f32 %v1732, %v1956
        %v1958 = vpop.f32.mrb[0].mxu0
        %1959 = vmatprep.mubr.f32.mxu0 %v1091
        %1960 = vmatmul.mubr.f32.gmra.mrb[0].mxu0 %v1058
        %v1961 = vpop.f32.mrb[0].mxu0
        %v1962 = vadd.f32 %v1737, %v1961
        %v1963 = vpop.f32.mrb[0].mxu0
        %1964 = vmatprep.mubr.f32.mxu0 %v1092
        %1965 = vmatmul.mubr.f32.gmra.mrb[0].mxu0 %v1059
        %v1966 = vpop.f32.mrb[0].mxu0
        %v1967 = vadd.f32 %v1742, %v1966
        %v1968 = vpop.f32.mrb[0].mxu0
        %1969 = vmatprep.mubr.f32.mxu0 %v1093
        %1970 = vmatmul.mubr.f32.gmra.mrb[0].mxu0 %v1060
        %v1971 = vpop.f32.mrb[0].mxu0
        %v1972 = vadd.f32 %v1747, %v1971
        %v1973 = vpop.f32.mrb[0].mxu0
        %1974 = vmatprep.mubr.f32.mxu0 %v1094
        %1975 = vmatmul.mubr.f32.gmra.mrb[0].mxu0 %v1061
        %v1976 = vpop.f32.mrb[0].mxu0
        %v1977 = vadd.f32 %v1752, %v1976
        %v1978 = vpop.f32.mrb[0].mxu0
        %1979 = vmatprep.mubr.f32.mxu0 %v1095
        %1980 = vmatmul.mubr.f32.gmra.mrb[0].mxu0 %v1062
        %v1981 = vpop.f32.mrb[0].mxu0
        %v1982 = vadd.f32 %v1757, %v1981
        %v1983 = vpop.f32.mrb[0].mxu0
        %1984 = vmatprep.mubr.f32.mxu0 %v1096
        %1985 = vmatmul.mubr.f32.gmra.mrb[0].mxu0 %v1063
        %v1986 = vpop.f32.mrb[0].mxu0
        %v1987 = vadd.f32 %v1762, %v1986
        %v1988 = vpop.f32.mrb[0].mxu0
        %1989 = vmatprep.mubr.f32.mxu0 %v1097
        %1990 = vmatmul.mubr.f32.gmra.mrb[0].mxu0 %v1064
        %v1991 = vpop.f32.mrb[0].mxu0
        %v1992 = vadd.f32 %v1767, %v1991
        %v1993 = vpop.f32.mrb[0].mxu0
        %1994 = vmatprep.mubr.f32.mxu0 %v1098
        %1995 = vmatmul.mubr.f32.gmra.mrb[0].mxu0 %v1065
        %v1996 = vpop.f32.mrb[0].mxu0
        %v1997 = vadd.f32 %v1772, %v1996
        %v1998 = vpop.f32.mrb[0].mxu0
        %1999 = vmatprep.mubr.f32.mxu0 %v1099
        %2000 = vmatmul.mubr.f32.gmra.mrb[0].mxu0 %v1066
        %v2001 = vpop.f32.mrb[0].mxu0
        %v2002 = vadd.f32 %v1777, %v2001
        %v2003 = vpop.f32.mrb[0].mxu0
        %2004 = vmatprep.mubr.f32.mxu0 %v1100
        %2005 = vmatmul.mubr.f32.gmra.mrb[0].mxu0 %v1067
        %v2006 = vpop.f32.mrb[0].mxu0
        %v2007 = vadd.f32 %v1782, %v2006
        %v2008 = vpop.f32.mrb[0].mxu0
        %2009 = vmatprep.mubr.f32.mxu0 %v1101
        %2010 = vmatmul.mubr.f32.gmra.mrb[0].mxu0 %v1068
        %v2011 = vpop.f32.mrb[0].mxu0
        %v2012 = vadd.f32 %v1787, %v2011
        %v2013 = vpop.f32.mrb[0].mxu0
        %2014 = vmatprep.mubr.f32.mxu0 %v1102
        %2015 = vmatmul.mubr.f32.gmra.mrb[0].mxu0 %v1069
        %v2016 = vpop.f32.mrb[0].mxu0
        %v2017 = vadd.f32 %v1792, %v2016
        %v2018 = vpop.f32.mrb[0].mxu0
        %2019 = vmatprep.mubr.f32.mxu0 %v1103
        %2020 = vmatmul.mubr.f32.gmra.mrb[0].mxu0 %v1070
        %v2021 = vpop.f32.mrb[0].mxu0
        %v2022 = vadd.f32 %v1797, %v2021
        %v2023 = vpop.f32.mrb[0].mxu0
        %2024 = vmatprep.mubr.f32.mxu0 %v1104
        %2025 = vmatmul.mubr.f32.gmra.mrb[0].mxu0 %v1071
        %v2026 = vpop.f32.mrb[0].mxu0
        %v2027 = vadd.f32 %v1802, %v2026
        %v2028 = vpop.f32.mrb[0].mxu0
        %2029 = vdwg.mxu0
        %2030 = vmatprep.subr.mxu0 0.0
        %2031 = vmatpush1.msra.mxu0 %v1300
        %2032 = vmatprep.subr.mxu0 0.0
        %2033 = vmatpush1.msra.mxu0 %v1301
        %2034 = vmatprep.subr.mxu0 0.0
        %2035 = vmatpush1.msra.mxu0 %v1302
        %2036 = vmatprep.subr.mxu0 0.0
        %2037 = vmatpush1.msra.mxu0 %v1303
        %2038 = vmatprep.subr.mxu0 0.0
        %2039 = vmatpush1.msra.mxu0 %v1304
        %2040 = vmatprep.subr.mxu0 0.0
        %2041 = vmatpush1.msra.mxu0 %v1305
        %2042 = vmatprep.subr.mxu0 0.0
        %2043 = vmatpush1.msra.mxu0 %v1306
        %2044 = vmatprep.subr.mxu0 0.0
        %2045 = vmatpush1.msra.mxu0 %v1307
        %2046 = vmatprep.subr.mxu0 0.0
        %2047 = vmatpush1.msra.mxu0 %v1308
        %2048 = vmatprep.subr.mxu0 0.0
        %2049 = vmatpush1.msra.mxu0 %v1309
        %2050 = vmatprep.subr.mxu0 0.0
        %2051 = vmatpush1.msra.mxu0 %v1310
        %2052 = vmatprep.subr.mxu0 0.0
        %2053 = vmatpush1.msra.mxu0 %v1311
        %2054 = vmatprep.subr.mxu0 0.0
        %2055 = vmatpush1.msra.mxu0 %v1312
        %2056 = vmatprep.subr.mxu0 0.0
        %2057 = vmatpush1.msra.mxu0 %v1313
        %2058 = vmatprep.subr.mxu0 0.0
        %2059 = vmatpush1.msra.mxu0 %v1314
        %2060 = vmatprep.subr.mxu0 0.0
        %2061 = vmatpush1.msra.mxu0 %v1315
        %2062 = vmatprep.subr.mxu0 0.0
        %2063 = vmatpush1.msra.mxu0 %v1316
        %2064 = vmatprep.subr.mxu0 0.0
        %2065 = vmatpush1.msra.mxu0 %v1317
        %2066 = vmatprep.subr.mxu0 0.0
        %2067 = vmatpush1.msra.mxu0 %v1318
        %2068 = vmatprep.subr.mxu0 0.0
        %2069 = vmatpush1.msra.mxu0 %v1319
        %2070 = vmatprep.subr.mxu0 0.0
        %2071 = vmatpush1.msra.mxu0 %v1320
        %2072 = vmatprep.subr.mxu0 0.0
        %2073 = vmatpush1.msra.mxu0 %v1321
        %2074 = vmatprep.subr.mxu0 0.0
        %2075 = vmatpush1.msra.mxu0 %v1322
        %2076 = vmatprep.subr.mxu0 0.0
        %2077 = vmatpush1.msra.mxu0 %v1323
        %2078 = vmatprep.subr.mxu0 0.0
        %2079 = vmatpush1.msra.mxu0 %v1324
        %2080 = vmatprep.subr.mxu0 0.0
        %2081 = vmatpush1.msra.mxu0 %v1325
        %2082 = vmatprep.subr.mxu0 0.0
        %2083 = vmatpush1.msra.mxu0 %v1326
        %2084 = vmatprep.subr.mxu0 0.0
        %2085 = vmatpush1.msra.mxu0 %v1327
        %2086 = vmatprep.subr.mxu0 0.0
        %2087 = vmatpush1.msra.mxu0 %v1328
        %2088 = vmatprep.subr.mxu0 0.0
        %2089 = vmatpush1.msra.mxu0 %v1329
        %2090 = vmatprep.subr.mxu0 0.0
        %2091 = vmatpush1.msra.mxu0 %v1330
        %2092 = vmatprep.subr.mxu0 0.0
        %2093 = vmatpush1.msra.mxu0 %v1331
        %2094 = vmatprep.mubr.f32.mxu0 %v1139
        %2095 = vmatmul.mubr.f32.gmra.mrb[0].mxu0 %v1106
        %v2096 = vpop.f32.mrb[0].mxu0
        %v2097 = vadd.f32 %v1872, %v2096
        %v2098 = vpop.f32.mrb[0].mxu0
        %2099 = vmatprep.mubr.f32.mxu0 %v1140
        %2100 = vmatmul.mubr.f32.gmra.mrb[0].mxu0 %v1107
        %v2101 = vpop.f32.mrb[0].mxu0
        %v2102 = vadd.f32 %v1877, %v2101
        %v2103 = vpop.f32.mrb[0].mxu0
        %2104 = vmatprep.mubr.f32.mxu0 %v1141
        %2105 = vmatmul.mubr.f32.gmra.mrb[0].mxu0 %v1108
        %v2106 = vpop.f32.mrb[0].mxu0
        %v2107 = vadd.f32 %v1882, %v2106
        %v2108 = vpop.f32.mrb[0].mxu0
        %2109 = vmatprep.mubr.f32.mxu0 %v1142
        %2110 = vmatmul.mubr.f32.gmra.mrb[0].mxu0 %v1109
        %v2111 = vpop.f32.mrb[0].mxu0
        %v2112 = vadd.f32 %v1887, %v2111
        %v2113 = vpop.f32.mrb[0].mxu0
        %2114 = vmatprep.mubr.f32.mxu0 %v1143
        %2115 = vmatmul.mubr.f32.gmra.mrb[0].mxu0 %v1110
        %v2116 = vpop.f32.mrb[0].mxu0
        %v2117 = vadd.f32 %v1892, %v2116
        %v2118 = vpop.f32.mrb[0].mxu0
        %2119 = vmatprep.mubr.f32.mxu0 %v1144
        %2120 = vmatmul.mubr.f32.gmra.mrb[0].mxu0 %v1111
        %v2121 = vpop.f32.mrb[0].mxu0
        %v2122 = vadd.f32 %v1897, %v2121
        %v2123 = vpop.f32.mrb[0].mxu0
        %2124 = vmatprep.mubr.f32.mxu0 %v1145
        %2125 = vmatmul.mubr.f32.gmra.mrb[0].mxu0 %v1112
        %v2126 = vpop.f32.mrb[0].mxu0
        %v2127 = vadd.f32 %v1902, %v2126
        %v2128 = vpop.f32.mrb[0].mxu0
        %2129 = vmatprep.mubr.f32.mxu0 %v1146
        %2130 = vmatmul.mubr.f32.gmra.mrb[0].mxu0 %v1113
        %v2131 = vpop.f32.mrb[0].mxu0
        %v2132 = vadd.f32 %v1907, %v2131
        %v2133 = vpop.f32.mrb[0].mxu0
        %2134 = vmatprep.mubr.f32.mxu0 %v1147
        %2135 = vmatmul.mubr.f32.gmra.mrb[0].mxu0 %v1114
        %v2136 = vpop.f32.mrb[0].mxu0
        %v2137 = vadd.f32 %v1912, %v2136
        %v2138 = vpop.f32.mrb[0].mxu0
        %2139 = vmatprep.mubr.f32.mxu0 %v1148
        %2140 = vmatmul.mubr.f32.gmra.mrb[0].mxu0 %v1115
        %v2141 = vpop.f32.mrb[0].mxu0
        %v2142 = vadd.f32 %v1917, %v2141
        %v2143 = vpop.f32.mrb[0].mxu0
        %2144 = vmatprep.mubr.f32.mxu0 %v1149
        %2145 = vmatmul.mubr.f32.gmra.mrb[0].mxu0 %v1116
        %v2146 = vpop.f32.mrb[0].mxu0
        %v2147 = vadd.f32 %v1922, %v2146
        %v2148 = vpop.f32.mrb[0].mxu0
        %2149 = vmatprep.mubr.f32.mxu0 %v1150
        %2150 = vmatmul.mubr.f32.gmra.mrb[0].mxu0 %v1117
        %v2151 = vpop.f32.mrb[0].mxu0
        %v2152 = vadd.f32 %v1927, %v2151
        %v2153 = vpop.f32.mrb[0].mxu0
        %2154 = vmatprep.mubr.f32.mxu0 %v1151
        %2155 = vmatmul.mubr.f32.gmra.mrb[0].mxu0 %v1118
        %v2156 = vpop.f32.mrb[0].mxu0
        %v2157 = vadd.f32 %v1932, %v2156
        %v2158 = vpop.f32.mrb[0].mxu0
        %2159 = vmatprep.mubr.f32.mxu0 %v1152
        %2160 = vmatmul.mubr.f32.gmra.mrb[0].mxu0 %v1119
        %v2161 = vpop.f32.mrb[0].mxu0
        %v2162 = vadd.f32 %v1937, %v2161
        %v2163 = vpop.f32.mrb[0].mxu0
        %2164 = vmatprep.mubr.f32.mxu0 %v1153
        %2165 = vmatmul.mubr.f32.gmra.mrb[0].mxu0 %v1120
        %v2166 = vpop.f32.mrb[0].mxu0
        %v2167 = vadd.f32 %v1942, %v2166
        %v2168 = vpop.f32.mrb[0].mxu0
        %2169 = vmatprep.mubr.f32.mxu0 %v1154
        %2170 = vmatmul.mubr.f32.gmra.mrb[0].mxu0 %v1121
        %v2171 = vpop.f32.mrb[0].mxu0
        %v2172 = vadd.f32 %v1947, %v2171
        %v2173 = vpop.f32.mrb[0].mxu0
        %2174 = vmatprep.mubr.f32.mxu0 %v1155
        %2175 = vmatmul.mubr.f32.gmra.mrb[0].mxu0 %v1122
        %v2176 = vpop.f32.mrb[0].mxu0
        %v2177 = vadd.f32 %v1952, %v2176
        %v2178 = vpop.f32.mrb[0].mxu0
        %2179 = vmatprep.mubr.f32.mxu0 %v1156
        %2180 = vmatmul.mubr.f32.gmra.mrb[0].mxu0 %v1123
        %v2181 = vpop.f32.mrb[0].mxu0
        %v2182 = vadd.f32 %v1957, %v2181
        %v2183 = vpop.f32.mrb[0].mxu0
        %2184 = vmatprep.mubr.f32.mxu0 %v1157
        %2185 = vmatmul.mubr.f32.gmra.mrb[0].mxu0 %v1124
        %v2186 = vpop.f32.mrb[0].mxu0
        %v2187 = vadd.f32 %v1962, %v2186
        %v2188 = vpop.f32.mrb[0].mxu0
        %2189 = vmatprep.mubr.f32.mxu0 %v1158
        %2190 = vmatmul.mubr.f32.gmra.mrb[0].mxu0 %v1125
        %v2191 = vpop.f32.mrb[0].mxu0
        %v2192 = vadd.f32 %v1967, %v2191
        %v2193 = vpop.f32.mrb[0].mxu0
        %2194 = vmatprep.mubr.f32.mxu0 %v1159
        %2195 = vmatmul.mubr.f32.gmra.mrb[0].mxu0 %v1126
        %v2196 = vpop.f32.mrb[0].mxu0
        %v2197 = vadd.f32 %v1972, %v2196
        %v2198 = vpop.f32.mrb[0].mxu0
        %2199 = vmatprep.mubr.f32.mxu0 %v1160
        %2200 = vmatmul.mubr.f32.gmra.mrb[0].mxu0 %v1127
        %v2201 = vpop.f32.mrb[0].mxu0
        %v2202 = vadd.f32 %v1977, %v2201
        %v2203 = vpop.f32.mrb[0].mxu0
        %2204 = vmatprep.mubr.f32.mxu0 %v1161
        %2205 = vmatmul.mubr.f32.gmra.mrb[0].mxu0 %v1128
        %v2206 = vpop.f32.mrb[0].mxu0
        %v2207 = vadd.f32 %v1982, %v2206
        %v2208 = vpop.f32.mrb[0].mxu0
        %2209 = vmatprep.mubr.f32.mxu0 %v1162
        %2210 = vmatmul.mubr.f32.gmra.mrb[0].mxu0 %v1129
        %v2211 = vpop.f32.mrb[0].mxu0
        %v2212 = vadd.f32 %v1987, %v2211
        %v2213 = vpop.f32.mrb[0].mxu0
        %2214 = vmatprep.mubr.f32.mxu0 %v1163
        %2215 = vmatmul.mubr.f32.gmra.mrb[0].mxu0 %v1130
        %v2216 = vpop.f32.mrb[0].mxu0
        %v2217 = vadd.f32 %v1992, %v2216
        %v2218 = vpop.f32.mrb[0].mxu0
        %2219 = vmatprep.mubr.f32.mxu0 %v1164
        %2220 = vmatmul.mubr.f32.gmra.mrb[0].mxu0 %v1131
        %v2221 = vpop.f32.mrb[0].mxu0
        %v2222 = vadd.f32 %v1997, %v2221
        %v2223 = vpop.f32.mrb[0].mxu0
        %2224 = vmatprep.mubr.f32.mxu0 %v1165
        %2225 = vmatmul.mubr.f32.gmra.mrb[0].mxu0 %v1132
        %v2226 = vpop.f32.mrb[0].mxu0
        %v2227 = vadd.f32 %v2002, %v2226
        %v2228 = vpop.f32.mrb[0].mxu0
        %2229 = vmatprep.mubr.f32.mxu0 %v1166
        %2230 = vmatmul.mubr.f32.gmra.mrb[0].mxu0 %v1133
        %v2231 = vpop.f32.mrb[0].mxu0
        %v2232 = vadd.f32 %v2007, %v2231
        %v2233 = vpop.f32.mrb[0].mxu0
        %2234 = vmatprep.mubr.f32.mxu0 %v1167
        %2235 = vmatmul.mubr.f32.gmra.mrb[0].mxu0 %v1134
        %v2236 = vpop.f32.mrb[0].mxu0
        %v2237 = vadd.f32 %v2012, %v2236
        %v2238 = vpop.f32.mrb[0].mxu0
        %2239 = vmatprep.mubr.f32.mxu0 %v1168
        %2240 = vmatmul.mubr.f32.gmra.mrb[0].mxu0 %v1135
        %v2241 = vpop.f32.mrb[0].mxu0
        %v2242 = vadd.f32 %v2017, %v2241
        %v2243 = vpop.f32.mrb[0].mxu0
        %2244 = vmatprep.mubr.f32.mxu0 %v1169
        %2245 = vmatmul.mubr.f32.gmra.mrb[0].mxu0 %v1136
        %v2246 = vpop.f32.mrb[0].mxu0
        %v2247 = vadd.f32 %v2022, %v2246
        %v2248 = vpop.f32.mrb[0].mxu0
        %2249 = vmatprep.mubr.f32.mxu0 %v1170
        %2250 = vmatmul.mubr.f32.gmra.mrb[0].mxu0 %v1137
        %v2251 = vpop.f32.mrb[0].mxu0
        %v2252 = vadd.f32 %v2027, %v2251
        %v2253 = vpop.f32.mrb[0].mxu0
        %2254 = vdwg.mxu0
        %2255 = vmatprep.subr.mxu0 0.0
        %2256 = vmatpush1.msra.mxu0 %v1332
        %2257 = vmatprep.subr.mxu0 0.0
        %2258 = vmatpush1.msra.mxu0 %v1333
        %2259 = vmatprep.subr.mxu0 0.0
        %2260 = vmatpush1.msra.mxu0 %v1334
        %2261 = vmatprep.subr.mxu0 0.0
        %2262 = vmatpush1.msra.mxu0 %v1335
        %2263 = vmatprep.subr.mxu0 0.0
        %2264 = vmatpush1.msra.mxu0 %v1336
        %2265 = vmatprep.subr.mxu0 0.0
        %2266 = vmatpush1.msra.mxu0 %v1337
        %2267 = vmatprep.subr.mxu0 0.0
        %2268 = vmatpush1.msra.mxu0 %v1338
        %2269 = vmatprep.subr.mxu0 0.0
        %2270 = vmatpush1.msra.mxu0 %v1339
        %2271 = vmatprep.subr.mxu0 0.0
        %2272 = vmatpush1.msra.mxu0 %v1340
        %2273 = vmatprep.subr.mxu0 0.0
        %2274 = vmatpush1.msra.mxu0 %v1341
        %2275 = vmatprep.subr.mxu0 0.0
        %2276 = vmatpush1.msra.mxu0 %v1342
        %2277 = vmatprep.subr.mxu0 0.0
        %2278 = vmatpush1.msra.mxu0 %v1343
        %2279 = vmatprep.subr.mxu0 0.0
        %2280 = vmatpush1.msra.mxu0 %v1344
        %2281 = vmatprep.subr.mxu0 0.0
        %2282 = vmatpush1.msra.mxu0 %v1345
        %2283 = vmatprep.subr.mxu0 0.0
        %2284 = vmatpush1.msra.mxu0 %v1346
        %2285 = vmatprep.subr.mxu0 0.0
        %2286 = vmatpush1.msra.mxu0 %v1347
        %2287 = vmatprep.subr.mxu0 0.0
        %2288 = vmatpush1.msra.mxu0 0.0
        %2289 = vmatprep.subr.mxu0 0.0
        %2290 = vmatpush1.msra.mxu0 0.0
        %2291 = vmatprep.subr.mxu0 0.0
        %2292 = vmatpush1.msra.mxu0 0.0
        %2293 = vmatprep.subr.mxu0 0.0
        %2294 = vmatpush1.msra.mxu0 0.0
        %2295 = vmatprep.subr.mxu0 0.0
        %2296 = vmatpush1.msra.mxu0 0.0
        %2297 = vmatprep.subr.mxu0 0.0
        %2298 = vmatpush1.msra.mxu0 0.0
        %2299 = vmatprep.subr.mxu0 0.0
        %2300 = vmatpush1.msra.mxu0 0.0
        %2301 = vmatprep.subr.mxu0 0.0
        %2302 = vmatpush1.msra.mxu0 0.0
        %2303 = vmatprep.subr.mxu0 0.0
        %2304 = vmatpush1.msra.mxu0 0.0
        %2305 = vmatprep.subr.mxu0 0.0
        %2306 = vmatpush1.msra.mxu0 0.0
        %2307 = vmatprep.subr.mxu0 0.0
        %2308 = vmatpush1.msra.mxu0 0.0
        %2309 = vmatprep.subr.mxu0 0.0
        %2310 = vmatpush1.msra.mxu0 0.0
        %2311 = vmatprep.subr.mxu0 0.0
        %2312 = vmatpush1.msra.mxu0 0.0
        %2313 = vmatprep.subr.mxu0 0.0
        %2314 = vmatpush1.msra.mxu0 0.0
        %2315 = vmatprep.subr.mxu0 0.0
        %2316 = vmatpush1.msra.mxu0 0.0
        %2317 = vmatprep.subr.mxu0 0.0
        %2318 = vmatpush1.msra.mxu0 0.0
        %2319 = vmatprep.mubr.f32.mxu0 0.0
        %2320 = vmatmul.mubr.f32.gmra.mrb[0].mxu0 %v1172
        %v2321 = vpop.f32.mrb[0].mxu0
        %v2322 = vadd.f32 %v2097, %v2321
        %v2323 = vpop.f32.mrb[0].mxu0
        %2324 = vmatprep.mubr.f32.mxu0 0.0
        %2325 = vmatmul.mubr.f32.gmra.mrb[0].mxu0 %v1173
        %v2326 = vpop.f32.mrb[0].mxu0
        %v2327 = vadd.f32 %v2102, %v2326
        %v2328 = vpop.f32.mrb[0].mxu0
        %2329 = vmatprep.mubr.f32.mxu0 0.0
        %2330 = vmatmul.mubr.f32.gmra.mrb[0].mxu0 %v1174
        %v2331 = vpop.f32.mrb[0].mxu0
        %v2332 = vadd.f32 %v2107, %v2331
        %v2333 = vpop.f32.mrb[0].mxu0
        %2334 = vmatprep.mubr.f32.mxu0 0.0
        %2335 = vmatmul.mubr.f32.gmra.mrb[0].mxu0 %v1175
        %v2336 = vpop.f32.mrb[0].mxu0
        %v2337 = vadd.f32 %v2112, %v2336
        %v2338 = vpop.f32.mrb[0].mxu0
        %2339 = vmatprep.mubr.f32.mxu0 0.0
        %2340 = vmatmul.mubr.f32.gmra.mrb[0].mxu0 %v1176
        %v2341 = vpop.f32.mrb[0].mxu0
        %v2342 = vadd.f32 %v2117, %v2341
        %v2343 = vpop.f32.mrb[0].mxu0
        %2344 = vmatprep.mubr.f32.mxu0 0.0
        %2345 = vmatmul.mubr.f32.gmra.mrb[0].mxu0 %v1177
        %v2346 = vpop.f32.mrb[0].mxu0
        %v2347 = vadd.f32 %v2122, %v2346
        %v2348 = vpop.f32.mrb[0].mxu0
        %2349 = vmatprep.mubr.f32.mxu0 0.0
        %2350 = vmatmul.mubr.f32.gmra.mrb[0].mxu0 %v1178
        %v2351 = vpop.f32.mrb[0].mxu0
        %v2352 = vadd.f32 %v2127, %v2351
        %v2353 = vpop.f32.mrb[0].mxu0
        %2354 = vmatprep.mubr.f32.mxu0 0.0
        %2355 = vmatmul.mubr.f32.gmra.mrb[0].mxu0 %v1179
        %v2356 = vpop.f32.mrb[0].mxu0
        %v2357 = vadd.f32 %v2132, %v2356
        %v2358 = vpop.f32.mrb[0].mxu0
        %2359 = vmatprep.mubr.f32.mxu0 0.0
        %2360 = vmatmul.mubr.f32.gmra.mrb[0].mxu0 %v1180
        %v2361 = vpop.f32.mrb[0].mxu0
        %v2362 = vadd.f32 %v2137, %v2361
        %v2363 = vpop.f32.mrb[0].mxu0
        %2364 = vmatprep.mubr.f32.mxu0 0.0
        %2365 = vmatmul.mubr.f32.gmra.mrb[0].mxu0 %v1181
        %v2366 = vpop.f32.mrb[0].mxu0
        %v2367 = vadd.f32 %v2142, %v2366
        %v2368 = vpop.f32.mrb[0].mxu0
        %2369 = vmatprep.mubr.f32.mxu0 0.0
        %2370 = vmatmul.mubr.f32.gmra.mrb[0].mxu0 %v1182
        %v2371 = vpop.f32.mrb[0].mxu0
        %v2372 = vadd.f32 %v2147, %v2371
        %v2373 = vpop.f32.mrb[0].mxu0
        %2374 = vmatprep.mubr.f32.mxu0 0.0
        %2375 = vmatmul.mubr.f32.gmra.mrb[0].mxu0 %v1183
        %v2376 = vpop.f32.mrb[0].mxu0
        %v2377 = vadd.f32 %v2152, %v2376
        %v2378 = vpop.f32.mrb[0].mxu0
        %2379 = vmatprep.mubr.f32.mxu0 0.0
        %2380 = vmatmul.mubr.f32.gmra.mrb[0].mxu0 %v1184
        %v2381 = vpop.f32.mrb[0].mxu0
        %v2382 = vadd.f32 %v2157, %v2381
        %v2383 = vpop.f32.mrb[0].mxu0
        %2384 = vmatprep.mubr.f32.mxu0 0.0
        %2385 = vmatmul.mubr.f32.gmra.mrb[0].mxu0 %v1185
        %v2386 = vpop.f32.mrb[0].mxu0
        %v2387 = vadd.f32 %v2162, %v2386
        %v2388 = vpop.f32.mrb[0].mxu0
        %2389 = vmatprep.mubr.f32.mxu0 0.0
        %2390 = vmatmul.mubr.f32.gmra.mrb[0].mxu0 %v1186
        %v2391 = vpop.f32.mrb[0].mxu0
        %v2392 = vadd.f32 %v2167, %v2391
        %v2393 = vpop.f32.mrb[0].mxu0
        %2394 = vmatprep.mubr.f32.mxu0 0.0
        %2395 = vmatmul.mubr.f32.gmra.mrb[0].mxu0 %v1187
        %v2396 = vpop.f32.mrb[0].mxu0
        %v2397 = vadd.f32 %v2172, %v2396
        %v2398 = vpop.f32.mrb[0].mxu0
        %2399 = vmatprep.mubr.f32.mxu0 0.0
        %2400 = vmatmul.mubr.f32.gmra.mrb[0].mxu0 %v1188
        %v2401 = vpop.f32.mrb[0].mxu0
        %v2402 = vadd.f32 %v2177, %v2401
        %v2403 = vpop.f32.mrb[0].mxu0
        %2404 = vmatprep.mubr.f32.mxu0 0.0
        %2405 = vmatmul.mubr.f32.gmra.mrb[0].mxu0 %v1189
        %v2406 = vpop.f32.mrb[0].mxu0
        %v2407 = vadd.f32 %v2182, %v2406
        %v2408 = vpop.f32.mrb[0].mxu0
        %2409 = vmatprep.mubr.f32.mxu0 0.0
        %2410 = vmatmul.mubr.f32.gmra.mrb[0].mxu0 %v1190
        %v2411 = vpop.f32.mrb[0].mxu0
        %v2412 = vadd.f32 %v2187, %v2411
        %v2413 = vpop.f32.mrb[0].mxu0
        %2414 = vmatprep.mubr.f32.mxu0 0.0
        %2415 = vmatmul.mubr.f32.gmra.mrb[0].mxu0 %v1191
        %v2416 = vpop.f32.mrb[0].mxu0
        %v2417 = vadd.f32 %v2192, %v2416
        %v2418 = vpop.f32.mrb[0].mxu0
        %2419 = vmatprep.mubr.f32.mxu0 0.0
        %2420 = vmatmul.mubr.f32.gmra.mrb[0].mxu0 %v1192
        %v2421 = vpop.f32.mrb[0].mxu0
        %v2422 = vadd.f32 %v2197, %v2421
        %v2423 = vpop.f32.mrb[0].mxu0
        %2424 = vmatprep.mubr.f32.mxu0 0.0
        %2425 = vmatmul.mubr.f32.gmra.mrb[0].mxu0 %v1193
        %v2426 = vpop.f32.mrb[0].mxu0
        %v2427 = vadd.f32 %v2202, %v2426
        %v2428 = vpop.f32.mrb[0].mxu0
        %2429 = vmatprep.mubr.f32.mxu0 0.0
        %2430 = vmatmul.mubr.f32.gmra.mrb[0].mxu0 %v1194
        %v2431 = vpop.f32.mrb[0].mxu0
        %v2432 = vadd.f32 %v2207, %v2431
        %v2433 = vpop.f32.mrb[0].mxu0
        %2434 = vmatprep.mubr.f32.mxu0 0.0
        %2435 = vmatmul.mubr.f32.gmra.mrb[0].mxu0 %v1195
        %v2436 = vpop.f32.mrb[0].mxu0
        %v2437 = vadd.f32 %v2212, %v2436
        %v2438 = vpop.f32.mrb[0].mxu0
        %2439 = vmatprep.mubr.f32.mxu0 0.0
        %2440 = vmatmul.mubr.f32.gmra.mrb[0].mxu0 %v1196
        %v2441 = vpop.f32.mrb[0].mxu0
        %v2442 = vadd.f32 %v2217, %v2441
        %v2443 = vpop.f32.mrb[0].mxu0
        %2444 = vmatprep.mubr.f32.mxu0 0.0
        %2445 = vmatmul.mubr.f32.gmra.mrb[0].mxu0 %v1197
        %v2446 = vpop.f32.mrb[0].mxu0
        %v2447 = vadd.f32 %v2222, %v2446
        %v2448 = vpop.f32.mrb[0].mxu0
        %2449 = vmatprep.mubr.f32.mxu0 0.0
        %2450 = vmatmul.mubr.f32.gmra.mrb[0].mxu0 %v1198
        %v2451 = vpop.f32.mrb[0].mxu0
        %v2452 = vadd.f32 %v2227, %v2451
        %v2453 = vpop.f32.mrb[0].mxu0
        %2454 = vmatprep.mubr.f32.mxu0 0.0
        %2455 = vmatmul.mubr.f32.gmra.mrb[0].mxu0 %v1199
        %v2456 = vpop.f32.mrb[0].mxu0
        %v2457 = vadd.f32 %v2232, %v2456
        %v2458 = vpop.f32.mrb[0].mxu0
        %2459 = vmatprep.mubr.f32.mxu0 0.0
        %2460 = vmatmul.mubr.f32.gmra.mrb[0].mxu0 %v1200
        %v2461 = vpop.f32.mrb[0].mxu0
        %v2462 = vadd.f32 %v2237, %v2461
        %v2463 = vpop.f32.mrb[0].mxu0
        %2464 = vmatprep.mubr.f32.mxu0 0.0
        %2465 = vmatmul.mubr.f32.gmra.mrb[0].mxu0 %v1201
        %v2466 = vpop.f32.mrb[0].mxu0
        %v2467 = vadd.f32 %v2242, %v2466
        %v2468 = vpop.f32.mrb[0].mxu0
        %2469 = vmatprep.mubr.f32.mxu0 0.0
        %2470 = vmatmul.mubr.f32.gmra.mrb[0].mxu0 %v1202
        %v2471 = vpop.f32.mrb[0].mxu0
        %v2472 = vadd.f32 %v2247, %v2471
        %v2473 = vpop.f32.mrb[0].mxu0
        %2474 = vmatprep.mubr.f32.mxu0 0.0
        %2475 = vmatmul.mubr.f32.gmra.mrb[0].mxu0 %v1203
        %v2476 = vpop.f32.mrb[0].mxu0
        %v2477 = vadd.f32 %v2252, %v2476
        %v2478 = vpop.f32.mrb[0].mxu0
        %2479 = vdwg.mxu0
        %s2480 = scalar_lea.vmem [#allocation2], 32
        %2481 = vst [vmem:[%s2480 + $0x8] sm:$0xff] %v2322
        %2482 = vst [vmem:[%s2480 + $0x10] sm:$0xff] %v2327
        %2483 = vst [vmem:[%s2480 + $0x28] sm:$0xff] %v2332
        %2484 = vst [vmem:[%s2480 + $0x30] sm:$0xff] %v2337
        %2485 = vst [vmem:[%s2480 + $0x48] sm:$0xff] %v2342
        %2486 = vst [vmem:[%s2480 + $0x50] sm:$0xff] %v2347
        %2487 = vst [vmem:[%s2480 + $0x68] sm:$0xff] %v2352
        %2488 = vst [vmem:[%s2480 + $0x70] sm:$0xff] %v2357
        %2489 = vst [vmem:[%s2480 + $0x88] sm:$0xff] %v2362
        %2490 = vst [vmem:[%s2480 + $0x90] sm:$0xff] %v2367
        %2491 = vst [vmem:[%s2480 + $0xa8] sm:$0xff] %v2372
        %2492 = vst [vmem:[%s2480 + $0xb0] sm:$0xff] %v2377
        %2493 = vst [vmem:[%s2480 + $0xc8] sm:$0xff] %v2382
        %2494 = vst [vmem:[%s2480 + $0xd0] sm:$0xff] %v2387
        %2495 = vst [vmem:[%s2480 + $0xe8] sm:$0xff] %v2392
        %2496 = vst [vmem:[%s2480 + $0xf0] sm:$0xff] %v2397
        %2497 = vst [vmem:[%s2480 + $0x108] sm:$0xff] %v2402
        %2498 = vst [vmem:[%s2480 + $0x110] sm:$0xff] %v2407
        %2499 = vst [vmem:[%s2480 + $0x128] sm:$0xff] %v2412
        %2500 = vst [vmem:[%s2480 + $0x130] sm:$0xff] %v2417
        %2501 = vst [vmem:[%s2480 + $0x148] sm:$0xff] %v2422
        %2502 = vst [vmem:[%s2480 + $0x150] sm:$0xff] %v2427
        %2503 = vst [vmem:[%s2480 + $0x168] sm:$0xff] %v2432
        %2504 = vst [vmem:[%s2480 + $0x170] sm:$0xff] %v2437
        %2505 = vst [vmem:[%s2480 + $0x188] sm:$0xff] %v2442
        %2506 = vst [vmem:[%s2480 + $0x190] sm:$0xff] %v2447
        %2507 = vst [vmem:[%s2480 + $0x1a8] sm:$0xff] %v2452
        %2508 = vst [vmem:[%s2480 + $0x1b0] sm:$0xff] %v2457
        %2509 = vst [vmem:[%s2480 + $0x1c8] sm:$0xff] %v2462
        %2510 = vst [vmem:[%s2480 + $0x1d0] sm:$0xff] %v2467
        %2511 = vst [vmem:[%s2480 + $0x1e8] sm:$0xff] %v2472
        %2512 = vst [vmem:[%s2480 + $0x1f0] sm:$0xff] %v2477
        %v2513 = vld [vmem:[#allocation2 + $0x7] sm:$0xff]
        %v2514 = vld [vmem:[#allocation2 + $0xf] sm:$0xff]
        %v2515 = vld [vmem:[#allocation2 + $0x27] sm:$0xff]
        %v2516 = vld [vmem:[#allocation2 + $0x2f] sm:$0xff]
        %v2517 = vld [vmem:[#allocation2 + $0x47] sm:$0xff]
        %v2518 = vld [vmem:[#allocation2 + $0x4f] sm:$0xff]
        %v2519 = vld [vmem:[#allocation2 + $0x67] sm:$0xff]
        %v2520 = vld [vmem:[#allocation2 + $0x6f] sm:$0xff]
        %v2521 = vld [vmem:[#allocation2 + $0x87] sm:$0xff]
        %v2522 = vld [vmem:[#allocation2 + $0x8f] sm:$0xff]
        %v2523 = vld [vmem:[#allocation2 + $0xa7] sm:$0xff]
        %v2524 = vld [vmem:[#allocation2 + $0xaf] sm:$0xff]
        %v2525 = vld [vmem:[#allocation2 + $0xc7] sm:$0xff]
        %v2526 = vld [vmem:[#allocation2 + $0xcf] sm:$0xff]
        %v2527 = vld [vmem:[#allocation2 + $0xe7] sm:$0xff]
        %v2528 = vld [vmem:[#allocation2 + $0xef] sm:$0xff]
        %v2529 = vld [vmem:[#allocation2 + $0x107] sm:$0xff]
        %v2530 = vld [vmem:[#allocation2 + $0x10f] sm:$0xff]
        %v2531 = vld [vmem:[#allocation2 + $0x127] sm:$0xff]
        %v2532 = vld [vmem:[#allocation2 + $0x12f] sm:$0xff]
        %v2533 = vld [vmem:[#allocation2 + $0x147] sm:$0xff]
        %v2534 = vld [vmem:[#allocation2 + $0x14f] sm:$0xff]
        %v2535 = vld [vmem:[#allocation2 + $0x167] sm:$0xff]
        %v2536 = vld [vmem:[#allocation2 + $0x16f] sm:$0xff]
        %v2537 = vld [vmem:[#allocation2 + $0x187] sm:$0xff]
        %v2538 = vld [vmem:[#allocation2 + $0x18f] sm:$0xff]
        %v2539 = vld [vmem:[#allocation2 + $0x1a7] sm:$0xff]
        %v2540 = vld [vmem:[#allocation2 + $0x1af] sm:$0xff]
        %v2541 = vld [vmem:[#allocation2 + $0x1c7] sm:$0xff]
        %v2542 = vld [vmem:[#allocation2 + $0x1cf] sm:$0xff]
        %v2543 = vld [vmem:[#allocation2 + $0x1e7] sm:$0xff]
        %v2544 = vld [vmem:[#allocation2 + $0x1ef] sm:$0xff]
        %v2545 = vld [vmem:[#allocation2 + $0x207] sm:$0xff]
        %v2546 = vld [vmem:[#allocation2 + $0x20f] sm:$0xff]
        %v2547 = vld [vmem:[#allocation2 + $0x227] sm:$0xff]
        %v2548 = vld [vmem:[#allocation2 + $0x22f] sm:$0xff]
        %2549 = vst [vmem:[#allocation3] sm:$0xff] %v2513
        %2550 = vst [vmem:[#allocation3 + $0x8] sm:$0xff] %v2514
        %2551 = vst [vmem:[#allocation3 + $0x10] sm:$0xff] %v2515
        %2552 = vst [vmem:[#allocation3 + $0x18] sm:$0xff] %v2516
        %2553 = vst [vmem:[#allocation3 + $0x20] sm:$0xff] %v2517
        %2554 = vst [vmem:[#allocation3 + $0x28] sm:$0xff] %v2518
        %2555 = vst [vmem:[#allocation3 + $0x30] sm:$0xff] %v2519
        %2556 = vst [vmem:[#allocation3 + $0x38] sm:$0xff] %v2520
        %2557 = vst [vmem:[#allocation3 + $0x40] sm:$0xff] %v2521
        %2558 = vst [vmem:[#allocation3 + $0x48] sm:$0xff] %v2522
        %2559 = vst [vmem:[#allocation3 + $0x50] sm:$0xff] %v2523
        %2560 = vst [vmem:[#allocation3 + $0x58] sm:$0xff] %v2524
        %2561 = vst [vmem:[#allocation3 + $0x60] sm:$0xff] %v2525
        %2562 = vst [vmem:[#allocation3 + $0x68] sm:$0xff] %v2526
        %2563 = vst [vmem:[#allocation3 + $0x70] sm:$0xff] %v2527
        %2564 = vst [vmem:[#allocation3 + $0x78] sm:$0xff] %v2528
        %2565 = vst [vmem:[#allocation3 + $0x80] sm:$0xff] %v2529
        %2566 = vst [vmem:[#allocation3 + $0x88] sm:$0xff] %v2530
        %2567 = vst [vmem:[#allocation3 + $0x90] sm:$0xff] %v2531
        %2568 = vst [vmem:[#allocation3 + $0x98] sm:$0xff] %v2532
        %2569 = vst [vmem:[#allocation3 + $0xa0] sm:$0xff] %v2533
        %2570 = vst [vmem:[#allocation3 + $0xa8] sm:$0xff] %v2534
        %2571 = vst [vmem:[#allocation3 + $0xb0] sm:$0xff] %v2535
        %2572 = vst [vmem:[#allocation3 + $0xb8] sm:$0xff] %v2536
        %2573 = vst [vmem:[#allocation3 + $0xc0] sm:$0xff] %v2537
        %2574 = vst [vmem:[#allocation3 + $0xc8] sm:$0xff] %v2538
        %2575 = vst [vmem:[#allocation3 + $0xd0] sm:$0xff] %v2539
        %2576 = vst [vmem:[#allocation3 + $0xd8] sm:$0xff] %v2540
        %2577 = vst [vmem:[#allocation3 + $0xe0] sm:$0xff] %v2541
        %2578 = vst [vmem:[#allocation3 + $0xe8] sm:$0xff] %v2542
        %2579 = vst [vmem:[#allocation3 + $0xf0] sm:$0xff] %v2543
        %2580 = vst [vmem:[#allocation3 + $0xf8] sm:$0xff] %v2544
        %2581 = vst [vmem:[#allocation3 + $0x100] sm:$0xff] %v2545
        %2582 = vst [vmem:[#allocation3 + $0x108] sm:$0xff] %v2546
        %2583 = vst [vmem:[#allocation3 + $0x110] sm:$0xff] %v2547
        %2584 = vst [vmem:[#allocation3 + $0x118] sm:$0xff] %v2548
        %v2585 = vld [vmem:[#allocation2 + $0x8] sm:$0xff]
        %v2586 = vld [vmem:[#allocation2 + $0x10] sm:$0xff]
        %v2587 = vld [vmem:[#allocation2 + $0x28] sm:$0xff]
        %v2588 = vld [vmem:[#allocation2 + $0x30] sm:$0xff]
        %v2589 = vld [vmem:[#allocation2 + $0x48] sm:$0xff]
        %v2590 = vld [vmem:[#allocation2 + $0x50] sm:$0xff]
        %v2591 = vld [vmem:[#allocation2 + $0x68] sm:$0xff]
        %v2592 = vld [vmem:[#allocation2 + $0x70] sm:$0xff]
        %v2593 = vld [vmem:[#allocation2 + $0x88] sm:$0xff]
        %v2594 = vld [vmem:[#allocation2 + $0x90] sm:$0xff]
        %v2595 = vld [vmem:[#allocation2 + $0xa8] sm:$0xff]
        %v2596 = vld [vmem:[#allocation2 + $0xb0] sm:$0xff]
        %v2597 = vld [vmem:[#allocation2 + $0xc8] sm:$0xff]
        %v2598 = vld [vmem:[#allocation2 + $0xd0] sm:$0xff]
        %v2599 = vld [vmem:[#allocation2 + $0xe8] sm:$0xff]
        %v2600 = vld [vmem:[#allocation2 + $0xf0] sm:$0xff]
        %v2601 = vld [vmem:[#allocation2 + $0x108] sm:$0xff]
        %v2602 = vld [vmem:[#allocation2 + $0x110] sm:$0xff]
        %v2603 = vld [vmem:[#allocation2 + $0x128] sm:$0xff]
        %v2604 = vld [vmem:[#allocation2 + $0x130] sm:$0xff]
        %v2605 = vld [vmem:[#allocation2 + $0x148] sm:$0xff]
        %v2606 = vld [vmem:[#allocation2 + $0x150] sm:$0xff]
        %v2607 = vld [vmem:[#allocation2 + $0x168] sm:$0xff]
        %v2608 = vld [vmem:[#allocation2 + $0x170] sm:$0xff]
        %v2609 = vld [vmem:[#allocation2 + $0x188] sm:$0xff]
        %v2610 = vld [vmem:[#allocation2 + $0x190] sm:$0xff]
        %v2611 = vld [vmem:[#allocation2 + $0x1a8] sm:$0xff]
        %v2612 = vld [vmem:[#allocation2 + $0x1b0] sm:$0xff]
        %v2613 = vld [vmem:[#allocation2 + $0x1c8] sm:$0xff]
        %v2614 = vld [vmem:[#allocation2 + $0x1d0] sm:$0xff]
        %v2615 = vld [vmem:[#allocation2 + $0x1e8] sm:$0xff]
        %v2616 = vld [vmem:[#allocation2 + $0x1f0] sm:$0xff]
        %v2617 = vld [vmem:[#allocation2 + $0x208] sm:$0xff]
        %v2618 = vld [vmem:[#allocation2 + $0x210] sm:$0xff]
        %v2619 = vld [vmem:[#allocation2 + $0x228] sm:$0xff]
        %v2620 = vld [vmem:[#allocation2 + $0x230] sm:$0xff]
        %2621 = vst [vmem:[%s800] sm:$0xff] %v2585
        %2622 = vst [vmem:[%s800 + $0x8] sm:$0xff] %v2586
        %2623 = vst [vmem:[%s800 + $0x10] sm:$0xff] %v2587
        %2624 = vst [vmem:[%s800 + $0x18] sm:$0xff] %v2588
        %2625 = vst [vmem:[%s800 + $0x20] sm:$0xff] %v2589
        %2626 = vst [vmem:[%s800 + $0x28] sm:$0xff] %v2590
        %2627 = vst [vmem:[%s800 + $0x30] sm:$0xff] %v2591
        %2628 = vst [vmem:[%s800 + $0x38] sm:$0xff] %v2592
        %2629 = vst [vmem:[%s800 + $0x40] sm:$0xff] %v2593
        %2630 = vst [vmem:[%s800 + $0x48] sm:$0xff] %v2594
        %2631 = vst [vmem:[%s800 + $0x50] sm:$0xff] %v2595
        %2632 = vst [vmem:[%s800 + $0x58] sm:$0xff] %v2596
        %2633 = vst [vmem:[%s800 + $0x60] sm:$0xff] %v2597
        %2634 = vst [vmem:[%s800 + $0x68] sm:$0xff] %v2598
        %2635 = vst [vmem:[%s800 + $0x70] sm:$0xff] %v2599
        %2636 = vst [vmem:[%s800 + $0x78] sm:$0xff] %v2600
        %2637 = vst [vmem:[%s800 + $0x80] sm:$0xff] %v2601
        %2638 = vst [vmem:[%s800 + $0x88] sm:$0xff] %v2602
        %2639 = vst [vmem:[%s800 + $0x90] sm:$0xff] %v2603
        %2640 = vst [vmem:[%s800 + $0x98] sm:$0xff] %v2604
        %2641 = vst [vmem:[%s800 + $0xa0] sm:$0xff] %v2605
        %2642 = vst [vmem:[%s800 + $0xa8] sm:$0xff] %v2606
        %2643 = vst [vmem:[%s800 + $0xb0] sm:$0xff] %v2607
        %2644 = vst [vmem:[%s800 + $0xb8] sm:$0xff] %v2608
        %2645 = vst [vmem:[%s800 + $0xc0] sm:$0xff] %v2609
        %2646 = vst [vmem:[%s800 + $0xc8] sm:$0xff] %v2610
        %2647 = vst [vmem:[%s800 + $0xd0] sm:$0xff] %v2611
        %2648 = vst [vmem:[%s800 + $0xd8] sm:$0xff] %v2612
        %2649 = vst [vmem:[%s800 + $0xe0] sm:$0xff] %v2613
        %2650 = vst [vmem:[%s800 + $0xe8] sm:$0xff] %v2614
        %2651 = vst [vmem:[%s800 + $0xf0] sm:$0xff] %v2615
        %2652 = vst [vmem:[%s800 + $0xf8] sm:$0xff] %v2616
        %2653 = vst [vmem:[%s800 + $0x100] sm:$0xff] %v2617
        %2654 = vst [vmem:[%s800 + $0x108] sm:$0xff] %v2618
        %2655 = vst [vmem:[%s800 + $0x110] sm:$0xff] %v2619
        %2656 = vst [vmem:[%s800 + $0x118] sm:$0xff] %v2620
        %v2657 = vld [vmem:[#allocation2 + $0x9] sm:$0xff]
        %v2658 = vld [vmem:[#allocation2 + $0x11] sm:$0xff]
        %v2659 = vld [vmem:[#allocation2 + $0x29] sm:$0xff]
        %v2660 = vld [vmem:[#allocation2 + $0x31] sm:$0xff]
        %v2661 = vld [vmem:[#allocation2 + $0x49] sm:$0xff]
        %v2662 = vld [vmem:[#allocation2 + $0x51] sm:$0xff]
        %v2663 = vld [vmem:[#allocation2 + $0x69] sm:$0xff]
        %v2664 = vld [vmem:[#allocation2 + $0x71] sm:$0xff]
        %v2665 = vld [vmem:[#allocation2 + $0x89] sm:$0xff]
        %v2666 = vld [vmem:[#allocation2 + $0x91] sm:$0xff]
        %v2667 = vld [vmem:[#allocation2 + $0xa9] sm:$0xff]
        %v2668 = vld [vmem:[#allocation2 + $0xb1] sm:$0xff]
        %v2669 = vld [vmem:[#allocation2 + $0xc9] sm:$0xff]
        %v2670 = vld [vmem:[#allocation2 + $0xd1] sm:$0xff]
        %v2671 = vld [vmem:[#allocation2 + $0xe9] sm:$0xff]
        %v2672 = vld [vmem:[#allocation2 + $0xf1] sm:$0xff]
        %v2673 = vld [vmem:[#allocation2 + $0x109] sm:$0xff]
        %v2674 = vld [vmem:[#allocation2 + $0x111] sm:$0xff]
        %v2675 = vld [vmem:[#allocation2 + $0x129] sm:$0xff]
        %v2676 = vld [vmem:[#allocation2 + $0x131] sm:$0xff]
        %v2677 = vld [vmem:[#allocation2 + $0x149] sm:$0xff]
        %v2678 = vld [vmem:[#allocation2 + $0x151] sm:$0xff]
        %v2679 = vld [vmem:[#allocation2 + $0x169] sm:$0xff]
        %v2680 = vld [vmem:[#allocation2 + $0x171] sm:$0xff]
        %v2681 = vld [vmem:[#allocation2 + $0x189] sm:$0xff]
        %v2682 = vld [vmem:[#allocation2 + $0x191] sm:$0xff]
        %v2683 = vld [vmem:[#allocation2 + $0x1a9] sm:$0xff]
        %v2684 = vld [vmem:[#allocation2 + $0x1b1] sm:$0xff]
        %v2685 = vld [vmem:[#allocation2 + $0x1c9] sm:$0xff]
        %v2686 = vld [vmem:[#allocation2 + $0x1d1] sm:$0xff]
        %v2687 = vld [vmem:[#allocation2 + $0x1e9] sm:$0xff]
        %v2688 = vld [vmem:[#allocation2 + $0x1f1] sm:$0xff]
        %v2689 = vld [vmem:[#allocation2 + $0x209] sm:$0xff]
        %v2690 = vld [vmem:[#allocation2 + $0x211] sm:$0xff]
        %v2691 = vld [vmem:[#allocation2 + $0x229] sm:$0xff]
        %v2692 = vld [vmem:[#allocation2 + $0x231] sm:$0xff]
        %2693 = vst [vmem:[%s873] sm:$0xff] %v2657
        %2694 = vst [vmem:[%s873 + $0x8] sm:$0xff] %v2658
        %2695 = vst [vmem:[%s873 + $0x10] sm:$0xff] %v2659
        %2696 = vst [vmem:[%s873 + $0x18] sm:$0xff] %v2660
        %2697 = vst [vmem:[%s873 + $0x20] sm:$0xff] %v2661
        %2698 = vst [vmem:[%s873 + $0x28] sm:$0xff] %v2662
        %2699 = vst [vmem:[%s873 + $0x30] sm:$0xff] %v2663
        %2700 = vst [vmem:[%s873 + $0x38] sm:$0xff] %v2664
        %2701 = vst [vmem:[%s873 + $0x40] sm:$0xff] %v2665
        %2702 = vst [vmem:[%s873 + $0x48] sm:$0xff] %v2666
        %2703 = vst [vmem:[%s873 + $0x50] sm:$0xff] %v2667
        %2704 = vst [vmem:[%s873 + $0x58] sm:$0xff] %v2668
        %2705 = vst [vmem:[%s873 + $0x60] sm:$0xff] %v2669
        %2706 = vst [vmem:[%s873 + $0x68] sm:$0xff] %v2670
        %2707 = vst [vmem:[%s873 + $0x70] sm:$0xff] %v2671
        %2708 = vst [vmem:[%s873 + $0x78] sm:$0xff] %v2672
        %2709 = vst [vmem:[%s873 + $0x80] sm:$0xff] %v2673
        %2710 = vst [vmem:[%s873 + $0x88] sm:$0xff] %v2674
        %2711 = vst [vmem:[%s873 + $0x90] sm:$0xff] %v2675
        %2712 = vst [vmem:[%s873 + $0x98] sm:$0xff] %v2676
        %2713 = vst [vmem:[%s873 + $0xa0] sm:$0xff] %v2677
        %2714 = vst [vmem:[%s873 + $0xa8] sm:$0xff] %v2678
        %2715 = vst [vmem:[%s873 + $0xb0] sm:$0xff] %v2679
        %2716 = vst [vmem:[%s873 + $0xb8] sm:$0xff] %v2680
        %2717 = vst [vmem:[%s873 + $0xc0] sm:$0xff] %v2681
        %2718 = vst [vmem:[%s873 + $0xc8] sm:$0xff] %v2682
        %2719 = vst [vmem:[%s873 + $0xd0] sm:$0xff] %v2683
        %2720 = vst [vmem:[%s873 + $0xd8] sm:$0xff] %v2684
        %2721 = vst [vmem:[%s873 + $0xe0] sm:$0xff] %v2685
        %2722 = vst [vmem:[%s873 + $0xe8] sm:$0xff] %v2686
        %2723 = vst [vmem:[%s873 + $0xf0] sm:$0xff] %v2687
        %2724 = vst [vmem:[%s873 + $0xf8] sm:$0xff] %v2688
        %2725 = vst [vmem:[%s873 + $0x100] sm:$0xff] %v2689
        %2726 = vst [vmem:[%s873 + $0x108] sm:$0xff] %v2690
        %2727 = vst [vmem:[%s873 + $0x110] sm:$0xff] %v2691
        %2728 = vst [vmem:[%s873 + $0x118] sm:$0xff] %v2692
        %v2729 = vld [vmem:[#allocation3] sm:$0xff]
        %v2730 = vld [vmem:[#allocation3 + $0x8] sm:$0xff]
        %v2731 = vld [vmem:[#allocation3 + $0x10] sm:$0xff]
        %v2732 = vld [vmem:[#allocation3 + $0x18] sm:$0xff]
        %v2733 = vld [vmem:[#allocation3 + $0x20] sm:$0xff]
        %v2734 = vld [vmem:[#allocation3 + $0x28] sm:$0xff]
        %v2735 = vld [vmem:[#allocation3 + $0x30] sm:$0xff]
        %v2736 = vld [vmem:[#allocation3 + $0x38] sm:$0xff]
        %v2737 = vld [vmem:[#allocation3 + $0x40] sm:$0xff]
        %v2738 = vld [vmem:[#allocation3 + $0x48] sm:$0xff]
        %v2739 = vld [vmem:[#allocation3 + $0x50] sm:$0xff]
        %v2740 = vld [vmem:[#allocation3 + $0x58] sm:$0xff]
        %v2741 = vld [vmem:[#allocation3 + $0x60] sm:$0xff]
        %v2742 = vld [vmem:[#allocation3 + $0x68] sm:$0xff]
        %v2743 = vld [vmem:[#allocation3 + $0x70] sm:$0xff]
        %v2744 = vld [vmem:[#allocation3 + $0x78] sm:$0xff]
        %v2745 = vld [vmem:[#allocation3 + $0x80] sm:$0xff]
        %v2746 = vld [vmem:[#allocation3 + $0x88] sm:$0xff]
        %v2747 = vld [vmem:[#allocation3 + $0x90] sm:$0xff]
        %v2748 = vld [vmem:[#allocation3 + $0x98] sm:$0xff]
        %v2749 = vld [vmem:[#allocation3 + $0xa0] sm:$0xff]
        %v2750 = vld [vmem:[#allocation3 + $0xa8] sm:$0xff]
        %v2751 = vld [vmem:[#allocation3 + $0xb0] sm:$0xff]
        %v2752 = vld [vmem:[#allocation3 + $0xb8] sm:$0xff]
        %v2753 = vld [vmem:[#allocation3 + $0xc0] sm:$0xff]
        %v2754 = vld [vmem:[#allocation3 + $0xc8] sm:$0xff]
        %v2755 = vld [vmem:[#allocation3 + $0xd0] sm:$0xff]
        %v2756 = vld [vmem:[#allocation3 + $0xd8] sm:$0xff]
        %v2757 = vld [vmem:[#allocation3 + $0xe0] sm:$0xff]
        %v2758 = vld [vmem:[#allocation3 + $0xe8] sm:$0xff]
        %v2759 = vld [vmem:[#allocation3 + $0xf0] sm:$0xff]
        %v2760 = vld [vmem:[#allocation3 + $0xf8] sm:$0xff]
        %v2761 = vld [vmem:[%s3] sm:$0x1]
        %v2763 = vlaneseq
        %v2764 = vshrl.u32 %v2763, 7
        %v2765 = vsub.s32 0, %v2764
        %v2766 = vrot.slane %v2761, %v2765
        %v2768 = vmul.f32 %v2729, %v2766
        %v2769 = vmul.f32 %v2730, %v2766
        %v2770 = vmul.f32 %v2731, %v2766
        %v2771 = vmul.f32 %v2732, %v2766
        %v2772 = vmul.f32 %v2733, %v2766
        %v2773 = vmul.f32 %v2734, %v2766
        %v2774 = vmul.f32 %v2735, %v2766
        %v2775 = vmul.f32 %v2736, %v2766
        %v2776 = vmul.f32 %v2737, %v2766
        %v2777 = vmul.f32 %v2738, %v2766
        %v2778 = vmul.f32 %v2739, %v2766
        %v2779 = vmul.f32 %v2740, %v2766
        %v2780 = vmul.f32 %v2741, %v2766
        %v2781 = vmul.f32 %v2742, %v2766
        %v2782 = vmul.f32 %v2743, %v2766
        %v2783 = vmul.f32 %v2744, %v2766
        %v2784 = vmul.f32 %v2745, %v2766
        %v2785 = vmul.f32 %v2746, %v2766
        %v2786 = vmul.f32 %v2747, %v2766
        %v2787 = vmul.f32 %v2748, %v2766
        %v2788 = vmul.f32 %v2749, %v2766
        %v2789 = vmul.f32 %v2750, %v2766
        %v2790 = vmul.f32 %v2751, %v2766
        %v2791 = vmul.f32 %v2752, %v2766
        %v2792 = vmul.f32 %v2753, %v2766
        %v2793 = vmul.f32 %v2754, %v2766
        %v2794 = vmul.f32 %v2755, %v2766
        %v2795 = vmul.f32 %v2756, %v2766
        %v2796 = vmul.f32 %v2757, %v2766
        %v2797 = vmul.f32 %v2758, %v2766
        %v2798 = vmul.f32 %v2759, %v2766
        %v2799 = vmul.f32 %v2760, %v2766
        %v2800 = vld [vmem:[%s800] sm:$0xff]
        %v2801 = vld [vmem:[%s800 + $0x8] sm:$0xff]
        %v2802 = vld [vmem:[%s800 + $0x10] sm:$0xff]
        %v2803 = vld [vmem:[%s800 + $0x18] sm:$0xff]
        %v2804 = vld [vmem:[%s800 + $0x20] sm:$0xff]
        %v2805 = vld [vmem:[%s800 + $0x28] sm:$0xff]
        %v2806 = vld [vmem:[%s800 + $0x30] sm:$0xff]
        %v2807 = vld [vmem:[%s800 + $0x38] sm:$0xff]
        %v2808 = vld [vmem:[%s800 + $0x40] sm:$0xff]
        %v2809 = vld [vmem:[%s800 + $0x48] sm:$0xff]
        %v2810 = vld [vmem:[%s800 + $0x50] sm:$0xff]
        %v2811 = vld [vmem:[%s800 + $0x58] sm:$0xff]
        %v2812 = vld [vmem:[%s800 + $0x60] sm:$0xff]
        %v2813 = vld [vmem:[%s800 + $0x68] sm:$0xff]
        %v2814 = vld [vmem:[%s800 + $0x70] sm:$0xff]
        %v2815 = vld [vmem:[%s800 + $0x78] sm:$0xff]
        %v2816 = vld [vmem:[%s800 + $0x80] sm:$0xff]
        %v2817 = vld [vmem:[%s800 + $0x88] sm:$0xff]
        %v2818 = vld [vmem:[%s800 + $0x90] sm:$0xff]
        %v2819 = vld [vmem:[%s800 + $0x98] sm:$0xff]
        %v2820 = vld [vmem:[%s800 + $0xa0] sm:$0xff]
        %v2821 = vld [vmem:[%s800 + $0xa8] sm:$0xff]
        %v2822 = vld [vmem:[%s800 + $0xb0] sm:$0xff]
        %v2823 = vld [vmem:[%s800 + $0xb8] sm:$0xff]
        %v2824 = vld [vmem:[%s800 + $0xc0] sm:$0xff]
        %v2825 = vld [vmem:[%s800 + $0xc8] sm:$0xff]
        %v2826 = vld [vmem:[%s800 + $0xd0] sm:$0xff]
        %v2827 = vld [vmem:[%s800 + $0xd8] sm:$0xff]
        %v2828 = vld [vmem:[%s800 + $0xe0] sm:$0xff]
        %v2829 = vld [vmem:[%s800 + $0xe8] sm:$0xff]
        %v2830 = vld [vmem:[%s800 + $0xf0] sm:$0xff]
        %v2831 = vld [vmem:[%s800 + $0xf8] sm:$0xff]
        %s2832 = scalar_lea.vmem %s3, 1
        %v2833 = vld [vmem:[%s2832] sm:$0x1]
        %v2835 = vlaneseq
        %v2836 = vshrl.u32 %v2835, 7
        %v2837 = vsub.s32 0, %v2836
        %v2838 = vrot.slane %v2833, %v2837
        %v2840 = vmul.f32 %v2800, %v2838
        %v2841 = vmul.f32 %v2801, %v2838
        %v2842 = vmul.f32 %v2802, %v2838
        %v2843 = vmul.f32 %v2803, %v2838
        %v2844 = vmul.f32 %v2804, %v2838
        %v2845 = vmul.f32 %v2805, %v2838
        %v2846 = vmul.f32 %v2806, %v2838
        %v2847 = vmul.f32 %v2807, %v2838
        %v2848 = vmul.f32 %v2808, %v2838
        %v2849 = vmul.f32 %v2809, %v2838
        %v2850 = vmul.f32 %v2810, %v2838
        %v2851 = vmul.f32 %v2811, %v2838
        %v2852 = vmul.f32 %v2812, %v2838
        %v2853 = vmul.f32 %v2813, %v2838
        %v2854 = vmul.f32 %v2814, %v2838
        %v2855 = vmul.f32 %v2815, %v2838
        %v2856 = vmul.f32 %v2816, %v2838
        %v2857 = vmul.f32 %v2817, %v2838
        %v2858 = vmul.f32 %v2818, %v2838
        %v2859 = vmul.f32 %v2819, %v2838
        %v2860 = vmul.f32 %v2820, %v2838
        %v2861 = vmul.f32 %v2821, %v2838
        %v2862 = vmul.f32 %v2822, %v2838
        %v2863 = vmul.f32 %v2823, %v2838
        %v2864 = vmul.f32 %v2824, %v2838
        %v2865 = vmul.f32 %v2825, %v2838
        %v2866 = vmul.f32 %v2826, %v2838
        %v2867 = vmul.f32 %v2827, %v2838
        %v2868 = vmul.f32 %v2828, %v2838
        %v2869 = vmul.f32 %v2829, %v2838
        %v2870 = vmul.f32 %v2830, %v2838
        %v2871 = vmul.f32 %v2831, %v2838
        %v2872 = vadd.f32 %v2768, %v2840
        %v2873 = vadd.f32 %v2769, %v2841
        %v2874 = vadd.f32 %v2770, %v2842
        %v2875 = vadd.f32 %v2771, %v2843
        %v2876 = vadd.f32 %v2772, %v2844
        %v2877 = vadd.f32 %v2773, %v2845
        %v2878 = vadd.f32 %v2774, %v2846
        %v2879 = vadd.f32 %v2775, %v2847
        %v2880 = vadd.f32 %v2776, %v2848
        %v2881 = vadd.f32 %v2777, %v2849
        %v2882 = vadd.f32 %v2778, %v2850
        %v2883 = vadd.f32 %v2779, %v2851
        %v2884 = vadd.f32 %v2780, %v2852
        %v2885 = vadd.f32 %v2781, %v2853
        %v2886 = vadd.f32 %v2782, %v2854
        %v2887 = vadd.f32 %v2783, %v2855
        %v2888 = vadd.f32 %v2784, %v2856
        %v2889 = vadd.f32 %v2785, %v2857
        %v2890 = vadd.f32 %v2786, %v2858
        %v2891 = vadd.f32 %v2787, %v2859
        %v2892 = vadd.f32 %v2788, %v2860
        %v2893 = vadd.f32 %v2789, %v2861
        %v2894 = vadd.f32 %v2790, %v2862
        %v2895 = vadd.f32 %v2791, %v2863
        %v2896 = vadd.f32 %v2792, %v2864
        %v2897 = vadd.f32 %v2793, %v2865
        %v2898 = vadd.f32 %v2794, %v2866
        %v2899 = vadd.f32 %v2795, %v2867
        %v2900 = vadd.f32 %v2796, %v2868
        %v2901 = vadd.f32 %v2797, %v2869
        %v2902 = vadd.f32 %v2798, %v2870
        %v2903 = vadd.f32 %v2799, %v2871
        %v2904 = vld [vmem:[%s873] sm:$0xff]
        %v2905 = vld [vmem:[%s873 + $0x8] sm:$0xff]
        %v2906 = vld [vmem:[%s873 + $0x10] sm:$0xff]
        %v2907 = vld [vmem:[%s873 + $0x18] sm:$0xff]
        %v2908 = vld [vmem:[%s873 + $0x20] sm:$0xff]
        %v2909 = vld [vmem:[%s873 + $0x28] sm:$0xff]
        %v2910 = vld [vmem:[%s873 + $0x30] sm:$0xff]
        %v2911 = vld [vmem:[%s873 + $0x38] sm:$0xff]
        %v2912 = vld [vmem:[%s873 + $0x40] sm:$0xff]
        %v2913 = vld [vmem:[%s873 + $0x48] sm:$0xff]
        %v2914 = vld [vmem:[%s873 + $0x50] sm:$0xff]
        %v2915 = vld [vmem:[%s873 + $0x58] sm:$0xff]
        %v2916 = vld [vmem:[%s873 + $0x60] sm:$0xff]
        %v2917 = vld [vmem:[%s873 + $0x68] sm:$0xff]
        %v2918 = vld [vmem:[%s873 + $0x70] sm:$0xff]
        %v2919 = vld [vmem:[%s873 + $0x78] sm:$0xff]
        %v2920 = vld [vmem:[%s873 + $0x80] sm:$0xff]
        %v2921 = vld [vmem:[%s873 + $0x88] sm:$0xff]
        %v2922 = vld [vmem:[%s873 + $0x90] sm:$0xff]
        %v2923 = vld [vmem:[%s873 + $0x98] sm:$0xff]
        %v2924 = vld [vmem:[%s873 + $0xa0] sm:$0xff]
        %v2925 = vld [vmem:[%s873 + $0xa8] sm:$0xff]
        %v2926 = vld [vmem:[%s873 + $0xb0] sm:$0xff]
        %v2927 = vld [vmem:[%s873 + $0xb8] sm:$0xff]
        %v2928 = vld [vmem:[%s873 + $0xc0] sm:$0xff]
        %v2929 = vld [vmem:[%s873 + $0xc8] sm:$0xff]
        %v2930 = vld [vmem:[%s873 + $0xd0] sm:$0xff]
        %v2931 = vld [vmem:[%s873 + $0xd8] sm:$0xff]
        %v2932 = vld [vmem:[%s873 + $0xe0] sm:$0xff]
        %v2933 = vld [vmem:[%s873 + $0xe8] sm:$0xff]
        %v2934 = vld [vmem:[%s873 + $0xf0] sm:$0xff]
        %v2935 = vld [vmem:[%s873 + $0xf8] sm:$0xff]
        %s2936 = scalar_lea.vmem %s3, 2
        %v2937 = vld [vmem:[%s2936] sm:$0x1]
        %v2939 = vlaneseq
        %v2940 = vshrl.u32 %v2939, 7
        %v2941 = vsub.s32 0, %v2940
        %v2942 = vrot.slane %v2937, %v2941
        %v2944 = vmul.f32 %v2904, %v2942
        %v2945 = vmul.f32 %v2905, %v2942
        %v2946 = vmul.f32 %v2906, %v2942
        %v2947 = vmul.f32 %v2907, %v2942
        %v2948 = vmul.f32 %v2908, %v2942
        %v2949 = vmul.f32 %v2909, %v2942
        %v2950 = vmul.f32 %v2910, %v2942
        %v2951 = vmul.f32 %v2911, %v2942
        %v2952 = vmul.f32 %v2912, %v2942
        %v2953 = vmul.f32 %v2913, %v2942
        %v2954 = vmul.f32 %v2914, %v2942
        %v2955 = vmul.f32 %v2915, %v2942
        %v2956 = vmul.f32 %v2916, %v2942
        %v2957 = vmul.f32 %v2917, %v2942
        %v2958 = vmul.f32 %v2918, %v2942
        %v2959 = vmul.f32 %v2919, %v2942
        %v2960 = vmul.f32 %v2920, %v2942
        %v2961 = vmul.f32 %v2921, %v2942
        %v2962 = vmul.f32 %v2922, %v2942
        %v2963 = vmul.f32 %v2923, %v2942
        %v2964 = vmul.f32 %v2924, %v2942
        %v2965 = vmul.f32 %v2925, %v2942
        %v2966 = vmul.f32 %v2926, %v2942
        %v2967 = vmul.f32 %v2927, %v2942
        %v2968 = vmul.f32 %v2928, %v2942
        %v2969 = vmul.f32 %v2929, %v2942
        %v2970 = vmul.f32 %v2930, %v2942
        %v2971 = vmul.f32 %v2931, %v2942
        %v2972 = vmul.f32 %v2932, %v2942
        %v2973 = vmul.f32 %v2933, %v2942
        %v2974 = vmul.f32 %v2934, %v2942
        %v2975 = vmul.f32 %v2935, %v2942
        %v2976 = vadd.f32 %v2872, %v2944
        %v2977 = vadd.f32 %v2873, %v2945
        %v2978 = vadd.f32 %v2874, %v2946
        %v2979 = vadd.f32 %v2875, %v2947
        %v2980 = vadd.f32 %v2876, %v2948
        %v2981 = vadd.f32 %v2877, %v2949
        %v2982 = vadd.f32 %v2878, %v2950
        %v2983 = vadd.f32 %v2879, %v2951
        %v2984 = vadd.f32 %v2880, %v2952
        %v2985 = vadd.f32 %v2881, %v2953
        %v2986 = vadd.f32 %v2882, %v2954
        %v2987 = vadd.f32 %v2883, %v2955
        %v2988 = vadd.f32 %v2884, %v2956
        %v2989 = vadd.f32 %v2885, %v2957
        %v2990 = vadd.f32 %v2886, %v2958
        %v2991 = vadd.f32 %v2887, %v2959
        %v2992 = vadd.f32 %v2888, %v2960
        %v2993 = vadd.f32 %v2889, %v2961
        %v2994 = vadd.f32 %v2890, %v2962
        %v2995 = vadd.f32 %v2891, %v2963
        %v2996 = vadd.f32 %v2892, %v2964
        %v2997 = vadd.f32 %v2893, %v2965
        %v2998 = vadd.f32 %v2894, %v2966
        %v2999 = vadd.f32 %v2895, %v2967
        %v3000 = vadd.f32 %v2896, %v2968
        %v3001 = vadd.f32 %v2897, %v2969
        %v3002 = vadd.f32 %v2898, %v2970
        %v3003 = vadd.f32 %v2899, %v2971
        %v3004 = vadd.f32 %v2900, %v2972
        %v3005 = vadd.f32 %v2901, %v2973
        %v3006 = vadd.f32 %v2902, %v2974
        %v3007 = vadd.f32 %v2903, %v2975
        %v3008 = vld [vmem:[%s1006] sm:$0xff]
        %v3009 = vld [vmem:[%s1006 + $0x8] sm:$0xff]
        %v3010 = vld [vmem:[%s1006 + $0x10] sm:$0xff]
        %v3011 = vld [vmem:[%s1006 + $0x18] sm:$0xff]
        %v3012 = vld [vmem:[%s1006 + $0x20] sm:$0xff]
        %v3013 = vld [vmem:[%s1006 + $0x28] sm:$0xff]
        %v3014 = vld [vmem:[%s1006 + $0x30] sm:$0xff]
        %v3015 = vld [vmem:[%s1006 + $0x38] sm:$0xff]
        %v3016 = vld [vmem:[%s1006 + $0x40] sm:$0xff]
        %v3017 = vld [vmem:[%s1006 + $0x48] sm:$0xff]
        %v3018 = vld [vmem:[%s1006 + $0x50] sm:$0xff]
        %v3019 = vld [vmem:[%s1006 + $0x58] sm:$0xff]
        %v3020 = vld [vmem:[%s1006 + $0x60] sm:$0xff]
        %v3021 = vld [vmem:[%s1006 + $0x68] sm:$0xff]
        %v3022 = vld [vmem:[%s1006 + $0x70] sm:$0xff]
        %v3023 = vld [vmem:[%s1006 + $0x78] sm:$0xff]
        %v3024 = vld [vmem:[%s1006 + $0x80] sm:$0xff]
        %v3025 = vld [vmem:[%s1006 + $0x88] sm:$0xff]
        %v3026 = vld [vmem:[%s1006 + $0x90] sm:$0xff]
        %v3027 = vld [vmem:[%s1006 + $0x98] sm:$0xff]
        %v3028 = vld [vmem:[%s1006 + $0xa0] sm:$0xff]
        %v3029 = vld [vmem:[%s1006 + $0xa8] sm:$0xff]
        %v3030 = vld [vmem:[%s1006 + $0xb0] sm:$0xff]
        %v3031 = vld [vmem:[%s1006 + $0xb8] sm:$0xff]
        %v3032 = vld [vmem:[%s1006 + $0xc0] sm:$0xff]
        %v3033 = vld [vmem:[%s1006 + $0xc8] sm:$0xff]
        %v3034 = vld [vmem:[%s1006 + $0xd0] sm:$0xff]
        %v3035 = vld [vmem:[%s1006 + $0xd8] sm:$0xff]
        %v3036 = vld [vmem:[%s1006 + $0xe0] sm:$0xff]
        %v3037 = vld [vmem:[%s1006 + $0xe8] sm:$0xff]
        %v3038 = vld [vmem:[%s1006 + $0xf0] sm:$0xff]
        %v3039 = vld [vmem:[%s1006 + $0xf8] sm:$0xff]
        %s3040 = scalar_lea.vmem %s3, 3
        %v3041 = vld [vmem:[%s3040] sm:$0x1]
        %v3043 = vlaneseq
        %v3044 = vshrl.u32 %v3043, 7
        %v3045 = vsub.s32 0, %v3044
        %v3046 = vrot.slane %v3041, %v3045
        %v3048 = vmul.f32 %v3008, %v3046
        %v3049 = vmul.f32 %v3009, %v3046
        %v3050 = vmul.f32 %v3010, %v3046
        %v3051 = vmul.f32 %v3011, %v3046
        %v3052 = vmul.f32 %v3012, %v3046
        %v3053 = vmul.f32 %v3013, %v3046
        %v3054 = vmul.f32 %v3014, %v3046
        %v3055 = vmul.f32 %v3015, %v3046
        %v3056 = vmul.f32 %v3016, %v3046
        %v3057 = vmul.f32 %v3017, %v3046
        %v3058 = vmul.f32 %v3018, %v3046
        %v3059 = vmul.f32 %v3019, %v3046
        %v3060 = vmul.f32 %v3020, %v3046
        %v3061 = vmul.f32 %v3021, %v3046
        %v3062 = vmul.f32 %v3022, %v3046
        %v3063 = vmul.f32 %v3023, %v3046
        %v3064 = vmul.f32 %v3024, %v3046
        %v3065 = vmul.f32 %v3025, %v3046
        %v3066 = vmul.f32 %v3026, %v3046
        %v3067 = vmul.f32 %v3027, %v3046
        %v3068 = vmul.f32 %v3028, %v3046
        %v3069 = vmul.f32 %v3029, %v3046
        %v3070 = vmul.f32 %v3030, %v3046
        %v3071 = vmul.f32 %v3031, %v3046
        %v3072 = vmul.f32 %v3032, %v3046
        %v3073 = vmul.f32 %v3033, %v3046
        %v3074 = vmul.f32 %v3034, %v3046
        %v3075 = vmul.f32 %v3035, %v3046
        %v3076 = vmul.f32 %v3036, %v3046
        %v3077 = vmul.f32 %v3037, %v3046
        %v3078 = vmul.f32 %v3038, %v3046
        %v3079 = vmul.f32 %v3039, %v3046
        %v3080 = vadd.f32 %v2976, %v3048
        %v3081 = vadd.f32 %v2977, %v3049
        %v3082 = vadd.f32 %v2978, %v3050
        %v3083 = vadd.f32 %v2979, %v3051
        %v3084 = vadd.f32 %v2980, %v3052
        %v3085 = vadd.f32 %v2981, %v3053
        %v3086 = vadd.f32 %v2982, %v3054
        %v3087 = vadd.f32 %v2983, %v3055
        %v3088 = vadd.f32 %v2984, %v3056
        %v3089 = vadd.f32 %v2985, %v3057
        %v3090 = vadd.f32 %v2986, %v3058
        %v3091 = vadd.f32 %v2987, %v3059
        %v3092 = vadd.f32 %v2988, %v3060
        %v3093 = vadd.f32 %v2989, %v3061
        %v3094 = vadd.f32 %v2990, %v3062
        %v3095 = vadd.f32 %v2991, %v3063
        %v3096 = vadd.f32 %v2992, %v3064
        %v3097 = vadd.f32 %v2993, %v3065
        %v3098 = vadd.f32 %v2994, %v3066
        %v3099 = vadd.f32 %v2995, %v3067
        %v3100 = vadd.f32 %v2996, %v3068
        %v3101 = vadd.f32 %v2997, %v3069
        %v3102 = vadd.f32 %v2998, %v3070
        %v3103 = vadd.f32 %v2999, %v3071
        %v3104 = vadd.f32 %v3000, %v3072
        %v3105 = vadd.f32 %v3001, %v3073
        %v3106 = vadd.f32 %v3002, %v3074
        %v3107 = vadd.f32 %v3003, %v3075
        %v3108 = vadd.f32 %v3004, %v3076
        %v3109 = vadd.f32 %v3005, %v3077
        %v3110 = vadd.f32 %v3006, %v3078
        %v3111 = vadd.f32 %v3007, %v3079
        %v3112 = vld [vmem:[%s1039] sm:$0xff]
        %v3113 = vld [vmem:[%s1039 + $0x8] sm:$0xff]
        %v3114 = vld [vmem:[%s1039 + $0x10] sm:$0xff]
        %v3115 = vld [vmem:[%s1039 + $0x18] sm:$0xff]
        %v3116 = vld [vmem:[%s1039 + $0x20] sm:$0xff]
        %v3117 = vld [vmem:[%s1039 + $0x28] sm:$0xff]
        %v3118 = vld [vmem:[%s1039 + $0x30] sm:$0xff]
        %v3119 = vld [vmem:[%s1039 + $0x38] sm:$0xff]
        %v3120 = vld [vmem:[%s1039 + $0x40] sm:$0xff]
        %v3121 = vld [vmem:[%s1039 + $0x48] sm:$0xff]
        %v3122 = vld [vmem:[%s1039 + $0x50] sm:$0xff]
        %v3123 = vld [vmem:[%s1039 + $0x58] sm:$0xff]
        %v3124 = vld [vmem:[%s1039 + $0x60] sm:$0xff]
        %v3125 = vld [vmem:[%s1039 + $0x68] sm:$0xff]
        %v3126 = vld [vmem:[%s1039 + $0x70] sm:$0xff]
        %v3127 = vld [vmem:[%s1039 + $0x78] sm:$0xff]
        %v3128 = vld [vmem:[%s1039 + $0x80] sm:$0xff]
        %v3129 = vld [vmem:[%s1039 + $0x88] sm:$0xff]
        %v3130 = vld [vmem:[%s1039 + $0x90] sm:$0xff]
        %v3131 = vld [vmem:[%s1039 + $0x98] sm:$0xff]
        %v3132 = vld [vmem:[%s1039 + $0xa0] sm:$0xff]
        %v3133 = vld [vmem:[%s1039 + $0xa8] sm:$0xff]
        %v3134 = vld [vmem:[%s1039 + $0xb0] sm:$0xff]
        %v3135 = vld [vmem:[%s1039 + $0xb8] sm:$0xff]
        %v3136 = vld [vmem:[%s1039 + $0xc0] sm:$0xff]
        %v3137 = vld [vmem:[%s1039 + $0xc8] sm:$0xff]
        %v3138 = vld [vmem:[%s1039 + $0xd0] sm:$0xff]
        %v3139 = vld [vmem:[%s1039 + $0xd8] sm:$0xff]
        %v3140 = vld [vmem:[%s1039 + $0xe0] sm:$0xff]
        %v3141 = vld [vmem:[%s1039 + $0xe8] sm:$0xff]
        %v3142 = vld [vmem:[%s1039 + $0xf0] sm:$0xff]
        %v3143 = vld [vmem:[%s1039 + $0xf8] sm:$0xff]
        %s3144 = scalar_lea.vmem %s3, 4
        %v3145 = vld [vmem:[%s3144] sm:$0x1]
        %v3147 = vlaneseq
        %v3148 = vshrl.u32 %v3147, 7
        %v3149 = vsub.s32 0, %v3148
        %v3150 = vrot.slane %v3145, %v3149
        %v3152 = vmul.f32 %v3112, %v3150
        %v3153 = vmul.f32 %v3113, %v3150
        %v3154 = vmul.f32 %v3114, %v3150
        %v3155 = vmul.f32 %v3115, %v3150
        %v3156 = vmul.f32 %v3116, %v3150
        %v3157 = vmul.f32 %v3117, %v3150
        %v3158 = vmul.f32 %v3118, %v3150
        %v3159 = vmul.f32 %v3119, %v3150
        %v3160 = vmul.f32 %v3120, %v3150
        %v3161 = vmul.f32 %v3121, %v3150
        %v3162 = vmul.f32 %v3122, %v3150
        %v3163 = vmul.f32 %v3123, %v3150
        %v3164 = vmul.f32 %v3124, %v3150
        %v3165 = vmul.f32 %v3125, %v3150
        %v3166 = vmul.f32 %v3126, %v3150
        %v3167 = vmul.f32 %v3127, %v3150
        %v3168 = vmul.f32 %v3128, %v3150
        %v3169 = vmul.f32 %v3129, %v3150
        %v3170 = vmul.f32 %v3130, %v3150
        %v3171 = vmul.f32 %v3131, %v3150
        %v3172 = vmul.f32 %v3132, %v3150
        %v3173 = vmul.f32 %v3133, %v3150
        %v3174 = vmul.f32 %v3134, %v3150
        %v3175 = vmul.f32 %v3135, %v3150
        %v3176 = vmul.f32 %v3136, %v3150
        %v3177 = vmul.f32 %v3137, %v3150
        %v3178 = vmul.f32 %v3138, %v3150
        %v3179 = vmul.f32 %v3139, %v3150
        %v3180 = vmul.f32 %v3140, %v3150
        %v3181 = vmul.f32 %v3141, %v3150
        %v3182 = vmul.f32 %v3142, %v3150
        %v3183 = vmul.f32 %v3143, %v3150
        %v3184 = vadd.f32 %v3080, %v3152
        %v3185 = vadd.f32 %v3081, %v3153
        %v3186 = vadd.f32 %v3082, %v3154
        %v3187 = vadd.f32 %v3083, %v3155
        %v3188 = vadd.f32 %v3084, %v3156
        %v3189 = vadd.f32 %v3085, %v3157
        %v3190 = vadd.f32 %v3086, %v3158
        %v3191 = vadd.f32 %v3087, %v3159
        %v3192 = vadd.f32 %v3088, %v3160
        %v3193 = vadd.f32 %v3089, %v3161
        %v3194 = vadd.f32 %v3090, %v3162
        %v3195 = vadd.f32 %v3091, %v3163
        %v3196 = vadd.f32 %v3092, %v3164
        %v3197 = vadd.f32 %v3093, %v3165
        %v3198 = vadd.f32 %v3094, %v3166
        %v3199 = vadd.f32 %v3095, %v3167
        %v3200 = vadd.f32 %v3096, %v3168
        %v3201 = vadd.f32 %v3097, %v3169
        %v3202 = vadd.f32 %v3098, %v3170
        %v3203 = vadd.f32 %v3099, %v3171
        %v3204 = vadd.f32 %v3100, %v3172
        %v3205 = vadd.f32 %v3101, %v3173
        %v3206 = vadd.f32 %v3102, %v3174
        %v3207 = vadd.f32 %v3103, %v3175
        %v3208 = vadd.f32 %v3104, %v3176
        %v3209 = vadd.f32 %v3105, %v3177
        %v3210 = vadd.f32 %v3106, %v3178
        %v3211 = vadd.f32 %v3107, %v3179
        %v3212 = vadd.f32 %v3108, %v3180
        %v3213 = vadd.f32 %v3109, %v3181
        %v3214 = vadd.f32 %v3110, %v3182
        %v3215 = vadd.f32 %v3111, %v3183
        %v3216 = vld [vmem:[%s1072] sm:$0xff]
        %v3217 = vld [vmem:[%s1072 + $0x8] sm:$0xff]
        %v3218 = vld [vmem:[%s1072 + $0x10] sm:$0xff]
        %v3219 = vld [vmem:[%s1072 + $0x18] sm:$0xff]
        %v3220 = vld [vmem:[%s1072 + $0x20] sm:$0xff]
        %v3221 = vld [vmem:[%s1072 + $0x28] sm:$0xff]
        %v3222 = vld [vmem:[%s1072 + $0x30] sm:$0xff]
        %v3223 = vld [vmem:[%s1072 + $0x38] sm:$0xff]
        %v3224 = vld [vmem:[%s1072 + $0x40] sm:$0xff]
        %v3225 = vld [vmem:[%s1072 + $0x48] sm:$0xff]
        %v3226 = vld [vmem:[%s1072 + $0x50] sm:$0xff]
        %v3227 = vld [vmem:[%s1072 + $0x58] sm:$0xff]
        %v3228 = vld [vmem:[%s1072 + $0x60] sm:$0xff]
        %v3229 = vld [vmem:[%s1072 + $0x68] sm:$0xff]
        %v3230 = vld [vmem:[%s1072 + $0x70] sm:$0xff]
        %v3231 = vld [vmem:[%s1072 + $0x78] sm:$0xff]
        %v3232 = vld [vmem:[%s1072 + $0x80] sm:$0xff]
        %v3233 = vld [vmem:[%s1072 + $0x88] sm:$0xff]
        %v3234 = vld [vmem:[%s1072 + $0x90] sm:$0xff]
        %v3235 = vld [vmem:[%s1072 + $0x98] sm:$0xff]
        %v3236 = vld [vmem:[%s1072 + $0xa0] sm:$0xff]
        %v3237 = vld [vmem:[%s1072 + $0xa8] sm:$0xff]
        %v3238 = vld [vmem:[%s1072 + $0xb0] sm:$0xff]
        %v3239 = vld [vmem:[%s1072 + $0xb8] sm:$0xff]
        %v3240 = vld [vmem:[%s1072 + $0xc0] sm:$0xff]
        %v3241 = vld [vmem:[%s1072 + $0xc8] sm:$0xff]
        %v3242 = vld [vmem:[%s1072 + $0xd0] sm:$0xff]
        %v3243 = vld [vmem:[%s1072 + $0xd8] sm:$0xff]
        %v3244 = vld [vmem:[%s1072 + $0xe0] sm:$0xff]
        %v3245 = vld [vmem:[%s1072 + $0xe8] sm:$0xff]
        %v3246 = vld [vmem:[%s1072 + $0xf0] sm:$0xff]
        %v3247 = vld [vmem:[%s1072 + $0xf8] sm:$0xff]
        %s3248 = scalar_lea.vmem %s3, 5
        %v3249 = vld [vmem:[%s3248] sm:$0x1]
        %v3251 = vlaneseq
        %v3252 = vshrl.u32 %v3251, 7
        %v3253 = vsub.s32 0, %v3252
        %v3254 = vrot.slane %v3249, %v3253
        %v3256 = vmul.f32 %v3216, %v3254
        %v3257 = vmul.f32 %v3217, %v3254
        %v3258 = vmul.f32 %v3218, %v3254
        %v3259 = vmul.f32 %v3219, %v3254
        %v3260 = vmul.f32 %v3220, %v3254
        %v3261 = vmul.f32 %v3221, %v3254
        %v3262 = vmul.f32 %v3222, %v3254
        %v3263 = vmul.f32 %v3223, %v3254
        %v3264 = vmul.f32 %v3224, %v3254
        %v3265 = vmul.f32 %v3225, %v3254
        %v3266 = vmul.f32 %v3226, %v3254
        %v3267 = vmul.f32 %v3227, %v3254
        %v3268 = vmul.f32 %v3228, %v3254
        %v3269 = vmul.f32 %v3229, %v3254
        %v3270 = vmul.f32 %v3230, %v3254
        %v3271 = vmul.f32 %v3231, %v3254
        %v3272 = vmul.f32 %v3232, %v3254
        %v3273 = vmul.f32 %v3233, %v3254
        %v3274 = vmul.f32 %v3234, %v3254
        %v3275 = vmul.f32 %v3235, %v3254
        %v3276 = vmul.f32 %v3236, %v3254
        %v3277 = vmul.f32 %v3237, %v3254
        %v3278 = vmul.f32 %v3238, %v3254
        %v3279 = vmul.f32 %v3239, %v3254
        %v3280 = vmul.f32 %v3240, %v3254
        %v3281 = vmul.f32 %v3241, %v3254
        %v3282 = vmul.f32 %v3242, %v3254
        %v3283 = vmul.f32 %v3243, %v3254
        %v3284 = vmul.f32 %v3244, %v3254
        %v3285 = vmul.f32 %v3245, %v3254
        %v3286 = vmul.f32 %v3246, %v3254
        %v3287 = vmul.f32 %v3247, %v3254
        %v3288 = vadd.f32 %v3184, %v3256
        %v3289 = vadd.f32 %v3185, %v3257
        %v3290 = vadd.f32 %v3186, %v3258
        %v3291 = vadd.f32 %v3187, %v3259
        %v3292 = vadd.f32 %v3188, %v3260
        %v3293 = vadd.f32 %v3189, %v3261
        %v3294 = vadd.f32 %v3190, %v3262
        %v3295 = vadd.f32 %v3191, %v3263
        %v3296 = vadd.f32 %v3192, %v3264
        %v3297 = vadd.f32 %v3193, %v3265
        %v3298 = vadd.f32 %v3194, %v3266
        %v3299 = vadd.f32 %v3195, %v3267
        %v3300 = vadd.f32 %v3196, %v3268
        %v3301 = vadd.f32 %v3197, %v3269
        %v3302 = vadd.f32 %v3198, %v3270
        %v3303 = vadd.f32 %v3199, %v3271
        %v3304 = vadd.f32 %v3200, %v3272
        %v3305 = vadd.f32 %v3201, %v3273
        %v3306 = vadd.f32 %v3202, %v3274
        %v3307 = vadd.f32 %v3203, %v3275
        %v3308 = vadd.f32 %v3204, %v3276
        %v3309 = vadd.f32 %v3205, %v3277
        %v3310 = vadd.f32 %v3206, %v3278
        %v3311 = vadd.f32 %v3207, %v3279
        %v3312 = vadd.f32 %v3208, %v3280
        %v3313 = vadd.f32 %v3209, %v3281
        %v3314 = vadd.f32 %v3210, %v3282
        %v3315 = vadd.f32 %v3211, %v3283
        %v3316 = vadd.f32 %v3212, %v3284
        %v3317 = vadd.f32 %v3213, %v3285
        %v3318 = vadd.f32 %v3214, %v3286
        %v3319 = vadd.f32 %v3215, %v3287
        %v3320 = vld [vmem:[%s1105] sm:$0xff]
        %v3321 = vld [vmem:[%s1105 + $0x8] sm:$0xff]
        %v3322 = vld [vmem:[%s1105 + $0x10] sm:$0xff]
        %v3323 = vld [vmem:[%s1105 + $0x18] sm:$0xff]
        %v3324 = vld [vmem:[%s1105 + $0x20] sm:$0xff]
        %v3325 = vld [vmem:[%s1105 + $0x28] sm:$0xff]
        %v3326 = vld [vmem:[%s1105 + $0x30] sm:$0xff]
        %v3327 = vld [vmem:[%s1105 + $0x38] sm:$0xff]
        %v3328 = vld [vmem:[%s1105 + $0x40] sm:$0xff]
        %v3329 = vld [vmem:[%s1105 + $0x48] sm:$0xff]
        %v3330 = vld [vmem:[%s1105 + $0x50] sm:$0xff]
        %v3331 = vld [vmem:[%s1105 + $0x58] sm:$0xff]
        %v3332 = vld [vmem:[%s1105 + $0x60] sm:$0xff]
        %v3333 = vld [vmem:[%s1105 + $0x68] sm:$0xff]
        %v3334 = vld [vmem:[%s1105 + $0x70] sm:$0xff]
        %v3335 = vld [vmem:[%s1105 + $0x78] sm:$0xff]
        %v3336 = vld [vmem:[%s1105 + $0x80] sm:$0xff]
        %v3337 = vld [vmem:[%s1105 + $0x88] sm:$0xff]
        %v3338 = vld [vmem:[%s1105 + $0x90] sm:$0xff]
        %v3339 = vld [vmem:[%s1105 + $0x98] sm:$0xff]
        %v3340 = vld [vmem:[%s1105 + $0xa0] sm:$0xff]
        %v3341 = vld [vmem:[%s1105 + $0xa8] sm:$0xff]
        %v3342 = vld [vmem:[%s1105 + $0xb0] sm:$0xff]
        %v3343 = vld [vmem:[%s1105 + $0xb8] sm:$0xff]
        %v3344 = vld [vmem:[%s1105 + $0xc0] sm:$0xff]
        %v3345 = vld [vmem:[%s1105 + $0xc8] sm:$0xff]
        %v3346 = vld [vmem:[%s1105 + $0xd0] sm:$0xff]
        %v3347 = vld [vmem:[%s1105 + $0xd8] sm:$0xff]
        %v3348 = vld [vmem:[%s1105 + $0xe0] sm:$0xff]
        %v3349 = vld [vmem:[%s1105 + $0xe8] sm:$0xff]
        %v3350 = vld [vmem:[%s1105 + $0xf0] sm:$0xff]
        %v3351 = vld [vmem:[%s1105 + $0xf8] sm:$0xff]
        %s3352 = scalar_lea.vmem %s3, 6
        %v3353 = vld [vmem:[%s3352] sm:$0x1]
        %v3355 = vlaneseq
        %v3356 = vshrl.u32 %v3355, 7
        %v3357 = vsub.s32 0, %v3356
        %v3358 = vrot.slane %v3353, %v3357
        %v3360 = vmul.f32 %v3320, %v3358
        %v3361 = vmul.f32 %v3321, %v3358
        %v3362 = vmul.f32 %v3322, %v3358
        %v3363 = vmul.f32 %v3323, %v3358
        %v3364 = vmul.f32 %v3324, %v3358
        %v3365 = vmul.f32 %v3325, %v3358
        %v3366 = vmul.f32 %v3326, %v3358
        %v3367 = vmul.f32 %v3327, %v3358
        %v3368 = vmul.f32 %v3328, %v3358
        %v3369 = vmul.f32 %v3329, %v3358
        %v3370 = vmul.f32 %v3330, %v3358
        %v3371 = vmul.f32 %v3331, %v3358
        %v3372 = vmul.f32 %v3332, %v3358
        %v3373 = vmul.f32 %v3333, %v3358
        %v3374 = vmul.f32 %v3334, %v3358
        %v3375 = vmul.f32 %v3335, %v3358
        %v3376 = vmul.f32 %v3336, %v3358
        %v3377 = vmul.f32 %v3337, %v3358
        %v3378 = vmul.f32 %v3338, %v3358
        %v3379 = vmul.f32 %v3339, %v3358
        %v3380 = vmul.f32 %v3340, %v3358
        %v3381 = vmul.f32 %v3341, %v3358
        %v3382 = vmul.f32 %v3342, %v3358
        %v3383 = vmul.f32 %v3343, %v3358
        %v3384 = vmul.f32 %v3344, %v3358
        %v3385 = vmul.f32 %v3345, %v3358
        %v3386 = vmul.f32 %v3346, %v3358
        %v3387 = vmul.f32 %v3347, %v3358
        %v3388 = vmul.f32 %v3348, %v3358
        %v3389 = vmul.f32 %v3349, %v3358
        %v3390 = vmul.f32 %v3350, %v3358
        %v3391 = vmul.f32 %v3351, %v3358
        %v3392 = vadd.f32 %v3288, %v3360
        %v3393 = vadd.f32 %v3289, %v3361
        %v3394 = vadd.f32 %v3290, %v3362
        %v3395 = vadd.f32 %v3291, %v3363
        %v3396 = vadd.f32 %v3292, %v3364
        %v3397 = vadd.f32 %v3293, %v3365
        %v3398 = vadd.f32 %v3294, %v3366
        %v3399 = vadd.f32 %v3295, %v3367
        %v3400 = vadd.f32 %v3296, %v3368
        %v3401 = vadd.f32 %v3297, %v3369
        %v3402 = vadd.f32 %v3298, %v3370
        %v3403 = vadd.f32 %v3299, %v3371
        %v3404 = vadd.f32 %v3300, %v3372
        %v3405 = vadd.f32 %v3301, %v3373
        %v3406 = vadd.f32 %v3302, %v3374
        %v3407 = vadd.f32 %v3303, %v3375
        %v3408 = vadd.f32 %v3304, %v3376
        %v3409 = vadd.f32 %v3305, %v3377
        %v3410 = vadd.f32 %v3306, %v3378
        %v3411 = vadd.f32 %v3307, %v3379
        %v3412 = vadd.f32 %v3308, %v3380
        %v3413 = vadd.f32 %v3309, %v3381
        %v3414 = vadd.f32 %v3310, %v3382
        %v3415 = vadd.f32 %v3311, %v3383
        %v3416 = vadd.f32 %v3312, %v3384
        %v3417 = vadd.f32 %v3313, %v3385
        %v3418 = vadd.f32 %v3314, %v3386
        %v3419 = vadd.f32 %v3315, %v3387
        %v3420 = vadd.f32 %v3316, %v3388
        %v3421 = vadd.f32 %v3317, %v3389
        %v3422 = vadd.f32 %v3318, %v3390
        %v3423 = vadd.f32 %v3319, %v3391
        %v3424 = vld [vmem:[%s1138] sm:$0xff]
        %v3425 = vld [vmem:[%s1138 + $0x8] sm:$0xff]
        %v3426 = vld [vmem:[%s1138 + $0x10] sm:$0xff]
        %v3427 = vld [vmem:[%s1138 + $0x18] sm:$0xff]
        %v3428 = vld [vmem:[%s1138 + $0x20] sm:$0xff]
        %v3429 = vld [vmem:[%s1138 + $0x28] sm:$0xff]
        %v3430 = vld [vmem:[%s1138 + $0x30] sm:$0xff]
        %v3431 = vld [vmem:[%s1138 + $0x38] sm:$0xff]
        %v3432 = vld [vmem:[%s1138 + $0x40] sm:$0xff]
        %v3433 = vld [vmem:[%s1138 + $0x48] sm:$0xff]
        %v3434 = vld [vmem:[%s1138 + $0x50] sm:$0xff]
        %v3435 = vld [vmem:[%s1138 + $0x58] sm:$0xff]
        %v3436 = vld [vmem:[%s1138 + $0x60] sm:$0xff]
        %v3437 = vld [vmem:[%s1138 + $0x68] sm:$0xff]
        %v3438 = vld [vmem:[%s1138 + $0x70] sm:$0xff]
        %v3439 = vld [vmem:[%s1138 + $0x78] sm:$0xff]
        %v3440 = vld [vmem:[%s1138 + $0x80] sm:$0xff]
        %v3441 = vld [vmem:[%s1138 + $0x88] sm:$0xff]
        %v3442 = vld [vmem:[%s1138 + $0x90] sm:$0xff]
        %v3443 = vld [vmem:[%s1138 + $0x98] sm:$0xff]
        %v3444 = vld [vmem:[%s1138 + $0xa0] sm:$0xff]
        %v3445 = vld [vmem:[%s1138 + $0xa8] sm:$0xff]
        %v3446 = vld [vmem:[%s1138 + $0xb0] sm:$0xff]
        %v3447 = vld [vmem:[%s1138 + $0xb8] sm:$0xff]
        %v3448 = vld [vmem:[%s1138 + $0xc0] sm:$0xff]
        %v3449 = vld [vmem:[%s1138 + $0xc8] sm:$0xff]
        %v3450 = vld [vmem:[%s1138 + $0xd0] sm:$0xff]
        %v3451 = vld [vmem:[%s1138 + $0xd8] sm:$0xff]
        %v3452 = vld [vmem:[%s1138 + $0xe0] sm:$0xff]
        %v3453 = vld [vmem:[%s1138 + $0xe8] sm:$0xff]
        %v3454 = vld [vmem:[%s1138 + $0xf0] sm:$0xff]
        %v3455 = vld [vmem:[%s1138 + $0xf8] sm:$0xff]
        %s3456 = scalar_lea.vmem %s3, 7
        %v3457 = vld [vmem:[%s3456] sm:$0x1]
        %v3459 = vlaneseq
        %v3460 = vshrl.u32 %v3459, 7
        %v3461 = vsub.s32 0, %v3460
        %v3462 = vrot.slane %v3457, %v3461
        %v3464 = vmul.f32 %v3424, %v3462
        %v3465 = vmul.f32 %v3425, %v3462
        %v3466 = vmul.f32 %v3426, %v3462
        %v3467 = vmul.f32 %v3427, %v3462
        %v3468 = vmul.f32 %v3428, %v3462
        %v3469 = vmul.f32 %v3429, %v3462
        %v3470 = vmul.f32 %v3430, %v3462
        %v3471 = vmul.f32 %v3431, %v3462
        %v3472 = vmul.f32 %v3432, %v3462
        %v3473 = vmul.f32 %v3433, %v3462
        %v3474 = vmul.f32 %v3434, %v3462
        %v3475 = vmul.f32 %v3435, %v3462
        %v3476 = vmul.f32 %v3436, %v3462
        %v3477 = vmul.f32 %v3437, %v3462
        %v3478 = vmul.f32 %v3438, %v3462
        %v3479 = vmul.f32 %v3439, %v3462
        %v3480 = vmul.f32 %v3440, %v3462
        %v3481 = vmul.f32 %v3441, %v3462
        %v3482 = vmul.f32 %v3442, %v3462
        %v3483 = vmul.f32 %v3443, %v3462
        %v3484 = vmul.f32 %v3444, %v3462
        %v3485 = vmul.f32 %v3445, %v3462
        %v3486 = vmul.f32 %v3446, %v3462
        %v3487 = vmul.f32 %v3447, %v3462
        %v3488 = vmul.f32 %v3448, %v3462
        %v3489 = vmul.f32 %v3449, %v3462
        %v3490 = vmul.f32 %v3450, %v3462
        %v3491 = vmul.f32 %v3451, %v3462
        %v3492 = vmul.f32 %v3452, %v3462
        %v3493 = vmul.f32 %v3453, %v3462
        %v3494 = vmul.f32 %v3454, %v3462
        %v3495 = vmul.f32 %v3455, %v3462
        %v3496 = vadd.f32 %v3392, %v3464
        %v3497 = vadd.f32 %v3393, %v3465
        %v3498 = vadd.f32 %v3394, %v3466
        %v3499 = vadd.f32 %v3395, %v3467
        %v3500 = vadd.f32 %v3396, %v3468
        %v3501 = vadd.f32 %v3397, %v3469
        %v3502 = vadd.f32 %v3398, %v3470
        %v3503 = vadd.f32 %v3399, %v3471
        %v3504 = vadd.f32 %v3400, %v3472
        %v3505 = vadd.f32 %v3401, %v3473
        %v3506 = vadd.f32 %v3402, %v3474
        %v3507 = vadd.f32 %v3403, %v3475
        %v3508 = vadd.f32 %v3404, %v3476
        %v3509 = vadd.f32 %v3405, %v3477
        %v3510 = vadd.f32 %v3406, %v3478
        %v3511 = vadd.f32 %v3407, %v3479
        %v3512 = vadd.f32 %v3408, %v3480
        %v3513 = vadd.f32 %v3409, %v3481
        %v3514 = vadd.f32 %v3410, %v3482
        %v3515 = vadd.f32 %v3411, %v3483
        %v3516 = vadd.f32 %v3412, %v3484
        %v3517 = vadd.f32 %v3413, %v3485
        %v3518 = vadd.f32 %v3414, %v3486
        %v3519 = vadd.f32 %v3415, %v3487
        %v3520 = vadd.f32 %v3416, %v3488
        %v3521 = vadd.f32 %v3417, %v3489
        %v3522 = vadd.f32 %v3418, %v3490
        %v3523 = vadd.f32 %v3419, %v3491
        %v3524 = vadd.f32 %v3420, %v3492
        %v3525 = vadd.f32 %v3421, %v3493
        %v3526 = vadd.f32 %v3422, %v3494
        %v3527 = vadd.f32 %v3423, %v3495
        %v3528 = vld [vmem:[%s1171] sm:$0xff]
        %v3529 = vld [vmem:[%s1171 + $0x8] sm:$0xff]
        %v3530 = vld [vmem:[%s1171 + $0x10] sm:$0xff]
        %v3531 = vld [vmem:[%s1171 + $0x18] sm:$0xff]
        %v3532 = vld [vmem:[%s1171 + $0x20] sm:$0xff]
        %v3533 = vld [vmem:[%s1171 + $0x28] sm:$0xff]
        %v3534 = vld [vmem:[%s1171 + $0x30] sm:$0xff]
        %v3535 = vld [vmem:[%s1171 + $0x38] sm:$0xff]
        %v3536 = vld [vmem:[%s1171 + $0x40] sm:$0xff]
        %v3537 = vld [vmem:[%s1171 + $0x48] sm:$0xff]
        %v3538 = vld [vmem:[%s1171 + $0x50] sm:$0xff]
        %v3539 = vld [vmem:[%s1171 + $0x58] sm:$0xff]
        %v3540 = vld [vmem:[%s1171 + $0x60] sm:$0xff]
        %v3541 = vld [vmem:[%s1171 + $0x68] sm:$0xff]
        %v3542 = vld [vmem:[%s1171 + $0x70] sm:$0xff]
        %v3543 = vld [vmem:[%s1171 + $0x78] sm:$0xff]
        %v3544 = vld [vmem:[%s1171 + $0x80] sm:$0xff]
        %v3545 = vld [vmem:[%s1171 + $0x88] sm:$0xff]
        %v3546 = vld [vmem:[%s1171 + $0x90] sm:$0xff]
        %v3547 = vld [vmem:[%s1171 + $0x98] sm:$0xff]
        %v3548 = vld [vmem:[%s1171 + $0xa0] sm:$0xff]
        %v3549 = vld [vmem:[%s1171 + $0xa8] sm:$0xff]
        %v3550 = vld [vmem:[%s1171 + $0xb0] sm:$0xff]
        %v3551 = vld [vmem:[%s1171 + $0xb8] sm:$0xff]
        %v3552 = vld [vmem:[%s1171 + $0xc0] sm:$0xff]
        %v3553 = vld [vmem:[%s1171 + $0xc8] sm:$0xff]
        %v3554 = vld [vmem:[%s1171 + $0xd0] sm:$0xff]
        %v3555 = vld [vmem:[%s1171 + $0xd8] sm:$0xff]
        %v3556 = vld [vmem:[%s1171 + $0xe0] sm:$0xff]
        %v3557 = vld [vmem:[%s1171 + $0xe8] sm:$0xff]
        %v3558 = vld [vmem:[%s1171 + $0xf0] sm:$0xff]
        %v3559 = vld [vmem:[%s1171 + $0xf8] sm:$0xff]
        %s3560 = scalar_lea.vmem %s3, 8
        %v3561 = vld [vmem:[%s3560] sm:$0x1]
        %v3563 = vlaneseq
        %v3564 = vshrl.u32 %v3563, 7
        %v3565 = vsub.s32 0, %v3564
        %v3566 = vrot.slane %v3561, %v3565
        %v3568 = vmul.f32 %v3528, %v3566
        %v3569 = vmul.f32 %v3529, %v3566
        %v3570 = vmul.f32 %v3530, %v3566
        %v3571 = vmul.f32 %v3531, %v3566
        %v3572 = vmul.f32 %v3532, %v3566
        %v3573 = vmul.f32 %v3533, %v3566
        %v3574 = vmul.f32 %v3534, %v3566
        %v3575 = vmul.f32 %v3535, %v3566
        %v3576 = vmul.f32 %v3536, %v3566
        %v3577 = vmul.f32 %v3537, %v3566
        %v3578 = vmul.f32 %v3538, %v3566
        %v3579 = vmul.f32 %v3539, %v3566
        %v3580 = vmul.f32 %v3540, %v3566
        %v3581 = vmul.f32 %v3541, %v3566
        %v3582 = vmul.f32 %v3542, %v3566
        %v3583 = vmul.f32 %v3543, %v3566
        %v3584 = vmul.f32 %v3544, %v3566
        %v3585 = vmul.f32 %v3545, %v3566
        %v3586 = vmul.f32 %v3546, %v3566
        %v3587 = vmul.f32 %v3547, %v3566
        %v3588 = vmul.f32 %v3548, %v3566
        %v3589 = vmul.f32 %v3549, %v3566
        %v3590 = vmul.f32 %v3550, %v3566
        %v3591 = vmul.f32 %v3551, %v3566
        %v3592 = vmul.f32 %v3552, %v3566
        %v3593 = vmul.f32 %v3553, %v3566
        %v3594 = vmul.f32 %v3554, %v3566
        %v3595 = vmul.f32 %v3555, %v3566
        %v3596 = vmul.f32 %v3556, %v3566
        %v3597 = vmul.f32 %v3557, %v3566
        %v3598 = vmul.f32 %v3558, %v3566
        %v3599 = vmul.f32 %v3559, %v3566
        %v3600 = vadd.f32 %v3496, %v3568
        %v3601 = vadd.f32 %v3497, %v3569
        %v3602 = vadd.f32 %v3498, %v3570
        %v3603 = vadd.f32 %v3499, %v3571
        %v3604 = vadd.f32 %v3500, %v3572
        %v3605 = vadd.f32 %v3501, %v3573
        %v3606 = vadd.f32 %v3502, %v3574
        %v3607 = vadd.f32 %v3503, %v3575
        %v3608 = vadd.f32 %v3504, %v3576
        %v3609 = vadd.f32 %v3505, %v3577
        %v3610 = vadd.f32 %v3506, %v3578
        %v3611 = vadd.f32 %v3507, %v3579
        %v3612 = vadd.f32 %v3508, %v3580
        %v3613 = vadd.f32 %v3509, %v3581
        %v3614 = vadd.f32 %v3510, %v3582
        %v3615 = vadd.f32 %v3511, %v3583
        %v3616 = vadd.f32 %v3512, %v3584
        %v3617 = vadd.f32 %v3513, %v3585
        %v3618 = vadd.f32 %v3514, %v3586
        %v3619 = vadd.f32 %v3515, %v3587
        %v3620 = vadd.f32 %v3516, %v3588
        %v3621 = vadd.f32 %v3517, %v3589
        %v3622 = vadd.f32 %v3518, %v3590
        %v3623 = vadd.f32 %v3519, %v3591
        %v3624 = vadd.f32 %v3520, %v3592
        %v3625 = vadd.f32 %v3521, %v3593
        %v3626 = vadd.f32 %v3522, %v3594
        %v3627 = vadd.f32 %v3523, %v3595
        %v3628 = vadd.f32 %v3524, %v3596
        %v3629 = vadd.f32 %v3525, %v3597
        %v3630 = vadd.f32 %v3526, %v3598
        %v3631 = vadd.f32 %v3527, %v3599
        %v3632 = vmax.f32 %v3600, 0.0
        %v3633 = vmax.f32 %v3601, 0.0
        %v3634 = vmax.f32 %v3602, 0.0
        %v3635 = vmax.f32 %v3603, 0.0
        %v3636 = vmax.f32 %v3604, 0.0
        %v3637 = vmax.f32 %v3605, 0.0
        %v3638 = vmax.f32 %v3606, 0.0
        %v3639 = vmax.f32 %v3607, 0.0
        %v3640 = vmax.f32 %v3608, 0.0
        %v3641 = vmax.f32 %v3609, 0.0
        %v3642 = vmax.f32 %v3610, 0.0
        %v3643 = vmax.f32 %v3611, 0.0
        %v3644 = vmax.f32 %v3612, 0.0
        %v3645 = vmax.f32 %v3613, 0.0
        %v3646 = vmax.f32 %v3614, 0.0
        %v3647 = vmax.f32 %v3615, 0.0
        %v3648 = vmax.f32 %v3616, 0.0
        %v3649 = vmax.f32 %v3617, 0.0
        %v3650 = vmax.f32 %v3618, 0.0
        %v3651 = vmax.f32 %v3619, 0.0
        %v3652 = vmax.f32 %v3620, 0.0
        %v3653 = vmax.f32 %v3621, 0.0
        %v3654 = vmax.f32 %v3622, 0.0
        %v3655 = vmax.f32 %v3623, 0.0
        %v3656 = vmax.f32 %v3624, 0.0
        %v3657 = vmax.f32 %v3625, 0.0
        %v3658 = vmax.f32 %v3626, 0.0
        %v3659 = vmax.f32 %v3627, 0.0
        %v3660 = vmax.f32 %v3628, 0.0
        %v3661 = vmax.f32 %v3629, 0.0
        %v3662 = vmax.f32 %v3630, 0.0
        %v3663 = vmax.f32 %v3631, 0.0
        %v3664 = vld [vmem:[%s4] sm:$0xff]
        %v3665 = vld [vmem:[%s4 + $0x8] sm:$0xff]
        %v3666 = vld [vmem:[%s4 + $0x10] sm:$0xff]
        %v3667 = vld [vmem:[%s4 + $0x18] sm:$0xff]
        %v3668 = vld [vmem:[%s4 + $0x20] sm:$0xff]
        %v3669 = vld [vmem:[%s4 + $0x28] sm:$0xff]
        %v3670 = vld [vmem:[%s4 + $0x30] sm:$0xff]
        %v3671 = vld [vmem:[%s4 + $0x38] sm:$0xff]
        %v3672 = vld [vmem:[%s4 + $0x40] sm:$0xff]
        %v3673 = vld [vmem:[%s4 + $0x48] sm:$0xff]
        %v3674 = vld [vmem:[%s4 + $0x50] sm:$0xff]
        %v3675 = vld [vmem:[%s4 + $0x58] sm:$0xff]
        %v3676 = vld [vmem:[%s4 + $0x60] sm:$0xff]
        %v3677 = vld [vmem:[%s4 + $0x68] sm:$0xff]
        %v3678 = vld [vmem:[%s4 + $0x70] sm:$0xff]
        %v3679 = vld [vmem:[%s4 + $0x78] sm:$0xff]
        %3680 = vmatprep.subr.mxu0 0.0
        %3681 = vmatpush1.msra.mxu0 %v3664
        %3682 = vmatprep.subr.mxu0 0.0
        %3683 = vmatpush1.msra.mxu0 %v3665
        %3684 = vmatprep.subr.mxu0 0.0
        %3685 = vmatpush1.msra.mxu0 %v3666
        %3686 = vmatprep.subr.mxu0 0.0
        %3687 = vmatpush1.msra.mxu0 %v3667
        %3688 = vmatprep.subr.mxu0 0.0
        %3689 = vmatpush1.msra.mxu0 %v3668
        %3690 = vmatprep.subr.mxu0 0.0
        %3691 = vmatpush1.msra.mxu0 %v3669
        %3692 = vmatprep.subr.mxu0 0.0
        %3693 = vmatpush1.msra.mxu0 %v3670
        %3694 = vmatprep.subr.mxu0 0.0
        %3695 = vmatpush1.msra.mxu0 %v3671
        %3696 = vmatprep.subr.mxu0 0.0
        %3697 = vmatpush1.msra.mxu0 %v3672
        %3698 = vmatprep.subr.mxu0 0.0
        %3699 = vmatpush1.msra.mxu0 %v3673
        %3700 = vmatprep.subr.mxu0 0.0
        %3701 = vmatpush1.msra.mxu0 %v3674
        %3702 = vmatprep.subr.mxu0 0.0
        %3703 = vmatpush1.msra.mxu0 %v3675
        %3704 = vmatprep.subr.mxu0 0.0
        %3705 = vmatpush1.msra.mxu0 %v3676
        %3706 = vmatprep.subr.mxu0 0.0
        %3707 = vmatpush1.msra.mxu0 %v3677
        %3708 = vmatprep.subr.mxu0 0.0
        %3709 = vmatpush1.msra.mxu0 %v3678
        %3710 = vmatprep.subr.mxu0 0.0
        %3711 = vmatpush1.msra.mxu0 %v3679
        %3712 = vmatprep.subr.mxu0 0.0
        %3713 = vmatpush1.msra.mxu0 0.0
        %3714 = vmatprep.subr.mxu0 0.0
        %3715 = vmatpush1.msra.mxu0 0.0
        %3716 = vmatprep.subr.mxu0 0.0
        %3717 = vmatpush1.msra.mxu0 0.0
        %3718 = vmatprep.subr.mxu0 0.0
        %3719 = vmatpush1.msra.mxu0 0.0
        %3720 = vmatprep.subr.mxu0 0.0
        %3721 = vmatpush1.msra.mxu0 0.0
        %3722 = vmatprep.subr.mxu0 0.0
        %3723 = vmatpush1.msra.mxu0 0.0
        %3724 = vmatprep.subr.mxu0 0.0
        %3725 = vmatpush1.msra.mxu0 0.0
        %3726 = vmatprep.subr.mxu0 0.0
        %3727 = vmatpush1.msra.mxu0 0.0
        %3728 = vmatprep.subr.mxu0 0.0
        %3729 = vmatpush1.msra.mxu0 0.0
        %3730 = vmatprep.subr.mxu0 0.0
        %3731 = vmatpush1.msra.mxu0 0.0
        %3732 = vmatprep.subr.mxu0 0.0
        %3733 = vmatpush1.msra.mxu0 0.0
        %3734 = vmatprep.subr.mxu0 0.0
        %3735 = vmatpush1.msra.mxu0 0.0
        %3736 = vmatprep.subr.mxu0 0.0
        %3737 = vmatpush1.msra.mxu0 0.0
        %3738 = vmatprep.subr.mxu0 0.0
        %3739 = vmatpush1.msra.mxu0 0.0
        %3740 = vmatprep.subr.mxu0 0.0
        %3741 = vmatpush1.msra.mxu0 0.0
        %3742 = vmatprep.subr.mxu0 0.0
        %3743 = vmatpush1.msra.mxu0 0.0
        %3744 = vmatprep.mubr.f32.mxu0 0.0
        %3745 = vmatmul.mubr.f32.gmra.mrb[0].mxu0 %v3632
        %v3746 = vpop.f32.mrb[0].mxu0
        %v3747 = vadd.f32 0.0, %v3746
        %v3748 = vpop.f32.mrb[0].mxu0
        %3749 = vmatprep.mubr.f32.mxu0 0.0
        %3750 = vmatmul.mubr.f32.gmra.mrb[0].mxu0 %v3633
        %v3751 = vpop.f32.mrb[0].mxu0
        %v3752 = vadd.f32 0.0, %v3751
        %v3753 = vpop.f32.mrb[0].mxu0
        %3754 = vmatprep.mubr.f32.mxu0 0.0
        %3755 = vmatmul.mubr.f32.gmra.mrb[0].mxu0 %v3634
        %v3756 = vpop.f32.mrb[0].mxu0
        %v3757 = vadd.f32 0.0, %v3756
        %v3758 = vpop.f32.mrb[0].mxu0
        %3759 = vmatprep.mubr.f32.mxu0 0.0
        %3760 = vmatmul.mubr.f32.gmra.mrb[0].mxu0 %v3635
        %v3761 = vpop.f32.mrb[0].mxu0
        %v3762 = vadd.f32 0.0, %v3761
        %v3763 = vpop.f32.mrb[0].mxu0
        %3764 = vmatprep.mubr.f32.mxu0 0.0
        %3765 = vmatmul.mubr.f32.gmra.mrb[0].mxu0 %v3636
        %v3766 = vpop.f32.mrb[0].mxu0
        %v3767 = vadd.f32 0.0, %v3766
        %v3768 = vpop.f32.mrb[0].mxu0
        %3769 = vmatprep.mubr.f32.mxu0 0.0
        %3770 = vmatmul.mubr.f32.gmra.mrb[0].mxu0 %v3637
        %v3771 = vpop.f32.mrb[0].mxu0
        %v3772 = vadd.f32 0.0, %v3771
        %v3773 = vpop.f32.mrb[0].mxu0
        %3774 = vmatprep.mubr.f32.mxu0 0.0
        %3775 = vmatmul.mubr.f32.gmra.mrb[0].mxu0 %v3638
        %v3776 = vpop.f32.mrb[0].mxu0
        %v3777 = vadd.f32 0.0, %v3776
        %v3778 = vpop.f32.mrb[0].mxu0
        %3779 = vmatprep.mubr.f32.mxu0 0.0
        %3780 = vmatmul.mubr.f32.gmra.mrb[0].mxu0 %v3639
        %v3781 = vpop.f32.mrb[0].mxu0
        %v3782 = vadd.f32 0.0, %v3781
        %v3783 = vpop.f32.mrb[0].mxu0
        %3784 = vmatprep.mubr.f32.mxu0 0.0
        %3785 = vmatmul.mubr.f32.gmra.mrb[0].mxu0 %v3640
        %v3786 = vpop.f32.mrb[0].mxu0
        %v3787 = vadd.f32 0.0, %v3786
        %v3788 = vpop.f32.mrb[0].mxu0
        %3789 = vmatprep.mubr.f32.mxu0 0.0
        %3790 = vmatmul.mubr.f32.gmra.mrb[0].mxu0 %v3641
        %v3791 = vpop.f32.mrb[0].mxu0
        %v3792 = vadd.f32 0.0, %v3791
        %v3793 = vpop.f32.mrb[0].mxu0
        %3794 = vmatprep.mubr.f32.mxu0 0.0
        %3795 = vmatmul.mubr.f32.gmra.mrb[0].mxu0 %v3642
        %v3796 = vpop.f32.mrb[0].mxu0
        %v3797 = vadd.f32 0.0, %v3796
        %v3798 = vpop.f32.mrb[0].mxu0
        %3799 = vmatprep.mubr.f32.mxu0 0.0
        %3800 = vmatmul.mubr.f32.gmra.mrb[0].mxu0 %v3643
        %v3801 = vpop.f32.mrb[0].mxu0
        %v3802 = vadd.f32 0.0, %v3801
        %v3803 = vpop.f32.mrb[0].mxu0
        %3804 = vmatprep.mubr.f32.mxu0 0.0
        %3805 = vmatmul.mubr.f32.gmra.mrb[0].mxu0 %v3644
        %v3806 = vpop.f32.mrb[0].mxu0
        %v3807 = vadd.f32 0.0, %v3806
        %v3808 = vpop.f32.mrb[0].mxu0
        %3809 = vmatprep.mubr.f32.mxu0 0.0
        %3810 = vmatmul.mubr.f32.gmra.mrb[0].mxu0 %v3645
        %v3811 = vpop.f32.mrb[0].mxu0
        %v3812 = vadd.f32 0.0, %v3811
        %v3813 = vpop.f32.mrb[0].mxu0
        %3814 = vmatprep.mubr.f32.mxu0 0.0
        %3815 = vmatmul.mubr.f32.gmra.mrb[0].mxu0 %v3646
        %v3816 = vpop.f32.mrb[0].mxu0
        %v3817 = vadd.f32 0.0, %v3816
        %v3818 = vpop.f32.mrb[0].mxu0
        %3819 = vmatprep.mubr.f32.mxu0 0.0
        %3820 = vmatmul.mubr.f32.gmra.mrb[0].mxu0 %v3647
        %v3821 = vpop.f32.mrb[0].mxu0
        %v3822 = vadd.f32 0.0, %v3821
        %v3823 = vpop.f32.mrb[0].mxu0
        %3824 = vmatprep.mubr.f32.mxu0 0.0
        %3825 = vmatmul.mubr.f32.gmra.mrb[0].mxu0 %v3648
        %v3826 = vpop.f32.mrb[0].mxu0
        %v3827 = vadd.f32 0.0, %v3826
        %v3828 = vpop.f32.mrb[0].mxu0
        %3829 = vmatprep.mubr.f32.mxu0 0.0
        %3830 = vmatmul.mubr.f32.gmra.mrb[0].mxu0 %v3649
        %v3831 = vpop.f32.mrb[0].mxu0
        %v3832 = vadd.f32 0.0, %v3831
        %v3833 = vpop.f32.mrb[0].mxu0
        %3834 = vmatprep.mubr.f32.mxu0 0.0
        %3835 = vmatmul.mubr.f32.gmra.mrb[0].mxu0 %v3650
        %v3836 = vpop.f32.mrb[0].mxu0
        %v3837 = vadd.f32 0.0, %v3836
        %v3838 = vpop.f32.mrb[0].mxu0
        %3839 = vmatprep.mubr.f32.mxu0 0.0
        %3840 = vmatmul.mubr.f32.gmra.mrb[0].mxu0 %v3651
        %v3841 = vpop.f32.mrb[0].mxu0
        %v3842 = vadd.f32 0.0, %v3841
        %v3843 = vpop.f32.mrb[0].mxu0
        %3844 = vmatprep.mubr.f32.mxu0 0.0
        %3845 = vmatmul.mubr.f32.gmra.mrb[0].mxu0 %v3652
        %v3846 = vpop.f32.mrb[0].mxu0
        %v3847 = vadd.f32 0.0, %v3846
        %v3848 = vpop.f32.mrb[0].mxu0
        %3849 = vmatprep.mubr.f32.mxu0 0.0
        %3850 = vmatmul.mubr.f32.gmra.mrb[0].mxu0 %v3653
        %v3851 = vpop.f32.mrb[0].mxu0
        %v3852 = vadd.f32 0.0, %v3851
        %v3853 = vpop.f32.mrb[0].mxu0
        %3854 = vmatprep.mubr.f32.mxu0 0.0
        %3855 = vmatmul.mubr.f32.gmra.mrb[0].mxu0 %v3654
        %v3856 = vpop.f32.mrb[0].mxu0
        %v3857 = vadd.f32 0.0, %v3856
        %v3858 = vpop.f32.mrb[0].mxu0
        %3859 = vmatprep.mubr.f32.mxu0 0.0
        %3860 = vmatmul.mubr.f32.gmra.mrb[0].mxu0 %v3655
        %v3861 = vpop.f32.mrb[0].mxu0
        %v3862 = vadd.f32 0.0, %v3861
        %v3863 = vpop.f32.mrb[0].mxu0
        %3864 = vmatprep.mubr.f32.mxu0 0.0
        %3865 = vmatmul.mubr.f32.gmra.mrb[0].mxu0 %v3656
        %v3866 = vpop.f32.mrb[0].mxu0
        %v3867 = vadd.f32 0.0, %v3866
        %v3868 = vpop.f32.mrb[0].mxu0
        %3869 = vmatprep.mubr.f32.mxu0 0.0
        %3870 = vmatmul.mubr.f32.gmra.mrb[0].mxu0 %v3657
        %v3871 = vpop.f32.mrb[0].mxu0
        %v3872 = vadd.f32 0.0, %v3871
        %v3873 = vpop.f32.mrb[0].mxu0
        %3874 = vmatprep.mubr.f32.mxu0 0.0
        %3875 = vmatmul.mubr.f32.gmra.mrb[0].mxu0 %v3658
        %v3876 = vpop.f32.mrb[0].mxu0
        %v3877 = vadd.f32 0.0, %v3876
        %v3878 = vpop.f32.mrb[0].mxu0
        %3879 = vmatprep.mubr.f32.mxu0 0.0
        %3880 = vmatmul.mubr.f32.gmra.mrb[0].mxu0 %v3659
        %v3881 = vpop.f32.mrb[0].mxu0
        %v3882 = vadd.f32 0.0, %v3881
        %v3883 = vpop.f32.mrb[0].mxu0
        %3884 = vmatprep.mubr.f32.mxu0 0.0
        %3885 = vmatmul.mubr.f32.gmra.mrb[0].mxu0 %v3660
        %v3886 = vpop.f32.mrb[0].mxu0
        %v3887 = vadd.f32 0.0, %v3886
        %v3888 = vpop.f32.mrb[0].mxu0
        %3889 = vmatprep.mubr.f32.mxu0 0.0
        %3890 = vmatmul.mubr.f32.gmra.mrb[0].mxu0 %v3661
        %v3891 = vpop.f32.mrb[0].mxu0
        %v3892 = vadd.f32 0.0, %v3891
        %v3893 = vpop.f32.mrb[0].mxu0
        %3894 = vmatprep.mubr.f32.mxu0 0.0
        %3895 = vmatmul.mubr.f32.gmra.mrb[0].mxu0 %v3662
        %v3896 = vpop.f32.mrb[0].mxu0
        %v3897 = vadd.f32 0.0, %v3896
        %v3898 = vpop.f32.mrb[0].mxu0
        %3899 = vmatprep.mubr.f32.mxu0 0.0
        %3900 = vmatmul.mubr.f32.gmra.mrb[0].mxu0 %v3663
        %v3901 = vpop.f32.mrb[0].mxu0
        %v3902 = vadd.f32 0.0, %v3901
        %v3903 = vpop.f32.mrb[0].mxu0
        %3904 = vdwg.mxu0
        %v3905 = vadd.f32 %v3747, %v3752
        %v3906 = vadd.f32 %v3905, %v3757
        %v3907 = vadd.f32 %v3906, %v3762
        %v3908 = vadd.f32 %v3907, %v3767
        %v3909 = vadd.f32 %v3908, %v3772
        %v3910 = vadd.f32 %v3909, %v3777
        %v3911 = vadd.f32 %v3910, %v3782
        %v3912 = vadd.f32 %v3911, %v3787
        %v3913 = vadd.f32 %v3912, %v3792
        %v3914 = vadd.f32 %v3913, %v3797
        %v3915 = vadd.f32 %v3914, %v3802
        %v3916 = vadd.f32 %v3915, %v3807
        %v3917 = vadd.f32 %v3916, %v3812
        %v3918 = vadd.f32 %v3917, %v3817
        %v3919 = vadd.f32 %v3918, %v3822
        %v3920 = vadd.f32 %v3919, %v3827
        %v3921 = vadd.f32 %v3920, %v3832
        %v3922 = vadd.f32 %v3921, %v3837
        %v3923 = vadd.f32 %v3922, %v3842
        %v3924 = vadd.f32 %v3923, %v3847
        %v3925 = vadd.f32 %v3924, %v3852
        %v3926 = vadd.f32 %v3925, %v3857
        %v3927 = vadd.f32 %v3926, %v3862
        %v3928 = vadd.f32 %v3927, %v3867
        %v3929 = vadd.f32 %v3928, %v3872
        %v3930 = vadd.f32 %v3929, %v3877
        %v3931 = vadd.f32 %v3930, %v3882
        %v3932 = vadd.f32 %v3931, %v3887
        %v3933 = vadd.f32 %v3932, %v3892
        %v3934 = vadd.f32 %v3933, %v3897
        %v3935 = vadd.f32 %v3934, %v3902
        %v3936 = vrot.slane %v3935, 4
        %v3937 = vadd.f32 %v3935, %v3936
        %v3938 = vrot.slane %v3937, 2
        %v3939 = vadd.f32 %v3937, %v3938
        %v3940 = vrot.slane %v3939, 1
        %v3941 = vadd.f32 %v3939, %v3940
        %v3942 = vrcp.pop 256.0
        %v3943 = vmul.f32 %v3941, %v3942
        %v3944 = vld [vmem:[%s5] sm:$0x1]
        %v3945 = vmul.f32 %v3943, %v3944
        %vm3946 = vcmask 1040384
        %v3947 = vsel %vm3946, %v3945, 0.0
        %3948 = vadd.xlane.f32.xlu0 %v3947
        %v3949 = vpop.xlane.xlu0 %3948
        %v3950 = vld [vmem:[#allocation4] sm:$0x1]
        %v3951 = vadd.f32 %v3949, %v3950
        %v3952 = vsub.f32 0.0, %v3951
        %v3953 = vmul.f32 %v3952, 1.442695
        %v3954 = vpow.pop %v3953
        %v3955 = vadd.f32 %v3954, 1.0
        %v3956 = vrcp.pop %v3955
        %v3957 = vmul.f32 1.0, %v3956
        %s3959 = vtos %v3957
        %v3960 = vstv %s3959
        %v3962 = vmul.f32 %v3747, %v3960
        %v3963 = vmul.f32 %v3752, %v3960
        %v3964 = vmul.f32 %v3757, %v3960
        %v3965 = vmul.f32 %v3762, %v3960
        %v3966 = vmul.f32 %v3767, %v3960
        %v3967 = vmul.f32 %v3772, %v3960
        %v3968 = vmul.f32 %v3777, %v3960
        %v3969 = vmul.f32 %v3782, %v3960
        %v3970 = vmul.f32 %v3787, %v3960
        %v3971 = vmul.f32 %v3792, %v3960
        %v3972 = vmul.f32 %v3797, %v3960
        %v3973 = vmul.f32 %v3802, %v3960
        %v3974 = vmul.f32 %v3807, %v3960
        %v3975 = vmul.f32 %v3812, %v3960
        %v3976 = vmul.f32 %v3817, %v3960
        %v3977 = vmul.f32 %v3822, %v3960
        %v3978 = vmul.f32 %v3827, %v3960
        %v3979 = vmul.f32 %v3832, %v3960
        %v3980 = vmul.f32 %v3837, %v3960
        %v3981 = vmul.f32 %v3842, %v3960
        %v3982 = vmul.f32 %v3847, %v3960
        %v3983 = vmul.f32 %v3852, %v3960
        %v3984 = vmul.f32 %v3857, %v3960
        %v3985 = vmul.f32 %v3862, %v3960
        %v3986 = vmul.f32 %v3867, %v3960
        %v3987 = vmul.f32 %v3872, %v3960
        %v3988 = vmul.f32 %v3877, %v3960
        %v3989 = vmul.f32 %v3882, %v3960
        %v3990 = vmul.f32 %v3887, %v3960
        %v3991 = vmul.f32 %v3892, %v3960
        %v3992 = vmul.f32 %v3897, %v3960
        %v3993 = vmul.f32 %v3902, %v3960
        %v3994 = vld [vmem:[#allocation9] sm:$0xff]
        %v3995 = vld [vmem:[#allocation9 + $0x8] sm:$0xff]
        %v3996 = vld [vmem:[#allocation9 + $0x10] sm:$0xff]
        %v3997 = vld [vmem:[#allocation9 + $0x18] sm:$0xff]
        %v3998 = vld [vmem:[#allocation9 + $0x20] sm:$0xff]
        %v3999 = vld [vmem:[#allocation9 + $0x28] sm:$0xff]
        %v4000 = vld [vmem:[#allocation9 + $0x30] sm:$0xff]
        %v4001 = vld [vmem:[#allocation9 + $0x38] sm:$0xff]
        %v4002 = vld [vmem:[#allocation9 + $0x40] sm:$0xff]
        %v4003 = vld [vmem:[#allocation9 + $0x48] sm:$0xff]
        %v4004 = vld [vmem:[#allocation9 + $0x50] sm:$0xff]
        %v4005 = vld [vmem:[#allocation9 + $0x58] sm:$0xff]
        %v4006 = vld [vmem:[#allocation9 + $0x60] sm:$0xff]
        %v4007 = vld [vmem:[#allocation9 + $0x68] sm:$0xff]
        %v4008 = vld [vmem:[#allocation9 + $0x70] sm:$0xff]
        %v4009 = vld [vmem:[#allocation9 + $0x78] sm:$0xff]
        %4010 = vmatprep.subr.mxu0 0.0
        %4011 = vmatpush1.msra.mxu0 %v3994
        %4012 = vmatprep.subr.mxu0 0.0
        %4013 = vmatpush1.msra.mxu0 %v3995
        %4014 = vmatprep.subr.mxu0 0.0
        %4015 = vmatpush1.msra.mxu0 %v3996
        %4016 = vmatprep.subr.mxu0 0.0
        %4017 = vmatpush1.msra.mxu0 %v3997
        %4018 = vmatprep.subr.mxu0 0.0
        %4019 = vmatpush1.msra.mxu0 %v3998
        %4020 = vmatprep.subr.mxu0 0.0
        %4021 = vmatpush1.msra.mxu0 %v3999
        %4022 = vmatprep.subr.mxu0 0.0
        %4023 = vmatpush1.msra.mxu0 %v4000
        %4024 = vmatprep.subr.mxu0 0.0
        %4025 = vmatpush1.msra.mxu0 %v4001
        %4026 = vmatprep.subr.mxu0 0.0
        %4027 = vmatpush1.msra.mxu0 %v4002
        %4028 = vmatprep.subr.mxu0 0.0
        %4029 = vmatpush1.msra.mxu0 %v4003
        %4030 = vmatprep.subr.mxu0 0.0
        %4031 = vmatpush1.msra.mxu0 %v4004
        %4032 = vmatprep.subr.mxu0 0.0
        %4033 = vmatpush1.msra.mxu0 %v4005
        %4034 = vmatprep.subr.mxu0 0.0
        %4035 = vmatpush1.msra.mxu0 %v4006
        %4036 = vmatprep.subr.mxu0 0.0
        %4037 = vmatpush1.msra.mxu0 %v4007
        %4038 = vmatprep.subr.mxu0 0.0
        %4039 = vmatpush1.msra.mxu0 %v4008
        %4040 = vmatprep.subr.mxu0 0.0
        %4041 = vmatpush1.msra.mxu0 %v4009
        %4042 = vmatprep.subr.mxu0 0.0
        %4043 = vmatpush1.msra.mxu0 0.0
        %4044 = vmatprep.subr.mxu0 0.0
        %4045 = vmatpush1.msra.mxu0 0.0
        %4046 = vmatprep.subr.mxu0 0.0
        %4047 = vmatpush1.msra.mxu0 0.0
        %4048 = vmatprep.subr.mxu0 0.0
        %4049 = vmatpush1.msra.mxu0 0.0
        %4050 = vmatprep.subr.mxu0 0.0
        %4051 = vmatpush1.msra.mxu0 0.0
        %4052 = vmatprep.subr.mxu0 0.0
        %4053 = vmatpush1.msra.mxu0 0.0
        %4054 = vmatprep.subr.mxu0 0.0
        %4055 = vmatpush1.msra.mxu0 0.0
        %4056 = vmatprep.subr.mxu0 0.0
        %4057 = vmatpush1.msra.mxu0 0.0
        %4058 = vmatprep.subr.mxu0 0.0
        %4059 = vmatpush1.msra.mxu0 0.0
        %4060 = vmatprep.subr.mxu0 0.0
        %4061 = vmatpush1.msra.mxu0 0.0
        %4062 = vmatprep.subr.mxu0 0.0
        %4063 = vmatpush1.msra.mxu0 0.0
        %4064 = vmatprep.subr.mxu0 0.0
        %4065 = vmatpush1.msra.mxu0 0.0
        %4066 = vmatprep.subr.mxu0 0.0
        %4067 = vmatpush1.msra.mxu0 0.0
        %4068 = vmatprep.subr.mxu0 0.0
        %4069 = vmatpush1.msra.mxu0 0.0
        %4070 = vmatprep.subr.mxu0 0.0
        %4071 = vmatpush1.msra.mxu0 0.0
        %4072 = vmatprep.subr.mxu0 0.0
        %4073 = vmatpush1.msra.mxu0 0.0
        %4074 = vmatprep.mubr.f32.mxu0 0.0
        %4075 = vmatmul.mubr.f32.gmra.mrb[0].mxu0 %v3962
        %v4076 = vpop.f32.mrb[0].mxu0
        %v4077 = vadd.f32 0.0, %v4076
        %v4078 = vpop.f32.mrb[0].mxu0
        %4079 = vmatprep.mubr.f32.mxu0 0.0
        %4080 = vmatmul.mubr.f32.gmra.mrb[0].mxu0 %v3963
        %v4081 = vpop.f32.mrb[0].mxu0
        %v4082 = vadd.f32 0.0, %v4081
        %v4083 = vpop.f32.mrb[0].mxu0
        %4084 = vmatprep.mubr.f32.mxu0 0.0
        %4085 = vmatmul.mubr.f32.gmra.mrb[0].mxu0 %v3964
        %v4086 = vpop.f32.mrb[0].mxu0
        %v4087 = vadd.f32 0.0, %v4086
        %v4088 = vpop.f32.mrb[0].mxu0
        %4089 = vmatprep.mubr.f32.mxu0 0.0
        %4090 = vmatmul.mubr.f32.gmra.mrb[0].mxu0 %v3965
        %v4091 = vpop.f32.mrb[0].mxu0
        %v4092 = vadd.f32 0.0, %v4091
        %v4093 = vpop.f32.mrb[0].mxu0
        %4094 = vmatprep.mubr.f32.mxu0 0.0
        %4095 = vmatmul.mubr.f32.gmra.mrb[0].mxu0 %v3966
        %v4096 = vpop.f32.mrb[0].mxu0
        %v4097 = vadd.f32 0.0, %v4096
        %v4098 = vpop.f32.mrb[0].mxu0
        %4099 = vmatprep.mubr.f32.mxu0 0.0
        %4100 = vmatmul.mubr.f32.gmra.mrb[0].mxu0 %v3967
        %v4101 = vpop.f32.mrb[0].mxu0
        %v4102 = vadd.f32 0.0, %v4101
        %v4103 = vpop.f32.mrb[0].mxu0
        %4104 = vmatprep.mubr.f32.mxu0 0.0
        %4105 = vmatmul.mubr.f32.gmra.mrb[0].mxu0 %v3968
        %v4106 = vpop.f32.mrb[0].mxu0
        %v4107 = vadd.f32 0.0, %v4106
        %v4108 = vpop.f32.mrb[0].mxu0
        %4109 = vmatprep.mubr.f32.mxu0 0.0
        %4110 = vmatmul.mubr.f32.gmra.mrb[0].mxu0 %v3969
        %v4111 = vpop.f32.mrb[0].mxu0
        %v4112 = vadd.f32 0.0, %v4111
        %v4113 = vpop.f32.mrb[0].mxu0
        %4114 = vmatprep.mubr.f32.mxu0 0.0
        %4115 = vmatmul.mubr.f32.gmra.mrb[0].mxu0 %v3970
        %v4116 = vpop.f32.mrb[0].mxu0
        %v4117 = vadd.f32 0.0, %v4116
        %v4118 = vpop.f32.mrb[0].mxu0
        %4119 = vmatprep.mubr.f32.mxu0 0.0
        %4120 = vmatmul.mubr.f32.gmra.mrb[0].mxu0 %v3971
        %v4121 = vpop.f32.mrb[0].mxu0
        %v4122 = vadd.f32 0.0, %v4121
        %v4123 = vpop.f32.mrb[0].mxu0
        %4124 = vmatprep.mubr.f32.mxu0 0.0
        %4125 = vmatmul.mubr.f32.gmra.mrb[0].mxu0 %v3972
        %v4126 = vpop.f32.mrb[0].mxu0
        %v4127 = vadd.f32 0.0, %v4126
        %v4128 = vpop.f32.mrb[0].mxu0
        %4129 = vmatprep.mubr.f32.mxu0 0.0
        %4130 = vmatmul.mubr.f32.gmra.mrb[0].mxu0 %v3973
        %v4131 = vpop.f32.mrb[0].mxu0
        %v4132 = vadd.f32 0.0, %v4131
        %v4133 = vpop.f32.mrb[0].mxu0
        %4134 = vmatprep.mubr.f32.mxu0 0.0
        %4135 = vmatmul.mubr.f32.gmra.mrb[0].mxu0 %v3974
        %v4136 = vpop.f32.mrb[0].mxu0
        %v4137 = vadd.f32 0.0, %v4136
        %v4138 = vpop.f32.mrb[0].mxu0
        %4139 = vmatprep.mubr.f32.mxu0 0.0
        %4140 = vmatmul.mubr.f32.gmra.mrb[0].mxu0 %v3975
        %v4141 = vpop.f32.mrb[0].mxu0
        %v4142 = vadd.f32 0.0, %v4141
        %v4143 = vpop.f32.mrb[0].mxu0
        %4144 = vmatprep.mubr.f32.mxu0 0.0
        %4145 = vmatmul.mubr.f32.gmra.mrb[0].mxu0 %v3976
        %v4146 = vpop.f32.mrb[0].mxu0
        %v4147 = vadd.f32 0.0, %v4146
        %v4148 = vpop.f32.mrb[0].mxu0
        %4149 = vmatprep.mubr.f32.mxu0 0.0
        %4150 = vmatmul.mubr.f32.gmra.mrb[0].mxu0 %v3977
        %v4151 = vpop.f32.mrb[0].mxu0
        %v4152 = vadd.f32 0.0, %v4151
        %v4153 = vpop.f32.mrb[0].mxu0
        %4154 = vmatprep.mubr.f32.mxu0 0.0
        %4155 = vmatmul.mubr.f32.gmra.mrb[0].mxu0 %v3978
        %v4156 = vpop.f32.mrb[0].mxu0
        %v4157 = vadd.f32 0.0, %v4156
        %v4158 = vpop.f32.mrb[0].mxu0
        %4159 = vmatprep.mubr.f32.mxu0 0.0
        %4160 = vmatmul.mubr.f32.gmra.mrb[0].mxu0 %v3979
        %v4161 = vpop.f32.mrb[0].mxu0
        %v4162 = vadd.f32 0.0, %v4161
        %v4163 = vpop.f32.mrb[0].mxu0
        %4164 = vmatprep.mubr.f32.mxu0 0.0
        %4165 = vmatmul.mubr.f32.gmra.mrb[0].mxu0 %v3980
        %v4166 = vpop.f32.mrb[0].mxu0
        %v4167 = vadd.f32 0.0, %v4166
        %v4168 = vpop.f32.mrb[0].mxu0
        %4169 = vmatprep.mubr.f32.mxu0 0.0
        %4170 = vmatmul.mubr.f32.gmra.mrb[0].mxu0 %v3981
        %v4171 = vpop.f32.mrb[0].mxu0
        %v4172 = vadd.f32 0.0, %v4171
        %v4173 = vpop.f32.mrb[0].mxu0
        %4174 = vmatprep.mubr.f32.mxu0 0.0
        %4175 = vmatmul.mubr.f32.gmra.mrb[0].mxu0 %v3982
        %v4176 = vpop.f32.mrb[0].mxu0
        %v4177 = vadd.f32 0.0, %v4176
        %v4178 = vpop.f32.mrb[0].mxu0
        %4179 = vmatprep.mubr.f32.mxu0 0.0
        %4180 = vmatmul.mubr.f32.gmra.mrb[0].mxu0 %v3983
        %v4181 = vpop.f32.mrb[0].mxu0
        %v4182 = vadd.f32 0.0, %v4181
        %v4183 = vpop.f32.mrb[0].mxu0
        %4184 = vmatprep.mubr.f32.mxu0 0.0
        %4185 = vmatmul.mubr.f32.gmra.mrb[0].mxu0 %v3984
        %v4186 = vpop.f32.mrb[0].mxu0
        %v4187 = vadd.f32 0.0, %v4186
        %v4188 = vpop.f32.mrb[0].mxu0
        %4189 = vmatprep.mubr.f32.mxu0 0.0
        %4190 = vmatmul.mubr.f32.gmra.mrb[0].mxu0 %v3985
        %v4191 = vpop.f32.mrb[0].mxu0
        %v4192 = vadd.f32 0.0, %v4191
        %v4193 = vpop.f32.mrb[0].mxu0
        %4194 = vmatprep.mubr.f32.mxu0 0.0
        %4195 = vmatmul.mubr.f32.gmra.mrb[0].mxu0 %v3986
        %v4196 = vpop.f32.mrb[0].mxu0
        %v4197 = vadd.f32 0.0, %v4196
        %v4198 = vpop.f32.mrb[0].mxu0
        %4199 = vmatprep.mubr.f32.mxu0 0.0
        %4200 = vmatmul.mubr.f32.gmra.mrb[0].mxu0 %v3987
        %v4201 = vpop.f32.mrb[0].mxu0
        %v4202 = vadd.f32 0.0, %v4201
        %v4203 = vpop.f32.mrb[0].mxu0
        %4204 = vmatprep.mubr.f32.mxu0 0.0
        %4205 = vmatmul.mubr.f32.gmra.mrb[0].mxu0 %v3988
        %v4206 = vpop.f32.mrb[0].mxu0
        %v4207 = vadd.f32 0.0, %v4206
        %v4208 = vpop.f32.mrb[0].mxu0
        %4209 = vmatprep.mubr.f32.mxu0 0.0
        %4210 = vmatmul.mubr.f32.gmra.mrb[0].mxu0 %v3989
        %v4211 = vpop.f32.mrb[0].mxu0
        %v4212 = vadd.f32 0.0, %v4211
        %v4213 = vpop.f32.mrb[0].mxu0
        %4214 = vmatprep.mubr.f32.mxu0 0.0
        %4215 = vmatmul.mubr.f32.gmra.mrb[0].mxu0 %v3990
        %v4216 = vpop.f32.mrb[0].mxu0
        %v4217 = vadd.f32 0.0, %v4216
        %v4218 = vpop.f32.mrb[0].mxu0
        %4219 = vmatprep.mubr.f32.mxu0 0.0
        %4220 = vmatmul.mubr.f32.gmra.mrb[0].mxu0 %v3991
        %v4221 = vpop.f32.mrb[0].mxu0
        %v4222 = vadd.f32 0.0, %v4221
        %v4223 = vpop.f32.mrb[0].mxu0
        %4224 = vmatprep.mubr.f32.mxu0 0.0
        %4225 = vmatmul.mubr.f32.gmra.mrb[0].mxu0 %v3992
        %v4226 = vpop.f32.mrb[0].mxu0
        %v4227 = vadd.f32 0.0, %v4226
        %v4228 = vpop.f32.mrb[0].mxu0
        %4229 = vmatprep.mubr.f32.mxu0 0.0
        %4230 = vmatmul.mubr.f32.gmra.mrb[0].mxu0 %v3993
        %v4231 = vpop.f32.mrb[0].mxu0
        %v4232 = vadd.f32 0.0, %v4231
        %v4233 = vpop.f32.mrb[0].mxu0
        %4234 = vdwg.mxu0
        %4235 = vst [vmem:[%s2480 + $0x8] sm:$0xff] %v4077
        %4236 = vst [vmem:[%s2480 + $0x10] sm:$0xff] %v4082
        %4237 = vst [vmem:[%s2480 + $0x28] sm:$0xff] %v4087
        %4238 = vst [vmem:[%s2480 + $0x30] sm:$0xff] %v4092
        %4239 = vst [vmem:[%s2480 + $0x48] sm:$0xff] %v4097
        %4240 = vst [vmem:[%s2480 + $0x50] sm:$0xff] %v4102
        %4241 = vst [vmem:[%s2480 + $0x68] sm:$0xff] %v4107
        %4242 = vst [vmem:[%s2480 + $0x70] sm:$0xff] %v4112
        %4243 = vst [vmem:[%s2480 + $0x88] sm:$0xff] %v4117
        %4244 = vst [vmem:[%s2480 + $0x90] sm:$0xff] %v4122
        %4245 = vst [vmem:[%s2480 + $0xa8] sm:$0xff] %v4127
        %4246 = vst [vmem:[%s2480 + $0xb0] sm:$0xff] %v4132
        %4247 = vst [vmem:[%s2480 + $0xc8] sm:$0xff] %v4137
        %4248 = vst [vmem:[%s2480 + $0xd0] sm:$0xff] %v4142
        %4249 = vst [vmem:[%s2480 + $0xe8] sm:$0xff] %v4147
        %4250 = vst [vmem:[%s2480 + $0xf0] sm:$0xff] %v4152
        %4251 = vst [vmem:[%s2480 + $0x108] sm:$0xff] %v4157
        %4252 = vst [vmem:[%s2480 + $0x110] sm:$0xff] %v4162
        %4253 = vst [vmem:[%s2480 + $0x128] sm:$0xff] %v4167
        %4254 = vst [vmem:[%s2480 + $0x130] sm:$0xff] %v4172
        %4255 = vst [vmem:[%s2480 + $0x148] sm:$0xff] %v4177
        %4256 = vst [vmem:[%s2480 + $0x150] sm:$0xff] %v4182
        %4257 = vst [vmem:[%s2480 + $0x168] sm:$0xff] %v4187
        %4258 = vst [vmem:[%s2480 + $0x170] sm:$0xff] %v4192
        %4259 = vst [vmem:[%s2480 + $0x188] sm:$0xff] %v4197
        %4260 = vst [vmem:[%s2480 + $0x190] sm:$0xff] %v4202
        %4261 = vst [vmem:[%s2480 + $0x1a8] sm:$0xff] %v4207
        %4262 = vst [vmem:[%s2480 + $0x1b0] sm:$0xff] %v4212
        %4263 = vst [vmem:[%s2480 + $0x1c8] sm:$0xff] %v4217
        %4264 = vst [vmem:[%s2480 + $0x1d0] sm:$0xff] %v4222
        %4265 = vst [vmem:[%s2480 + $0x1e8] sm:$0xff] %v4227
        %4266 = vst [vmem:[%s2480 + $0x1f0] sm:$0xff] %v4232
        %v4267 = vld [vmem:[#allocation2 + $0x7] sm:$0xff]
        %v4268 = vld [vmem:[#allocation2 + $0xf] sm:$0xff]
        %v4269 = vld [vmem:[#allocation2 + $0x27] sm:$0xff]
        %v4270 = vld [vmem:[#allocation2 + $0x2f] sm:$0xff]
        %v4271 = vld [vmem:[#allocation2 + $0x47] sm:$0xff]
        %v4272 = vld [vmem:[#allocation2 + $0x4f] sm:$0xff]
        %v4273 = vld [vmem:[#allocation2 + $0x67] sm:$0xff]
        %v4274 = vld [vmem:[#allocation2 + $0x6f] sm:$0xff]
        %v4275 = vld [vmem:[#allocation2 + $0x87] sm:$0xff]
        %v4276 = vld [vmem:[#allocation2 + $0x8f] sm:$0xff]
        %v4277 = vld [vmem:[#allocation2 + $0xa7] sm:$0xff]
        %v4278 = vld [vmem:[#allocation2 + $0xaf] sm:$0xff]
        %v4279 = vld [vmem:[#allocation2 + $0xc7] sm:$0xff]
        %v4280 = vld [vmem:[#allocation2 + $0xcf] sm:$0xff]
        %v4281 = vld [vmem:[#allocation2 + $0xe7] sm:$0xff]
        %v4282 = vld [vmem:[#allocation2 + $0xef] sm:$0xff]
        %v4283 = vld [vmem:[#allocation2 + $0x107] sm:$0xff]
        %v4284 = vld [vmem:[#allocation2 + $0x10f] sm:$0xff]
        %v4285 = vld [vmem:[#allocation2 + $0x127] sm:$0xff]
        %v4286 = vld [vmem:[#allocation2 + $0x12f] sm:$0xff]
        %v4287 = vld [vmem:[#allocation2 + $0x147] sm:$0xff]
        %v4288 = vld [vmem:[#allocation2 + $0x14f] sm:$0xff]
        %v4289 = vld [vmem:[#allocation2 + $0x167] sm:$0xff]
        %v4290 = vld [vmem:[#allocation2 + $0x16f] sm:$0xff]
        %v4291 = vld [vmem:[#allocation2 + $0x187] sm:$0xff]
        %v4292 = vld [vmem:[#allocation2 + $0x18f] sm:$0xff]
        %v4293 = vld [vmem:[#allocation2 + $0x1a7] sm:$0xff]
        %v4294 = vld [vmem:[#allocation2 + $0x1af] sm:$0xff]
        %v4295 = vld [vmem:[#allocation2 + $0x1c7] sm:$0xff]
        %v4296 = vld [vmem:[#allocation2 + $0x1cf] sm:$0xff]
        %v4297 = vld [vmem:[#allocation2 + $0x1e7] sm:$0xff]
        %v4298 = vld [vmem:[#allocation2 + $0x1ef] sm:$0xff]
        %v4299 = vld [vmem:[#allocation2 + $0x207] sm:$0xff]
        %v4300 = vld [vmem:[#allocation2 + $0x20f] sm:$0xff]
        %v4301 = vld [vmem:[#allocation2 + $0x227] sm:$0xff]
        %v4302 = vld [vmem:[#allocation2 + $0x22f] sm:$0xff]
        %4303 = vst [vmem:[#allocation3] sm:$0xff] %v4267
        %4304 = vst [vmem:[#allocation3 + $0x8] sm:$0xff] %v4268
        %4305 = vst [vmem:[#allocation3 + $0x10] sm:$0xff] %v4269
        %4306 = vst [vmem:[#allocation3 + $0x18] sm:$0xff] %v4270
        %4307 = vst [vmem:[#allocation3 + $0x20] sm:$0xff] %v4271
        %4308 = vst [vmem:[#allocation3 + $0x28] sm:$0xff] %v4272
        %4309 = vst [vmem:[#allocation3 + $0x30] sm:$0xff] %v4273
        %4310 = vst [vmem:[#allocation3 + $0x38] sm:$0xff] %v4274
        %4311 = vst [vmem:[#allocation3 + $0x40] sm:$0xff] %v4275
        %4312 = vst [vmem:[#allocation3 + $0x48] sm:$0xff] %v4276
        %4313 = vst [vmem:[#allocation3 + $0x50] sm:$0xff] %v4277
        %4314 = vst [vmem:[#allocation3 + $0x58] sm:$0xff] %v4278
        %4315 = vst [vmem:[#allocation3 + $0x60] sm:$0xff] %v4279
        %4316 = vst [vmem:[#allocation3 + $0x68] sm:$0xff] %v4280
        %4317 = vst [vmem:[#allocation3 + $0x70] sm:$0xff] %v4281
        %4318 = vst [vmem:[#allocation3 + $0x78] sm:$0xff] %v4282
        %4319 = vst [vmem:[#allocation3 + $0x80] sm:$0xff] %v4283
        %4320 = vst [vmem:[#allocation3 + $0x88] sm:$0xff] %v4284
        %4321 = vst [vmem:[#allocation3 + $0x90] sm:$0xff] %v4285
        %4322 = vst [vmem:[#allocation3 + $0x98] sm:$0xff] %v4286
        %4323 = vst [vmem:[#allocation3 + $0xa0] sm:$0xff] %v4287
        %4324 = vst [vmem:[#allocation3 + $0xa8] sm:$0xff] %v4288
        %4325 = vst [vmem:[#allocation3 + $0xb0] sm:$0xff] %v4289
        %4326 = vst [vmem:[#allocation3 + $0xb8] sm:$0xff] %v4290
        %4327 = vst [vmem:[#allocation3 + $0xc0] sm:$0xff] %v4291
        %4328 = vst [vmem:[#allocation3 + $0xc8] sm:$0xff] %v4292
        %4329 = vst [vmem:[#allocation3 + $0xd0] sm:$0xff] %v4293
        %4330 = vst [vmem:[#allocation3 + $0xd8] sm:$0xff] %v4294
        %4331 = vst [vmem:[#allocation3 + $0xe0] sm:$0xff] %v4295
        %4332 = vst [vmem:[#allocation3 + $0xe8] sm:$0xff] %v4296
        %4333 = vst [vmem:[#allocation3 + $0xf0] sm:$0xff] %v4297
        %4334 = vst [vmem:[#allocation3 + $0xf8] sm:$0xff] %v4298
        %4335 = vst [vmem:[#allocation3 + $0x100] sm:$0xff] %v4299
        %4336 = vst [vmem:[#allocation3 + $0x108] sm:$0xff] %v4300
        %4337 = vst [vmem:[#allocation3 + $0x110] sm:$0xff] %v4301
        %4338 = vst [vmem:[#allocation3 + $0x118] sm:$0xff] %v4302
        %v4339 = vld [vmem:[#allocation2 + $0x8] sm:$0xff]
        %v4340 = vld [vmem:[#allocation2 + $0x10] sm:$0xff]
        %v4341 = vld [vmem:[#allocation2 + $0x28] sm:$0xff]
        %v4342 = vld [vmem:[#allocation2 + $0x30] sm:$0xff]
        %v4343 = vld [vmem:[#allocation2 + $0x48] sm:$0xff]
        %v4344 = vld [vmem:[#allocation2 + $0x50] sm:$0xff]
        %v4345 = vld [vmem:[#allocation2 + $0x68] sm:$0xff]
        %v4346 = vld [vmem:[#allocation2 + $0x70] sm:$0xff]
        %v4347 = vld [vmem:[#allocation2 + $0x88] sm:$0xff]
        %v4348 = vld [vmem:[#allocation2 + $0x90] sm:$0xff]
        %v4349 = vld [vmem:[#allocation2 + $0xa8] sm:$0xff]
        %v4350 = vld [vmem:[#allocation2 + $0xb0] sm:$0xff]
        %v4351 = vld [vmem:[#allocation2 + $0xc8] sm:$0xff]
        %v4352 = vld [vmem:[#allocation2 + $0xd0] sm:$0xff]
        %v4353 = vld [vmem:[#allocation2 + $0xe8] sm:$0xff]
        %v4354 = vld [vmem:[#allocation2 + $0xf0] sm:$0xff]
        %v4355 = vld [vmem:[#allocation2 + $0x108] sm:$0xff]
        %v4356 = vld [vmem:[#allocation2 + $0x110] sm:$0xff]
        %v4357 = vld [vmem:[#allocation2 + $0x128] sm:$0xff]
        %v4358 = vld [vmem:[#allocation2 + $0x130] sm:$0xff]
        %v4359 = vld [vmem:[#allocation2 + $0x148] sm:$0xff]
        %v4360 = vld [vmem:[#allocation2 + $0x150] sm:$0xff]
        %v4361 = vld [vmem:[#allocation2 + $0x168] sm:$0xff]
        %v4362 = vld [vmem:[#allocation2 + $0x170] sm:$0xff]
        %v4363 = vld [vmem:[#allocation2 + $0x188] sm:$0xff]
        %v4364 = vld [vmem:[#allocation2 + $0x190] sm:$0xff]
        %v4365 = vld [vmem:[#allocation2 + $0x1a8] sm:$0xff]
        %v4366 = vld [vmem:[#allocation2 + $0x1b0] sm:$0xff]
        %v4367 = vld [vmem:[#allocation2 + $0x1c8] sm:$0xff]
        %v4368 = vld [vmem:[#allocation2 + $0x1d0] sm:$0xff]
        %v4369 = vld [vmem:[#allocation2 + $0x1e8] sm:$0xff]
        %v4370 = vld [vmem:[#allocation2 + $0x1f0] sm:$0xff]
        %v4371 = vld [vmem:[#allocation2 + $0x208] sm:$0xff]
        %v4372 = vld [vmem:[#allocation2 + $0x210] sm:$0xff]
        %v4373 = vld [vmem:[#allocation2 + $0x228] sm:$0xff]
        %v4374 = vld [vmem:[#allocation2 + $0x230] sm:$0xff]
        %4375 = vst [vmem:[%s800] sm:$0xff] %v4339
        %4376 = vst [vmem:[%s800 + $0x8] sm:$0xff] %v4340
        %4377 = vst [vmem:[%s800 + $0x10] sm:$0xff] %v4341
        %4378 = vst [vmem:[%s800 + $0x18] sm:$0xff] %v4342
        %4379 = vst [vmem:[%s800 + $0x20] sm:$0xff] %v4343
        %4380 = vst [vmem:[%s800 + $0x28] sm:$0xff] %v4344
        %4381 = vst [vmem:[%s800 + $0x30] sm:$0xff] %v4345
        %4382 = vst [vmem:[%s800 + $0x38] sm:$0xff] %v4346
        %4383 = vst [vmem:[%s800 + $0x40] sm:$0xff] %v4347
        %4384 = vst [vmem:[%s800 + $0x48] sm:$0xff] %v4348
        %4385 = vst [vmem:[%s800 + $0x50] sm:$0xff] %v4349
        %4386 = vst [vmem:[%s800 + $0x58] sm:$0xff] %v4350
        %4387 = vst [vmem:[%s800 + $0x60] sm:$0xff] %v4351
        %4388 = vst [vmem:[%s800 + $0x68] sm:$0xff] %v4352
        %4389 = vst [vmem:[%s800 + $0x70] sm:$0xff] %v4353
        %4390 = vst [vmem:[%s800 + $0x78] sm:$0xff] %v4354
        %4391 = vst [vmem:[%s800 + $0x80] sm:$0xff] %v4355
        %4392 = vst [vmem:[%s800 + $0x88] sm:$0xff] %v4356
        %4393 = vst [vmem:[%s800 + $0x90] sm:$0xff] %v4357
        %4394 = vst [vmem:[%s800 + $0x98] sm:$0xff] %v4358
        %4395 = vst [vmem:[%s800 + $0xa0] sm:$0xff] %v4359
        %4396 = vst [vmem:[%s800 + $0xa8] sm:$0xff] %v4360
        %4397 = vst [vmem:[%s800 + $0xb0] sm:$0xff] %v4361
        %4398 = vst [vmem:[%s800 + $0xb8] sm:$0xff] %v4362
        %4399 = vst [vmem:[%s800 + $0xc0] sm:$0xff] %v4363
        %4400 = vst [vmem:[%s800 + $0xc8] sm:$0xff] %v4364
        %4401 = vst [vmem:[%s800 + $0xd0] sm:$0xff] %v4365
        %4402 = vst [vmem:[%s800 + $0xd8] sm:$0xff] %v4366
        %4403 = vst [vmem:[%s800 + $0xe0] sm:$0xff] %v4367
        %4404 = vst [vmem:[%s800 + $0xe8] sm:$0xff] %v4368
        %4405 = vst [vmem:[%s800 + $0xf0] sm:$0xff] %v4369
        %4406 = vst [vmem:[%s800 + $0xf8] sm:$0xff] %v4370
        %4407 = vst [vmem:[%s800 + $0x100] sm:$0xff] %v4371
        %4408 = vst [vmem:[%s800 + $0x108] sm:$0xff] %v4372
        %4409 = vst [vmem:[%s800 + $0x110] sm:$0xff] %v4373
        %4410 = vst [vmem:[%s800 + $0x118] sm:$0xff] %v4374
        %v4411 = vld [vmem:[#allocation2 + $0x9] sm:$0xff]
        %v4412 = vld [vmem:[#allocation2 + $0x11] sm:$0xff]
        %v4413 = vld [vmem:[#allocation2 + $0x29] sm:$0xff]
        %v4414 = vld [vmem:[#allocation2 + $0x31] sm:$0xff]
        %v4415 = vld [vmem:[#allocation2 + $0x49] sm:$0xff]
        %v4416 = vld [vmem:[#allocation2 + $0x51] sm:$0xff]
        %v4417 = vld [vmem:[#allocation2 + $0x69] sm:$0xff]
        %v4418 = vld [vmem:[#allocation2 + $0x71] sm:$0xff]
        %v4419 = vld [vmem:[#allocation2 + $0x89] sm:$0xff]
        %v4420 = vld [vmem:[#allocation2 + $0x91] sm:$0xff]
        %v4421 = vld [vmem:[#allocation2 + $0xa9] sm:$0xff]
        %v4422 = vld [vmem:[#allocation2 + $0xb1] sm:$0xff]
        %v4423 = vld [vmem:[#allocation2 + $0xc9] sm:$0xff]
        %v4424 = vld [vmem:[#allocation2 + $0xd1] sm:$0xff]
        %v4425 = vld [vmem:[#allocation2 + $0xe9] sm:$0xff]
        %v4426 = vld [vmem:[#allocation2 + $0xf1] sm:$0xff]
        %v4427 = vld [vmem:[#allocation2 + $0x109] sm:$0xff]
        %v4428 = vld [vmem:[#allocation2 + $0x111] sm:$0xff]
        %v4429 = vld [vmem:[#allocation2 + $0x129] sm:$0xff]
        %v4430 = vld [vmem:[#allocation2 + $0x131] sm:$0xff]
        %v4431 = vld [vmem:[#allocation2 + $0x149] sm:$0xff]
        %v4432 = vld [vmem:[#allocation2 + $0x151] sm:$0xff]
        %v4433 = vld [vmem:[#allocation2 + $0x169] sm:$0xff]
        %v4434 = vld [vmem:[#allocation2 + $0x171] sm:$0xff]
        %v4435 = vld [vmem:[#allocation2 + $0x189] sm:$0xff]
        %v4436 = vld [vmem:[#allocation2 + $0x191] sm:$0xff]
        %v4437 = vld [vmem:[#allocation2 + $0x1a9] sm:$0xff]
        %v4438 = vld [vmem:[#allocation2 + $0x1b1] sm:$0xff]
        %v4439 = vld [vmem:[#allocation2 + $0x1c9] sm:$0xff]
        %v4440 = vld [vmem:[#allocation2 + $0x1d1] sm:$0xff]
        %v4441 = vld [vmem:[#allocation2 + $0x1e9] sm:$0xff]
        %v4442 = vld [vmem:[#allocation2 + $0x1f1] sm:$0xff]
        %v4443 = vld [vmem:[#allocation2 + $0x209] sm:$0xff]
        %v4444 = vld [vmem:[#allocation2 + $0x211] sm:$0xff]
        %v4445 = vld [vmem:[#allocation2 + $0x229] sm:$0xff]
        %v4446 = vld [vmem:[#allocation2 + $0x231] sm:$0xff]
        %4447 = vst [vmem:[%s873] sm:$0xff] %v4411
        %4448 = vst [vmem:[%s873 + $0x8] sm:$0xff] %v4412
        %4449 = vst [vmem:[%s873 + $0x10] sm:$0xff] %v4413
        %4450 = vst [vmem:[%s873 + $0x18] sm:$0xff] %v4414
        %4451 = vst [vmem:[%s873 + $0x20] sm:$0xff] %v4415
        %4452 = vst [vmem:[%s873 + $0x28] sm:$0xff] %v4416
        %4453 = vst [vmem:[%s873 + $0x30] sm:$0xff] %v4417
        %4454 = vst [vmem:[%s873 + $0x38] sm:$0xff] %v4418
        %4455 = vst [vmem:[%s873 + $0x40] sm:$0xff] %v4419
        %4456 = vst [vmem:[%s873 + $0x48] sm:$0xff] %v4420
        %4457 = vst [vmem:[%s873 + $0x50] sm:$0xff] %v4421
        %4458 = vst [vmem:[%s873 + $0x58] sm:$0xff] %v4422
        %4459 = vst [vmem:[%s873 + $0x60] sm:$0xff] %v4423
        %4460 = vst [vmem:[%s873 + $0x68] sm:$0xff] %v4424
        %4461 = vst [vmem:[%s873 + $0x70] sm:$0xff] %v4425
        %4462 = vst [vmem:[%s873 + $0x78] sm:$0xff] %v4426
        %4463 = vst [vmem:[%s873 + $0x80] sm:$0xff] %v4427
        %4464 = vst [vmem:[%s873 + $0x88] sm:$0xff] %v4428
        %4465 = vst [vmem:[%s873 + $0x90] sm:$0xff] %v4429
        %4466 = vst [vmem:[%s873 + $0x98] sm:$0xff] %v4430
        %4467 = vst [vmem:[%s873 + $0xa0] sm:$0xff] %v4431
        %4468 = vst [vmem:[%s873 + $0xa8] sm:$0xff] %v4432
        %4469 = vst [vmem:[%s873 + $0xb0] sm:$0xff] %v4433
        %4470 = vst [vmem:[%s873 + $0xb8] sm:$0xff] %v4434
        %4471 = vst [vmem:[%s873 + $0xc0] sm:$0xff] %v4435
        %4472 = vst [vmem:[%s873 + $0xc8] sm:$0xff] %v4436
        %4473 = vst [vmem:[%s873 + $0xd0] sm:$0xff] %v4437
        %4474 = vst [vmem:[%s873 + $0xd8] sm:$0xff] %v4438
        %4475 = vst [vmem:[%s873 + $0xe0] sm:$0xff] %v4439
        %4476 = vst [vmem:[%s873 + $0xe8] sm:$0xff] %v4440
        %4477 = vst [vmem:[%s873 + $0xf0] sm:$0xff] %v4441
        %4478 = vst [vmem:[%s873 + $0xf8] sm:$0xff] %v4442
        %4479 = vst [vmem:[%s873 + $0x100] sm:$0xff] %v4443
        %4480 = vst [vmem:[%s873 + $0x108] sm:$0xff] %v4444
        %4481 = vst [vmem:[%s873 + $0x110] sm:$0xff] %v4445
        %4482 = vst [vmem:[%s873 + $0x118] sm:$0xff] %v4446
        %v4483 = vld [vmem:[#allocation3] sm:$0xff]
        %v4484 = vld [vmem:[#allocation3 + $0x8] sm:$0xff]
        %v4485 = vld [vmem:[#allocation3 + $0x10] sm:$0xff]
        %v4486 = vld [vmem:[#allocation3 + $0x18] sm:$0xff]
        %v4487 = vld [vmem:[#allocation3 + $0x20] sm:$0xff]
        %v4488 = vld [vmem:[#allocation3 + $0x28] sm:$0xff]
        %v4489 = vld [vmem:[#allocation3 + $0x30] sm:$0xff]
        %v4490 = vld [vmem:[#allocation3 + $0x38] sm:$0xff]
        %v4491 = vld [vmem:[#allocation3 + $0x40] sm:$0xff]
        %v4492 = vld [vmem:[#allocation3 + $0x48] sm:$0xff]
        %v4493 = vld [vmem:[#allocation3 + $0x50] sm:$0xff]
        %v4494 = vld [vmem:[#allocation3 + $0x58] sm:$0xff]
        %v4495 = vld [vmem:[#allocation3 + $0x60] sm:$0xff]
        %v4496 = vld [vmem:[#allocation3 + $0x68] sm:$0xff]
        %v4497 = vld [vmem:[#allocation3 + $0x70] sm:$0xff]
        %v4498 = vld [vmem:[#allocation3 + $0x78] sm:$0xff]
        %v4499 = vld [vmem:[#allocation3 + $0x80] sm:$0xff]
        %v4500 = vld [vmem:[#allocation3 + $0x88] sm:$0xff]
        %v4501 = vld [vmem:[#allocation3 + $0x90] sm:$0xff]
        %v4502 = vld [vmem:[#allocation3 + $0x98] sm:$0xff]
        %v4503 = vld [vmem:[#allocation3 + $0xa0] sm:$0xff]
        %v4504 = vld [vmem:[#allocation3 + $0xa8] sm:$0xff]
        %v4505 = vld [vmem:[#allocation3 + $0xb0] sm:$0xff]
        %v4506 = vld [vmem:[#allocation3 + $0xb8] sm:$0xff]
        %v4507 = vld [vmem:[#allocation3 + $0xc0] sm:$0xff]
        %v4508 = vld [vmem:[#allocation3 + $0xc8] sm:$0xff]
        %v4509 = vld [vmem:[#allocation3 + $0xd0] sm:$0xff]
        %v4510 = vld [vmem:[#allocation3 + $0xd8] sm:$0xff]
        %v4511 = vld [vmem:[#allocation3 + $0xe0] sm:$0xff]
        %v4512 = vld [vmem:[#allocation3 + $0xe8] sm:$0xff]
        %v4513 = vld [vmem:[#allocation3 + $0xf0] sm:$0xff]
        %v4514 = vld [vmem:[#allocation3 + $0xf8] sm:$0xff]
        %v4515 = vld [vmem:[%s800] sm:$0xff]
        %v4516 = vld [vmem:[%s800 + $0x8] sm:$0xff]
        %v4517 = vld [vmem:[%s800 + $0x10] sm:$0xff]
        %v4518 = vld [vmem:[%s800 + $0x18] sm:$0xff]
        %v4519 = vld [vmem:[%s800 + $0x20] sm:$0xff]
        %v4520 = vld [vmem:[%s800 + $0x28] sm:$0xff]
        %v4521 = vld [vmem:[%s800 + $0x30] sm:$0xff]
        %v4522 = vld [vmem:[%s800 + $0x38] sm:$0xff]
        %v4523 = vld [vmem:[%s800 + $0x40] sm:$0xff]
        %v4524 = vld [vmem:[%s800 + $0x48] sm:$0xff]
        %v4525 = vld [vmem:[%s800 + $0x50] sm:$0xff]
        %v4526 = vld [vmem:[%s800 + $0x58] sm:$0xff]
        %v4527 = vld [vmem:[%s800 + $0x60] sm:$0xff]
        %v4528 = vld [vmem:[%s800 + $0x68] sm:$0xff]
        %v4529 = vld [vmem:[%s800 + $0x70] sm:$0xff]
        %v4530 = vld [vmem:[%s800 + $0x78] sm:$0xff]
        %v4531 = vld [vmem:[%s800 + $0x80] sm:$0xff]
        %v4532 = vld [vmem:[%s800 + $0x88] sm:$0xff]
        %v4533 = vld [vmem:[%s800 + $0x90] sm:$0xff]
        %v4534 = vld [vmem:[%s800 + $0x98] sm:$0xff]
        %v4535 = vld [vmem:[%s800 + $0xa0] sm:$0xff]
        %v4536 = vld [vmem:[%s800 + $0xa8] sm:$0xff]
        %v4537 = vld [vmem:[%s800 + $0xb0] sm:$0xff]
        %v4538 = vld [vmem:[%s800 + $0xb8] sm:$0xff]
        %v4539 = vld [vmem:[%s800 + $0xc0] sm:$0xff]
        %v4540 = vld [vmem:[%s800 + $0xc8] sm:$0xff]
        %v4541 = vld [vmem:[%s800 + $0xd0] sm:$0xff]
        %v4542 = vld [vmem:[%s800 + $0xd8] sm:$0xff]
        %v4543 = vld [vmem:[%s800 + $0xe0] sm:$0xff]
        %v4544 = vld [vmem:[%s800 + $0xe8] sm:$0xff]
        %v4545 = vld [vmem:[%s800 + $0xf0] sm:$0xff]
        %v4546 = vld [vmem:[%s800 + $0xf8] sm:$0xff]
        %v4547 = vld [vmem:[%s873] sm:$0xff]
        %v4548 = vld [vmem:[%s873 + $0x8] sm:$0xff]
        %v4549 = vld [vmem:[%s873 + $0x10] sm:$0xff]
        %v4550 = vld [vmem:[%s873 + $0x18] sm:$0xff]
        %v4551 = vld [vmem:[%s873 + $0x20] sm:$0xff]
        %v4552 = vld [vmem:[%s873 + $0x28] sm:$0xff]
        %v4553 = vld [vmem:[%s873 + $0x30] sm:$0xff]
        %v4554 = vld [vmem:[%s873 + $0x38] sm:$0xff]
        %v4555 = vld [vmem:[%s873 + $0x40] sm:$0xff]
        %v4556 = vld [vmem:[%s873 + $0x48] sm:$0xff]
        %v4557 = vld [vmem:[%s873 + $0x50] sm:$0xff]
        %v4558 = vld [vmem:[%s873 + $0x58] sm:$0xff]
        %v4559 = vld [vmem:[%s873 + $0x60] sm:$0xff]
        %v4560 = vld [vmem:[%s873 + $0x68] sm:$0xff]
        %v4561 = vld [vmem:[%s873 + $0x70] sm:$0xff]
        %v4562 = vld [vmem:[%s873 + $0x78] sm:$0xff]
        %v4563 = vld [vmem:[%s873 + $0x80] sm:$0xff]
        %v4564 = vld [vmem:[%s873 + $0x88] sm:$0xff]
        %v4565 = vld [vmem:[%s873 + $0x90] sm:$0xff]
        %v4566 = vld [vmem:[%s873 + $0x98] sm:$0xff]
        %v4567 = vld [vmem:[%s873 + $0xa0] sm:$0xff]
        %v4568 = vld [vmem:[%s873 + $0xa8] sm:$0xff]
        %v4569 = vld [vmem:[%s873 + $0xb0] sm:$0xff]
        %v4570 = vld [vmem:[%s873 + $0xb8] sm:$0xff]
        %v4571 = vld [vmem:[%s873 + $0xc0] sm:$0xff]
        %v4572 = vld [vmem:[%s873 + $0xc8] sm:$0xff]
        %v4573 = vld [vmem:[%s873 + $0xd0] sm:$0xff]
        %v4574 = vld [vmem:[%s873 + $0xd8] sm:$0xff]
        %v4575 = vld [vmem:[%s873 + $0xe0] sm:$0xff]
        %v4576 = vld [vmem:[%s873 + $0xe8] sm:$0xff]
        %v4577 = vld [vmem:[%s873 + $0xf0] sm:$0xff]
        %v4578 = vld [vmem:[%s873 + $0xf8] sm:$0xff]
        %v4579 = vld [vmem:[%s1006] sm:$0xff]
        %v4580 = vld [vmem:[%s1006 + $0x8] sm:$0xff]
        %v4581 = vld [vmem:[%s1006 + $0x10] sm:$0xff]
        %v4582 = vld [vmem:[%s1006 + $0x18] sm:$0xff]
        %v4583 = vld [vmem:[%s1006 + $0x20] sm:$0xff]
        %v4584 = vld [vmem:[%s1006 + $0x28] sm:$0xff]
        %v4585 = vld [vmem:[%s1006 + $0x30] sm:$0xff]
        %v4586 = vld [vmem:[%s1006 + $0x38] sm:$0xff]
        %v4587 = vld [vmem:[%s1006 + $0x40] sm:$0xff]
        %v4588 = vld [vmem:[%s1006 + $0x48] sm:$0xff]
        %v4589 = vld [vmem:[%s1006 + $0x50] sm:$0xff]
        %v4590 = vld [vmem:[%s1006 + $0x58] sm:$0xff]
        %v4591 = vld [vmem:[%s1006 + $0x60] sm:$0xff]
        %v4592 = vld [vmem:[%s1006 + $0x68] sm:$0xff]
        %v4593 = vld [vmem:[%s1006 + $0x70] sm:$0xff]
        %v4594 = vld [vmem:[%s1006 + $0x78] sm:$0xff]
        %v4595 = vld [vmem:[%s1006 + $0x80] sm:$0xff]
        %v4596 = vld [vmem:[%s1006 + $0x88] sm:$0xff]
        %v4597 = vld [vmem:[%s1006 + $0x90] sm:$0xff]
        %v4598 = vld [vmem:[%s1006 + $0x98] sm:$0xff]
        %v4599 = vld [vmem:[%s1006 + $0xa0] sm:$0xff]
        %v4600 = vld [vmem:[%s1006 + $0xa8] sm:$0xff]
        %v4601 = vld [vmem:[%s1006 + $0xb0] sm:$0xff]
        %v4602 = vld [vmem:[%s1006 + $0xb8] sm:$0xff]
        %v4603 = vld [vmem:[%s1006 + $0xc0] sm:$0xff]
        %v4604 = vld [vmem:[%s1006 + $0xc8] sm:$0xff]
        %v4605 = vld [vmem:[%s1006 + $0xd0] sm:$0xff]
        %v4606 = vld [vmem:[%s1006 + $0xd8] sm:$0xff]
        %v4607 = vld [vmem:[%s1006 + $0xe0] sm:$0xff]
        %v4608 = vld [vmem:[%s1006 + $0xe8] sm:$0xff]
        %v4609 = vld [vmem:[%s1006 + $0xf0] sm:$0xff]
        %v4610 = vld [vmem:[%s1006 + $0xf8] sm:$0xff]
        %v4611 = vld [vmem:[%s1039] sm:$0xff]
        %v4612 = vld [vmem:[%s1039 + $0x8] sm:$0xff]
        %v4613 = vld [vmem:[%s1039 + $0x10] sm:$0xff]
        %v4614 = vld [vmem:[%s1039 + $0x18] sm:$0xff]
        %v4615 = vld [vmem:[%s1039 + $0x20] sm:$0xff]
        %v4616 = vld [vmem:[%s1039 + $0x28] sm:$0xff]
        %v4617 = vld [vmem:[%s1039 + $0x30] sm:$0xff]
        %v4618 = vld [vmem:[%s1039 + $0x38] sm:$0xff]
        %v4619 = vld [vmem:[%s1039 + $0x40] sm:$0xff]
        %v4620 = vld [vmem:[%s1039 + $0x48] sm:$0xff]
        %v4621 = vld [vmem:[%s1039 + $0x50] sm:$0xff]
        %v4622 = vld [vmem:[%s1039 + $0x58] sm:$0xff]
        %v4623 = vld [vmem:[%s1039 + $0x60] sm:$0xff]
        %v4624 = vld [vmem:[%s1039 + $0x68] sm:$0xff]
        %v4625 = vld [vmem:[%s1039 + $0x70] sm:$0xff]
        %v4626 = vld [vmem:[%s1039 + $0x78] sm:$0xff]
        %v4627 = vld [vmem:[%s1039 + $0x80] sm:$0xff]
        %v4628 = vld [vmem:[%s1039 + $0x88] sm:$0xff]
        %v4629 = vld [vmem:[%s1039 + $0x90] sm:$0xff]
        %v4630 = vld [vmem:[%s1039 + $0x98] sm:$0xff]
        %v4631 = vld [vmem:[%s1039 + $0xa0] sm:$0xff]
        %v4632 = vld [vmem:[%s1039 + $0xa8] sm:$0xff]
        %v4633 = vld [vmem:[%s1039 + $0xb0] sm:$0xff]
        %v4634 = vld [vmem:[%s1039 + $0xb8] sm:$0xff]
        %v4635 = vld [vmem:[%s1039 + $0xc0] sm:$0xff]
        %v4636 = vld [vmem:[%s1039 + $0xc8] sm:$0xff]
        %v4637 = vld [vmem:[%s1039 + $0xd0] sm:$0xff]
        %v4638 = vld [vmem:[%s1039 + $0xd8] sm:$0xff]
        %v4639 = vld [vmem:[%s1039 + $0xe0] sm:$0xff]
        %v4640 = vld [vmem:[%s1039 + $0xe8] sm:$0xff]
        %v4641 = vld [vmem:[%s1039 + $0xf0] sm:$0xff]
        %v4642 = vld [vmem:[%s1039 + $0xf8] sm:$0xff]
        %v4643 = vld [vmem:[%s1072] sm:$0xff]
        %v4644 = vld [vmem:[%s1072 + $0x8] sm:$0xff]
        %v4645 = vld [vmem:[%s1072 + $0x10] sm:$0xff]
        %v4646 = vld [vmem:[%s1072 + $0x18] sm:$0xff]
        %v4647 = vld [vmem:[%s1072 + $0x20] sm:$0xff]
        %v4648 = vld [vmem:[%s1072 + $0x28] sm:$0xff]
        %v4649 = vld [vmem:[%s1072 + $0x30] sm:$0xff]
        %v4650 = vld [vmem:[%s1072 + $0x38] sm:$0xff]
        %v4651 = vld [vmem:[%s1072 + $0x40] sm:$0xff]
        %v4652 = vld [vmem:[%s1072 + $0x48] sm:$0xff]
        %v4653 = vld [vmem:[%s1072 + $0x50] sm:$0xff]
        %v4654 = vld [vmem:[%s1072 + $0x58] sm:$0xff]
        %v4655 = vld [vmem:[%s1072 + $0x60] sm:$0xff]
        %v4656 = vld [vmem:[%s1072 + $0x68] sm:$0xff]
        %v4657 = vld [vmem:[%s1072 + $0x70] sm:$0xff]
        %v4658 = vld [vmem:[%s1072 + $0x78] sm:$0xff]
        %v4659 = vld [vmem:[%s1072 + $0x80] sm:$0xff]
        %v4660 = vld [vmem:[%s1072 + $0x88] sm:$0xff]
        %v4661 = vld [vmem:[%s1072 + $0x90] sm:$0xff]
        %v4662 = vld [vmem:[%s1072 + $0x98] sm:$0xff]
        %v4663 = vld [vmem:[%s1072 + $0xa0] sm:$0xff]
        %v4664 = vld [vmem:[%s1072 + $0xa8] sm:$0xff]
        %v4665 = vld [vmem:[%s1072 + $0xb0] sm:$0xff]
        %v4666 = vld [vmem:[%s1072 + $0xb8] sm:$0xff]
        %v4667 = vld [vmem:[%s1072 + $0xc0] sm:$0xff]
        %v4668 = vld [vmem:[%s1072 + $0xc8] sm:$0xff]
        %v4669 = vld [vmem:[%s1072 + $0xd0] sm:$0xff]
        %v4670 = vld [vmem:[%s1072 + $0xd8] sm:$0xff]
        %v4671 = vld [vmem:[%s1072 + $0xe0] sm:$0xff]
        %v4672 = vld [vmem:[%s1072 + $0xe8] sm:$0xff]
        %v4673 = vld [vmem:[%s1072 + $0xf0] sm:$0xff]
        %v4674 = vld [vmem:[%s1072 + $0xf8] sm:$0xff]
        %v4675 = vld [vmem:[%s1105] sm:$0xff]
        %v4676 = vld [vmem:[%s1105 + $0x8] sm:$0xff]
        %v4677 = vld [vmem:[%s1105 + $0x10] sm:$0xff]
        %v4678 = vld [vmem:[%s1105 + $0x18] sm:$0xff]
        %v4679 = vld [vmem:[%s1105 + $0x20] sm:$0xff]
        %v4680 = vld [vmem:[%s1105 + $0x28] sm:$0xff]
        %v4681 = vld [vmem:[%s1105 + $0x30] sm:$0xff]
        %v4682 = vld [vmem:[%s1105 + $0x38] sm:$0xff]
        %v4683 = vld [vmem:[%s1105 + $0x40] sm:$0xff]
        %v4684 = vld [vmem:[%s1105 + $0x48] sm:$0xff]
        %v4685 = vld [vmem:[%s1105 + $0x50] sm:$0xff]
        %v4686 = vld [vmem:[%s1105 + $0x58] sm:$0xff]
        %v4687 = vld [vmem:[%s1105 + $0x60] sm:$0xff]
        %v4688 = vld [vmem:[%s1105 + $0x68] sm:$0xff]
        %v4689 = vld [vmem:[%s1105 + $0x70] sm:$0xff]
        %v4690 = vld [vmem:[%s1105 + $0x78] sm:$0xff]
        %v4691 = vld [vmem:[%s1105 + $0x80] sm:$0xff]
        %v4692 = vld [vmem:[%s1105 + $0x88] sm:$0xff]
        %v4693 = vld [vmem:[%s1105 + $0x90] sm:$0xff]
        %v4694 = vld [vmem:[%s1105 + $0x98] sm:$0xff]
        %v4695 = vld [vmem:[%s1105 + $0xa0] sm:$0xff]
        %v4696 = vld [vmem:[%s1105 + $0xa8] sm:$0xff]
        %v4697 = vld [vmem:[%s1105 + $0xb0] sm:$0xff]
        %v4698 = vld [vmem:[%s1105 + $0xb8] sm:$0xff]
        %v4699 = vld [vmem:[%s1105 + $0xc0] sm:$0xff]
        %v4700 = vld [vmem:[%s1105 + $0xc8] sm:$0xff]
        %v4701 = vld [vmem:[%s1105 + $0xd0] sm:$0xff]
        %v4702 = vld [vmem:[%s1105 + $0xd8] sm:$0xff]
        %v4703 = vld [vmem:[%s1105 + $0xe0] sm:$0xff]
        %v4704 = vld [vmem:[%s1105 + $0xe8] sm:$0xff]
        %v4705 = vld [vmem:[%s1105 + $0xf0] sm:$0xff]
        %v4706 = vld [vmem:[%s1105 + $0xf8] sm:$0xff]
        %v4707 = vld [vmem:[%s1138] sm:$0xff]
        %v4708 = vld [vmem:[%s1138 + $0x8] sm:$0xff]
        %v4709 = vld [vmem:[%s1138 + $0x10] sm:$0xff]
        %v4710 = vld [vmem:[%s1138 + $0x18] sm:$0xff]
        %v4711 = vld [vmem:[%s1138 + $0x20] sm:$0xff]
        %v4712 = vld [vmem:[%s1138 + $0x28] sm:$0xff]
        %v4713 = vld [vmem:[%s1138 + $0x30] sm:$0xff]
        %v4714 = vld [vmem:[%s1138 + $0x38] sm:$0xff]
        %v4715 = vld [vmem:[%s1138 + $0x40] sm:$0xff]
        %v4716 = vld [vmem:[%s1138 + $0x48] sm:$0xff]
        %v4717 = vld [vmem:[%s1138 + $0x50] sm:$0xff]
        %v4718 = vld [vmem:[%s1138 + $0x58] sm:$0xff]
        %v4719 = vld [vmem:[%s1138 + $0x60] sm:$0xff]
        %v4720 = vld [vmem:[%s1138 + $0x68] sm:$0xff]
        %v4721 = vld [vmem:[%s1138 + $0x70] sm:$0xff]
        %v4722 = vld [vmem:[%s1138 + $0x78] sm:$0xff]
        %v4723 = vld [vmem:[%s1138 + $0x80] sm:$0xff]
        %v4724 = vld [vmem:[%s1138 + $0x88] sm:$0xff]
        %v4725 = vld [vmem:[%s1138 + $0x90] sm:$0xff]
        %v4726 = vld [vmem:[%s1138 + $0x98] sm:$0xff]
        %v4727 = vld [vmem:[%s1138 + $0xa0] sm:$0xff]
        %v4728 = vld [vmem:[%s1138 + $0xa8] sm:$0xff]
        %v4729 = vld [vmem:[%s1138 + $0xb0] sm:$0xff]
        %v4730 = vld [vmem:[%s1138 + $0xb8] sm:$0xff]
        %v4731 = vld [vmem:[%s1138 + $0xc0] sm:$0xff]
        %v4732 = vld [vmem:[%s1138 + $0xc8] sm:$0xff]
        %v4733 = vld [vmem:[%s1138 + $0xd0] sm:$0xff]
        %v4734 = vld [vmem:[%s1138 + $0xd8] sm:$0xff]
        %v4735 = vld [vmem:[%s1138 + $0xe0] sm:$0xff]
        %v4736 = vld [vmem:[%s1138 + $0xe8] sm:$0xff]
        %v4737 = vld [vmem:[%s1138 + $0xf0] sm:$0xff]
        %v4738 = vld [vmem:[%s1138 + $0xf8] sm:$0xff]
        %v4739 = vld [vmem:[%s1171] sm:$0xff]
        %v4740 = vld [vmem:[%s1171 + $0x8] sm:$0xff]
        %v4741 = vld [vmem:[%s1171 + $0x10] sm:$0xff]
        %v4742 = vld [vmem:[%s1171 + $0x18] sm:$0xff]
        %v4743 = vld [vmem:[%s1171 + $0x20] sm:$0xff]
        %v4744 = vld [vmem:[%s1171 + $0x28] sm:$0xff]
        %v4745 = vld [vmem:[%s1171 + $0x30] sm:$0xff]
        %v4746 = vld [vmem:[%s1171 + $0x38] sm:$0xff]
        %v4747 = vld [vmem:[%s1171 + $0x40] sm:$0xff]
        %v4748 = vld [vmem:[%s1171 + $0x48] sm:$0xff]
        %v4749 = vld [vmem:[%s1171 + $0x50] sm:$0xff]
        %v4750 = vld [vmem:[%s1171 + $0x58] sm:$0xff]
        %v4751 = vld [vmem:[%s1171 + $0x60] sm:$0xff]
        %v4752 = vld [vmem:[%s1171 + $0x68] sm:$0xff]
        %v4753 = vld [vmem:[%s1171 + $0x70] sm:$0xff]
        %v4754 = vld [vmem:[%s1171 + $0x78] sm:$0xff]
        %v4755 = vld [vmem:[%s1171 + $0x80] sm:$0xff]
        %v4756 = vld [vmem:[%s1171 + $0x88] sm:$0xff]
        %v4757 = vld [vmem:[%s1171 + $0x90] sm:$0xff]
        %v4758 = vld [vmem:[%s1171 + $0x98] sm:$0xff]
        %v4759 = vld [vmem:[%s1171 + $0xa0] sm:$0xff]
        %v4760 = vld [vmem:[%s1171 + $0xa8] sm:$0xff]
        %v4761 = vld [vmem:[%s1171 + $0xb0] sm:$0xff]
        %v4762 = vld [vmem:[%s1171 + $0xb8] sm:$0xff]
        %v4763 = vld [vmem:[%s1171 + $0xc0] sm:$0xff]
        %v4764 = vld [vmem:[%s1171 + $0xc8] sm:$0xff]
        %v4765 = vld [vmem:[%s1171 + $0xd0] sm:$0xff]
        %v4766 = vld [vmem:[%s1171 + $0xd8] sm:$0xff]
        %v4767 = vld [vmem:[%s1171 + $0xe0] sm:$0xff]
        %v4768 = vld [vmem:[%s1171 + $0xe8] sm:$0xff]
        %v4769 = vld [vmem:[%s1171 + $0xf0] sm:$0xff]
        %v4770 = vld [vmem:[%s1171 + $0xf8] sm:$0xff]
        %v4771 = vld [vmem:[#allocation10] sm:$0xff]
        %v4772 = vld [vmem:[#allocation10 + $0x8] sm:$0xff]
        %v4773 = vld [vmem:[#allocation10 + $0x10] sm:$0xff]
        %v4774 = vld [vmem:[#allocation10 + $0x18] sm:$0xff]
        %v4775 = vld [vmem:[#allocation10 + $0x20] sm:$0xff]
        %v4776 = vld [vmem:[#allocation10 + $0x28] sm:$0xff]
        %v4777 = vld [vmem:[#allocation10 + $0x30] sm:$0xff]
        %v4778 = vld [vmem:[#allocation10 + $0x38] sm:$0xff]
        %v4779 = vld [vmem:[#allocation10 + $0x40] sm:$0xff]
        %v4780 = vld [vmem:[#allocation10 + $0x48] sm:$0xff]
        %v4781 = vld [vmem:[#allocation10 + $0x50] sm:$0xff]
        %v4782 = vld [vmem:[#allocation10 + $0x58] sm:$0xff]
        %v4783 = vld [vmem:[#allocation10 + $0x60] sm:$0xff]
        %v4784 = vld [vmem:[#allocation10 + $0x68] sm:$0xff]
        %v4785 = vld [vmem:[#allocation10 + $0x70] sm:$0xff]
        %v4786 = vld [vmem:[#allocation10 + $0x78] sm:$0xff]
        %v4787 = vld [vmem:[#allocation10 + $0x80] sm:$0xff]
        %v4788 = vld [vmem:[#allocation10 + $0x88] sm:$0xff]
        %v4789 = vld [vmem:[#allocation10 + $0x90] sm:$0xff]
        %v4790 = vld [vmem:[#allocation10 + $0x98] sm:$0xff]
        %v4791 = vld [vmem:[#allocation10 + $0xa0] sm:$0xff]
        %v4792 = vld [vmem:[#allocation10 + $0xa8] sm:$0xff]
        %v4793 = vld [vmem:[#allocation10 + $0xb0] sm:$0xff]
        %v4794 = vld [vmem:[#allocation10 + $0xb8] sm:$0xff]
        %v4795 = vld [vmem:[#allocation10 + $0xc0] sm:$0xff]
        %v4796 = vld [vmem:[#allocation10 + $0xc8] sm:$0xff]
        %v4797 = vld [vmem:[#allocation10 + $0xd0] sm:$0xff]
        %v4798 = vld [vmem:[#allocation10 + $0xd8] sm:$0xff]
        %v4799 = vld [vmem:[#allocation10 + $0xe0] sm:$0xff]
        %v4800 = vld [vmem:[#allocation10 + $0xe8] sm:$0xff]
        %v4801 = vld [vmem:[#allocation10 + $0xf0] sm:$0xff]
        %v4802 = vld [vmem:[#allocation10 + $0xf8] sm:$0xff]
        %v4803 = vld [vmem:[#allocation10 + $0x100] sm:$0xff]
        %v4804 = vld [vmem:[#allocation10 + $0x108] sm:$0xff]
        %v4805 = vld [vmem:[#allocation10 + $0x110] sm:$0xff]
        %v4806 = vld [vmem:[#allocation10 + $0x118] sm:$0xff]
        %v4807 = vld [vmem:[#allocation10 + $0x120] sm:$0xff]
        %v4808 = vld [vmem:[#allocation10 + $0x128] sm:$0xff]
        %v4809 = vld [vmem:[#allocation10 + $0x130] sm:$0xff]
        %v4810 = vld [vmem:[#allocation10 + $0x138] sm:$0xff]
        %v4811 = vld [vmem:[#allocation10 + $0x140] sm:$0xff]
        %v4812 = vld [vmem:[#allocation10 + $0x148] sm:$0xff]
        %v4813 = vld [vmem:[#allocation10 + $0x150] sm:$0xff]
        %v4814 = vld [vmem:[#allocation10 + $0x158] sm:$0xff]
        %v4815 = vld [vmem:[#allocation10 + $0x160] sm:$0xff]
        %v4816 = vld [vmem:[#allocation10 + $0x168] sm:$0xff]
        %v4817 = vld [vmem:[#allocation10 + $0x170] sm:$0xff]
        %v4818 = vld [vmem:[#allocation10 + $0x178] sm:$0xff]
        %v4819 = vld [vmem:[#allocation10 + $0x180] sm:$0xff]
        %v4820 = vld [vmem:[#allocation10 + $0x188] sm:$0xff]
        %v4821 = vld [vmem:[#allocation10 + $0x190] sm:$0xff]
        %v4822 = vld [vmem:[#allocation10 + $0x198] sm:$0xff]
        %v4823 = vld [vmem:[#allocation10 + $0x1a0] sm:$0xff]
        %v4824 = vld [vmem:[#allocation10 + $0x1a8] sm:$0xff]
        %v4825 = vld [vmem:[#allocation10 + $0x1b0] sm:$0xff]
        %v4826 = vld [vmem:[#allocation10 + $0x1b8] sm:$0xff]
        %v4827 = vld [vmem:[#allocation10 + $0x1c0] sm:$0xff]
        %v4828 = vld [vmem:[#allocation10 + $0x1c8] sm:$0xff]
        %v4829 = vld [vmem:[#allocation10 + $0x1d0] sm:$0xff]
        %v4830 = vld [vmem:[#allocation10 + $0x1d8] sm:$0xff]
        %v4831 = vld [vmem:[#allocation10 + $0x1e0] sm:$0xff]
        %v4832 = vld [vmem:[#allocation10 + $0x1e8] sm:$0xff]
        %v4833 = vld [vmem:[#allocation10 + $0x1f0] sm:$0xff]
        %v4834 = vld [vmem:[#allocation10 + $0x1f8] sm:$0xff]
        %v4835 = vld [vmem:[#allocation10 + $0x200] sm:$0xff]
        %v4836 = vld [vmem:[#allocation10 + $0x208] sm:$0xff]
        %v4837 = vld [vmem:[#allocation10 + $0x210] sm:$0xff]
        %v4838 = vld [vmem:[#allocation10 + $0x218] sm:$0xff]
        %v4839 = vld [vmem:[#allocation10 + $0x220] sm:$0xff]
        %v4840 = vld [vmem:[#allocation10 + $0x228] sm:$0xff]
        %v4841 = vld [vmem:[#allocation10 + $0x230] sm:$0xff]
        %v4842 = vld [vmem:[#allocation10 + $0x238] sm:$0xff]
        %v4843 = vld [vmem:[#allocation10 + $0x240] sm:$0xff]
        %v4844 = vld [vmem:[#allocation10 + $0x248] sm:$0xff]
        %v4845 = vld [vmem:[#allocation10 + $0x250] sm:$0xff]
        %v4846 = vld [vmem:[#allocation10 + $0x258] sm:$0xff]
        %v4847 = vld [vmem:[#allocation10 + $0x260] sm:$0xff]
        %v4848 = vld [vmem:[#allocation10 + $0x268] sm:$0xff]
        %v4849 = vld [vmem:[#allocation10 + $0x270] sm:$0xff]
        %v4850 = vld [vmem:[#allocation10 + $0x278] sm:$0xff]
        %v4851 = vld [vmem:[#allocation10 + $0x280] sm:$0xff]
        %v4852 = vld [vmem:[#allocation10 + $0x288] sm:$0xff]
        %v4853 = vld [vmem:[#allocation10 + $0x290] sm:$0xff]
        %v4854 = vld [vmem:[#allocation10 + $0x298] sm:$0xff]
        %v4855 = vld [vmem:[#allocation10 + $0x2a0] sm:$0xff]
        %v4856 = vld [vmem:[#allocation10 + $0x2a8] sm:$0xff]
        %v4857 = vld [vmem:[#allocation10 + $0x2b0] sm:$0xff]
        %v4858 = vld [vmem:[#allocation10 + $0x2b8] sm:$0xff]
        %v4859 = vld [vmem:[#allocation10 + $0x2c0] sm:$0xff]
        %v4860 = vld [vmem:[#allocation10 + $0x2c8] sm:$0xff]
        %v4861 = vld [vmem:[#allocation10 + $0x2d0] sm:$0xff]
        %v4862 = vld [vmem:[#allocation10 + $0x2d8] sm:$0xff]
        %v4863 = vld [vmem:[#allocation10 + $0x2e0] sm:$0xff]
        %v4864 = vld [vmem:[#allocation10 + $0x2e8] sm:$0xff]
        %v4865 = vld [vmem:[#allocation10 + $0x2f0] sm:$0xff]
        %v4866 = vld [vmem:[#allocation10 + $0x2f8] sm:$0xff]
        %v4867 = vld [vmem:[#allocation10 + $0x300] sm:$0xff]
        %v4868 = vld [vmem:[#allocation10 + $0x308] sm:$0xff]
        %v4869 = vld [vmem:[#allocation10 + $0x310] sm:$0xff]
        %v4870 = vld [vmem:[#allocation10 + $0x318] sm:$0xff]
        %v4871 = vld [vmem:[#allocation10 + $0x320] sm:$0xff]
        %v4872 = vld [vmem:[#allocation10 + $0x328] sm:$0xff]
        %v4873 = vld [vmem:[#allocation10 + $0x330] sm:$0xff]
        %v4874 = vld [vmem:[#allocation10 + $0x338] sm:$0xff]
        %v4875 = vld [vmem:[#allocation10 + $0x340] sm:$0xff]
        %v4876 = vld [vmem:[#allocation10 + $0x348] sm:$0xff]
        %v4877 = vld [vmem:[#allocation10 + $0x350] sm:$0xff]
        %v4878 = vld [vmem:[#allocation10 + $0x358] sm:$0xff]
        %v4879 = vld [vmem:[#allocation10 + $0x360] sm:$0xff]
        %v4880 = vld [vmem:[#allocation10 + $0x368] sm:$0xff]
        %v4881 = vld [vmem:[#allocation10 + $0x370] sm:$0xff]
        %v4882 = vld [vmem:[#allocation10 + $0x378] sm:$0xff]
        %v4883 = vld [vmem:[#allocation10 + $0x380] sm:$0xff]
        %v4884 = vld [vmem:[#allocation10 + $0x388] sm:$0xff]
        %v4885 = vld [vmem:[#allocation10 + $0x390] sm:$0xff]
        %v4886 = vld [vmem:[#allocation10 + $0x398] sm:$0xff]
        %v4887 = vld [vmem:[#allocation10 + $0x3a0] sm:$0xff]
        %v4888 = vld [vmem:[#allocation10 + $0x3a8] sm:$0xff]
        %v4889 = vld [vmem:[#allocation10 + $0x3b0] sm:$0xff]
        %v4890 = vld [vmem:[#allocation10 + $0x3b8] sm:$0xff]
        %v4891 = vld [vmem:[#allocation10 + $0x3c0] sm:$0xff]
        %v4892 = vld [vmem:[#allocation10 + $0x3c8] sm:$0xff]
        %v4893 = vld [vmem:[#allocation10 + $0x3d0] sm:$0xff]
        %v4894 = vld [vmem:[#allocation10 + $0x3d8] sm:$0xff]
        %v4895 = vld [vmem:[#allocation10 + $0x3e0] sm:$0xff]
        %v4896 = vld [vmem:[#allocation10 + $0x3e8] sm:$0xff]
        %v4897 = vld [vmem:[#allocation10 + $0x3f0] sm:$0xff]
        %v4898 = vld [vmem:[#allocation10 + $0x3f8] sm:$0xff]
        %v4899 = vld [vmem:[#allocation10 + $0x400] sm:$0xff]
        %v4900 = vld [vmem:[#allocation10 + $0x408] sm:$0xff]
        %v4901 = vld [vmem:[#allocation10 + $0x410] sm:$0xff]
        %v4902 = vld [vmem:[#allocation10 + $0x418] sm:$0xff]
        %v4903 = vld [vmem:[#allocation10 + $0x420] sm:$0xff]
        %v4904 = vld [vmem:[#allocation10 + $0x428] sm:$0xff]
        %v4905 = vld [vmem:[#allocation10 + $0x430] sm:$0xff]
        %v4906 = vld [vmem:[#allocation10 + $0x438] sm:$0xff]
        %v4907 = vld [vmem:[#allocation10 + $0x440] sm:$0xff]
        %v4908 = vld [vmem:[#allocation10 + $0x448] sm:$0xff]
        %v4909 = vld [vmem:[#allocation10 + $0x450] sm:$0xff]
        %v4910 = vld [vmem:[#allocation10 + $0x458] sm:$0xff]
        %v4911 = vld [vmem:[#allocation10 + $0x460] sm:$0xff]
        %v4912 = vld [vmem:[#allocation10 + $0x468] sm:$0xff]
        %v4913 = vld [vmem:[#allocation10 + $0x470] sm:$0xff]
        %v4914 = vld [vmem:[#allocation10 + $0x478] sm:$0xff]
        %v4915 = vld [vmem:[%s9] sm:$0x1]
        %v4917 = vlaneseq
        %v4918 = vshrl.u32 %v4917, 7
        %v4919 = vsub.s32 0, %v4918
        %v4920 = vrot.slane %v4915, %v4919
        %4922 = vmatprep.subr.mxu0 0.0
        %4923 = vmatpush1.msra.mxu0 %v4771
        %4924 = vmatprep.subr.mxu0 0.0
        %4925 = vmatpush1.msra.mxu0 %v4772
        %4926 = vmatprep.subr.mxu0 0.0
        %4927 = vmatpush1.msra.mxu0 %v4773
        %4928 = vmatprep.subr.mxu0 0.0
        %4929 = vmatpush1.msra.mxu0 %v4774
        %4930 = vmatprep.subr.mxu0 0.0
        %4931 = vmatpush1.msra.mxu0 %v4775
        %4932 = vmatprep.subr.mxu0 0.0
        %4933 = vmatpush1.msra.mxu0 %v4776
        %4934 = vmatprep.subr.mxu0 0.0
        %4935 = vmatpush1.msra.mxu0 %v4777
        %4936 = vmatprep.subr.mxu0 0.0
        %4937 = vmatpush1.msra.mxu0 %v4778
        %4938 = vmatprep.subr.mxu0 0.0
        %4939 = vmatpush1.msra.mxu0 %v4779
        %4940 = vmatprep.subr.mxu0 0.0
        %4941 = vmatpush1.msra.mxu0 %v4780
        %4942 = vmatprep.subr.mxu0 0.0
        %4943 = vmatpush1.msra.mxu0 %v4781
        %4944 = vmatprep.subr.mxu0 0.0
        %4945 = vmatpush1.msra.mxu0 %v4782
        %4946 = vmatprep.subr.mxu0 0.0
        %4947 = vmatpush1.msra.mxu0 %v4783
        %4948 = vmatprep.subr.mxu0 0.0
        %4949 = vmatpush1.msra.mxu0 %v4784
        %4950 = vmatprep.subr.mxu0 0.0
        %4951 = vmatpush1.msra.mxu0 %v4785
        %4952 = vmatprep.subr.mxu0 0.0
        %4953 = vmatpush1.msra.mxu0 %v4786
        %4954 = vmatprep.subr.mxu0 0.0
        %4955 = vmatpush1.msra.mxu0 %v4787
        %4956 = vmatprep.subr.mxu0 0.0
        %4957 = vmatpush1.msra.mxu0 %v4788
        %4958 = vmatprep.subr.mxu0 0.0
        %4959 = vmatpush1.msra.mxu0 %v4789
        %4960 = vmatprep.subr.mxu0 0.0
        %4961 = vmatpush1.msra.mxu0 %v4790
        %4962 = vmatprep.subr.mxu0 0.0
        %4963 = vmatpush1.msra.mxu0 %v4791
        %4964 = vmatprep.subr.mxu0 0.0
        %4965 = vmatpush1.msra.mxu0 %v4792
        %4966 = vmatprep.subr.mxu0 0.0
        %4967 = vmatpush1.msra.mxu0 %v4793
        %4968 = vmatprep.subr.mxu0 0.0
        %4969 = vmatpush1.msra.mxu0 %v4794
        %4970 = vmatprep.subr.mxu0 0.0
        %4971 = vmatpush1.msra.mxu0 %v4795
        %4972 = vmatprep.subr.mxu0 0.0
        %4973 = vmatpush1.msra.mxu0 %v4796
        %4974 = vmatprep.subr.mxu0 0.0
        %4975 = vmatpush1.msra.mxu0 %v4797
        %4976 = vmatprep.subr.mxu0 0.0
        %4977 = vmatpush1.msra.mxu0 %v4798
        %4978 = vmatprep.subr.mxu0 0.0
        %4979 = vmatpush1.msra.mxu0 %v4799
        %4980 = vmatprep.subr.mxu0 0.0
        %4981 = vmatpush1.msra.mxu0 %v4800
        %4982 = vmatprep.subr.mxu0 0.0
        %4983 = vmatpush1.msra.mxu0 %v4801
        %4984 = vmatprep.subr.mxu0 0.0
        %4985 = vmatpush1.msra.mxu0 %v4802
        %4986 = vmatprep.mubr.f32.mxu0 %v4515
        %4987 = vmatmul.mubr.f32.gmra.mrb[0].mxu0 %v4483
        %v4988 = vpop.f32.mrb[0].mxu0
        %v4989 = vadd.f32 %v4920, %v4988
        %v4990 = vpop.f32.mrb[0].mxu0
        %4991 = vmatprep.mubr.f32.mxu0 %v4516
        %4992 = vmatmul.mubr.f32.gmra.mrb[0].mxu0 %v4484
        %v4993 = vpop.f32.mrb[0].mxu0
        %v4994 = vadd.f32 %v4920, %v4993
        %v4995 = vpop.f32.mrb[0].mxu0
        %4996 = vmatprep.mubr.f32.mxu0 %v4517
        %4997 = vmatmul.mubr.f32.gmra.mrb[0].mxu0 %v4485
        %v4998 = vpop.f32.mrb[0].mxu0
        %v4999 = vadd.f32 %v4920, %v4998
        %v5000 = vpop.f32.mrb[0].mxu0
        %5001 = vmatprep.mubr.f32.mxu0 %v4518
        %5002 = vmatmul.mubr.f32.gmra.mrb[0].mxu0 %v4486
        %v5003 = vpop.f32.mrb[0].mxu0
        %v5004 = vadd.f32 %v4920, %v5003
        %v5005 = vpop.f32.mrb[0].mxu0
        %5006 = vmatprep.mubr.f32.mxu0 %v4519
        %5007 = vmatmul.mubr.f32.gmra.mrb[0].mxu0 %v4487
        %v5008 = vpop.f32.mrb[0].mxu0
        %v5009 = vadd.f32 %v4920, %v5008
        %v5010 = vpop.f32.mrb[0].mxu0
        %5011 = vmatprep.mubr.f32.mxu0 %v4520
        %5012 = vmatmul.mubr.f32.gmra.mrb[0].mxu0 %v4488
        %v5013 = vpop.f32.mrb[0].mxu0
        %v5014 = vadd.f32 %v4920, %v5013
        %v5015 = vpop.f32.mrb[0].mxu0
        %5016 = vmatprep.mubr.f32.mxu0 %v4521
        %5017 = vmatmul.mubr.f32.gmra.mrb[0].mxu0 %v4489
        %v5018 = vpop.f32.mrb[0].mxu0
        %v5019 = vadd.f32 %v4920, %v5018
        %v5020 = vpop.f32.mrb[0].mxu0
        %5021 = vmatprep.mubr.f32.mxu0 %v4522
        %5022 = vmatmul.mubr.f32.gmra.mrb[0].mxu0 %v4490
        %v5023 = vpop.f32.mrb[0].mxu0
        %v5024 = vadd.f32 %v4920, %v5023
        %v5025 = vpop.f32.mrb[0].mxu0
        %5026 = vmatprep.mubr.f32.mxu0 %v4523
        %5027 = vmatmul.mubr.f32.gmra.mrb[0].mxu0 %v4491
        %v5028 = vpop.f32.mrb[0].mxu0
        %v5029 = vadd.f32 %v4920, %v5028
        %v5030 = vpop.f32.mrb[0].mxu0
        %5031 = vmatprep.mubr.f32.mxu0 %v4524
        %5032 = vmatmul.mubr.f32.gmra.mrb[0].mxu0 %v4492
        %v5033 = vpop.f32.mrb[0].mxu0
        %v5034 = vadd.f32 %v4920, %v5033
        %v5035 = vpop.f32.mrb[0].mxu0
        %5036 = vmatprep.mubr.f32.mxu0 %v4525
        %5037 = vmatmul.mubr.f32.gmra.mrb[0].mxu0 %v4493
        %v5038 = vpop.f32.mrb[0].mxu0
        %v5039 = vadd.f32 %v4920, %v5038
        %v5040 = vpop.f32.mrb[0].mxu0
        %5041 = vmatprep.mubr.f32.mxu0 %v4526
        %5042 = vmatmul.mubr.f32.gmra.mrb[0].mxu0 %v4494
        %v5043 = vpop.f32.mrb[0].mxu0
        %v5044 = vadd.f32 %v4920, %v5043
        %v5045 = vpop.f32.mrb[0].mxu0
        %5046 = vmatprep.mubr.f32.mxu0 %v4527
        %5047 = vmatmul.mubr.f32.gmra.mrb[0].mxu0 %v4495
        %v5048 = vpop.f32.mrb[0].mxu0
        %v5049 = vadd.f32 %v4920, %v5048
        %v5050 = vpop.f32.mrb[0].mxu0
        %5051 = vmatprep.mubr.f32.mxu0 %v4528
        %5052 = vmatmul.mubr.f32.gmra.mrb[0].mxu0 %v4496
        %v5053 = vpop.f32.mrb[0].mxu0
        %v5054 = vadd.f32 %v4920, %v5053
        %v5055 = vpop.f32.mrb[0].mxu0
        %5056 = vmatprep.mubr.f32.mxu0 %v4529
        %5057 = vmatmul.mubr.f32.gmra.mrb[0].mxu0 %v4497
        %v5058 = vpop.f32.mrb[0].mxu0
        %v5059 = vadd.f32 %v4920, %v5058
        %v5060 = vpop.f32.mrb[0].mxu0
        %5061 = vmatprep.mubr.f32.mxu0 %v4530
        %5062 = vmatmul.mubr.f32.gmra.mrb[0].mxu0 %v4498
        %v5063 = vpop.f32.mrb[0].mxu0
        %v5064 = vadd.f32 %v4920, %v5063
        %v5065 = vpop.f32.mrb[0].mxu0
        %5066 = vmatprep.mubr.f32.mxu0 %v4531
        %5067 = vmatmul.mubr.f32.gmra.mrb[0].mxu0 %v4499
        %v5068 = vpop.f32.mrb[0].mxu0
        %v5069 = vadd.f32 %v4920, %v5068
        %v5070 = vpop.f32.mrb[0].mxu0
        %5071 = vmatprep.mubr.f32.mxu0 %v4532
        %5072 = vmatmul.mubr.f32.gmra.mrb[0].mxu0 %v4500
        %v5073 = vpop.f32.mrb[0].mxu0
        %v5074 = vadd.f32 %v4920, %v5073
        %v5075 = vpop.f32.mrb[0].mxu0
        %5076 = vmatprep.mubr.f32.mxu0 %v4533
        %5077 = vmatmul.mubr.f32.gmra.mrb[0].mxu0 %v4501
        %v5078 = vpop.f32.mrb[0].mxu0
        %v5079 = vadd.f32 %v4920, %v5078
        %v5080 = vpop.f32.mrb[0].mxu0
        %5081 = vmatprep.mubr.f32.mxu0 %v4534
        %5082 = vmatmul.mubr.f32.gmra.mrb[0].mxu0 %v4502
        %v5083 = vpop.f32.mrb[0].mxu0
        %v5084 = vadd.f32 %v4920, %v5083
        %v5085 = vpop.f32.mrb[0].mxu0
        %5086 = vmatprep.mubr.f32.mxu0 %v4535
        %5087 = vmatmul.mubr.f32.gmra.mrb[0].mxu0 %v4503
        %v5088 = vpop.f32.mrb[0].mxu0
        %v5089 = vadd.f32 %v4920, %v5088
        %v5090 = vpop.f32.mrb[0].mxu0
        %5091 = vmatprep.mubr.f32.mxu0 %v4536
        %5092 = vmatmul.mubr.f32.gmra.mrb[0].mxu0 %v4504
        %v5093 = vpop.f32.mrb[0].mxu0
        %v5094 = vadd.f32 %v4920, %v5093
        %v5095 = vpop.f32.mrb[0].mxu0
        %5096 = vmatprep.mubr.f32.mxu0 %v4537
        %5097 = vmatmul.mubr.f32.gmra.mrb[0].mxu0 %v4505
        %v5098 = vpop.f32.mrb[0].mxu0
        %v5099 = vadd.f32 %v4920, %v5098
        %v5100 = vpop.f32.mrb[0].mxu0
        %5101 = vmatprep.mubr.f32.mxu0 %v4538
        %5102 = vmatmul.mubr.f32.gmra.mrb[0].mxu0 %v4506
        %v5103 = vpop.f32.mrb[0].mxu0
        %v5104 = vadd.f32 %v4920, %v5103
        %v5105 = vpop.f32.mrb[0].mxu0
        %5106 = vmatprep.mubr.f32.mxu0 %v4539
        %5107 = vmatmul.mubr.f32.gmra.mrb[0].mxu0 %v4507
        %v5108 = vpop.f32.mrb[0].mxu0
        %v5109 = vadd.f32 %v4920, %v5108
        %v5110 = vpop.f32.mrb[0].mxu0
        %5111 = vmatprep.mubr.f32.mxu0 %v4540
        %5112 = vmatmul.mubr.f32.gmra.mrb[0].mxu0 %v4508
        %v5113 = vpop.f32.mrb[0].mxu0
        %v5114 = vadd.f32 %v4920, %v5113
        %v5115 = vpop.f32.mrb[0].mxu0
        %5116 = vmatprep.mubr.f32.mxu0 %v4541
        %5117 = vmatmul.mubr.f32.gmra.mrb[0].mxu0 %v4509
        %v5118 = vpop.f32.mrb[0].mxu0
        %v5119 = vadd.f32 %v4920, %v5118
        %v5120 = vpop.f32.mrb[0].mxu0
        %5121 = vmatprep.mubr.f32.mxu0 %v4542
        %5122 = vmatmul.mubr.f32.gmra.mrb[0].mxu0 %v4510
        %v5123 = vpop.f32.mrb[0].mxu0
        %v5124 = vadd.f32 %v4920, %v5123
        %v5125 = vpop.f32.mrb[0].mxu0
        %5126 = vmatprep.mubr.f32.mxu0 %v4543
        %5127 = vmatmul.mubr.f32.gmra.mrb[0].mxu0 %v4511
        %v5128 = vpop.f32.mrb[0].mxu0
        %v5129 = vadd.f32 %v4920, %v5128
        %v5130 = vpop.f32.mrb[0].mxu0
        %5131 = vmatprep.mubr.f32.mxu0 %v4544
        %5132 = vmatmul.mubr.f32.gmra.mrb[0].mxu0 %v4512
        %v5133 = vpop.f32.mrb[0].mxu0
        %v5134 = vadd.f32 %v4920, %v5133
        %v5135 = vpop.f32.mrb[0].mxu0
        %5136 = vmatprep.mubr.f32.mxu0 %v4545
        %5137 = vmatmul.mubr.f32.gmra.mrb[0].mxu0 %v4513
        %v5138 = vpop.f32.mrb[0].mxu0
        %v5139 = vadd.f32 %v4920, %v5138
        %v5140 = vpop.f32.mrb[0].mxu0
        %5141 = vmatprep.mubr.f32.mxu0 %v4546
        %5142 = vmatmul.mubr.f32.gmra.mrb[0].mxu0 %v4514
        %v5143 = vpop.f32.mrb[0].mxu0
        %v5144 = vadd.f32 %v4920, %v5143
        %v5145 = vpop.f32.mrb[0].mxu0
        %5146 = vdwg.mxu0
        %5147 = vmatprep.subr.mxu0 0.0
        %5148 = vmatpush1.msra.mxu0 %v4803
        %5149 = vmatprep.subr.mxu0 0.0
        %5150 = vmatpush1.msra.mxu0 %v4804
        %5151 = vmatprep.subr.mxu0 0.0
        %5152 = vmatpush1.msra.mxu0 %v4805
        %5153 = vmatprep.subr.mxu0 0.0
        %5154 = vmatpush1.msra.mxu0 %v4806
        %5155 = vmatprep.subr.mxu0 0.0
        %5156 = vmatpush1.msra.mxu0 %v4807
        %5157 = vmatprep.subr.mxu0 0.0
        %5158 = vmatpush1.msra.mxu0 %v4808
        %5159 = vmatprep.subr.mxu0 0.0
        %5160 = vmatpush1.msra.mxu0 %v4809
        %5161 = vmatprep.subr.mxu0 0.0
        %5162 = vmatpush1.msra.mxu0 %v4810
        %5163 = vmatprep.subr.mxu0 0.0
        %5164 = vmatpush1.msra.mxu0 %v4811
        %5165 = vmatprep.subr.mxu0 0.0
        %5166 = vmatpush1.msra.mxu0 %v4812
        %5167 = vmatprep.subr.mxu0 0.0
        %5168 = vmatpush1.msra.mxu0 %v4813
        %5169 = vmatprep.subr.mxu0 0.0
        %5170 = vmatpush1.msra.mxu0 %v4814
        %5171 = vmatprep.subr.mxu0 0.0
        %5172 = vmatpush1.msra.mxu0 %v4815
        %5173 = vmatprep.subr.mxu0 0.0
        %5174 = vmatpush1.msra.mxu0 %v4816
        %5175 = vmatprep.subr.mxu0 0.0
        %5176 = vmatpush1.msra.mxu0 %v4817
        %5177 = vmatprep.subr.mxu0 0.0
        %5178 = vmatpush1.msra.mxu0 %v4818
        %5179 = vmatprep.subr.mxu0 0.0
        %5180 = vmatpush1.msra.mxu0 %v4819
        %5181 = vmatprep.subr.mxu0 0.0
        %5182 = vmatpush1.msra.mxu0 %v4820
        %5183 = vmatprep.subr.mxu0 0.0
        %5184 = vmatpush1.msra.mxu0 %v4821
        %5185 = vmatprep.subr.mxu0 0.0
        %5186 = vmatpush1.msra.mxu0 %v4822
        %5187 = vmatprep.subr.mxu0 0.0
        %5188 = vmatpush1.msra.mxu0 %v4823
        %5189 = vmatprep.subr.mxu0 0.0
        %5190 = vmatpush1.msra.mxu0 %v4824
        %5191 = vmatprep.subr.mxu0 0.0
        %5192 = vmatpush1.msra.mxu0 %v4825
        %5193 = vmatprep.subr.mxu0 0.0
        %5194 = vmatpush1.msra.mxu0 %v4826
        %5195 = vmatprep.subr.mxu0 0.0
        %5196 = vmatpush1.msra.mxu0 %v4827
        %5197 = vmatprep.subr.mxu0 0.0
        %5198 = vmatpush1.msra.mxu0 %v4828
        %5199 = vmatprep.subr.mxu0 0.0
        %5200 = vmatpush1.msra.mxu0 %v4829
        %5201 = vmatprep.subr.mxu0 0.0
        %5202 = vmatpush1.msra.mxu0 %v4830
        %5203 = vmatprep.subr.mxu0 0.0
        %5204 = vmatpush1.msra.mxu0 %v4831
        %5205 = vmatprep.subr.mxu0 0.0
        %5206 = vmatpush1.msra.mxu0 %v4832
        %5207 = vmatprep.subr.mxu0 0.0
        %5208 = vmatpush1.msra.mxu0 %v4833
        %5209 = vmatprep.subr.mxu0 0.0
        %5210 = vmatpush1.msra.mxu0 %v4834
        %5211 = vmatprep.mubr.f32.mxu0 %v4579
        %5212 = vmatmul.mubr.f32.gmra.mrb[0].mxu0 %v4547
        %v5213 = vpop.f32.mrb[0].mxu0
        %v5214 = vadd.f32 %v4989, %v5213
        %v5215 = vpop.f32.mrb[0].mxu0
        %5216 = vmatprep.mubr.f32.mxu0 %v4580
        %5217 = vmatmul.mubr.f32.gmra.mrb[0].mxu0 %v4548
        %v5218 = vpop.f32.mrb[0].mxu0
        %v5219 = vadd.f32 %v4994, %v5218
        %v5220 = vpop.f32.mrb[0].mxu0
        %5221 = vmatprep.mubr.f32.mxu0 %v4581
        %5222 = vmatmul.mubr.f32.gmra.mrb[0].mxu0 %v4549
        %v5223 = vpop.f32.mrb[0].mxu0
        %v5224 = vadd.f32 %v4999, %v5223
        %v5225 = vpop.f32.mrb[0].mxu0
        %5226 = vmatprep.mubr.f32.mxu0 %v4582
        %5227 = vmatmul.mubr.f32.gmra.mrb[0].mxu0 %v4550
        %v5228 = vpop.f32.mrb[0].mxu0
        %v5229 = vadd.f32 %v5004, %v5228
        %v5230 = vpop.f32.mrb[0].mxu0
        %5231 = vmatprep.mubr.f32.mxu0 %v4583
        %5232 = vmatmul.mubr.f32.gmra.mrb[0].mxu0 %v4551
        %v5233 = vpop.f32.mrb[0].mxu0
        %v5234 = vadd.f32 %v5009, %v5233
        %v5235 = vpop.f32.mrb[0].mxu0
        %5236 = vmatprep.mubr.f32.mxu0 %v4584
        %5237 = vmatmul.mubr.f32.gmra.mrb[0].mxu0 %v4552
        %v5238 = vpop.f32.mrb[0].mxu0
        %v5239 = vadd.f32 %v5014, %v5238
        %v5240 = vpop.f32.mrb[0].mxu0
        %5241 = vmatprep.mubr.f32.mxu0 %v4585
        %5242 = vmatmul.mubr.f32.gmra.mrb[0].mxu0 %v4553
        %v5243 = vpop.f32.mrb[0].mxu0
        %v5244 = vadd.f32 %v5019, %v5243
        %v5245 = vpop.f32.mrb[0].mxu0
        %5246 = vmatprep.mubr.f32.mxu0 %v4586
        %5247 = vmatmul.mubr.f32.gmra.mrb[0].mxu0 %v4554
        %v5248 = vpop.f32.mrb[0].mxu0
        %v5249 = vadd.f32 %v5024, %v5248
        %v5250 = vpop.f32.mrb[0].mxu0
        %5251 = vmatprep.mubr.f32.mxu0 %v4587
        %5252 = vmatmul.mubr.f32.gmra.mrb[0].mxu0 %v4555
        %v5253 = vpop.f32.mrb[0].mxu0
        %v5254 = vadd.f32 %v5029, %v5253
        %v5255 = vpop.f32.mrb[0].mxu0
        %5256 = vmatprep.mubr.f32.mxu0 %v4588
        %5257 = vmatmul.mubr.f32.gmra.mrb[0].mxu0 %v4556
        %v5258 = vpop.f32.mrb[0].mxu0
        %v5259 = vadd.f32 %v5034, %v5258
        %v5260 = vpop.f32.mrb[0].mxu0
        %5261 = vmatprep.mubr.f32.mxu0 %v4589
        %5262 = vmatmul.mubr.f32.gmra.mrb[0].mxu0 %v4557
        %v5263 = vpop.f32.mrb[0].mxu0
        %v5264 = vadd.f32 %v5039, %v5263
        %v5265 = vpop.f32.mrb[0].mxu0
        %5266 = vmatprep.mubr.f32.mxu0 %v4590
        %5267 = vmatmul.mubr.f32.gmra.mrb[0].mxu0 %v4558
        %v5268 = vpop.f32.mrb[0].mxu0
        %v5269 = vadd.f32 %v5044, %v5268
        %v5270 = vpop.f32.mrb[0].mxu0
        %5271 = vmatprep.mubr.f32.mxu0 %v4591
        %5272 = vmatmul.mubr.f32.gmra.mrb[0].mxu0 %v4559
        %v5273 = vpop.f32.mrb[0].mxu0
        %v5274 = vadd.f32 %v5049, %v5273
        %v5275 = vpop.f32.mrb[0].mxu0
        %5276 = vmatprep.mubr.f32.mxu0 %v4592
        %5277 = vmatmul.mubr.f32.gmra.mrb[0].mxu0 %v4560
        %v5278 = vpop.f32.mrb[0].mxu0
        %v5279 = vadd.f32 %v5054, %v5278
        %v5280 = vpop.f32.mrb[0].mxu0
        %5281 = vmatprep.mubr.f32.mxu0 %v4593
        %5282 = vmatmul.mubr.f32.gmra.mrb[0].mxu0 %v4561
        %v5283 = vpop.f32.mrb[0].mxu0
        %v5284 = vadd.f32 %v5059, %v5283
        %v5285 = vpop.f32.mrb[0].mxu0
        %5286 = vmatprep.mubr.f32.mxu0 %v4594
        %5287 = vmatmul.mubr.f32.gmra.mrb[0].mxu0 %v4562
        %v5288 = vpop.f32.mrb[0].mxu0
        %v5289 = vadd.f32 %v5064, %v5288
        %v5290 = vpop.f32.mrb[0].mxu0
        %5291 = vmatprep.mubr.f32.mxu0 %v4595
        %5292 = vmatmul.mubr.f32.gmra.mrb[0].mxu0 %v4563
        %v5293 = vpop.f32.mrb[0].mxu0
        %v5294 = vadd.f32 %v5069, %v5293
        %v5295 = vpop.f32.mrb[0].mxu0
        %5296 = vmatprep.mubr.f32.mxu0 %v4596
        %5297 = vmatmul.mubr.f32.gmra.mrb[0].mxu0 %v4564
        %v5298 = vpop.f32.mrb[0].mxu0
        %v5299 = vadd.f32 %v5074, %v5298
        %v5300 = vpop.f32.mrb[0].mxu0
        %5301 = vmatprep.mubr.f32.mxu0 %v4597
        %5302 = vmatmul.mubr.f32.gmra.mrb[0].mxu0 %v4565
        %v5303 = vpop.f32.mrb[0].mxu0
        %v5304 = vadd.f32 %v5079, %v5303
        %v5305 = vpop.f32.mrb[0].mxu0
        %5306 = vmatprep.mubr.f32.mxu0 %v4598
        %5307 = vmatmul.mubr.f32.gmra.mrb[0].mxu0 %v4566
        %v5308 = vpop.f32.mrb[0].mxu0
        %v5309 = vadd.f32 %v5084, %v5308
        %v5310 = vpop.f32.mrb[0].mxu0
        %5311 = vmatprep.mubr.f32.mxu0 %v4599
        %5312 = vmatmul.mubr.f32.gmra.mrb[0].mxu0 %v4567
        %v5313 = vpop.f32.mrb[0].mxu0
        %v5314 = vadd.f32 %v5089, %v5313
        %v5315 = vpop.f32.mrb[0].mxu0
        %5316 = vmatprep.mubr.f32.mxu0 %v4600
        %5317 = vmatmul.mubr.f32.gmra.mrb[0].mxu0 %v4568
        %v5318 = vpop.f32.mrb[0].mxu0
        %v5319 = vadd.f32 %v5094, %v5318
        %v5320 = vpop.f32.mrb[0].mxu0
        %5321 = vmatprep.mubr.f32.mxu0 %v4601
        %5322 = vmatmul.mubr.f32.gmra.mrb[0].mxu0 %v4569
        %v5323 = vpop.f32.mrb[0].mxu0
        %v5324 = vadd.f32 %v5099, %v5323
        %v5325 = vpop.f32.mrb[0].mxu0
        %5326 = vmatprep.mubr.f32.mxu0 %v4602
        %5327 = vmatmul.mubr.f32.gmra.mrb[0].mxu0 %v4570
        %v5328 = vpop.f32.mrb[0].mxu0
        %v5329 = vadd.f32 %v5104, %v5328
        %v5330 = vpop.f32.mrb[0].mxu0
        %5331 = vmatprep.mubr.f32.mxu0 %v4603
        %5332 = vmatmul.mubr.f32.gmra.mrb[0].mxu0 %v4571
        %v5333 = vpop.f32.mrb[0].mxu0
        %v5334 = vadd.f32 %v5109, %v5333
        %v5335 = vpop.f32.mrb[0].mxu0
        %5336 = vmatprep.mubr.f32.mxu0 %v4604
        %5337 = vmatmul.mubr.f32.gmra.mrb[0].mxu0 %v4572
        %v5338 = vpop.f32.mrb[0].mxu0
        %v5339 = vadd.f32 %v5114, %v5338
        %v5340 = vpop.f32.mrb[0].mxu0
        %5341 = vmatprep.mubr.f32.mxu0 %v4605
        %5342 = vmatmul.mubr.f32.gmra.mrb[0].mxu0 %v4573
        %v5343 = vpop.f32.mrb[0].mxu0
        %v5344 = vadd.f32 %v5119, %v5343
        %v5345 = vpop.f32.mrb[0].mxu0
        %5346 = vmatprep.mubr.f32.mxu0 %v4606
        %5347 = vmatmul.mubr.f32.gmra.mrb[0].mxu0 %v4574
        %v5348 = vpop.f32.mrb[0].mxu0
        %v5349 = vadd.f32 %v5124, %v5348
        %v5350 = vpop.f32.mrb[0].mxu0
        %5351 = vmatprep.mubr.f32.mxu0 %v4607
        %5352 = vmatmul.mubr.f32.gmra.mrb[0].mxu0 %v4575
        %v5353 = vpop.f32.mrb[0].mxu0
        %v5354 = vadd.f32 %v5129, %v5353
        %v5355 = vpop.f32.mrb[0].mxu0
        %5356 = vmatprep.mubr.f32.mxu0 %v4608
        %5357 = vmatmul.mubr.f32.gmra.mrb[0].mxu0 %v4576
        %v5358 = vpop.f32.mrb[0].mxu0
        %v5359 = vadd.f32 %v5134, %v5358
        %v5360 = vpop.f32.mrb[0].mxu0
        %5361 = vmatprep.mubr.f32.mxu0 %v4609
        %5362 = vmatmul.mubr.f32.gmra.mrb[0].mxu0 %v4577
        %v5363 = vpop.f32.mrb[0].mxu0
        %v5364 = vadd.f32 %v5139, %v5363
        %v5365 = vpop.f32.mrb[0].mxu0
        %5366 = vmatprep.mubr.f32.mxu0 %v4610
        %5367 = vmatmul.mubr.f32.gmra.mrb[0].mxu0 %v4578
        %v5368 = vpop.f32.mrb[0].mxu0
        %v5369 = vadd.f32 %v5144, %v5368
        %v5370 = vpop.f32.mrb[0].mxu0
        %5371 = vdwg.mxu0
        %5372 = vmatprep.subr.mxu0 0.0
        %5373 = vmatpush1.msra.mxu0 %v4835
        %5374 = vmatprep.subr.mxu0 0.0
        %5375 = vmatpush1.msra.mxu0 %v4836
        %5376 = vmatprep.subr.mxu0 0.0
        %5377 = vmatpush1.msra.mxu0 %v4837
        %5378 = vmatprep.subr.mxu0 0.0
        %5379 = vmatpush1.msra.mxu0 %v4838
        %5380 = vmatprep.subr.mxu0 0.0
        %5381 = vmatpush1.msra.mxu0 %v4839
        %5382 = vmatprep.subr.mxu0 0.0
        %5383 = vmatpush1.msra.mxu0 %v4840
        %5384 = vmatprep.subr.mxu0 0.0
        %5385 = vmatpush1.msra.mxu0 %v4841
        %5386 = vmatprep.subr.mxu0 0.0
        %5387 = vmatpush1.msra.mxu0 %v4842
        %5388 = vmatprep.subr.mxu0 0.0
        %5389 = vmatpush1.msra.mxu0 %v4843
        %5390 = vmatprep.subr.mxu0 0.0
        %5391 = vmatpush1.msra.mxu0 %v4844
        %5392 = vmatprep.subr.mxu0 0.0
        %5393 = vmatpush1.msra.mxu0 %v4845
        %5394 = vmatprep.subr.mxu0 0.0
        %5395 = vmatpush1.msra.mxu0 %v4846
        %5396 = vmatprep.subr.mxu0 0.0
        %5397 = vmatpush1.msra.mxu0 %v4847
        %5398 = vmatprep.subr.mxu0 0.0
        %5399 = vmatpush1.msra.mxu0 %v4848
        %5400 = vmatprep.subr.mxu0 0.0
        %5401 = vmatpush1.msra.mxu0 %v4849
        %5402 = vmatprep.subr.mxu0 0.0
        %5403 = vmatpush1.msra.mxu0 %v4850
        %5404 = vmatprep.subr.mxu0 0.0
        %5405 = vmatpush1.msra.mxu0 %v4851
        %5406 = vmatprep.subr.mxu0 0.0
        %5407 = vmatpush1.msra.mxu0 %v4852
        %5408 = vmatprep.subr.mxu0 0.0
        %5409 = vmatpush1.msra.mxu0 %v4853
        %5410 = vmatprep.subr.mxu0 0.0
        %5411 = vmatpush1.msra.mxu0 %v4854
        %5412 = vmatprep.subr.mxu0 0.0
        %5413 = vmatpush1.msra.mxu0 %v4855
        %5414 = vmatprep.subr.mxu0 0.0
        %5415 = vmatpush1.msra.mxu0 %v4856
        %5416 = vmatprep.subr.mxu0 0.0
        %5417 = vmatpush1.msra.mxu0 %v4857
        %5418 = vmatprep.subr.mxu0 0.0
        %5419 = vmatpush1.msra.mxu0 %v4858
        %5420 = vmatprep.subr.mxu0 0.0
        %5421 = vmatpush1.msra.mxu0 %v4859
        %5422 = vmatprep.subr.mxu0 0.0
        %5423 = vmatpush1.msra.mxu0 %v4860
        %5424 = vmatprep.subr.mxu0 0.0
        %5425 = vmatpush1.msra.mxu0 %v4861
        %5426 = vmatprep.subr.mxu0 0.0
        %5427 = vmatpush1.msra.mxu0 %v4862
        %5428 = vmatprep.subr.mxu0 0.0
        %5429 = vmatpush1.msra.mxu0 %v4863
        %5430 = vmatprep.subr.mxu0 0.0
        %5431 = vmatpush1.msra.mxu0 %v4864
        %5432 = vmatprep.subr.mxu0 0.0
        %5433 = vmatpush1.msra.mxu0 %v4865
        %5434 = vmatprep.subr.mxu0 0.0
        %5435 = vmatpush1.msra.mxu0 %v4866
        %5436 = vmatprep.mubr.f32.mxu0 %v4643
        %5437 = vmatmul.mubr.f32.gmra.mrb[0].mxu0 %v4611
        %v5438 = vpop.f32.mrb[0].mxu0
        %v5439 = vadd.f32 %v5214, %v5438
        %v5440 = vpop.f32.mrb[0].mxu0
        %5441 = vmatprep.mubr.f32.mxu0 %v4644
        %5442 = vmatmul.mubr.f32.gmra.mrb[0].mxu0 %v4612
        %v5443 = vpop.f32.mrb[0].mxu0
        %v5444 = vadd.f32 %v5219, %v5443
        %v5445 = vpop.f32.mrb[0].mxu0
        %5446 = vmatprep.mubr.f32.mxu0 %v4645
        %5447 = vmatmul.mubr.f32.gmra.mrb[0].mxu0 %v4613
        %v5448 = vpop.f32.mrb[0].mxu0
        %v5449 = vadd.f32 %v5224, %v5448
        %v5450 = vpop.f32.mrb[0].mxu0
        %5451 = vmatprep.mubr.f32.mxu0 %v4646
        %5452 = vmatmul.mubr.f32.gmra.mrb[0].mxu0 %v4614
        %v5453 = vpop.f32.mrb[0].mxu0
        %v5454 = vadd.f32 %v5229, %v5453
        %v5455 = vpop.f32.mrb[0].mxu0
        %5456 = vmatprep.mubr.f32.mxu0 %v4647
        %5457 = vmatmul.mubr.f32.gmra.mrb[0].mxu0 %v4615
        %v5458 = vpop.f32.mrb[0].mxu0
        %v5459 = vadd.f32 %v5234, %v5458
        %v5460 = vpop.f32.mrb[0].mxu0
        %5461 = vmatprep.mubr.f32.mxu0 %v4648
        %5462 = vmatmul.mubr.f32.gmra.mrb[0].mxu0 %v4616
        %v5463 = vpop.f32.mrb[0].mxu0
        %v5464 = vadd.f32 %v5239, %v5463
        %v5465 = vpop.f32.mrb[0].mxu0
        %5466 = vmatprep.mubr.f32.mxu0 %v4649
        %5467 = vmatmul.mubr.f32.gmra.mrb[0].mxu0 %v4617
        %v5468 = vpop.f32.mrb[0].mxu0
        %v5469 = vadd.f32 %v5244, %v5468
        %v5470 = vpop.f32.mrb[0].mxu0
        %5471 = vmatprep.mubr.f32.mxu0 %v4650
        %5472 = vmatmul.mubr.f32.gmra.mrb[0].mxu0 %v4618
        %v5473 = vpop.f32.mrb[0].mxu0
        %v5474 = vadd.f32 %v5249, %v5473
        %v5475 = vpop.f32.mrb[0].mxu0
        %5476 = vmatprep.mubr.f32.mxu0 %v4651
        %5477 = vmatmul.mubr.f32.gmra.mrb[0].mxu0 %v4619
        %v5478 = vpop.f32.mrb[0].mxu0
        %v5479 = vadd.f32 %v5254, %v5478
        %v5480 = vpop.f32.mrb[0].mxu0
        %5481 = vmatprep.mubr.f32.mxu0 %v4652
        %5482 = vmatmul.mubr.f32.gmra.mrb[0].mxu0 %v4620
        %v5483 = vpop.f32.mrb[0].mxu0
        %v5484 = vadd.f32 %v5259, %v5483
        %v5485 = vpop.f32.mrb[0].mxu0
        %5486 = vmatprep.mubr.f32.mxu0 %v4653
        %5487 = vmatmul.mubr.f32.gmra.mrb[0].mxu0 %v4621
        %v5488 = vpop.f32.mrb[0].mxu0
        %v5489 = vadd.f32 %v5264, %v5488
        %v5490 = vpop.f32.mrb[0].mxu0
        %5491 = vmatprep.mubr.f32.mxu0 %v4654
        %5492 = vmatmul.mubr.f32.gmra.mrb[0].mxu0 %v4622
        %v5493 = vpop.f32.mrb[0].mxu0
        %v5494 = vadd.f32 %v5269, %v5493
        %v5495 = vpop.f32.mrb[0].mxu0
        %5496 = vmatprep.mubr.f32.mxu0 %v4655
        %5497 = vmatmul.mubr.f32.gmra.mrb[0].mxu0 %v4623
        %v5498 = vpop.f32.mrb[0].mxu0
        %v5499 = vadd.f32 %v5274, %v5498
        %v5500 = vpop.f32.mrb[0].mxu0
        %5501 = vmatprep.mubr.f32.mxu0 %v4656
        %5502 = vmatmul.mubr.f32.gmra.mrb[0].mxu0 %v4624
        %v5503 = vpop.f32.mrb[0].mxu0
        %v5504 = vadd.f32 %v5279, %v5503
        %v5505 = vpop.f32.mrb[0].mxu0
        %5506 = vmatprep.mubr.f32.mxu0 %v4657
        %5507 = vmatmul.mubr.f32.gmra.mrb[0].mxu0 %v4625
        %v5508 = vpop.f32.mrb[0].mxu0
        %v5509 = vadd.f32 %v5284, %v5508
        %v5510 = vpop.f32.mrb[0].mxu0
        %5511 = vmatprep.mubr.f32.mxu0 %v4658
        %5512 = vmatmul.mubr.f32.gmra.mrb[0].mxu0 %v4626
        %v5513 = vpop.f32.mrb[0].mxu0
        %v5514 = vadd.f32 %v5289, %v5513
        %v5515 = vpop.f32.mrb[0].mxu0
        %5516 = vmatprep.mubr.f32.mxu0 %v4659
        %5517 = vmatmul.mubr.f32.gmra.mrb[0].mxu0 %v4627
        %v5518 = vpop.f32.mrb[0].mxu0
        %v5519 = vadd.f32 %v5294, %v5518
        %v5520 = vpop.f32.mrb[0].mxu0
        %5521 = vmatprep.mubr.f32.mxu0 %v4660
        %5522 = vmatmul.mubr.f32.gmra.mrb[0].mxu0 %v4628
        %v5523 = vpop.f32.mrb[0].mxu0
        %v5524 = vadd.f32 %v5299, %v5523
        %v5525 = vpop.f32.mrb[0].mxu0
        %5526 = vmatprep.mubr.f32.mxu0 %v4661
        %5527 = vmatmul.mubr.f32.gmra.mrb[0].mxu0 %v4629
        %v5528 = vpop.f32.mrb[0].mxu0
        %v5529 = vadd.f32 %v5304, %v5528
        %v5530 = vpop.f32.mrb[0].mxu0
        %5531 = vmatprep.mubr.f32.mxu0 %v4662
        %5532 = vmatmul.mubr.f32.gmra.mrb[0].mxu0 %v4630
        %v5533 = vpop.f32.mrb[0].mxu0
        %v5534 = vadd.f32 %v5309, %v5533
        %v5535 = vpop.f32.mrb[0].mxu0
        %5536 = vmatprep.mubr.f32.mxu0 %v4663
        %5537 = vmatmul.mubr.f32.gmra.mrb[0].mxu0 %v4631
        %v5538 = vpop.f32.mrb[0].mxu0
        %v5539 = vadd.f32 %v5314, %v5538
        %v5540 = vpop.f32.mrb[0].mxu0
        %5541 = vmatprep.mubr.f32.mxu0 %v4664
        %5542 = vmatmul.mubr.f32.gmra.mrb[0].mxu0 %v4632
        %v5543 = vpop.f32.mrb[0].mxu0
        %v5544 = vadd.f32 %v5319, %v5543
        %v5545 = vpop.f32.mrb[0].mxu0
        %5546 = vmatprep.mubr.f32.mxu0 %v4665
        %5547 = vmatmul.mubr.f32.gmra.mrb[0].mxu0 %v4633
        %v5548 = vpop.f32.mrb[0].mxu0
        %v5549 = vadd.f32 %v5324, %v5548
        %v5550 = vpop.f32.mrb[0].mxu0
        %5551 = vmatprep.mubr.f32.mxu0 %v4666
        %5552 = vmatmul.mubr.f32.gmra.mrb[0].mxu0 %v4634
        %v5553 = vpop.f32.mrb[0].mxu0
        %v5554 = vadd.f32 %v5329, %v5553
        %v5555 = vpop.f32.mrb[0].mxu0
        %5556 = vmatprep.mubr.f32.mxu0 %v4667
        %5557 = vmatmul.mubr.f32.gmra.mrb[0].mxu0 %v4635
        %v5558 = vpop.f32.mrb[0].mxu0
        %v5559 = vadd.f32 %v5334, %v5558
        %v5560 = vpop.f32.mrb[0].mxu0
        %5561 = vmatprep.mubr.f32.mxu0 %v4668
        %5562 = vmatmul.mubr.f32.gmra.mrb[0].mxu0 %v4636
        %v5563 = vpop.f32.mrb[0].mxu0
        %v5564 = vadd.f32 %v5339, %v5563
        %v5565 = vpop.f32.mrb[0].mxu0
        %5566 = vmatprep.mubr.f32.mxu0 %v4669
        %5567 = vmatmul.mubr.f32.gmra.mrb[0].mxu0 %v4637
        %v5568 = vpop.f32.mrb[0].mxu0
        %v5569 = vadd.f32 %v5344, %v5568
        %v5570 = vpop.f32.mrb[0].mxu0
        %5571 = vmatprep.mubr.f32.mxu0 %v4670
        %5572 = vmatmul.mubr.f32.gmra.mrb[0].mxu0 %v4638
        %v5573 = vpop.f32.mrb[0].mxu0
        %v5574 = vadd.f32 %v5349, %v5573
        %v5575 = vpop.f32.mrb[0].mxu0
        %5576 = vmatprep.mubr.f32.mxu0 %v4671
        %5577 = vmatmul.mubr.f32.gmra.mrb[0].mxu0 %v4639
        %v5578 = vpop.f32.mrb[0].mxu0
        %v5579 = vadd.f32 %v5354, %v5578
        %v5580 = vpop.f32.mrb[0].mxu0
        %5581 = vmatprep.mubr.f32.mxu0 %v4672
        %5582 = vmatmul.mubr.f32.gmra.mrb[0].mxu0 %v4640
        %v5583 = vpop.f32.mrb[0].mxu0
        %v5584 = vadd.f32 %v5359, %v5583
        %v5585 = vpop.f32.mrb[0].mxu0
        %5586 = vmatprep.mubr.f32.mxu0 %v4673
        %5587 = vmatmul.mubr.f32.gmra.mrb[0].mxu0 %v4641
        %v5588 = vpop.f32.mrb[0].mxu0
        %v5589 = vadd.f32 %v5364, %v5588
        %v5590 = vpop.f32.mrb[0].mxu0
        %5591 = vmatprep.mubr.f32.mxu0 %v4674
        %5592 = vmatmul.mubr.f32.gmra.mrb[0].mxu0 %v4642
        %v5593 = vpop.f32.mrb[0].mxu0
        %v5594 = vadd.f32 %v5369, %v5593
        %v5595 = vpop.f32.mrb[0].mxu0
        %5596 = vdwg.mxu0
        %5597 = vmatprep.subr.mxu0 0.0
        %5598 = vmatpush1.msra.mxu0 %v4867
        %5599 = vmatprep.subr.mxu0 0.0
        %5600 = vmatpush1.msra.mxu0 %v4868
        %5601 = vmatprep.subr.mxu0 0.0
        %5602 = vmatpush1.msra.mxu0 %v4869
        %5603 = vmatprep.subr.mxu0 0.0
        %5604 = vmatpush1.msra.mxu0 %v4870
        %5605 = vmatprep.subr.mxu0 0.0
        %5606 = vmatpush1.msra.mxu0 %v4871
        %5607 = vmatprep.subr.mxu0 0.0
        %5608 = vmatpush1.msra.mxu0 %v4872
        %5609 = vmatprep.subr.mxu0 0.0
        %5610 = vmatpush1.msra.mxu0 %v4873
        %5611 = vmatprep.subr.mxu0 0.0
        %5612 = vmatpush1.msra.mxu0 %v4874
        %5613 = vmatprep.subr.mxu0 0.0
        %5614 = vmatpush1.msra.mxu0 %v4875
        %5615 = vmatprep.subr.mxu0 0.0
        %5616 = vmatpush1.msra.mxu0 %v4876
        %5617 = vmatprep.subr.mxu0 0.0
        %5618 = vmatpush1.msra.mxu0 %v4877
        %5619 = vmatprep.subr.mxu0 0.0
        %5620 = vmatpush1.msra.mxu0 %v4878
        %5621 = vmatprep.subr.mxu0 0.0
        %5622 = vmatpush1.msra.mxu0 %v4879
        %5623 = vmatprep.subr.mxu0 0.0
        %5624 = vmatpush1.msra.mxu0 %v4880
        %5625 = vmatprep.subr.mxu0 0.0
        %5626 = vmatpush1.msra.mxu0 %v4881
        %5627 = vmatprep.subr.mxu0 0.0
        %5628 = vmatpush1.msra.mxu0 %v4882
        %5629 = vmatprep.subr.mxu0 0.0
        %5630 = vmatpush1.msra.mxu0 %v4883
        %5631 = vmatprep.subr.mxu0 0.0
        %5632 = vmatpush1.msra.mxu0 %v4884
        %5633 = vmatprep.subr.mxu0 0.0
        %5634 = vmatpush1.msra.mxu0 %v4885
        %5635 = vmatprep.subr.mxu0 0.0
        %5636 = vmatpush1.msra.mxu0 %v4886
        %5637 = vmatprep.subr.mxu0 0.0
        %5638 = vmatpush1.msra.mxu0 %v4887
        %5639 = vmatprep.subr.mxu0 0.0
        %5640 = vmatpush1.msra.mxu0 %v4888
        %5641 = vmatprep.subr.mxu0 0.0
        %5642 = vmatpush1.msra.mxu0 %v4889
        %5643 = vmatprep.subr.mxu0 0.0
        %5644 = vmatpush1.msra.mxu0 %v4890
        %5645 = vmatprep.subr.mxu0 0.0
        %5646 = vmatpush1.msra.mxu0 %v4891
        %5647 = vmatprep.subr.mxu0 0.0
        %5648 = vmatpush1.msra.mxu0 %v4892
        %5649 = vmatprep.subr.mxu0 0.0
        %5650 = vmatpush1.msra.mxu0 %v4893
        %5651 = vmatprep.subr.mxu0 0.0
        %5652 = vmatpush1.msra.mxu0 %v4894
        %5653 = vmatprep.subr.mxu0 0.0
        %5654 = vmatpush1.msra.mxu0 %v4895
        %5655 = vmatprep.subr.mxu0 0.0
        %5656 = vmatpush1.msra.mxu0 %v4896
        %5657 = vmatprep.subr.mxu0 0.0
        %5658 = vmatpush1.msra.mxu0 %v4897
        %5659 = vmatprep.subr.mxu0 0.0
        %5660 = vmatpush1.msra.mxu0 %v4898
        %5661 = vmatprep.mubr.f32.mxu0 %v4707
        %5662 = vmatmul.mubr.f32.gmra.mrb[0].mxu0 %v4675
        %v5663 = vpop.f32.mrb[0].mxu0
        %v5664 = vadd.f32 %v5439, %v5663
        %v5665 = vpop.f32.mrb[0].mxu0
        %5666 = vmatprep.mubr.f32.mxu0 %v4708
        %5667 = vmatmul.mubr.f32.gmra.mrb[0].mxu0 %v4676
        %v5668 = vpop.f32.mrb[0].mxu0
        %v5669 = vadd.f32 %v5444, %v5668
        %v5670 = vpop.f32.mrb[0].mxu0
        %5671 = vmatprep.mubr.f32.mxu0 %v4709
        %5672 = vmatmul.mubr.f32.gmra.mrb[0].mxu0 %v4677
        %v5673 = vpop.f32.mrb[0].mxu0
        %v5674 = vadd.f32 %v5449, %v5673
        %v5675 = vpop.f32.mrb[0].mxu0
        %5676 = vmatprep.mubr.f32.mxu0 %v4710
        %5677 = vmatmul.mubr.f32.gmra.mrb[0].mxu0 %v4678
        %v5678 = vpop.f32.mrb[0].mxu0
        %v5679 = vadd.f32 %v5454, %v5678
        %v5680 = vpop.f32.mrb[0].mxu0
        %5681 = vmatprep.mubr.f32.mxu0 %v4711
        %5682 = vmatmul.mubr.f32.gmra.mrb[0].mxu0 %v4679
        %v5683 = vpop.f32.mrb[0].mxu0
        %v5684 = vadd.f32 %v5459, %v5683
        %v5685 = vpop.f32.mrb[0].mxu0
        %5686 = vmatprep.mubr.f32.mxu0 %v4712
        %5687 = vmatmul.mubr.f32.gmra.mrb[0].mxu0 %v4680
        %v5688 = vpop.f32.mrb[0].mxu0
        %v5689 = vadd.f32 %v5464, %v5688
        %v5690 = vpop.f32.mrb[0].mxu0
        %5691 = vmatprep.mubr.f32.mxu0 %v4713
        %5692 = vmatmul.mubr.f32.gmra.mrb[0].mxu0 %v4681
        %v5693 = vpop.f32.mrb[0].mxu0
        %v5694 = vadd.f32 %v5469, %v5693
        %v5695 = vpop.f32.mrb[0].mxu0
        %5696 = vmatprep.mubr.f32.mxu0 %v4714
        %5697 = vmatmul.mubr.f32.gmra.mrb[0].mxu0 %v4682
        %v5698 = vpop.f32.mrb[0].mxu0
        %v5699 = vadd.f32 %v5474, %v5698
        %v5700 = vpop.f32.mrb[0].mxu0
        %5701 = vmatprep.mubr.f32.mxu0 %v4715
        %5702 = vmatmul.mubr.f32.gmra.mrb[0].mxu0 %v4683
        %v5703 = vpop.f32.mrb[0].mxu0
        %v5704 = vadd.f32 %v5479, %v5703
        %v5705 = vpop.f32.mrb[0].mxu0
        %5706 = vmatprep.mubr.f32.mxu0 %v4716
        %5707 = vmatmul.mubr.f32.gmra.mrb[0].mxu0 %v4684
        %v5708 = vpop.f32.mrb[0].mxu0
        %v5709 = vadd.f32 %v5484, %v5708
        %v5710 = vpop.f32.mrb[0].mxu0
        %5711 = vmatprep.mubr.f32.mxu0 %v4717
        %5712 = vmatmul.mubr.f32.gmra.mrb[0].mxu0 %v4685
        %v5713 = vpop.f32.mrb[0].mxu0
        %v5714 = vadd.f32 %v5489, %v5713
        %v5715 = vpop.f32.mrb[0].mxu0
        %5716 = vmatprep.mubr.f32.mxu0 %v4718
        %5717 = vmatmul.mubr.f32.gmra.mrb[0].mxu0 %v4686
        %v5718 = vpop.f32.mrb[0].mxu0
        %v5719 = vadd.f32 %v5494, %v5718
        %v5720 = vpop.f32.mrb[0].mxu0
        %5721 = vmatprep.mubr.f32.mxu0 %v4719
        %5722 = vmatmul.mubr.f32.gmra.mrb[0].mxu0 %v4687
        %v5723 = vpop.f32.mrb[0].mxu0
        %v5724 = vadd.f32 %v5499, %v5723
        %v5725 = vpop.f32.mrb[0].mxu0
        %5726 = vmatprep.mubr.f32.mxu0 %v4720
        %5727 = vmatmul.mubr.f32.gmra.mrb[0].mxu0 %v4688
        %v5728 = vpop.f32.mrb[0].mxu0
        %v5729 = vadd.f32 %v5504, %v5728
        %v5730 = vpop.f32.mrb[0].mxu0
        %5731 = vmatprep.mubr.f32.mxu0 %v4721
        %5732 = vmatmul.mubr.f32.gmra.mrb[0].mxu0 %v4689
        %v5733 = vpop.f32.mrb[0].mxu0
        %v5734 = vadd.f32 %v5509, %v5733
        %v5735 = vpop.f32.mrb[0].mxu0
        %5736 = vmatprep.mubr.f32.mxu0 %v4722
        %5737 = vmatmul.mubr.f32.gmra.mrb[0].mxu0 %v4690
        %v5738 = vpop.f32.mrb[0].mxu0
        %v5739 = vadd.f32 %v5514, %v5738
        %v5740 = vpop.f32.mrb[0].mxu0
        %5741 = vmatprep.mubr.f32.mxu0 %v4723
        %5742 = vmatmul.mubr.f32.gmra.mrb[0].mxu0 %v4691
        %v5743 = vpop.f32.mrb[0].mxu0
        %v5744 = vadd.f32 %v5519, %v5743
        %v5745 = vpop.f32.mrb[0].mxu0
        %5746 = vmatprep.mubr.f32.mxu0 %v4724
        %5747 = vmatmul.mubr.f32.gmra.mrb[0].mxu0 %v4692
        %v5748 = vpop.f32.mrb[0].mxu0
        %v5749 = vadd.f32 %v5524, %v5748
        %v5750 = vpop.f32.mrb[0].mxu0
        %5751 = vmatprep.mubr.f32.mxu0 %v4725
        %5752 = vmatmul.mubr.f32.gmra.mrb[0].mxu0 %v4693
        %v5753 = vpop.f32.mrb[0].mxu0
        %v5754 = vadd.f32 %v5529, %v5753
        %v5755 = vpop.f32.mrb[0].mxu0
        %5756 = vmatprep.mubr.f32.mxu0 %v4726
        %5757 = vmatmul.mubr.f32.gmra.mrb[0].mxu0 %v4694
        %v5758 = vpop.f32.mrb[0].mxu0
        %v5759 = vadd.f32 %v5534, %v5758
        %v5760 = vpop.f32.mrb[0].mxu0
        %5761 = vmatprep.mubr.f32.mxu0 %v4727
        %5762 = vmatmul.mubr.f32.gmra.mrb[0].mxu0 %v4695
        %v5763 = vpop.f32.mrb[0].mxu0
        %v5764 = vadd.f32 %v5539, %v5763
        %v5765 = vpop.f32.mrb[0].mxu0
        %5766 = vmatprep.mubr.f32.mxu0 %v4728
        %5767 = vmatmul.mubr.f32.gmra.mrb[0].mxu0 %v4696
        %v5768 = vpop.f32.mrb[0].mxu0
        %v5769 = vadd.f32 %v5544, %v5768
        %v5770 = vpop.f32.mrb[0].mxu0
        %5771 = vmatprep.mubr.f32.mxu0 %v4729
        %5772 = vmatmul.mubr.f32.gmra.mrb[0].mxu0 %v4697
        %v5773 = vpop.f32.mrb[0].mxu0
        %v5774 = vadd.f32 %v5549, %v5773
        %v5775 = vpop.f32.mrb[0].mxu0
        %5776 = vmatprep.mubr.f32.mxu0 %v4730
        %5777 = vmatmul.mubr.f32.gmra.mrb[0].mxu0 %v4698
        %v5778 = vpop.f32.mrb[0].mxu0
        %v5779 = vadd.f32 %v5554, %v5778
        %v5780 = vpop.f32.mrb[0].mxu0
        %5781 = vmatprep.mubr.f32.mxu0 %v4731
        %5782 = vmatmul.mubr.f32.gmra.mrb[0].mxu0 %v4699
        %v5783 = vpop.f32.mrb[0].mxu0
        %v5784 = vadd.f32 %v5559, %v5783
        %v5785 = vpop.f32.mrb[0].mxu0
        %5786 = vmatprep.mubr.f32.mxu0 %v4732
        %5787 = vmatmul.mubr.f32.gmra.mrb[0].mxu0 %v4700
        %v5788 = vpop.f32.mrb[0].mxu0
        %v5789 = vadd.f32 %v5564, %v5788
        %v5790 = vpop.f32.mrb[0].mxu0
        %5791 = vmatprep.mubr.f32.mxu0 %v4733
        %5792 = vmatmul.mubr.f32.gmra.mrb[0].mxu0 %v4701
        %v5793 = vpop.f32.mrb[0].mxu0
        %v5794 = vadd.f32 %v5569, %v5793
        %v5795 = vpop.f32.mrb[0].mxu0
        %5796 = vmatprep.mubr.f32.mxu0 %v4734
        %5797 = vmatmul.mubr.f32.gmra.mrb[0].mxu0 %v4702
        %v5798 = vpop.f32.mrb[0].mxu0
        %v5799 = vadd.f32 %v5574, %v5798
        %v5800 = vpop.f32.mrb[0].mxu0
        %5801 = vmatprep.mubr.f32.mxu0 %v4735
        %5802 = vmatmul.mubr.f32.gmra.mrb[0].mxu0 %v4703
        %v5803 = vpop.f32.mrb[0].mxu0
        %v5804 = vadd.f32 %v5579, %v5803
        %v5805 = vpop.f32.mrb[0].mxu0
        %5806 = vmatprep.mubr.f32.mxu0 %v4736
        %5807 = vmatmul.mubr.f32.gmra.mrb[0].mxu0 %v4704
        %v5808 = vpop.f32.mrb[0].mxu0
        %v5809 = vadd.f32 %v5584, %v5808
        %v5810 = vpop.f32.mrb[0].mxu0
        %5811 = vmatprep.mubr.f32.mxu0 %v4737
        %5812 = vmatmul.mubr.f32.gmra.mrb[0].mxu0 %v4705
        %v5813 = vpop.f32.mrb[0].mxu0
        %v5814 = vadd.f32 %v5589, %v5813
        %v5815 = vpop.f32.mrb[0].mxu0
        %5816 = vmatprep.mubr.f32.mxu0 %v4738
        %5817 = vmatmul.mubr.f32.gmra.mrb[0].mxu0 %v4706
        %v5818 = vpop.f32.mrb[0].mxu0
        %v5819 = vadd.f32 %v5594, %v5818
        %v5820 = vpop.f32.mrb[0].mxu0
        %5821 = vdwg.mxu0
        %5822 = vmatprep.subr.mxu0 0.0
        %5823 = vmatpush1.msra.mxu0 %v4899
        %5824 = vmatprep.subr.mxu0 0.0
        %5825 = vmatpush1.msra.mxu0 %v4900
        %5826 = vmatprep.subr.mxu0 0.0
        %5827 = vmatpush1.msra.mxu0 %v4901
        %5828 = vmatprep.subr.mxu0 0.0
        %5829 = vmatpush1.msra.mxu0 %v4902
        %5830 = vmatprep.subr.mxu0 0.0
        %5831 = vmatpush1.msra.mxu0 %v4903
        %5832 = vmatprep.subr.mxu0 0.0
        %5833 = vmatpush1.msra.mxu0 %v4904
        %5834 = vmatprep.subr.mxu0 0.0
        %5835 = vmatpush1.msra.mxu0 %v4905
        %5836 = vmatprep.subr.mxu0 0.0
        %5837 = vmatpush1.msra.mxu0 %v4906
        %5838 = vmatprep.subr.mxu0 0.0
        %5839 = vmatpush1.msra.mxu0 %v4907
        %5840 = vmatprep.subr.mxu0 0.0
        %5841 = vmatpush1.msra.mxu0 %v4908
        %5842 = vmatprep.subr.mxu0 0.0
        %5843 = vmatpush1.msra.mxu0 %v4909
        %5844 = vmatprep.subr.mxu0 0.0
        %5845 = vmatpush1.msra.mxu0 %v4910
        %5846 = vmatprep.subr.mxu0 0.0
        %5847 = vmatpush1.msra.mxu0 %v4911
        %5848 = vmatprep.subr.mxu0 0.0
        %5849 = vmatpush1.msra.mxu0 %v4912
        %5850 = vmatprep.subr.mxu0 0.0
        %5851 = vmatpush1.msra.mxu0 %v4913
        %5852 = vmatprep.subr.mxu0 0.0
        %5853 = vmatpush1.msra.mxu0 %v4914
        %5854 = vmatprep.subr.mxu0 0.0
        %5855 = vmatpush1.msra.mxu0 0.0
        %5856 = vmatprep.subr.mxu0 0.0
        %5857 = vmatpush1.msra.mxu0 0.0
        %5858 = vmatprep.subr.mxu0 0.0
        %5859 = vmatpush1.msra.mxu0 0.0
        %5860 = vmatprep.subr.mxu0 0.0
        %5861 = vmatpush1.msra.mxu0 0.0
        %5862 = vmatprep.subr.mxu0 0.0
        %5863 = vmatpush1.msra.mxu0 0.0
        %5864 = vmatprep.subr.mxu0 0.0
        %5865 = vmatpush1.msra.mxu0 0.0
        %5866 = vmatprep.subr.mxu0 0.0
        %5867 = vmatpush1.msra.mxu0 0.0
        %5868 = vmatprep.subr.mxu0 0.0
        %5869 = vmatpush1.msra.mxu0 0.0
        %5870 = vmatprep.subr.mxu0 0.0
        %5871 = vmatpush1.msra.mxu0 0.0
        %5872 = vmatprep.subr.mxu0 0.0
        %5873 = vmatpush1.msra.mxu0 0.0
        %5874 = vmatprep.subr.mxu0 0.0
        %5875 = vmatpush1.msra.mxu0 0.0
        %5876 = vmatprep.subr.mxu0 0.0
        %5877 = vmatpush1.msra.mxu0 0.0
        %5878 = vmatprep.subr.mxu0 0.0
        %5879 = vmatpush1.msra.mxu0 0.0
        %5880 = vmatprep.subr.mxu0 0.0
        %5881 = vmatpush1.msra.mxu0 0.0
        %5882 = vmatprep.subr.mxu0 0.0
        %5883 = vmatpush1.msra.mxu0 0.0
        %5884 = vmatprep.subr.mxu0 0.0
        %5885 = vmatpush1.msra.mxu0 0.0
        %5886 = vmatprep.mubr.f32.mxu0 0.0
        %5887 = vmatmul.mubr.f32.gmra.mrb[0].mxu0 %v4739
        %v5888 = vpop.f32.mrb[0].mxu0
        %v5889 = vadd.f32 %v5664, %v5888
        %v5890 = vpop.f32.mrb[0].mxu0
        %5891 = vmatprep.mubr.f32.mxu0 0.0
        %5892 = vmatmul.mubr.f32.gmra.mrb[0].mxu0 %v4740
        %v5893 = vpop.f32.mrb[0].mxu0
        %v5894 = vadd.f32 %v5669, %v5893
        %v5895 = vpop.f32.mrb[0].mxu0
        %5896 = vmatprep.mubr.f32.mxu0 0.0
        %5897 = vmatmul.mubr.f32.gmra.mrb[0].mxu0 %v4741
        %v5898 = vpop.f32.mrb[0].mxu0
        %v5899 = vadd.f32 %v5674, %v5898
        %v5900 = vpop.f32.mrb[0].mxu0
        %5901 = vmatprep.mubr.f32.mxu0 0.0
        %5902 = vmatmul.mubr.f32.gmra.mrb[0].mxu0 %v4742
        %v5903 = vpop.f32.mrb[0].mxu0
        %v5904 = vadd.f32 %v5679, %v5903
        %v5905 = vpop.f32.mrb[0].mxu0
        %5906 = vmatprep.mubr.f32.mxu0 0.0
        %5907 = vmatmul.mubr.f32.gmra.mrb[0].mxu0 %v4743
        %v5908 = vpop.f32.mrb[0].mxu0
        %v5909 = vadd.f32 %v5684, %v5908
        %v5910 = vpop.f32.mrb[0].mxu0
        %5911 = vmatprep.mubr.f32.mxu0 0.0
        %5912 = vmatmul.mubr.f32.gmra.mrb[0].mxu0 %v4744
        %v5913 = vpop.f32.mrb[0].mxu0
        %v5914 = vadd.f32 %v5689, %v5913
        %v5915 = vpop.f32.mrb[0].mxu0
        %5916 = vmatprep.mubr.f32.mxu0 0.0
        %5917 = vmatmul.mubr.f32.gmra.mrb[0].mxu0 %v4745
        %v5918 = vpop.f32.mrb[0].mxu0
        %v5919 = vadd.f32 %v5694, %v5918
        %v5920 = vpop.f32.mrb[0].mxu0
        %5921 = vmatprep.mubr.f32.mxu0 0.0
        %5922 = vmatmul.mubr.f32.gmra.mrb[0].mxu0 %v4746
        %v5923 = vpop.f32.mrb[0].mxu0
        %v5924 = vadd.f32 %v5699, %v5923
        %v5925 = vpop.f32.mrb[0].mxu0
        %5926 = vmatprep.mubr.f32.mxu0 0.0
        %5927 = vmatmul.mubr.f32.gmra.mrb[0].mxu0 %v4747
        %v5928 = vpop.f32.mrb[0].mxu0
        %v5929 = vadd.f32 %v5704, %v5928
        %v5930 = vpop.f32.mrb[0].mxu0
        %5931 = vmatprep.mubr.f32.mxu0 0.0
        %5932 = vmatmul.mubr.f32.gmra.mrb[0].mxu0 %v4748
        %v5933 = vpop.f32.mrb[0].mxu0
        %v5934 = vadd.f32 %v5709, %v5933
        %v5935 = vpop.f32.mrb[0].mxu0
        %5936 = vmatprep.mubr.f32.mxu0 0.0
        %5937 = vmatmul.mubr.f32.gmra.mrb[0].mxu0 %v4749
        %v5938 = vpop.f32.mrb[0].mxu0
        %v5939 = vadd.f32 %v5714, %v5938
        %v5940 = vpop.f32.mrb[0].mxu0
        %5941 = vmatprep.mubr.f32.mxu0 0.0
        %5942 = vmatmul.mubr.f32.gmra.mrb[0].mxu0 %v4750
        %v5943 = vpop.f32.mrb[0].mxu0
        %v5944 = vadd.f32 %v5719, %v5943
        %v5945 = vpop.f32.mrb[0].mxu0
        %5946 = vmatprep.mubr.f32.mxu0 0.0
        %5947 = vmatmul.mubr.f32.gmra.mrb[0].mxu0 %v4751
        %v5948 = vpop.f32.mrb[0].mxu0
        %v5949 = vadd.f32 %v5724, %v5948
        %v5950 = vpop.f32.mrb[0].mxu0
        %5951 = vmatprep.mubr.f32.mxu0 0.0
        %5952 = vmatmul.mubr.f32.gmra.mrb[0].mxu0 %v4752
        %v5953 = vpop.f32.mrb[0].mxu0
        %v5954 = vadd.f32 %v5729, %v5953
        %v5955 = vpop.f32.mrb[0].mxu0
        %5956 = vmatprep.mubr.f32.mxu0 0.0
        %5957 = vmatmul.mubr.f32.gmra.mrb[0].mxu0 %v4753
        %v5958 = vpop.f32.mrb[0].mxu0
        %v5959 = vadd.f32 %v5734, %v5958
        %v5960 = vpop.f32.mrb[0].mxu0
        %5961 = vmatprep.mubr.f32.mxu0 0.0
        %5962 = vmatmul.mubr.f32.gmra.mrb[0].mxu0 %v4754
        %v5963 = vpop.f32.mrb[0].mxu0
        %v5964 = vadd.f32 %v5739, %v5963
        %v5965 = vpop.f32.mrb[0].mxu0
        %5966 = vmatprep.mubr.f32.mxu0 0.0
        %5967 = vmatmul.mubr.f32.gmra.mrb[0].mxu0 %v4755
        %v5968 = vpop.f32.mrb[0].mxu0
        %v5969 = vadd.f32 %v5744, %v5968
        %v5970 = vpop.f32.mrb[0].mxu0
        %5971 = vmatprep.mubr.f32.mxu0 0.0
        %5972 = vmatmul.mubr.f32.gmra.mrb[0].mxu0 %v4756
        %v5973 = vpop.f32.mrb[0].mxu0
        %v5974 = vadd.f32 %v5749, %v5973
        %v5975 = vpop.f32.mrb[0].mxu0
        %5976 = vmatprep.mubr.f32.mxu0 0.0
        %5977 = vmatmul.mubr.f32.gmra.mrb[0].mxu0 %v4757
        %v5978 = vpop.f32.mrb[0].mxu0
        %v5979 = vadd.f32 %v5754, %v5978
        %v5980 = vpop.f32.mrb[0].mxu0
        %5981 = vmatprep.mubr.f32.mxu0 0.0
        %5982 = vmatmul.mubr.f32.gmra.mrb[0].mxu0 %v4758
        %v5983 = vpop.f32.mrb[0].mxu0
        %v5984 = vadd.f32 %v5759, %v5983
        %v5985 = vpop.f32.mrb[0].mxu0
        %5986 = vmatprep.mubr.f32.mxu0 0.0
        %5987 = vmatmul.mubr.f32.gmra.mrb[0].mxu0 %v4759
        %v5988 = vpop.f32.mrb[0].mxu0
        %v5989 = vadd.f32 %v5764, %v5988
        %v5990 = vpop.f32.mrb[0].mxu0
        %5991 = vmatprep.mubr.f32.mxu0 0.0
        %5992 = vmatmul.mubr.f32.gmra.mrb[0].mxu0 %v4760
        %v5993 = vpop.f32.mrb[0].mxu0
        %v5994 = vadd.f32 %v5769, %v5993
        %v5995 = vpop.f32.mrb[0].mxu0
        %5996 = vmatprep.mubr.f32.mxu0 0.0
        %5997 = vmatmul.mubr.f32.gmra.mrb[0].mxu0 %v4761
        %v5998 = vpop.f32.mrb[0].mxu0
        %v5999 = vadd.f32 %v5774, %v5998
        %v6000 = vpop.f32.mrb[0].mxu0
        %6001 = vmatprep.mubr.f32.mxu0 0.0
        %6002 = vmatmul.mubr.f32.gmra.mrb[0].mxu0 %v4762
        %v6003 = vpop.f32.mrb[0].mxu0
        %v6004 = vadd.f32 %v5779, %v6003
        %v6005 = vpop.f32.mrb[0].mxu0
        %6006 = vmatprep.mubr.f32.mxu0 0.0
        %6007 = vmatmul.mubr.f32.gmra.mrb[0].mxu0 %v4763
        %v6008 = vpop.f32.mrb[0].mxu0
        %v6009 = vadd.f32 %v5784, %v6008
        %v6010 = vpop.f32.mrb[0].mxu0
        %6011 = vmatprep.mubr.f32.mxu0 0.0
        %6012 = vmatmul.mubr.f32.gmra.mrb[0].mxu0 %v4764
        %v6013 = vpop.f32.mrb[0].mxu0
        %v6014 = vadd.f32 %v5789, %v6013
        %v6015 = vpop.f32.mrb[0].mxu0
        %6016 = vmatprep.mubr.f32.mxu0 0.0
        %6017 = vmatmul.mubr.f32.gmra.mrb[0].mxu0 %v4765
        %v6018 = vpop.f32.mrb[0].mxu0
        %v6019 = vadd.f32 %v5794, %v6018
        %v6020 = vpop.f32.mrb[0].mxu0
        %6021 = vmatprep.mubr.f32.mxu0 0.0
        %6022 = vmatmul.mubr.f32.gmra.mrb[0].mxu0 %v4766
        %v6023 = vpop.f32.mrb[0].mxu0
        %v6024 = vadd.f32 %v5799, %v6023
        %v6025 = vpop.f32.mrb[0].mxu0
        %6026 = vmatprep.mubr.f32.mxu0 0.0
        %6027 = vmatmul.mubr.f32.gmra.mrb[0].mxu0 %v4767
        %v6028 = vpop.f32.mrb[0].mxu0
        %v6029 = vadd.f32 %v5804, %v6028
        %v6030 = vpop.f32.mrb[0].mxu0
        %6031 = vmatprep.mubr.f32.mxu0 0.0
        %6032 = vmatmul.mubr.f32.gmra.mrb[0].mxu0 %v4768
        %v6033 = vpop.f32.mrb[0].mxu0
        %v6034 = vadd.f32 %v5809, %v6033
        %v6035 = vpop.f32.mrb[0].mxu0
        %6036 = vmatprep.mubr.f32.mxu0 0.0
        %6037 = vmatmul.mubr.f32.gmra.mrb[0].mxu0 %v4769
        %v6038 = vpop.f32.mrb[0].mxu0
        %v6039 = vadd.f32 %v5814, %v6038
        %v6040 = vpop.f32.mrb[0].mxu0
        %6041 = vmatprep.mubr.f32.mxu0 0.0
        %6042 = vmatmul.mubr.f32.gmra.mrb[0].mxu0 %v4770
        %v6043 = vpop.f32.mrb[0].mxu0
        %v6044 = vadd.f32 %v5819, %v6043
        %v6045 = vpop.f32.mrb[0].mxu0
        %6046 = vdwg.mxu0
        %v6047 = vmax.f32 %v5889, 0.0
        %v6048 = vmax.f32 %v5894, 0.0
        %v6049 = vmax.f32 %v5899, 0.0
        %v6050 = vmax.f32 %v5904, 0.0
        %v6051 = vmax.f32 %v5909, 0.0
        %v6052 = vmax.f32 %v5914, 0.0
        %v6053 = vmax.f32 %v5919, 0.0
        %v6054 = vmax.f32 %v5924, 0.0
        %v6055 = vmax.f32 %v5929, 0.0
        %v6056 = vmax.f32 %v5934, 0.0
        %v6057 = vmax.f32 %v5939, 0.0
        %v6058 = vmax.f32 %v5944, 0.0
        %v6059 = vmax.f32 %v5949, 0.0
        %v6060 = vmax.f32 %v5954, 0.0
        %v6061 = vmax.f32 %v5959, 0.0
        %v6062 = vmax.f32 %v5964, 0.0
        %v6063 = vmax.f32 %v5969, 0.0
        %v6064 = vmax.f32 %v5974, 0.0
        %v6065 = vmax.f32 %v5979, 0.0
        %v6066 = vmax.f32 %v5984, 0.0
        %v6067 = vmax.f32 %v5989, 0.0
        %v6068 = vmax.f32 %v5994, 0.0
        %v6069 = vmax.f32 %v5999, 0.0
        %v6070 = vmax.f32 %v6004, 0.0
        %v6071 = vmax.f32 %v6009, 0.0
        %v6072 = vmax.f32 %v6014, 0.0
        %v6073 = vmax.f32 %v6019, 0.0
        %v6074 = vmax.f32 %v6024, 0.0
        %v6075 = vmax.f32 %v6029, 0.0
        %v6076 = vmax.f32 %v6034, 0.0
        %v6077 = vmax.f32 %v6039, 0.0
        %v6078 = vmax.f32 %v6044, 0.0
        %6079 = vst [vmem:[%s2480 + $0x8] sm:$0xff] %v6047
        %6080 = vst [vmem:[%s2480 + $0x10] sm:$0xff] %v6048
        %6081 = vst [vmem:[%s2480 + $0x28] sm:$0xff] %v6049
        %6082 = vst [vmem:[%s2480 + $0x30] sm:$0xff] %v6050
        %6083 = vst [vmem:[%s2480 + $0x48] sm:$0xff] %v6051
        %6084 = vst [vmem:[%s2480 + $0x50] sm:$0xff] %v6052
        %6085 = vst [vmem:[%s2480 + $0x68] sm:$0xff] %v6053
        %6086 = vst [vmem:[%s2480 + $0x70] sm:$0xff] %v6054
        %6087 = vst [vmem:[%s2480 + $0x88] sm:$0xff] %v6055
        %6088 = vst [vmem:[%s2480 + $0x90] sm:$0xff] %v6056
        %6089 = vst [vmem:[%s2480 + $0xa8] sm:$0xff] %v6057
        %6090 = vst [vmem:[%s2480 + $0xb0] sm:$0xff] %v6058
        %6091 = vst [vmem:[%s2480 + $0xc8] sm:$0xff] %v6059
        %6092 = vst [vmem:[%s2480 + $0xd0] sm:$0xff] %v6060
        %6093 = vst [vmem:[%s2480 + $0xe8] sm:$0xff] %v6061
        %6094 = vst [vmem:[%s2480 + $0xf0] sm:$0xff] %v6062
        %6095 = vst [vmem:[%s2480 + $0x108] sm:$0xff] %v6063
        %6096 = vst [vmem:[%s2480 + $0x110] sm:$0xff] %v6064
        %6097 = vst [vmem:[%s2480 + $0x128] sm:$0xff] %v6065
        %6098 = vst [vmem:[%s2480 + $0x130] sm:$0xff] %v6066
        %6099 = vst [vmem:[%s2480 + $0x148] sm:$0xff] %v6067
        %6100 = vst [vmem:[%s2480 + $0x150] sm:$0xff] %v6068
        %6101 = vst [vmem:[%s2480 + $0x168] sm:$0xff] %v6069
        %6102 = vst [vmem:[%s2480 + $0x170] sm:$0xff] %v6070
        %6103 = vst [vmem:[%s2480 + $0x188] sm:$0xff] %v6071
        %6104 = vst [vmem:[%s2480 + $0x190] sm:$0xff] %v6072
        %6105 = vst [vmem:[%s2480 + $0x1a8] sm:$0xff] %v6073
        %6106 = vst [vmem:[%s2480 + $0x1b0] sm:$0xff] %v6074
        %6107 = vst [vmem:[%s2480 + $0x1c8] sm:$0xff] %v6075
        %6108 = vst [vmem:[%s2480 + $0x1d0] sm:$0xff] %v6076
        %6109 = vst [vmem:[%s2480 + $0x1e8] sm:$0xff] %v6077
        %6110 = vst [vmem:[%s2480 + $0x1f0] sm:$0xff] %v6078
        %v6111 = vld [vmem:[#allocation2 + $0x7] sm:$0xff]
        %v6112 = vld [vmem:[#allocation2 + $0xf] sm:$0xff]
        %v6113 = vld [vmem:[#allocation2 + $0x27] sm:$0xff]
        %v6114 = vld [vmem:[#allocation2 + $0x2f] sm:$0xff]
        %v6115 = vld [vmem:[#allocation2 + $0x47] sm:$0xff]
        %v6116 = vld [vmem:[#allocation2 + $0x4f] sm:$0xff]
        %v6117 = vld [vmem:[#allocation2 + $0x67] sm:$0xff]
        %v6118 = vld [vmem:[#allocation2 + $0x6f] sm:$0xff]
        %v6119 = vld [vmem:[#allocation2 + $0x87] sm:$0xff]
        %v6120 = vld [vmem:[#allocation2 + $0x8f] sm:$0xff]
        %v6121 = vld [vmem:[#allocation2 + $0xa7] sm:$0xff]
        %v6122 = vld [vmem:[#allocation2 + $0xaf] sm:$0xff]
        %v6123 = vld [vmem:[#allocation2 + $0xc7] sm:$0xff]
        %v6124 = vld [vmem:[#allocation2 + $0xcf] sm:$0xff]
        %v6125 = vld [vmem:[#allocation2 + $0xe7] sm:$0xff]
        %v6126 = vld [vmem:[#allocation2 + $0xef] sm:$0xff]
        %v6127 = vld [vmem:[#allocation2 + $0x107] sm:$0xff]
        %v6128 = vld [vmem:[#allocation2 + $0x10f] sm:$0xff]
        %v6129 = vld [vmem:[#allocation2 + $0x127] sm:$0xff]
        %v6130 = vld [vmem:[#allocation2 + $0x12f] sm:$0xff]
        %v6131 = vld [vmem:[#allocation2 + $0x147] sm:$0xff]
        %v6132 = vld [vmem:[#allocation2 + $0x14f] sm:$0xff]
        %v6133 = vld [vmem:[#allocation2 + $0x167] sm:$0xff]
        %v6134 = vld [vmem:[#allocation2 + $0x16f] sm:$0xff]
        %v6135 = vld [vmem:[#allocation2 + $0x187] sm:$0xff]
        %v6136 = vld [vmem:[#allocation2 + $0x18f] sm:$0xff]
        %v6137 = vld [vmem:[#allocation2 + $0x1a7] sm:$0xff]
        %v6138 = vld [vmem:[#allocation2 + $0x1af] sm:$0xff]
        %v6139 = vld [vmem:[#allocation2 + $0x1c7] sm:$0xff]
        %v6140 = vld [vmem:[#allocation2 + $0x1cf] sm:$0xff]
        %v6141 = vld [vmem:[#allocation2 + $0x1e7] sm:$0xff]
        %v6142 = vld [vmem:[#allocation2 + $0x1ef] sm:$0xff]
        %v6143 = vld [vmem:[#allocation2 + $0x207] sm:$0xff]
        %v6144 = vld [vmem:[#allocation2 + $0x20f] sm:$0xff]
        %v6145 = vld [vmem:[#allocation2 + $0x227] sm:$0xff]
        %v6146 = vld [vmem:[#allocation2 + $0x22f] sm:$0xff]
        %6147 = vst [vmem:[#allocation3] sm:$0xff] %v6111
        %6148 = vst [vmem:[#allocation3 + $0x8] sm:$0xff] %v6112
        %6149 = vst [vmem:[#allocation3 + $0x10] sm:$0xff] %v6113
        %6150 = vst [vmem:[#allocation3 + $0x18] sm:$0xff] %v6114
        %6151 = vst [vmem:[#allocation3 + $0x20] sm:$0xff] %v6115
        %6152 = vst [vmem:[#allocation3 + $0x28] sm:$0xff] %v6116
        %6153 = vst [vmem:[#allocation3 + $0x30] sm:$0xff] %v6117
        %6154 = vst [vmem:[#allocation3 + $0x38] sm:$0xff] %v6118
        %6155 = vst [vmem:[#allocation3 + $0x40] sm:$0xff] %v6119
        %6156 = vst [vmem:[#allocation3 + $0x48] sm:$0xff] %v6120
        %6157 = vst [vmem:[#allocation3 + $0x50] sm:$0xff] %v6121
        %6158 = vst [vmem:[#allocation3 + $0x58] sm:$0xff] %v6122
        %6159 = vst [vmem:[#allocation3 + $0x60] sm:$0xff] %v6123
        %6160 = vst [vmem:[#allocation3 + $0x68] sm:$0xff] %v6124
        %6161 = vst [vmem:[#allocation3 + $0x70] sm:$0xff] %v6125
        %6162 = vst [vmem:[#allocation3 + $0x78] sm:$0xff] %v6126
        %6163 = vst [vmem:[#allocation3 + $0x80] sm:$0xff] %v6127
        %6164 = vst [vmem:[#allocation3 + $0x88] sm:$0xff] %v6128
        %6165 = vst [vmem:[#allocation3 + $0x90] sm:$0xff] %v6129
        %6166 = vst [vmem:[#allocation3 + $0x98] sm:$0xff] %v6130
        %6167 = vst [vmem:[#allocation3 + $0xa0] sm:$0xff] %v6131
        %6168 = vst [vmem:[#allocation3 + $0xa8] sm:$0xff] %v6132
        %6169 = vst [vmem:[#allocation3 + $0xb0] sm:$0xff] %v6133
        %6170 = vst [vmem:[#allocation3 + $0xb8] sm:$0xff] %v6134
        %6171 = vst [vmem:[#allocation3 + $0xc0] sm:$0xff] %v6135
        %6172 = vst [vmem:[#allocation3 + $0xc8] sm:$0xff] %v6136
        %6173 = vst [vmem:[#allocation3 + $0xd0] sm:$0xff] %v6137
        %6174 = vst [vmem:[#allocation3 + $0xd8] sm:$0xff] %v6138
        %6175 = vst [vmem:[#allocation3 + $0xe0] sm:$0xff] %v6139
        %6176 = vst [vmem:[#allocation3 + $0xe8] sm:$0xff] %v6140
        %6177 = vst [vmem:[#allocation3 + $0xf0] sm:$0xff] %v6141
        %6178 = vst [vmem:[#allocation3 + $0xf8] sm:$0xff] %v6142
        %6179 = vst [vmem:[#allocation3 + $0x100] sm:$0xff] %v6143
        %6180 = vst [vmem:[#allocation3 + $0x108] sm:$0xff] %v6144
        %6181 = vst [vmem:[#allocation3 + $0x110] sm:$0xff] %v6145
        %6182 = vst [vmem:[#allocation3 + $0x118] sm:$0xff] %v6146
        %v6183 = vld [vmem:[#allocation2 + $0x8] sm:$0xff]
        %v6184 = vld [vmem:[#allocation2 + $0x10] sm:$0xff]
        %v6185 = vld [vmem:[#allocation2 + $0x28] sm:$0xff]
        %v6186 = vld [vmem:[#allocation2 + $0x30] sm:$0xff]
        %v6187 = vld [vmem:[#allocation2 + $0x48] sm:$0xff]
        %v6188 = vld [vmem:[#allocation2 + $0x50] sm:$0xff]
        %v6189 = vld [vmem:[#allocation2 + $0x68] sm:$0xff]
        %v6190 = vld [vmem:[#allocation2 + $0x70] sm:$0xff]
        %v6191 = vld [vmem:[#allocation2 + $0x88] sm:$0xff]
        %v6192 = vld [vmem:[#allocation2 + $0x90] sm:$0xff]
        %v6193 = vld [vmem:[#allocation2 + $0xa8] sm:$0xff]
        %v6194 = vld [vmem:[#allocation2 + $0xb0] sm:$0xff]
        %v6195 = vld [vmem:[#allocation2 + $0xc8] sm:$0xff]
        %v6196 = vld [vmem:[#allocation2 + $0xd0] sm:$0xff]
        %v6197 = vld [vmem:[#allocation2 + $0xe8] sm:$0xff]
        %v6198 = vld [vmem:[#allocation2 + $0xf0] sm:$0xff]
        %v6199 = vld [vmem:[#allocation2 + $0x108] sm:$0xff]
        %v6200 = vld [vmem:[#allocation2 + $0x110] sm:$0xff]
        %v6201 = vld [vmem:[#allocation2 + $0x128] sm:$0xff]
        %v6202 = vld [vmem:[#allocation2 + $0x130] sm:$0xff]
        %v6203 = vld [vmem:[#allocation2 + $0x148] sm:$0xff]
        %v6204 = vld [vmem:[#allocation2 + $0x150] sm:$0xff]
        %v6205 = vld [vmem:[#allocation2 + $0x168] sm:$0xff]
        %v6206 = vld [vmem:[#allocation2 + $0x170] sm:$0xff]
        %v6207 = vld [vmem:[#allocation2 + $0x188] sm:$0xff]
        %v6208 = vld [vmem:[#allocation2 + $0x190] sm:$0xff]
        %v6209 = vld [vmem:[#allocation2 + $0x1a8] sm:$0xff]
        %v6210 = vld [vmem:[#allocation2 + $0x1b0] sm:$0xff]
        %v6211 = vld [vmem:[#allocation2 + $0x1c8] sm:$0xff]
        %v6212 = vld [vmem:[#allocation2 + $0x1d0] sm:$0xff]
        %v6213 = vld [vmem:[#allocation2 + $0x1e8] sm:$0xff]
        %v6214 = vld [vmem:[#allocation2 + $0x1f0] sm:$0xff]
        %v6215 = vld [vmem:[#allocation2 + $0x208] sm:$0xff]
        %v6216 = vld [vmem:[#allocation2 + $0x210] sm:$0xff]
        %v6217 = vld [vmem:[#allocation2 + $0x228] sm:$0xff]
        %v6218 = vld [vmem:[#allocation2 + $0x230] sm:$0xff]
        %6219 = vst [vmem:[%s800] sm:$0xff] %v6183
        %6220 = vst [vmem:[%s800 + $0x8] sm:$0xff] %v6184
        %6221 = vst [vmem:[%s800 + $0x10] sm:$0xff] %v6185
        %6222 = vst [vmem:[%s800 + $0x18] sm:$0xff] %v6186
        %6223 = vst [vmem:[%s800 + $0x20] sm:$0xff] %v6187
        %6224 = vst [vmem:[%s800 + $0x28] sm:$0xff] %v6188
        %6225 = vst [vmem:[%s800 + $0x30] sm:$0xff] %v6189
        %6226 = vst [vmem:[%s800 + $0x38] sm:$0xff] %v6190
        %6227 = vst [vmem:[%s800 + $0x40] sm:$0xff] %v6191
        %6228 = vst [vmem:[%s800 + $0x48] sm:$0xff] %v6192
        %6229 = vst [vmem:[%s800 + $0x50] sm:$0xff] %v6193
        %6230 = vst [vmem:[%s800 + $0x58] sm:$0xff] %v6194
        %6231 = vst [vmem:[%s800 + $0x60] sm:$0xff] %v6195
        %6232 = vst [vmem:[%s800 + $0x68] sm:$0xff] %v6196
        %6233 = vst [vmem:[%s800 + $0x70] sm:$0xff] %v6197
        %6234 = vst [vmem:[%s800 + $0x78] sm:$0xff] %v6198
        %6235 = vst [vmem:[%s800 + $0x80] sm:$0xff] %v6199
        %6236 = vst [vmem:[%s800 + $0x88] sm:$0xff] %v6200
        %6237 = vst [vmem:[%s800 + $0x90] sm:$0xff] %v6201
        %6238 = vst [vmem:[%s800 + $0x98] sm:$0xff] %v6202
        %6239 = vst [vmem:[%s800 + $0xa0] sm:$0xff] %v6203
        %6240 = vst [vmem:[%s800 + $0xa8] sm:$0xff] %v6204
        %6241 = vst [vmem:[%s800 + $0xb0] sm:$0xff] %v6205
        %6242 = vst [vmem:[%s800 + $0xb8] sm:$0xff] %v6206
        %6243 = vst [vmem:[%s800 + $0xc0] sm:$0xff] %v6207
        %6244 = vst [vmem:[%s800 + $0xc8] sm:$0xff] %v6208
        %6245 = vst [vmem:[%s800 + $0xd0] sm:$0xff] %v6209
        %6246 = vst [vmem:[%s800 + $0xd8] sm:$0xff] %v6210
        %6247 = vst [vmem:[%s800 + $0xe0] sm:$0xff] %v6211
        %6248 = vst [vmem:[%s800 + $0xe8] sm:$0xff] %v6212
        %6249 = vst [vmem:[%s800 + $0xf0] sm:$0xff] %v6213
        %6250 = vst [vmem:[%s800 + $0xf8] sm:$0xff] %v6214
        %6251 = vst [vmem:[%s800 + $0x100] sm:$0xff] %v6215
        %6252 = vst [vmem:[%s800 + $0x108] sm:$0xff] %v6216
        %6253 = vst [vmem:[%s800 + $0x110] sm:$0xff] %v6217
        %6254 = vst [vmem:[%s800 + $0x118] sm:$0xff] %v6218
        %v6255 = vld [vmem:[#allocation2 + $0x9] sm:$0xff]
        %v6256 = vld [vmem:[#allocation2 + $0x11] sm:$0xff]
        %v6257 = vld [vmem:[#allocation2 + $0x29] sm:$0xff]
        %v6258 = vld [vmem:[#allocation2 + $0x31] sm:$0xff]
        %v6259 = vld [vmem:[#allocation2 + $0x49] sm:$0xff]
        %v6260 = vld [vmem:[#allocation2 + $0x51] sm:$0xff]
        %v6261 = vld [vmem:[#allocation2 + $0x69] sm:$0xff]
        %v6262 = vld [vmem:[#allocation2 + $0x71] sm:$0xff]
        %v6263 = vld [vmem:[#allocation2 + $0x89] sm:$0xff]
        %v6264 = vld [vmem:[#allocation2 + $0x91] sm:$0xff]
        %v6265 = vld [vmem:[#allocation2 + $0xa9] sm:$0xff]
        %v6266 = vld [vmem:[#allocation2 + $0xb1] sm:$0xff]
        %v6267 = vld [vmem:[#allocation2 + $0xc9] sm:$0xff]
        %v6268 = vld [vmem:[#allocation2 + $0xd1] sm:$0xff]
        %v6269 = vld [vmem:[#allocation2 + $0xe9] sm:$0xff]
        %v6270 = vld [vmem:[#allocation2 + $0xf1] sm:$0xff]
        %v6271 = vld [vmem:[#allocation2 + $0x109] sm:$0xff]
        %v6272 = vld [vmem:[#allocation2 + $0x111] sm:$0xff]
        %v6273 = vld [vmem:[#allocation2 + $0x129] sm:$0xff]
        %v6274 = vld [vmem:[#allocation2 + $0x131] sm:$0xff]
        %v6275 = vld [vmem:[#allocation2 + $0x149] sm:$0xff]
        %v6276 = vld [vmem:[#allocation2 + $0x151] sm:$0xff]
        %v6277 = vld [vmem:[#allocation2 + $0x169] sm:$0xff]
        %v6278 = vld [vmem:[#allocation2 + $0x171] sm:$0xff]
        %v6279 = vld [vmem:[#allocation2 + $0x189] sm:$0xff]
        %v6280 = vld [vmem:[#allocation2 + $0x191] sm:$0xff]
        %v6281 = vld [vmem:[#allocation2 + $0x1a9] sm:$0xff]
        %v6282 = vld [vmem:[#allocation2 + $0x1b1] sm:$0xff]
        %v6283 = vld [vmem:[#allocation2 + $0x1c9] sm:$0xff]
        %v6284 = vld [vmem:[#allocation2 + $0x1d1] sm:$0xff]
        %v6285 = vld [vmem:[#allocation2 + $0x1e9] sm:$0xff]
        %v6286 = vld [vmem:[#allocation2 + $0x1f1] sm:$0xff]
        %v6287 = vld [vmem:[#allocation2 + $0x209] sm:$0xff]
        %v6288 = vld [vmem:[#allocation2 + $0x211] sm:$0xff]
        %v6289 = vld [vmem:[#allocation2 + $0x229] sm:$0xff]
        %v6290 = vld [vmem:[#allocation2 + $0x231] sm:$0xff]
        %6291 = vst [vmem:[%s873] sm:$0xff] %v6255
        %6292 = vst [vmem:[%s873 + $0x8] sm:$0xff] %v6256
        %6293 = vst [vmem:[%s873 + $0x10] sm:$0xff] %v6257
        %6294 = vst [vmem:[%s873 + $0x18] sm:$0xff] %v6258
        %6295 = vst [vmem:[%s873 + $0x20] sm:$0xff] %v6259
        %6296 = vst [vmem:[%s873 + $0x28] sm:$0xff] %v6260
        %6297 = vst [vmem:[%s873 + $0x30] sm:$0xff] %v6261
        %6298 = vst [vmem:[%s873 + $0x38] sm:$0xff] %v6262
        %6299 = vst [vmem:[%s873 + $0x40] sm:$0xff] %v6263
        %6300 = vst [vmem:[%s873 + $0x48] sm:$0xff] %v6264
        %6301 = vst [vmem:[%s873 + $0x50] sm:$0xff] %v6265
        %6302 = vst [vmem:[%s873 + $0x58] sm:$0xff] %v6266
        %6303 = vst [vmem:[%s873 + $0x60] sm:$0xff] %v6267
        %6304 = vst [vmem:[%s873 + $0x68] sm:$0xff] %v6268
        %6305 = vst [vmem:[%s873 + $0x70] sm:$0xff] %v6269
        %6306 = vst [vmem:[%s873 + $0x78] sm:$0xff] %v6270
        %6307 = vst [vmem:[%s873 + $0x80] sm:$0xff] %v6271
        %6308 = vst [vmem:[%s873 + $0x88] sm:$0xff] %v6272
        %6309 = vst [vmem:[%s873 + $0x90] sm:$0xff] %v6273
        %6310 = vst [vmem:[%s873 + $0x98] sm:$0xff] %v6274
        %6311 = vst [vmem:[%s873 + $0xa0] sm:$0xff] %v6275
        %6312 = vst [vmem:[%s873 + $0xa8] sm:$0xff] %v6276
        %6313 = vst [vmem:[%s873 + $0xb0] sm:$0xff] %v6277
        %6314 = vst [vmem:[%s873 + $0xb8] sm:$0xff] %v6278
        %6315 = vst [vmem:[%s873 + $0xc0] sm:$0xff] %v6279
        %6316 = vst [vmem:[%s873 + $0xc8] sm:$0xff] %v6280
        %6317 = vst [vmem:[%s873 + $0xd0] sm:$0xff] %v6281
        %6318 = vst [vmem:[%s873 + $0xd8] sm:$0xff] %v6282
        %6319 = vst [vmem:[%s873 + $0xe0] sm:$0xff] %v6283
        %6320 = vst [vmem:[%s873 + $0xe8] sm:$0xff] %v6284
        %6321 = vst [vmem:[%s873 + $0xf0] sm:$0xff] %v6285
        %6322 = vst [vmem:[%s873 + $0xf8] sm:$0xff] %v6286
        %6323 = vst [vmem:[%s873 + $0x100] sm:$0xff] %v6287
        %6324 = vst [vmem:[%s873 + $0x108] sm:$0xff] %v6288
        %6325 = vst [vmem:[%s873 + $0x110] sm:$0xff] %v6289
        %6326 = vst [vmem:[%s873 + $0x118] sm:$0xff] %v6290
        %v6327 = vld [vmem:[#allocation3] sm:$0xff]
        %v6328 = vld [vmem:[#allocation3 + $0x8] sm:$0xff]
        %v6329 = vld [vmem:[#allocation3 + $0x10] sm:$0xff]
        %v6330 = vld [vmem:[#allocation3 + $0x18] sm:$0xff]
        %v6331 = vld [vmem:[#allocation3 + $0x20] sm:$0xff]
        %v6332 = vld [vmem:[#allocation3 + $0x28] sm:$0xff]
        %v6333 = vld [vmem:[#allocation3 + $0x30] sm:$0xff]
        %v6334 = vld [vmem:[#allocation3 + $0x38] sm:$0xff]
        %v6335 = vld [vmem:[#allocation3 + $0x40] sm:$0xff]
        %v6336 = vld [vmem:[#allocation3 + $0x48] sm:$0xff]
        %v6337 = vld [vmem:[#allocation3 + $0x50] sm:$0xff]
        %v6338 = vld [vmem:[#allocation3 + $0x58] sm:$0xff]
        %v6339 = vld [vmem:[#allocation3 + $0x60] sm:$0xff]
        %v6340 = vld [vmem:[#allocation3 + $0x68] sm:$0xff]
        %v6341 = vld [vmem:[#allocation3 + $0x70] sm:$0xff]
        %v6342 = vld [vmem:[#allocation3 + $0x78] sm:$0xff]
        %v6343 = vld [vmem:[#allocation3 + $0x80] sm:$0xff]
        %v6344 = vld [vmem:[#allocation3 + $0x88] sm:$0xff]
        %v6345 = vld [vmem:[#allocation3 + $0x90] sm:$0xff]
        %v6346 = vld [vmem:[#allocation3 + $0x98] sm:$0xff]
        %v6347 = vld [vmem:[#allocation3 + $0xa0] sm:$0xff]
        %v6348 = vld [vmem:[#allocation3 + $0xa8] sm:$0xff]
        %v6349 = vld [vmem:[#allocation3 + $0xb0] sm:$0xff]
        %v6350 = vld [vmem:[#allocation3 + $0xb8] sm:$0xff]
        %v6351 = vld [vmem:[#allocation3 + $0xc0] sm:$0xff]
        %v6352 = vld [vmem:[#allocation3 + $0xc8] sm:$0xff]
        %v6353 = vld [vmem:[#allocation3 + $0xd0] sm:$0xff]
        %v6354 = vld [vmem:[#allocation3 + $0xd8] sm:$0xff]
        %v6355 = vld [vmem:[#allocation3 + $0xe0] sm:$0xff]
        %v6356 = vld [vmem:[#allocation3 + $0xe8] sm:$0xff]
        %v6357 = vld [vmem:[#allocation3 + $0xf0] sm:$0xff]
        %v6358 = vld [vmem:[#allocation3 + $0xf8] sm:$0xff]
        %v6359 = vld [vmem:[%s800] sm:$0xff]
        %v6360 = vld [vmem:[%s800 + $0x8] sm:$0xff]
        %v6361 = vld [vmem:[%s800 + $0x10] sm:$0xff]
        %v6362 = vld [vmem:[%s800 + $0x18] sm:$0xff]
        %v6363 = vld [vmem:[%s800 + $0x20] sm:$0xff]
        %v6364 = vld [vmem:[%s800 + $0x28] sm:$0xff]
        %v6365 = vld [vmem:[%s800 + $0x30] sm:$0xff]
        %v6366 = vld [vmem:[%s800 + $0x38] sm:$0xff]
        %v6367 = vld [vmem:[%s800 + $0x40] sm:$0xff]
        %v6368 = vld [vmem:[%s800 + $0x48] sm:$0xff]
        %v6369 = vld [vmem:[%s800 + $0x50] sm:$0xff]
        %v6370 = vld [vmem:[%s800 + $0x58] sm:$0xff]
        %v6371 = vld [vmem:[%s800 + $0x60] sm:$0xff]
        %v6372 = vld [vmem:[%s800 + $0x68] sm:$0xff]
        %v6373 = vld [vmem:[%s800 + $0x70] sm:$0xff]
        %v6374 = vld [vmem:[%s800 + $0x78] sm:$0xff]
        %v6375 = vld [vmem:[%s800 + $0x80] sm:$0xff]
        %v6376 = vld [vmem:[%s800 + $0x88] sm:$0xff]
        %v6377 = vld [vmem:[%s800 + $0x90] sm:$0xff]
        %v6378 = vld [vmem:[%s800 + $0x98] sm:$0xff]
        %v6379 = vld [vmem:[%s800 + $0xa0] sm:$0xff]
        %v6380 = vld [vmem:[%s800 + $0xa8] sm:$0xff]
        %v6381 = vld [vmem:[%s800 + $0xb0] sm:$0xff]
        %v6382 = vld [vmem:[%s800 + $0xb8] sm:$0xff]
        %v6383 = vld [vmem:[%s800 + $0xc0] sm:$0xff]
        %v6384 = vld [vmem:[%s800 + $0xc8] sm:$0xff]
        %v6385 = vld [vmem:[%s800 + $0xd0] sm:$0xff]
        %v6386 = vld [vmem:[%s800 + $0xd8] sm:$0xff]
        %v6387 = vld [vmem:[%s800 + $0xe0] sm:$0xff]
        %v6388 = vld [vmem:[%s800 + $0xe8] sm:$0xff]
        %v6389 = vld [vmem:[%s800 + $0xf0] sm:$0xff]
        %v6390 = vld [vmem:[%s800 + $0xf8] sm:$0xff]
        %v6391 = vld [vmem:[%s873] sm:$0xff]
        %v6392 = vld [vmem:[%s873 + $0x8] sm:$0xff]
        %v6393 = vld [vmem:[%s873 + $0x10] sm:$0xff]
        %v6394 = vld [vmem:[%s873 + $0x18] sm:$0xff]
        %v6395 = vld [vmem:[%s873 + $0x20] sm:$0xff]
        %v6396 = vld [vmem:[%s873 + $0x28] sm:$0xff]
        %v6397 = vld [vmem:[%s873 + $0x30] sm:$0xff]
        %v6398 = vld [vmem:[%s873 + $0x38] sm:$0xff]
        %v6399 = vld [vmem:[%s873 + $0x40] sm:$0xff]
        %v6400 = vld [vmem:[%s873 + $0x48] sm:$0xff]
        %v6401 = vld [vmem:[%s873 + $0x50] sm:$0xff]
        %v6402 = vld [vmem:[%s873 + $0x58] sm:$0xff]
        %v6403 = vld [vmem:[%s873 + $0x60] sm:$0xff]
        %v6404 = vld [vmem:[%s873 + $0x68] sm:$0xff]
        %v6405 = vld [vmem:[%s873 + $0x70] sm:$0xff]
        %v6406 = vld [vmem:[%s873 + $0x78] sm:$0xff]
        %v6407 = vld [vmem:[%s873 + $0x80] sm:$0xff]
        %v6408 = vld [vmem:[%s873 + $0x88] sm:$0xff]
        %v6409 = vld [vmem:[%s873 + $0x90] sm:$0xff]
        %v6410 = vld [vmem:[%s873 + $0x98] sm:$0xff]
        %v6411 = vld [vmem:[%s873 + $0xa0] sm:$0xff]
        %v6412 = vld [vmem:[%s873 + $0xa8] sm:$0xff]
        %v6413 = vld [vmem:[%s873 + $0xb0] sm:$0xff]
        %v6414 = vld [vmem:[%s873 + $0xb8] sm:$0xff]
        %v6415 = vld [vmem:[%s873 + $0xc0] sm:$0xff]
        %v6416 = vld [vmem:[%s873 + $0xc8] sm:$0xff]
        %v6417 = vld [vmem:[%s873 + $0xd0] sm:$0xff]
        %v6418 = vld [vmem:[%s873 + $0xd8] sm:$0xff]
        %v6419 = vld [vmem:[%s873 + $0xe0] sm:$0xff]
        %v6420 = vld [vmem:[%s873 + $0xe8] sm:$0xff]
        %v6421 = vld [vmem:[%s873 + $0xf0] sm:$0xff]
        %v6422 = vld [vmem:[%s873 + $0xf8] sm:$0xff]
        %v6423 = vld [vmem:[%s1006] sm:$0xff]
        %v6424 = vld [vmem:[%s1006 + $0x8] sm:$0xff]
        %v6425 = vld [vmem:[%s1006 + $0x10] sm:$0xff]
        %v6426 = vld [vmem:[%s1006 + $0x18] sm:$0xff]
        %v6427 = vld [vmem:[%s1006 + $0x20] sm:$0xff]
        %v6428 = vld [vmem:[%s1006 + $0x28] sm:$0xff]
        %v6429 = vld [vmem:[%s1006 + $0x30] sm:$0xff]
        %v6430 = vld [vmem:[%s1006 + $0x38] sm:$0xff]
        %v6431 = vld [vmem:[%s1006 + $0x40] sm:$0xff]
        %v6432 = vld [vmem:[%s1006 + $0x48] sm:$0xff]
        %v6433 = vld [vmem:[%s1006 + $0x50] sm:$0xff]
        %v6434 = vld [vmem:[%s1006 + $0x58] sm:$0xff]
        %v6435 = vld [vmem:[%s1006 + $0x60] sm:$0xff]
        %v6436 = vld [vmem:[%s1006 + $0x68] sm:$0xff]
        %v6437 = vld [vmem:[%s1006 + $0x70] sm:$0xff]
        %v6438 = vld [vmem:[%s1006 + $0x78] sm:$0xff]
        %v6439 = vld [vmem:[%s1006 + $0x80] sm:$0xff]
        %v6440 = vld [vmem:[%s1006 + $0x88] sm:$0xff]
        %v6441 = vld [vmem:[%s1006 + $0x90] sm:$0xff]
        %v6442 = vld [vmem:[%s1006 + $0x98] sm:$0xff]
        %v6443 = vld [vmem:[%s1006 + $0xa0] sm:$0xff]
        %v6444 = vld [vmem:[%s1006 + $0xa8] sm:$0xff]
        %v6445 = vld [vmem:[%s1006 + $0xb0] sm:$0xff]
        %v6446 = vld [vmem:[%s1006 + $0xb8] sm:$0xff]
        %v6447 = vld [vmem:[%s1006 + $0xc0] sm:$0xff]
        %v6448 = vld [vmem:[%s1006 + $0xc8] sm:$0xff]
        %v6449 = vld [vmem:[%s1006 + $0xd0] sm:$0xff]
        %v6450 = vld [vmem:[%s1006 + $0xd8] sm:$0xff]
        %v6451 = vld [vmem:[%s1006 + $0xe0] sm:$0xff]
        %v6452 = vld [vmem:[%s1006 + $0xe8] sm:$0xff]
        %v6453 = vld [vmem:[%s1006 + $0xf0] sm:$0xff]
        %v6454 = vld [vmem:[%s1006 + $0xf8] sm:$0xff]
        %v6455 = vld [vmem:[%s1039] sm:$0xff]
        %v6456 = vld [vmem:[%s1039 + $0x8] sm:$0xff]
        %v6457 = vld [vmem:[%s1039 + $0x10] sm:$0xff]
        %v6458 = vld [vmem:[%s1039 + $0x18] sm:$0xff]
        %v6459 = vld [vmem:[%s1039 + $0x20] sm:$0xff]
        %v6460 = vld [vmem:[%s1039 + $0x28] sm:$0xff]
        %v6461 = vld [vmem:[%s1039 + $0x30] sm:$0xff]
        %v6462 = vld [vmem:[%s1039 + $0x38] sm:$0xff]
        %v6463 = vld [vmem:[%s1039 + $0x40] sm:$0xff]
        %v6464 = vld [vmem:[%s1039 + $0x48] sm:$0xff]
        %v6465 = vld [vmem:[%s1039 + $0x50] sm:$0xff]
        %v6466 = vld [vmem:[%s1039 + $0x58] sm:$0xff]
        %v6467 = vld [vmem:[%s1039 + $0x60] sm:$0xff]
        %v6468 = vld [vmem:[%s1039 + $0x68] sm:$0xff]
        %v6469 = vld [vmem:[%s1039 + $0x70] sm:$0xff]
        %v6470 = vld [vmem:[%s1039 + $0x78] sm:$0xff]
        %v6471 = vld [vmem:[%s1039 + $0x80] sm:$0xff]
        %v6472 = vld [vmem:[%s1039 + $0x88] sm:$0xff]
        %v6473 = vld [vmem:[%s1039 + $0x90] sm:$0xff]
        %v6474 = vld [vmem:[%s1039 + $0x98] sm:$0xff]
        %v6475 = vld [vmem:[%s1039 + $0xa0] sm:$0xff]
        %v6476 = vld [vmem:[%s1039 + $0xa8] sm:$0xff]
        %v6477 = vld [vmem:[%s1039 + $0xb0] sm:$0xff]
        %v6478 = vld [vmem:[%s1039 + $0xb8] sm:$0xff]
        %v6479 = vld [vmem:[%s1039 + $0xc0] sm:$0xff]
        %v6480 = vld [vmem:[%s1039 + $0xc8] sm:$0xff]
        %v6481 = vld [vmem:[%s1039 + $0xd0] sm:$0xff]
        %v6482 = vld [vmem:[%s1039 + $0xd8] sm:$0xff]
        %v6483 = vld [vmem:[%s1039 + $0xe0] sm:$0xff]
        %v6484 = vld [vmem:[%s1039 + $0xe8] sm:$0xff]
        %v6485 = vld [vmem:[%s1039 + $0xf0] sm:$0xff]
        %v6486 = vld [vmem:[%s1039 + $0xf8] sm:$0xff]
        %v6487 = vld [vmem:[%s1072] sm:$0xff]
        %v6488 = vld [vmem:[%s1072 + $0x8] sm:$0xff]
        %v6489 = vld [vmem:[%s1072 + $0x10] sm:$0xff]
        %v6490 = vld [vmem:[%s1072 + $0x18] sm:$0xff]
        %v6491 = vld [vmem:[%s1072 + $0x20] sm:$0xff]
        %v6492 = vld [vmem:[%s1072 + $0x28] sm:$0xff]
        %v6493 = vld [vmem:[%s1072 + $0x30] sm:$0xff]
        %v6494 = vld [vmem:[%s1072 + $0x38] sm:$0xff]
        %v6495 = vld [vmem:[%s1072 + $0x40] sm:$0xff]
        %v6496 = vld [vmem:[%s1072 + $0x48] sm:$0xff]
        %v6497 = vld [vmem:[%s1072 + $0x50] sm:$0xff]
        %v6498 = vld [vmem:[%s1072 + $0x58] sm:$0xff]
        %v6499 = vld [vmem:[%s1072 + $0x60] sm:$0xff]
        %v6500 = vld [vmem:[%s1072 + $0x68] sm:$0xff]
        %v6501 = vld [vmem:[%s1072 + $0x70] sm:$0xff]
        %v6502 = vld [vmem:[%s1072 + $0x78] sm:$0xff]
        %v6503 = vld [vmem:[%s1072 + $0x80] sm:$0xff]
        %v6504 = vld [vmem:[%s1072 + $0x88] sm:$0xff]
        %v6505 = vld [vmem:[%s1072 + $0x90] sm:$0xff]
        %v6506 = vld [vmem:[%s1072 + $0x98] sm:$0xff]
        %v6507 = vld [vmem:[%s1072 + $0xa0] sm:$0xff]
        %v6508 = vld [vmem:[%s1072 + $0xa8] sm:$0xff]
        %v6509 = vld [vmem:[%s1072 + $0xb0] sm:$0xff]
        %v6510 = vld [vmem:[%s1072 + $0xb8] sm:$0xff]
        %v6511 = vld [vmem:[%s1072 + $0xc0] sm:$0xff]
        %v6512 = vld [vmem:[%s1072 + $0xc8] sm:$0xff]
        %v6513 = vld [vmem:[%s1072 + $0xd0] sm:$0xff]
        %v6514 = vld [vmem:[%s1072 + $0xd8] sm:$0xff]
        %v6515 = vld [vmem:[%s1072 + $0xe0] sm:$0xff]
        %v6516 = vld [vmem:[%s1072 + $0xe8] sm:$0xff]
        %v6517 = vld [vmem:[%s1072 + $0xf0] sm:$0xff]
        %v6518 = vld [vmem:[%s1072 + $0xf8] sm:$0xff]
        %v6519 = vld [vmem:[%s1105] sm:$0xff]
        %v6520 = vld [vmem:[%s1105 + $0x8] sm:$0xff]
        %v6521 = vld [vmem:[%s1105 + $0x10] sm:$0xff]
        %v6522 = vld [vmem:[%s1105 + $0x18] sm:$0xff]
        %v6523 = vld [vmem:[%s1105 + $0x20] sm:$0xff]
        %v6524 = vld [vmem:[%s1105 + $0x28] sm:$0xff]
        %v6525 = vld [vmem:[%s1105 + $0x30] sm:$0xff]
        %v6526 = vld [vmem:[%s1105 + $0x38] sm:$0xff]
        %v6527 = vld [vmem:[%s1105 + $0x40] sm:$0xff]
        %v6528 = vld [vmem:[%s1105 + $0x48] sm:$0xff]
        %v6529 = vld [vmem:[%s1105 + $0x50] sm:$0xff]
        %v6530 = vld [vmem:[%s1105 + $0x58] sm:$0xff]
        %v6531 = vld [vmem:[%s1105 + $0x60] sm:$0xff]
        %v6532 = vld [vmem:[%s1105 + $0x68] sm:$0xff]
        %v6533 = vld [vmem:[%s1105 + $0x70] sm:$0xff]
        %v6534 = vld [vmem:[%s1105 + $0x78] sm:$0xff]
        %v6535 = vld [vmem:[%s1105 + $0x80] sm:$0xff]
        %v6536 = vld [vmem:[%s1105 + $0x88] sm:$0xff]
        %v6537 = vld [vmem:[%s1105 + $0x90] sm:$0xff]
        %v6538 = vld [vmem:[%s1105 + $0x98] sm:$0xff]
        %v6539 = vld [vmem:[%s1105 + $0xa0] sm:$0xff]
        %v6540 = vld [vmem:[%s1105 + $0xa8] sm:$0xff]
        %v6541 = vld [vmem:[%s1105 + $0xb0] sm:$0xff]
        %v6542 = vld [vmem:[%s1105 + $0xb8] sm:$0xff]
        %v6543 = vld [vmem:[%s1105 + $0xc0] sm:$0xff]
        %v6544 = vld [vmem:[%s1105 + $0xc8] sm:$0xff]
        %v6545 = vld [vmem:[%s1105 + $0xd0] sm:$0xff]
        %v6546 = vld [vmem:[%s1105 + $0xd8] sm:$0xff]
        %v6547 = vld [vmem:[%s1105 + $0xe0] sm:$0xff]
        %v6548 = vld [vmem:[%s1105 + $0xe8] sm:$0xff]
        %v6549 = vld [vmem:[%s1105 + $0xf0] sm:$0xff]
        %v6550 = vld [vmem:[%s1105 + $0xf8] sm:$0xff]
        %v6551 = vld [vmem:[%s1138] sm:$0xff]
        %v6552 = vld [vmem:[%s1138 + $0x8] sm:$0xff]
        %v6553 = vld [vmem:[%s1138 + $0x10] sm:$0xff]
        %v6554 = vld [vmem:[%s1138 + $0x18] sm:$0xff]
        %v6555 = vld [vmem:[%s1138 + $0x20] sm:$0xff]
        %v6556 = vld [vmem:[%s1138 + $0x28] sm:$0xff]
        %v6557 = vld [vmem:[%s1138 + $0x30] sm:$0xff]
        %v6558 = vld [vmem:[%s1138 + $0x38] sm:$0xff]
        %v6559 = vld [vmem:[%s1138 + $0x40] sm:$0xff]
        %v6560 = vld [vmem:[%s1138 + $0x48] sm:$0xff]
        %v6561 = vld [vmem:[%s1138 + $0x50] sm:$0xff]
        %v6562 = vld [vmem:[%s1138 + $0x58] sm:$0xff]
        %v6563 = vld [vmem:[%s1138 + $0x60] sm:$0xff]
        %v6564 = vld [vmem:[%s1138 + $0x68] sm:$0xff]
        %v6565 = vld [vmem:[%s1138 + $0x70] sm:$0xff]
        %v6566 = vld [vmem:[%s1138 + $0x78] sm:$0xff]
        %v6567 = vld [vmem:[%s1138 + $0x80] sm:$0xff]
        %v6568 = vld [vmem:[%s1138 + $0x88] sm:$0xff]
        %v6569 = vld [vmem:[%s1138 + $0x90] sm:$0xff]
        %v6570 = vld [vmem:[%s1138 + $0x98] sm:$0xff]
        %v6571 = vld [vmem:[%s1138 + $0xa0] sm:$0xff]
        %v6572 = vld [vmem:[%s1138 + $0xa8] sm:$0xff]
        %v6573 = vld [vmem:[%s1138 + $0xb0] sm:$0xff]
        %v6574 = vld [vmem:[%s1138 + $0xb8] sm:$0xff]
        %v6575 = vld [vmem:[%s1138 + $0xc0] sm:$0xff]
        %v6576 = vld [vmem:[%s1138 + $0xc8] sm:$0xff]
        %v6577 = vld [vmem:[%s1138 + $0xd0] sm:$0xff]
        %v6578 = vld [vmem:[%s1138 + $0xd8] sm:$0xff]
        %v6579 = vld [vmem:[%s1138 + $0xe0] sm:$0xff]
        %v6580 = vld [vmem:[%s1138 + $0xe8] sm:$0xff]
        %v6581 = vld [vmem:[%s1138 + $0xf0] sm:$0xff]
        %v6582 = vld [vmem:[%s1138 + $0xf8] sm:$0xff]
        %v6583 = vld [vmem:[%s1171] sm:$0xff]
        %v6584 = vld [vmem:[%s1171 + $0x8] sm:$0xff]
        %v6585 = vld [vmem:[%s1171 + $0x10] sm:$0xff]
        %v6586 = vld [vmem:[%s1171 + $0x18] sm:$0xff]
        %v6587 = vld [vmem:[%s1171 + $0x20] sm:$0xff]
        %v6588 = vld [vmem:[%s1171 + $0x28] sm:$0xff]
        %v6589 = vld [vmem:[%s1171 + $0x30] sm:$0xff]
        %v6590 = vld [vmem:[%s1171 + $0x38] sm:$0xff]
        %v6591 = vld [vmem:[%s1171 + $0x40] sm:$0xff]
        %v6592 = vld [vmem:[%s1171 + $0x48] sm:$0xff]
        %v6593 = vld [vmem:[%s1171 + $0x50] sm:$0xff]
        %v6594 = vld [vmem:[%s1171 + $0x58] sm:$0xff]
        %v6595 = vld [vmem:[%s1171 + $0x60] sm:$0xff]
        %v6596 = vld [vmem:[%s1171 + $0x68] sm:$0xff]
        %v6597 = vld [vmem:[%s1171 + $0x70] sm:$0xff]
        %v6598 = vld [vmem:[%s1171 + $0x78] sm:$0xff]
        %v6599 = vld [vmem:[%s1171 + $0x80] sm:$0xff]
        %v6600 = vld [vmem:[%s1171 + $0x88] sm:$0xff]
        %v6601 = vld [vmem:[%s1171 + $0x90] sm:$0xff]
        %v6602 = vld [vmem:[%s1171 + $0x98] sm:$0xff]
        %v6603 = vld [vmem:[%s1171 + $0xa0] sm:$0xff]
        %v6604 = vld [vmem:[%s1171 + $0xa8] sm:$0xff]
        %v6605 = vld [vmem:[%s1171 + $0xb0] sm:$0xff]
        %v6606 = vld [vmem:[%s1171 + $0xb8] sm:$0xff]
        %v6607 = vld [vmem:[%s1171 + $0xc0] sm:$0xff]
        %v6608 = vld [vmem:[%s1171 + $0xc8] sm:$0xff]
        %v6609 = vld [vmem:[%s1171 + $0xd0] sm:$0xff]
        %v6610 = vld [vmem:[%s1171 + $0xd8] sm:$0xff]
        %v6611 = vld [vmem:[%s1171 + $0xe0] sm:$0xff]
        %v6612 = vld [vmem:[%s1171 + $0xe8] sm:$0xff]
        %v6613 = vld [vmem:[%s1171 + $0xf0] sm:$0xff]
        %v6614 = vld [vmem:[%s1171 + $0xf8] sm:$0xff]
        %v6615 = vld [vmem:[#allocation12] sm:$0xff]
        %v6616 = vld [vmem:[#allocation12 + $0x8] sm:$0xff]
        %v6617 = vld [vmem:[#allocation12 + $0x10] sm:$0xff]
        %v6618 = vld [vmem:[#allocation12 + $0x18] sm:$0xff]
        %v6619 = vld [vmem:[#allocation12 + $0x20] sm:$0xff]
        %v6620 = vld [vmem:[#allocation12 + $0x28] sm:$0xff]
        %v6621 = vld [vmem:[#allocation12 + $0x30] sm:$0xff]
        %v6622 = vld [vmem:[#allocation12 + $0x38] sm:$0xff]
        %v6623 = vld [vmem:[#allocation12 + $0x40] sm:$0xff]
        %v6624 = vld [vmem:[#allocation12 + $0x48] sm:$0xff]
        %v6625 = vld [vmem:[#allocation12 + $0x50] sm:$0xff]
        %v6626 = vld [vmem:[#allocation12 + $0x58] sm:$0xff]
        %v6627 = vld [vmem:[#allocation12 + $0x60] sm:$0xff]
        %v6628 = vld [vmem:[#allocation12 + $0x68] sm:$0xff]
        %v6629 = vld [vmem:[#allocation12 + $0x70] sm:$0xff]
        %v6630 = vld [vmem:[#allocation12 + $0x78] sm:$0xff]
        %v6631 = vld [vmem:[#allocation12 + $0x80] sm:$0xff]
        %v6632 = vld [vmem:[#allocation12 + $0x88] sm:$0xff]
        %v6633 = vld [vmem:[#allocation12 + $0x90] sm:$0xff]
        %v6634 = vld [vmem:[#allocation12 + $0x98] sm:$0xff]
        %v6635 = vld [vmem:[#allocation12 + $0xa0] sm:$0xff]
        %v6636 = vld [vmem:[#allocation12 + $0xa8] sm:$0xff]
        %v6637 = vld [vmem:[#allocation12 + $0xb0] sm:$0xff]
        %v6638 = vld [vmem:[#allocation12 + $0xb8] sm:$0xff]
        %v6639 = vld [vmem:[#allocation12 + $0xc0] sm:$0xff]
        %v6640 = vld [vmem:[#allocation12 + $0xc8] sm:$0xff]
        %v6641 = vld [vmem:[#allocation12 + $0xd0] sm:$0xff]
        %v6642 = vld [vmem:[#allocation12 + $0xd8] sm:$0xff]
        %v6643 = vld [vmem:[#allocation12 + $0xe0] sm:$0xff]
        %v6644 = vld [vmem:[#allocation12 + $0xe8] sm:$0xff]
        %v6645 = vld [vmem:[#allocation12 + $0xf0] sm:$0xff]
        %v6646 = vld [vmem:[#allocation12 + $0xf8] sm:$0xff]
        %v6647 = vld [vmem:[#allocation12 + $0x100] sm:$0xff]
        %v6648 = vld [vmem:[#allocation12 + $0x108] sm:$0xff]
        %v6649 = vld [vmem:[#allocation12 + $0x110] sm:$0xff]
        %v6650 = vld [vmem:[#allocation12 + $0x118] sm:$0xff]
        %v6651 = vld [vmem:[#allocation12 + $0x120] sm:$0xff]
        %v6652 = vld [vmem:[#allocation12 + $0x128] sm:$0xff]
        %v6653 = vld [vmem:[#allocation12 + $0x130] sm:$0xff]
        %v6654 = vld [vmem:[#allocation12 + $0x138] sm:$0xff]
        %v6655 = vld [vmem:[#allocation12 + $0x140] sm:$0xff]
        %v6656 = vld [vmem:[#allocation12 + $0x148] sm:$0xff]
        %v6657 = vld [vmem:[#allocation12 + $0x150] sm:$0xff]
        %v6658 = vld [vmem:[#allocation12 + $0x158] sm:$0xff]
        %v6659 = vld [vmem:[#allocation12 + $0x160] sm:$0xff]
        %v6660 = vld [vmem:[#allocation12 + $0x168] sm:$0xff]
        %v6661 = vld [vmem:[#allocation12 + $0x170] sm:$0xff]
        %v6662 = vld [vmem:[#allocation12 + $0x178] sm:$0xff]
        %v6663 = vld [vmem:[#allocation12 + $0x180] sm:$0xff]
        %v6664 = vld [vmem:[#allocation12 + $0x188] sm:$0xff]
        %v6665 = vld [vmem:[#allocation12 + $0x190] sm:$0xff]
        %v6666 = vld [vmem:[#allocation12 + $0x198] sm:$0xff]
        %v6667 = vld [vmem:[#allocation12 + $0x1a0] sm:$0xff]
        %v6668 = vld [vmem:[#allocation12 + $0x1a8] sm:$0xff]
        %v6669 = vld [vmem:[#allocation12 + $0x1b0] sm:$0xff]
        %v6670 = vld [vmem:[#allocation12 + $0x1b8] sm:$0xff]
        %v6671 = vld [vmem:[#allocation12 + $0x1c0] sm:$0xff]
        %v6672 = vld [vmem:[#allocation12 + $0x1c8] sm:$0xff]
        %v6673 = vld [vmem:[#allocation12 + $0x1d0] sm:$0xff]
        %v6674 = vld [vmem:[#allocation12 + $0x1d8] sm:$0xff]
        %v6675 = vld [vmem:[#allocation12 + $0x1e0] sm:$0xff]
        %v6676 = vld [vmem:[#allocation12 + $0x1e8] sm:$0xff]
        %v6677 = vld [vmem:[#allocation12 + $0x1f0] sm:$0xff]
        %v6678 = vld [vmem:[#allocation12 + $0x1f8] sm:$0xff]
        %v6679 = vld [vmem:[#allocation12 + $0x200] sm:$0xff]
        %v6680 = vld [vmem:[#allocation12 + $0x208] sm:$0xff]
        %v6681 = vld [vmem:[#allocation12 + $0x210] sm:$0xff]
        %v6682 = vld [vmem:[#allocation12 + $0x218] sm:$0xff]
        %v6683 = vld [vmem:[#allocation12 + $0x220] sm:$0xff]
        %v6684 = vld [vmem:[#allocation12 + $0x228] sm:$0xff]
        %v6685 = vld [vmem:[#allocation12 + $0x230] sm:$0xff]
        %v6686 = vld [vmem:[#allocation12 + $0x238] sm:$0xff]
        %v6687 = vld [vmem:[#allocation12 + $0x240] sm:$0xff]
        %v6688 = vld [vmem:[#allocation12 + $0x248] sm:$0xff]
        %v6689 = vld [vmem:[#allocation12 + $0x250] sm:$0xff]
        %v6690 = vld [vmem:[#allocation12 + $0x258] sm:$0xff]
        %v6691 = vld [vmem:[#allocation12 + $0x260] sm:$0xff]
        %v6692 = vld [vmem:[#allocation12 + $0x268] sm:$0xff]
        %v6693 = vld [vmem:[#allocation12 + $0x270] sm:$0xff]
        %v6694 = vld [vmem:[#allocation12 + $0x278] sm:$0xff]
        %v6695 = vld [vmem:[#allocation12 + $0x280] sm:$0xff]
        %v6696 = vld [vmem:[#allocation12 + $0x288] sm:$0xff]
        %v6697 = vld [vmem:[#allocation12 + $0x290] sm:$0xff]
        %v6698 = vld [vmem:[#allocation12 + $0x298] sm:$0xff]
        %v6699 = vld [vmem:[#allocation12 + $0x2a0] sm:$0xff]
        %v6700 = vld [vmem:[#allocation12 + $0x2a8] sm:$0xff]
        %v6701 = vld [vmem:[#allocation12 + $0x2b0] sm:$0xff]
        %v6702 = vld [vmem:[#allocation12 + $0x2b8] sm:$0xff]
        %v6703 = vld [vmem:[#allocation12 + $0x2c0] sm:$0xff]
        %v6704 = vld [vmem:[#allocation12 + $0x2c8] sm:$0xff]
        %v6705 = vld [vmem:[#allocation12 + $0x2d0] sm:$0xff]
        %v6706 = vld [vmem:[#allocation12 + $0x2d8] sm:$0xff]
        %v6707 = vld [vmem:[#allocation12 + $0x2e0] sm:$0xff]
        %v6708 = vld [vmem:[#allocation12 + $0x2e8] sm:$0xff]
        %v6709 = vld [vmem:[#allocation12 + $0x2f0] sm:$0xff]
        %v6710 = vld [vmem:[#allocation12 + $0x2f8] sm:$0xff]
        %v6711 = vld [vmem:[#allocation12 + $0x300] sm:$0xff]
        %v6712 = vld [vmem:[#allocation12 + $0x308] sm:$0xff]
        %v6713 = vld [vmem:[#allocation12 + $0x310] sm:$0xff]
        %v6714 = vld [vmem:[#allocation12 + $0x318] sm:$0xff]
        %v6715 = vld [vmem:[#allocation12 + $0x320] sm:$0xff]
        %v6716 = vld [vmem:[#allocation12 + $0x328] sm:$0xff]
        %v6717 = vld [vmem:[#allocation12 + $0x330] sm:$0xff]
        %v6718 = vld [vmem:[#allocation12 + $0x338] sm:$0xff]
        %v6719 = vld [vmem:[#allocation12 + $0x340] sm:$0xff]
        %v6720 = vld [vmem:[#allocation12 + $0x348] sm:$0xff]
        %v6721 = vld [vmem:[#allocation12 + $0x350] sm:$0xff]
        %v6722 = vld [vmem:[#allocation12 + $0x358] sm:$0xff]
        %v6723 = vld [vmem:[#allocation12 + $0x360] sm:$0xff]
        %v6724 = vld [vmem:[#allocation12 + $0x368] sm:$0xff]
        %v6725 = vld [vmem:[#allocation12 + $0x370] sm:$0xff]
        %v6726 = vld [vmem:[#allocation12 + $0x378] sm:$0xff]
        %v6727 = vld [vmem:[#allocation12 + $0x380] sm:$0xff]
        %v6728 = vld [vmem:[#allocation12 + $0x388] sm:$0xff]
        %v6729 = vld [vmem:[#allocation12 + $0x390] sm:$0xff]
        %v6730 = vld [vmem:[#allocation12 + $0x398] sm:$0xff]
        %v6731 = vld [vmem:[#allocation12 + $0x3a0] sm:$0xff]
        %v6732 = vld [vmem:[#allocation12 + $0x3a8] sm:$0xff]
        %v6733 = vld [vmem:[#allocation12 + $0x3b0] sm:$0xff]
        %v6734 = vld [vmem:[#allocation12 + $0x3b8] sm:$0xff]
        %v6735 = vld [vmem:[#allocation12 + $0x3c0] sm:$0xff]
        %v6736 = vld [vmem:[#allocation12 + $0x3c8] sm:$0xff]
        %v6737 = vld [vmem:[#allocation12 + $0x3d0] sm:$0xff]
        %v6738 = vld [vmem:[#allocation12 + $0x3d8] sm:$0xff]
        %v6739 = vld [vmem:[#allocation12 + $0x3e0] sm:$0xff]
        %v6740 = vld [vmem:[#allocation12 + $0x3e8] sm:$0xff]
        %v6741 = vld [vmem:[#allocation12 + $0x3f0] sm:$0xff]
        %v6742 = vld [vmem:[#allocation12 + $0x3f8] sm:$0xff]
        %v6743 = vld [vmem:[#allocation12 + $0x400] sm:$0xff]
        %v6744 = vld [vmem:[#allocation12 + $0x408] sm:$0xff]
        %v6745 = vld [vmem:[#allocation12 + $0x410] sm:$0xff]
        %v6746 = vld [vmem:[#allocation12 + $0x418] sm:$0xff]
        %v6747 = vld [vmem:[#allocation12 + $0x420] sm:$0xff]
        %v6748 = vld [vmem:[#allocation12 + $0x428] sm:$0xff]
        %v6749 = vld [vmem:[#allocation12 + $0x430] sm:$0xff]
        %v6750 = vld [vmem:[#allocation12 + $0x438] sm:$0xff]
        %v6751 = vld [vmem:[#allocation12 + $0x440] sm:$0xff]
        %v6752 = vld [vmem:[#allocation12 + $0x448] sm:$0xff]
        %v6753 = vld [vmem:[#allocation12 + $0x450] sm:$0xff]
        %v6754 = vld [vmem:[#allocation12 + $0x458] sm:$0xff]
        %v6755 = vld [vmem:[#allocation12 + $0x460] sm:$0xff]
        %v6756 = vld [vmem:[#allocation12 + $0x468] sm:$0xff]
        %v6757 = vld [vmem:[#allocation12 + $0x470] sm:$0xff]
        %v6758 = vld [vmem:[#allocation12 + $0x478] sm:$0xff]
        %v6759 = vld [vmem:[%s11] sm:$0x1]
        %v6761 = vlaneseq
        %v6762 = vshrl.u32 %v6761, 7
        %v6763 = vsub.s32 0, %v6762
        %v6764 = vrot.slane %v6759, %v6763
        %6766 = vmatprep.subr.mxu0 0.0
        %6767 = vmatpush1.msra.mxu0 %v6615
        %6768 = vmatprep.subr.mxu0 0.0
        %6769 = vmatpush1.msra.mxu0 %v6616
        %6770 = vmatprep.subr.mxu0 0.0
        %6771 = vmatpush1.msra.mxu0 %v6617
        %6772 = vmatprep.subr.mxu0 0.0
        %6773 = vmatpush1.msra.mxu0 %v6618
        %6774 = vmatprep.subr.mxu0 0.0
        %6775 = vmatpush1.msra.mxu0 %v6619
        %6776 = vmatprep.subr.mxu0 0.0
        %6777 = vmatpush1.msra.mxu0 %v6620
        %6778 = vmatprep.subr.mxu0 0.0
        %6779 = vmatpush1.msra.mxu0 %v6621
        %6780 = vmatprep.subr.mxu0 0.0
        %6781 = vmatpush1.msra.mxu0 %v6622
        %6782 = vmatprep.subr.mxu0 0.0
        %6783 = vmatpush1.msra.mxu0 %v6623
        %6784 = vmatprep.subr.mxu0 0.0
        %6785 = vmatpush1.msra.mxu0 %v6624
        %6786 = vmatprep.subr.mxu0 0.0
        %6787 = vmatpush1.msra.mxu0 %v6625
        %6788 = vmatprep.subr.mxu0 0.0
        %6789 = vmatpush1.msra.mxu0 %v6626
        %6790 = vmatprep.subr.mxu0 0.0
        %6791 = vmatpush1.msra.mxu0 %v6627
        %6792 = vmatprep.subr.mxu0 0.0
        %6793 = vmatpush1.msra.mxu0 %v6628
        %6794 = vmatprep.subr.mxu0 0.0
        %6795 = vmatpush1.msra.mxu0 %v6629
        %6796 = vmatprep.subr.mxu0 0.0
        %6797 = vmatpush1.msra.mxu0 %v6630
        %6798 = vmatprep.subr.mxu0 0.0
        %6799 = vmatpush1.msra.mxu0 %v6631
        %6800 = vmatprep.subr.mxu0 0.0
        %6801 = vmatpush1.msra.mxu0 %v6632
        %6802 = vmatprep.subr.mxu0 0.0
        %6803 = vmatpush1.msra.mxu0 %v6633
        %6804 = vmatprep.subr.mxu0 0.0
        %6805 = vmatpush1.msra.mxu0 %v6634
        %6806 = vmatprep.subr.mxu0 0.0
        %6807 = vmatpush1.msra.mxu0 %v6635
        %6808 = vmatprep.subr.mxu0 0.0
        %6809 = vmatpush1.msra.mxu0 %v6636
        %6810 = vmatprep.subr.mxu0 0.0
        %6811 = vmatpush1.msra.mxu0 %v6637
        %6812 = vmatprep.subr.mxu0 0.0
        %6813 = vmatpush1.msra.mxu0 %v6638
        %6814 = vmatprep.subr.mxu0 0.0
        %6815 = vmatpush1.msra.mxu0 %v6639
        %6816 = vmatprep.subr.mxu0 0.0
        %6817 = vmatpush1.msra.mxu0 %v6640
        %6818 = vmatprep.subr.mxu0 0.0
        %6819 = vmatpush1.msra.mxu0 %v6641
        %6820 = vmatprep.subr.mxu0 0.0
        %6821 = vmatpush1.msra.mxu0 %v6642
        %6822 = vmatprep.subr.mxu0 0.0
        %6823 = vmatpush1.msra.mxu0 %v6643
        %6824 = vmatprep.subr.mxu0 0.0
        %6825 = vmatpush1.msra.mxu0 %v6644
        %6826 = vmatprep.subr.mxu0 0.0
        %6827 = vmatpush1.msra.mxu0 %v6645
        %6828 = vmatprep.subr.mxu0 0.0
        %6829 = vmatpush1.msra.mxu0 %v6646
        %6830 = vmatprep.mubr.f32.mxu0 %v6359
        %6831 = vmatmul.mubr.f32.gmra.mrb[0].mxu0 %v6327
        %v6832 = vpop.f32.mrb[0].mxu0
        %v6833 = vadd.f32 %v6764, %v6832
        %v6834 = vpop.f32.mrb[0].mxu0
        %6835 = vmatprep.mubr.f32.mxu0 %v6360
        %6836 = vmatmul.mubr.f32.gmra.mrb[0].mxu0 %v6328
        %v6837 = vpop.f32.mrb[0].mxu0
        %v6838 = vadd.f32 %v6764, %v6837
        %v6839 = vpop.f32.mrb[0].mxu0
        %6840 = vmatprep.mubr.f32.mxu0 %v6361
        %6841 = vmatmul.mubr.f32.gmra.mrb[0].mxu0 %v6329
        %v6842 = vpop.f32.mrb[0].mxu0
        %v6843 = vadd.f32 %v6764, %v6842
        %v6844 = vpop.f32.mrb[0].mxu0
        %6845 = vmatprep.mubr.f32.mxu0 %v6362
        %6846 = vmatmul.mubr.f32.gmra.mrb[0].mxu0 %v6330
        %v6847 = vpop.f32.mrb[0].mxu0
        %v6848 = vadd.f32 %v6764, %v6847
        %v6849 = vpop.f32.mrb[0].mxu0
        %6850 = vmatprep.mubr.f32.mxu0 %v6363
        %6851 = vmatmul.mubr.f32.gmra.mrb[0].mxu0 %v6331
        %v6852 = vpop.f32.mrb[0].mxu0
        %v6853 = vadd.f32 %v6764, %v6852
        %v6854 = vpop.f32.mrb[0].mxu0
        %6855 = vmatprep.mubr.f32.mxu0 %v6364
        %6856 = vmatmul.mubr.f32.gmra.mrb[0].mxu0 %v6332
        %v6857 = vpop.f32.mrb[0].mxu0
        %v6858 = vadd.f32 %v6764, %v6857
        %v6859 = vpop.f32.mrb[0].mxu0
        %6860 = vmatprep.mubr.f32.mxu0 %v6365
        %6861 = vmatmul.mubr.f32.gmra.mrb[0].mxu0 %v6333
        %v6862 = vpop.f32.mrb[0].mxu0
        %v6863 = vadd.f32 %v6764, %v6862
        %v6864 = vpop.f32.mrb[0].mxu0
        %6865 = vmatprep.mubr.f32.mxu0 %v6366
        %6866 = vmatmul.mubr.f32.gmra.mrb[0].mxu0 %v6334
        %v6867 = vpop.f32.mrb[0].mxu0
        %v6868 = vadd.f32 %v6764, %v6867
        %v6869 = vpop.f32.mrb[0].mxu0
        %6870 = vmatprep.mubr.f32.mxu0 %v6367
        %6871 = vmatmul.mubr.f32.gmra.mrb[0].mxu0 %v6335
        %v6872 = vpop.f32.mrb[0].mxu0
        %v6873 = vadd.f32 %v6764, %v6872
        %v6874 = vpop.f32.mrb[0].mxu0
        %6875 = vmatprep.mubr.f32.mxu0 %v6368
        %6876 = vmatmul.mubr.f32.gmra.mrb[0].mxu0 %v6336
        %v6877 = vpop.f32.mrb[0].mxu0
        %v6878 = vadd.f32 %v6764, %v6877
        %v6879 = vpop.f32.mrb[0].mxu0
        %6880 = vmatprep.mubr.f32.mxu0 %v6369
        %6881 = vmatmul.mubr.f32.gmra.mrb[0].mxu0 %v6337
        %v6882 = vpop.f32.mrb[0].mxu0
        %v6883 = vadd.f32 %v6764, %v6882
        %v6884 = vpop.f32.mrb[0].mxu0
        %6885 = vmatprep.mubr.f32.mxu0 %v6370
        %6886 = vmatmul.mubr.f32.gmra.mrb[0].mxu0 %v6338
        %v6887 = vpop.f32.mrb[0].mxu0
        %v6888 = vadd.f32 %v6764, %v6887
        %v6889 = vpop.f32.mrb[0].mxu0
        %6890 = vmatprep.mubr.f32.mxu0 %v6371
        %6891 = vmatmul.mubr.f32.gmra.mrb[0].mxu0 %v6339
        %v6892 = vpop.f32.mrb[0].mxu0
        %v6893 = vadd.f32 %v6764, %v6892
        %v6894 = vpop.f32.mrb[0].mxu0
        %6895 = vmatprep.mubr.f32.mxu0 %v6372
        %6896 = vmatmul.mubr.f32.gmra.mrb[0].mxu0 %v6340
        %v6897 = vpop.f32.mrb[0].mxu0
        %v6898 = vadd.f32 %v6764, %v6897
        %v6899 = vpop.f32.mrb[0].mxu0
        %6900 = vmatprep.mubr.f32.mxu0 %v6373
        %6901 = vmatmul.mubr.f32.gmra.mrb[0].mxu0 %v6341
        %v6902 = vpop.f32.mrb[0].mxu0
        %v6903 = vadd.f32 %v6764, %v6902
        %v6904 = vpop.f32.mrb[0].mxu0
        %6905 = vmatprep.mubr.f32.mxu0 %v6374
        %6906 = vmatmul.mubr.f32.gmra.mrb[0].mxu0 %v6342
        %v6907 = vpop.f32.mrb[0].mxu0
        %v6908 = vadd.f32 %v6764, %v6907
        %v6909 = vpop.f32.mrb[0].mxu0
        %6910 = vmatprep.mubr.f32.mxu0 %v6375
        %6911 = vmatmul.mubr.f32.gmra.mrb[0].mxu0 %v6343
        %v6912 = vpop.f32.mrb[0].mxu0
        %v6913 = vadd.f32 %v6764, %v6912
        %v6914 = vpop.f32.mrb[0].mxu0
        %6915 = vmatprep.mubr.f32.mxu0 %v6376
        %6916 = vmatmul.mubr.f32.gmra.mrb[0].mxu0 %v6344
        %v6917 = vpop.f32.mrb[0].mxu0
        %v6918 = vadd.f32 %v6764, %v6917
        %v6919 = vpop.f32.mrb[0].mxu0
        %6920 = vmatprep.mubr.f32.mxu0 %v6377
        %6921 = vmatmul.mubr.f32.gmra.mrb[0].mxu0 %v6345
        %v6922 = vpop.f32.mrb[0].mxu0
        %v6923 = vadd.f32 %v6764, %v6922
        %v6924 = vpop.f32.mrb[0].mxu0
        %6925 = vmatprep.mubr.f32.mxu0 %v6378
        %6926 = vmatmul.mubr.f32.gmra.mrb[0].mxu0 %v6346
        %v6927 = vpop.f32.mrb[0].mxu0
        %v6928 = vadd.f32 %v6764, %v6927
        %v6929 = vpop.f32.mrb[0].mxu0
        %6930 = vmatprep.mubr.f32.mxu0 %v6379
        %6931 = vmatmul.mubr.f32.gmra.mrb[0].mxu0 %v6347
        %v6932 = vpop.f32.mrb[0].mxu0
        %v6933 = vadd.f32 %v6764, %v6932
        %v6934 = vpop.f32.mrb[0].mxu0
        %6935 = vmatprep.mubr.f32.mxu0 %v6380
        %6936 = vmatmul.mubr.f32.gmra.mrb[0].mxu0 %v6348
        %v6937 = vpop.f32.mrb[0].mxu0
        %v6938 = vadd.f32 %v6764, %v6937
        %v6939 = vpop.f32.mrb[0].mxu0
        %6940 = vmatprep.mubr.f32.mxu0 %v6381
        %6941 = vmatmul.mubr.f32.gmra.mrb[0].mxu0 %v6349
        %v6942 = vpop.f32.mrb[0].mxu0
        %v6943 = vadd.f32 %v6764, %v6942
        %v6944 = vpop.f32.mrb[0].mxu0
        %6945 = vmatprep.mubr.f32.mxu0 %v6382
        %6946 = vmatmul.mubr.f32.gmra.mrb[0].mxu0 %v6350
        %v6947 = vpop.f32.mrb[0].mxu0
        %v6948 = vadd.f32 %v6764, %v6947
        %v6949 = vpop.f32.mrb[0].mxu0
        %6950 = vmatprep.mubr.f32.mxu0 %v6383
        %6951 = vmatmul.mubr.f32.gmra.mrb[0].mxu0 %v6351
        %v6952 = vpop.f32.mrb[0].mxu0
        %v6953 = vadd.f32 %v6764, %v6952
        %v6954 = vpop.f32.mrb[0].mxu0
        %6955 = vmatprep.mubr.f32.mxu0 %v6384
        %6956 = vmatmul.mubr.f32.gmra.mrb[0].mxu0 %v6352
        %v6957 = vpop.f32.mrb[0].mxu0
        %v6958 = vadd.f32 %v6764, %v6957
        %v6959 = vpop.f32.mrb[0].mxu0
        %6960 = vmatprep.mubr.f32.mxu0 %v6385
        %6961 = vmatmul.mubr.f32.gmra.mrb[0].mxu0 %v6353
        %v6962 = vpop.f32.mrb[0].mxu0
        %v6963 = vadd.f32 %v6764, %v6962
        %v6964 = vpop.f32.mrb[0].mxu0
        %6965 = vmatprep.mubr.f32.mxu0 %v6386
        %6966 = vmatmul.mubr.f32.gmra.mrb[0].mxu0 %v6354
        %v6967 = vpop.f32.mrb[0].mxu0
        %v6968 = vadd.f32 %v6764, %v6967
        %v6969 = vpop.f32.mrb[0].mxu0
        %6970 = vmatprep.mubr.f32.mxu0 %v6387
        %6971 = vmatmul.mubr.f32.gmra.mrb[0].mxu0 %v6355
        %v6972 = vpop.f32.mrb[0].mxu0
        %v6973 = vadd.f32 %v6764, %v6972
        %v6974 = vpop.f32.mrb[0].mxu0
        %6975 = vmatprep.mubr.f32.mxu0 %v6388
        %6976 = vmatmul.mubr.f32.gmra.mrb[0].mxu0 %v6356
        %v6977 = vpop.f32.mrb[0].mxu0
        %v6978 = vadd.f32 %v6764, %v6977
        %v6979 = vpop.f32.mrb[0].mxu0
        %6980 = vmatprep.mubr.f32.mxu0 %v6389
        %6981 = vmatmul.mubr.f32.gmra.mrb[0].mxu0 %v6357
        %v6982 = vpop.f32.mrb[0].mxu0
        %v6983 = vadd.f32 %v6764, %v6982
        %v6984 = vpop.f32.mrb[0].mxu0
        %6985 = vmatprep.mubr.f32.mxu0 %v6390
        %6986 = vmatmul.mubr.f32.gmra.mrb[0].mxu0 %v6358
        %v6987 = vpop.f32.mrb[0].mxu0
        %v6988 = vadd.f32 %v6764, %v6987
        %v6989 = vpop.f32.mrb[0].mxu0
        %6990 = vdwg.mxu0
        %6991 = vmatprep.subr.mxu0 0.0
        %6992 = vmatpush1.msra.mxu0 %v6647
        %6993 = vmatprep.subr.mxu0 0.0
        %6994 = vmatpush1.msra.mxu0 %v6648
        %6995 = vmatprep.subr.mxu0 0.0
        %6996 = vmatpush1.msra.mxu0 %v6649
        %6997 = vmatprep.subr.mxu0 0.0
        %6998 = vmatpush1.msra.mxu0 %v6650
        %6999 = vmatprep.subr.mxu0 0.0
        %7000 = vmatpush1.msra.mxu0 %v6651
        %7001 = vmatprep.subr.mxu0 0.0
        %7002 = vmatpush1.msra.mxu0 %v6652
        %7003 = vmatprep.subr.mxu0 0.0
        %7004 = vmatpush1.msra.mxu0 %v6653
        %7005 = vmatprep.subr.mxu0 0.0
        %7006 = vmatpush1.msra.mxu0 %v6654
        %7007 = vmatprep.subr.mxu0 0.0
        %7008 = vmatpush1.msra.mxu0 %v6655
        %7009 = vmatprep.subr.mxu0 0.0
        %7010 = vmatpush1.msra.mxu0 %v6656
        %7011 = vmatprep.subr.mxu0 0.0
        %7012 = vmatpush1.msra.mxu0 %v6657
        %7013 = vmatprep.subr.mxu0 0.0
        %7014 = vmatpush1.msra.mxu0 %v6658
        %7015 = vmatprep.subr.mxu0 0.0
        %7016 = vmatpush1.msra.mxu0 %v6659
        %7017 = vmatprep.subr.mxu0 0.0
        %7018 = vmatpush1.msra.mxu0 %v6660
        %7019 = vmatprep.subr.mxu0 0.0
        %7020 = vmatpush1.msra.mxu0 %v6661
        %7021 = vmatprep.subr.mxu0 0.0
        %7022 = vmatpush1.msra.mxu0 %v6662
        %7023 = vmatprep.subr.mxu0 0.0
        %7024 = vmatpush1.msra.mxu0 %v6663
        %7025 = vmatprep.subr.mxu0 0.0
        %7026 = vmatpush1.msra.mxu0 %v6664
        %7027 = vmatprep.subr.mxu0 0.0
        %7028 = vmatpush1.msra.mxu0 %v6665
        %7029 = vmatprep.subr.mxu0 0.0
        %7030 = vmatpush1.msra.mxu0 %v6666
        %7031 = vmatprep.subr.mxu0 0.0
        %7032 = vmatpush1.msra.mxu0 %v6667
        %7033 = vmatprep.subr.mxu0 0.0
        %7034 = vmatpush1.msra.mxu0 %v6668
        %7035 = vmatprep.subr.mxu0 0.0
        %7036 = vmatpush1.msra.mxu0 %v6669
        %7037 = vmatprep.subr.mxu0 0.0
        %7038 = vmatpush1.msra.mxu0 %v6670
        %7039 = vmatprep.subr.mxu0 0.0
        %7040 = vmatpush1.msra.mxu0 %v6671
        %7041 = vmatprep.subr.mxu0 0.0
        %7042 = vmatpush1.msra.mxu0 %v6672
        %7043 = vmatprep.subr.mxu0 0.0
        %7044 = vmatpush1.msra.mxu0 %v6673
        %7045 = vmatprep.subr.mxu0 0.0
        %7046 = vmatpush1.msra.mxu0 %v6674
        %7047 = vmatprep.subr.mxu0 0.0
        %7048 = vmatpush1.msra.mxu0 %v6675
        %7049 = vmatprep.subr.mxu0 0.0
        %7050 = vmatpush1.msra.mxu0 %v6676
        %7051 = vmatprep.subr.mxu0 0.0
        %7052 = vmatpush1.msra.mxu0 %v6677
        %7053 = vmatprep.subr.mxu0 0.0
        %7054 = vmatpush1.msra.mxu0 %v6678
        %7055 = vmatprep.mubr.f32.mxu0 %v6423
        %7056 = vmatmul.mubr.f32.gmra.mrb[0].mxu0 %v6391
        %v7057 = vpop.f32.mrb[0].mxu0
        %v7058 = vadd.f32 %v6833, %v7057
        %v7059 = vpop.f32.mrb[0].mxu0
        %7060 = vmatprep.mubr.f32.mxu0 %v6424
        %7061 = vmatmul.mubr.f32.gmra.mrb[0].mxu0 %v6392
        %v7062 = vpop.f32.mrb[0].mxu0
        %v7063 = vadd.f32 %v6838, %v7062
        %v7064 = vpop.f32.mrb[0].mxu0
        %7065 = vmatprep.mubr.f32.mxu0 %v6425
        %7066 = vmatmul.mubr.f32.gmra.mrb[0].mxu0 %v6393
        %v7067 = vpop.f32.mrb[0].mxu0
        %v7068 = vadd.f32 %v6843, %v7067
        %v7069 = vpop.f32.mrb[0].mxu0
        %7070 = vmatprep.mubr.f32.mxu0 %v6426
        %7071 = vmatmul.mubr.f32.gmra.mrb[0].mxu0 %v6394
        %v7072 = vpop.f32.mrb[0].mxu0
        %v7073 = vadd.f32 %v6848, %v7072
        %v7074 = vpop.f32.mrb[0].mxu0
        %7075 = vmatprep.mubr.f32.mxu0 %v6427
        %7076 = vmatmul.mubr.f32.gmra.mrb[0].mxu0 %v6395
        %v7077 = vpop.f32.mrb[0].mxu0
        %v7078 = vadd.f32 %v6853, %v7077
        %v7079 = vpop.f32.mrb[0].mxu0
        %7080 = vmatprep.mubr.f32.mxu0 %v6428
        %7081 = vmatmul.mubr.f32.gmra.mrb[0].mxu0 %v6396
        %v7082 = vpop.f32.mrb[0].mxu0
        %v7083 = vadd.f32 %v6858, %v7082
        %v7084 = vpop.f32.mrb[0].mxu0
        %7085 = vmatprep.mubr.f32.mxu0 %v6429
        %7086 = vmatmul.mubr.f32.gmra.mrb[0].mxu0 %v6397
        %v7087 = vpop.f32.mrb[0].mxu0
        %v7088 = vadd.f32 %v6863, %v7087
        %v7089 = vpop.f32.mrb[0].mxu0
        %7090 = vmatprep.mubr.f32.mxu0 %v6430
        %7091 = vmatmul.mubr.f32.gmra.mrb[0].mxu0 %v6398
        %v7092 = vpop.f32.mrb[0].mxu0
        %v7093 = vadd.f32 %v6868, %v7092
        %v7094 = vpop.f32.mrb[0].mxu0
        %7095 = vmatprep.mubr.f32.mxu0 %v6431
        %7096 = vmatmul.mubr.f32.gmra.mrb[0].mxu0 %v6399
        %v7097 = vpop.f32.mrb[0].mxu0
        %v7098 = vadd.f32 %v6873, %v7097
        %v7099 = vpop.f32.mrb[0].mxu0
        %7100 = vmatprep.mubr.f32.mxu0 %v6432
        %7101 = vmatmul.mubr.f32.gmra.mrb[0].mxu0 %v6400
        %v7102 = vpop.f32.mrb[0].mxu0
        %v7103 = vadd.f32 %v6878, %v7102
        %v7104 = vpop.f32.mrb[0].mxu0
        %7105 = vmatprep.mubr.f32.mxu0 %v6433
        %7106 = vmatmul.mubr.f32.gmra.mrb[0].mxu0 %v6401
        %v7107 = vpop.f32.mrb[0].mxu0
        %v7108 = vadd.f32 %v6883, %v7107
        %v7109 = vpop.f32.mrb[0].mxu0
        %7110 = vmatprep.mubr.f32.mxu0 %v6434
        %7111 = vmatmul.mubr.f32.gmra.mrb[0].mxu0 %v6402
        %v7112 = vpop.f32.mrb[0].mxu0
        %v7113 = vadd.f32 %v6888, %v7112
        %v7114 = vpop.f32.mrb[0].mxu0
        %7115 = vmatprep.mubr.f32.mxu0 %v6435
        %7116 = vmatmul.mubr.f32.gmra.mrb[0].mxu0 %v6403
        %v7117 = vpop.f32.mrb[0].mxu0
        %v7118 = vadd.f32 %v6893, %v7117
        %v7119 = vpop.f32.mrb[0].mxu0
        %7120 = vmatprep.mubr.f32.mxu0 %v6436
        %7121 = vmatmul.mubr.f32.gmra.mrb[0].mxu0 %v6404
        %v7122 = vpop.f32.mrb[0].mxu0
        %v7123 = vadd.f32 %v6898, %v7122
        %v7124 = vpop.f32.mrb[0].mxu0
        %7125 = vmatprep.mubr.f32.mxu0 %v6437
        %7126 = vmatmul.mubr.f32.gmra.mrb[0].mxu0 %v6405
        %v7127 = vpop.f32.mrb[0].mxu0
        %v7128 = vadd.f32 %v6903, %v7127
        %v7129 = vpop.f32.mrb[0].mxu0
        %7130 = vmatprep.mubr.f32.mxu0 %v6438
        %7131 = vmatmul.mubr.f32.gmra.mrb[0].mxu0 %v6406
        %v7132 = vpop.f32.mrb[0].mxu0
        %v7133 = vadd.f32 %v6908, %v7132
        %v7134 = vpop.f32.mrb[0].mxu0
        %7135 = vmatprep.mubr.f32.mxu0 %v6439
        %7136 = vmatmul.mubr.f32.gmra.mrb[0].mxu0 %v6407
        %v7137 = vpop.f32.mrb[0].mxu0
        %v7138 = vadd.f32 %v6913, %v7137
        %v7139 = vpop.f32.mrb[0].mxu0
        %7140 = vmatprep.mubr.f32.mxu0 %v6440
        %7141 = vmatmul.mubr.f32.gmra.mrb[0].mxu0 %v6408
        %v7142 = vpop.f32.mrb[0].mxu0
        %v7143 = vadd.f32 %v6918, %v7142
        %v7144 = vpop.f32.mrb[0].mxu0
        %7145 = vmatprep.mubr.f32.mxu0 %v6441
        %7146 = vmatmul.mubr.f32.gmra.mrb[0].mxu0 %v6409
        %v7147 = vpop.f32.mrb[0].mxu0
        %v7148 = vadd.f32 %v6923, %v7147
        %v7149 = vpop.f32.mrb[0].mxu0
        %7150 = vmatprep.mubr.f32.mxu0 %v6442
        %7151 = vmatmul.mubr.f32.gmra.mrb[0].mxu0 %v6410
        %v7152 = vpop.f32.mrb[0].mxu0
        %v7153 = vadd.f32 %v6928, %v7152
        %v7154 = vpop.f32.mrb[0].mxu0
        %7155 = vmatprep.mubr.f32.mxu0 %v6443
        %7156 = vmatmul.mubr.f32.gmra.mrb[0].mxu0 %v6411
        %v7157 = vpop.f32.mrb[0].mxu0
        %v7158 = vadd.f32 %v6933, %v7157
        %v7159 = vpop.f32.mrb[0].mxu0
        %7160 = vmatprep.mubr.f32.mxu0 %v6444
        %7161 = vmatmul.mubr.f32.gmra.mrb[0].mxu0 %v6412
        %v7162 = vpop.f32.mrb[0].mxu0
        %v7163 = vadd.f32 %v6938, %v7162
        %v7164 = vpop.f32.mrb[0].mxu0
        %7165 = vmatprep.mubr.f32.mxu0 %v6445
        %7166 = vmatmul.mubr.f32.gmra.mrb[0].mxu0 %v6413
        %v7167 = vpop.f32.mrb[0].mxu0
        %v7168 = vadd.f32 %v6943, %v7167
        %v7169 = vpop.f32.mrb[0].mxu0
        %7170 = vmatprep.mubr.f32.mxu0 %v6446
        %7171 = vmatmul.mubr.f32.gmra.mrb[0].mxu0 %v6414
        %v7172 = vpop.f32.mrb[0].mxu0
        %v7173 = vadd.f32 %v6948, %v7172
        %v7174 = vpop.f32.mrb[0].mxu0
        %7175 = vmatprep.mubr.f32.mxu0 %v6447
        %7176 = vmatmul.mubr.f32.gmra.mrb[0].mxu0 %v6415
        %v7177 = vpop.f32.mrb[0].mxu0
        %v7178 = vadd.f32 %v6953, %v7177
        %v7179 = vpop.f32.mrb[0].mxu0
        %7180 = vmatprep.mubr.f32.mxu0 %v6448
        %7181 = vmatmul.mubr.f32.gmra.mrb[0].mxu0 %v6416
        %v7182 = vpop.f32.mrb[0].mxu0
        %v7183 = vadd.f32 %v6958, %v7182
        %v7184 = vpop.f32.mrb[0].mxu0
        %7185 = vmatprep.mubr.f32.mxu0 %v6449
        %7186 = vmatmul.mubr.f32.gmra.mrb[0].mxu0 %v6417
        %v7187 = vpop.f32.mrb[0].mxu0
        %v7188 = vadd.f32 %v6963, %v7187
        %v7189 = vpop.f32.mrb[0].mxu0
        %7190 = vmatprep.mubr.f32.mxu0 %v6450
        %7191 = vmatmul.mubr.f32.gmra.mrb[0].mxu0 %v6418
        %v7192 = vpop.f32.mrb[0].mxu0
        %v7193 = vadd.f32 %v6968, %v7192
        %v7194 = vpop.f32.mrb[0].mxu0
        %7195 = vmatprep.mubr.f32.mxu0 %v6451
        %7196 = vmatmul.mubr.f32.gmra.mrb[0].mxu0 %v6419
        %v7197 = vpop.f32.mrb[0].mxu0
        %v7198 = vadd.f32 %v6973, %v7197
        %v7199 = vpop.f32.mrb[0].mxu0
        %7200 = vmatprep.mubr.f32.mxu0 %v6452
        %7201 = vmatmul.mubr.f32.gmra.mrb[0].mxu0 %v6420
        %v7202 = vpop.f32.mrb[0].mxu0
        %v7203 = vadd.f32 %v6978, %v7202
        %v7204 = vpop.f32.mrb[0].mxu0
        %7205 = vmatprep.mubr.f32.mxu0 %v6453
        %7206 = vmatmul.mubr.f32.gmra.mrb[0].mxu0 %v6421
        %v7207 = vpop.f32.mrb[0].mxu0
        %v7208 = vadd.f32 %v6983, %v7207
        %v7209 = vpop.f32.mrb[0].mxu0
        %7210 = vmatprep.mubr.f32.mxu0 %v6454
        %7211 = vmatmul.mubr.f32.gmra.mrb[0].mxu0 %v6422
        %v7212 = vpop.f32.mrb[0].mxu0
        %v7213 = vadd.f32 %v6988, %v7212
        %v7214 = vpop.f32.mrb[0].mxu0
        %7215 = vdwg.mxu0
        %7216 = vmatprep.subr.mxu0 0.0
        %7217 = vmatpush1.msra.mxu0 %v6679
        %7218 = vmatprep.subr.mxu0 0.0
        %7219 = vmatpush1.msra.mxu0 %v6680
        %7220 = vmatprep.subr.mxu0 0.0
        %7221 = vmatpush1.msra.mxu0 %v6681
        %7222 = vmatprep.subr.mxu0 0.0
        %7223 = vmatpush1.msra.mxu0 %v6682
        %7224 = vmatprep.subr.mxu0 0.0
        %7225 = vmatpush1.msra.mxu0 %v6683
        %7226 = vmatprep.subr.mxu0 0.0
        %7227 = vmatpush1.msra.mxu0 %v6684
        %7228 = vmatprep.subr.mxu0 0.0
        %7229 = vmatpush1.msra.mxu0 %v6685
        %7230 = vmatprep.subr.mxu0 0.0
        %7231 = vmatpush1.msra.mxu0 %v6686
        %7232 = vmatprep.subr.mxu0 0.0
        %7233 = vmatpush1.msra.mxu0 %v6687
        %7234 = vmatprep.subr.mxu0 0.0
        %7235 = vmatpush1.msra.mxu0 %v6688
        %7236 = vmatprep.subr.mxu0 0.0
        %7237 = vmatpush1.msra.mxu0 %v6689
        %7238 = vmatprep.subr.mxu0 0.0
        %7239 = vmatpush1.msra.mxu0 %v6690
        %7240 = vmatprep.subr.mxu0 0.0
        %7241 = vmatpush1.msra.mxu0 %v6691
        %7242 = vmatprep.subr.mxu0 0.0
        %7243 = vmatpush1.msra.mxu0 %v6692
        %7244 = vmatprep.subr.mxu0 0.0
        %7245 = vmatpush1.msra.mxu0 %v6693
        %7246 = vmatprep.subr.mxu0 0.0
        %7247 = vmatpush1.msra.mxu0 %v6694
        %7248 = vmatprep.subr.mxu0 0.0
        %7249 = vmatpush1.msra.mxu0 %v6695
        %7250 = vmatprep.subr.mxu0 0.0
        %7251 = vmatpush1.msra.mxu0 %v6696
        %7252 = vmatprep.subr.mxu0 0.0
        %7253 = vmatpush1.msra.mxu0 %v6697
        %7254 = vmatprep.subr.mxu0 0.0
        %7255 = vmatpush1.msra.mxu0 %v6698
        %7256 = vmatprep.subr.mxu0 0.0
        %7257 = vmatpush1.msra.mxu0 %v6699
        %7258 = vmatprep.subr.mxu0 0.0
        %7259 = vmatpush1.msra.mxu0 %v6700
        %7260 = vmatprep.subr.mxu0 0.0
        %7261 = vmatpush1.msra.mxu0 %v6701
        %7262 = vmatprep.subr.mxu0 0.0
        %7263 = vmatpush1.msra.mxu0 %v6702
        %7264 = vmatprep.subr.mxu0 0.0
        %7265 = vmatpush1.msra.mxu0 %v6703
        %7266 = vmatprep.subr.mxu0 0.0
        %7267 = vmatpush1.msra.mxu0 %v6704
        %7268 = vmatprep.subr.mxu0 0.0
        %7269 = vmatpush1.msra.mxu0 %v6705
        %7270 = vmatprep.subr.mxu0 0.0
        %7271 = vmatpush1.msra.mxu0 %v6706
        %7272 = vmatprep.subr.mxu0 0.0
        %7273 = vmatpush1.msra.mxu0 %v6707
        %7274 = vmatprep.subr.mxu0 0.0
        %7275 = vmatpush1.msra.mxu0 %v6708
        %7276 = vmatprep.subr.mxu0 0.0
        %7277 = vmatpush1.msra.mxu0 %v6709
        %7278 = vmatprep.subr.mxu0 0.0
        %7279 = vmatpush1.msra.mxu0 %v6710
        %7280 = vmatprep.mubr.f32.mxu0 %v6487
        %7281 = vmatmul.mubr.f32.gmra.mrb[0].mxu0 %v6455
        %v7282 = vpop.f32.mrb[0].mxu0
        %v7283 = vadd.f32 %v7058, %v7282
        %v7284 = vpop.f32.mrb[0].mxu0
        %7285 = vmatprep.mubr.f32.mxu0 %v6488
        %7286 = vmatmul.mubr.f32.gmra.mrb[0].mxu0 %v6456
        %v7287 = vpop.f32.mrb[0].mxu0
        %v7288 = vadd.f32 %v7063, %v7287
        %v7289 = vpop.f32.mrb[0].mxu0
        %7290 = vmatprep.mubr.f32.mxu0 %v6489
        %7291 = vmatmul.mubr.f32.gmra.mrb[0].mxu0 %v6457
        %v7292 = vpop.f32.mrb[0].mxu0
        %v7293 = vadd.f32 %v7068, %v7292
        %v7294 = vpop.f32.mrb[0].mxu0
        %7295 = vmatprep.mubr.f32.mxu0 %v6490
        %7296 = vmatmul.mubr.f32.gmra.mrb[0].mxu0 %v6458
        %v7297 = vpop.f32.mrb[0].mxu0
        %v7298 = vadd.f32 %v7073, %v7297
        %v7299 = vpop.f32.mrb[0].mxu0
        %7300 = vmatprep.mubr.f32.mxu0 %v6491
        %7301 = vmatmul.mubr.f32.gmra.mrb[0].mxu0 %v6459
        %v7302 = vpop.f32.mrb[0].mxu0
        %v7303 = vadd.f32 %v7078, %v7302
        %v7304 = vpop.f32.mrb[0].mxu0
        %7305 = vmatprep.mubr.f32.mxu0 %v6492
        %7306 = vmatmul.mubr.f32.gmra.mrb[0].mxu0 %v6460
        %v7307 = vpop.f32.mrb[0].mxu0
        %v7308 = vadd.f32 %v7083, %v7307
        %v7309 = vpop.f32.mrb[0].mxu0
        %7310 = vmatprep.mubr.f32.mxu0 %v6493
        %7311 = vmatmul.mubr.f32.gmra.mrb[0].mxu0 %v6461
        %v7312 = vpop.f32.mrb[0].mxu0
        %v7313 = vadd.f32 %v7088, %v7312
        %v7314 = vpop.f32.mrb[0].mxu0
        %7315 = vmatprep.mubr.f32.mxu0 %v6494
        %7316 = vmatmul.mubr.f32.gmra.mrb[0].mxu0 %v6462
        %v7317 = vpop.f32.mrb[0].mxu0
        %v7318 = vadd.f32 %v7093, %v7317
        %v7319 = vpop.f32.mrb[0].mxu0
        %7320 = vmatprep.mubr.f32.mxu0 %v6495
        %7321 = vmatmul.mubr.f32.gmra.mrb[0].mxu0 %v6463
        %v7322 = vpop.f32.mrb[0].mxu0
        %v7323 = vadd.f32 %v7098, %v7322
        %v7324 = vpop.f32.mrb[0].mxu0
        %7325 = vmatprep.mubr.f32.mxu0 %v6496
        %7326 = vmatmul.mubr.f32.gmra.mrb[0].mxu0 %v6464
        %v7327 = vpop.f32.mrb[0].mxu0
        %v7328 = vadd.f32 %v7103, %v7327
        %v7329 = vpop.f32.mrb[0].mxu0
        %7330 = vmatprep.mubr.f32.mxu0 %v6497
        %7331 = vmatmul.mubr.f32.gmra.mrb[0].mxu0 %v6465
        %v7332 = vpop.f32.mrb[0].mxu0
        %v7333 = vadd.f32 %v7108, %v7332
        %v7334 = vpop.f32.mrb[0].mxu0
        %7335 = vmatprep.mubr.f32.mxu0 %v6498
        %7336 = vmatmul.mubr.f32.gmra.mrb[0].mxu0 %v6466
        %v7337 = vpop.f32.mrb[0].mxu0
        %v7338 = vadd.f32 %v7113, %v7337
        %v7339 = vpop.f32.mrb[0].mxu0
        %7340 = vmatprep.mubr.f32.mxu0 %v6499
        %7341 = vmatmul.mubr.f32.gmra.mrb[0].mxu0 %v6467
        %v7342 = vpop.f32.mrb[0].mxu0
        %v7343 = vadd.f32 %v7118, %v7342
        %v7344 = vpop.f32.mrb[0].mxu0
        %7345 = vmatprep.mubr.f32.mxu0 %v6500
        %7346 = vmatmul.mubr.f32.gmra.mrb[0].mxu0 %v6468
        %v7347 = vpop.f32.mrb[0].mxu0
        %v7348 = vadd.f32 %v7123, %v7347
        %v7349 = vpop.f32.mrb[0].mxu0
        %7350 = vmatprep.mubr.f32.mxu0 %v6501
        %7351 = vmatmul.mubr.f32.gmra.mrb[0].mxu0 %v6469
        %v7352 = vpop.f32.mrb[0].mxu0
        %v7353 = vadd.f32 %v7128, %v7352
        %v7354 = vpop.f32.mrb[0].mxu0
        %7355 = vmatprep.mubr.f32.mxu0 %v6502
        %7356 = vmatmul.mubr.f32.gmra.mrb[0].mxu0 %v6470
        %v7357 = vpop.f32.mrb[0].mxu0
        %v7358 = vadd.f32 %v7133, %v7357
        %v7359 = vpop.f32.mrb[0].mxu0
        %7360 = vmatprep.mubr.f32.mxu0 %v6503
        %7361 = vmatmul.mubr.f32.gmra.mrb[0].mxu0 %v6471
        %v7362 = vpop.f32.mrb[0].mxu0
        %v7363 = vadd.f32 %v7138, %v7362
        %v7364 = vpop.f32.mrb[0].mxu0
        %7365 = vmatprep.mubr.f32.mxu0 %v6504
        %7366 = vmatmul.mubr.f32.gmra.mrb[0].mxu0 %v6472
        %v7367 = vpop.f32.mrb[0].mxu0
        %v7368 = vadd.f32 %v7143, %v7367
        %v7369 = vpop.f32.mrb[0].mxu0
        %7370 = vmatprep.mubr.f32.mxu0 %v6505
        %7371 = vmatmul.mubr.f32.gmra.mrb[0].mxu0 %v6473
        %v7372 = vpop.f32.mrb[0].mxu0
        %v7373 = vadd.f32 %v7148, %v7372
        %v7374 = vpop.f32.mrb[0].mxu0
        %7375 = vmatprep.mubr.f32.mxu0 %v6506
        %7376 = vmatmul.mubr.f32.gmra.mrb[0].mxu0 %v6474
        %v7377 = vpop.f32.mrb[0].mxu0
        %v7378 = vadd.f32 %v7153, %v7377
        %v7379 = vpop.f32.mrb[0].mxu0
        %7380 = vmatprep.mubr.f32.mxu0 %v6507
        %7381 = vmatmul.mubr.f32.gmra.mrb[0].mxu0 %v6475
        %v7382 = vpop.f32.mrb[0].mxu0
        %v7383 = vadd.f32 %v7158, %v7382
        %v7384 = vpop.f32.mrb[0].mxu0
        %7385 = vmatprep.mubr.f32.mxu0 %v6508
        %7386 = vmatmul.mubr.f32.gmra.mrb[0].mxu0 %v6476
        %v7387 = vpop.f32.mrb[0].mxu0
        %v7388 = vadd.f32 %v7163, %v7387
        %v7389 = vpop.f32.mrb[0].mxu0
        %7390 = vmatprep.mubr.f32.mxu0 %v6509
        %7391 = vmatmul.mubr.f32.gmra.mrb[0].mxu0 %v6477
        %v7392 = vpop.f32.mrb[0].mxu0
        %v7393 = vadd.f32 %v7168, %v7392
        %v7394 = vpop.f32.mrb[0].mxu0
        %7395 = vmatprep.mubr.f32.mxu0 %v6510
        %7396 = vmatmul.mubr.f32.gmra.mrb[0].mxu0 %v6478
        %v7397 = vpop.f32.mrb[0].mxu0
        %v7398 = vadd.f32 %v7173, %v7397
        %v7399 = vpop.f32.mrb[0].mxu0
        %7400 = vmatprep.mubr.f32.mxu0 %v6511
        %7401 = vmatmul.mubr.f32.gmra.mrb[0].mxu0 %v6479
        %v7402 = vpop.f32.mrb[0].mxu0
        %v7403 = vadd.f32 %v7178, %v7402
        %v7404 = vpop.f32.mrb[0].mxu0
        %7405 = vmatprep.mubr.f32.mxu0 %v6512
        %7406 = vmatmul.mubr.f32.gmra.mrb[0].mxu0 %v6480
        %v7407 = vpop.f32.mrb[0].mxu0
        %v7408 = vadd.f32 %v7183, %v7407
        %v7409 = vpop.f32.mrb[0].mxu0
        %7410 = vmatprep.mubr.f32.mxu0 %v6513
        %7411 = vmatmul.mubr.f32.gmra.mrb[0].mxu0 %v6481
        %v7412 = vpop.f32.mrb[0].mxu0
        %v7413 = vadd.f32 %v7188, %v7412
        %v7414 = vpop.f32.mrb[0].mxu0
        %7415 = vmatprep.mubr.f32.mxu0 %v6514
        %7416 = vmatmul.mubr.f32.gmra.mrb[0].mxu0 %v6482
        %v7417 = vpop.f32.mrb[0].mxu0
        %v7418 = vadd.f32 %v7193, %v7417
        %v7419 = vpop.f32.mrb[0].mxu0
        %7420 = vmatprep.mubr.f32.mxu0 %v6515
        %7421 = vmatmul.mubr.f32.gmra.mrb[0].mxu0 %v6483
        %v7422 = vpop.f32.mrb[0].mxu0
        %v7423 = vadd.f32 %v7198, %v7422
        %v7424 = vpop.f32.mrb[0].mxu0
        %7425 = vmatprep.mubr.f32.mxu0 %v6516
        %7426 = vmatmul.mubr.f32.gmra.mrb[0].mxu0 %v6484
        %v7427 = vpop.f32.mrb[0].mxu0
        %v7428 = vadd.f32 %v7203, %v7427
        %v7429 = vpop.f32.mrb[0].mxu0
        %7430 = vmatprep.mubr.f32.mxu0 %v6517
        %7431 = vmatmul.mubr.f32.gmra.mrb[0].mxu0 %v6485
        %v7432 = vpop.f32.mrb[0].mxu0
        %v7433 = vadd.f32 %v7208, %v7432
        %v7434 = vpop.f32.mrb[0].mxu0
        %7435 = vmatprep.mubr.f32.mxu0 %v6518
        %7436 = vmatmul.mubr.f32.gmra.mrb[0].mxu0 %v6486
        %v7437 = vpop.f32.mrb[0].mxu0
        %v7438 = vadd.f32 %v7213, %v7437
        %v7439 = vpop.f32.mrb[0].mxu0
        %7440 = vdwg.mxu0
        %7441 = vmatprep.subr.mxu0 0.0
        %7442 = vmatpush1.msra.mxu0 %v6711
        %7443 = vmatprep.subr.mxu0 0.0
        %7444 = vmatpush1.msra.mxu0 %v6712
        %7445 = vmatprep.subr.mxu0 0.0
        %7446 = vmatpush1.msra.mxu0 %v6713
        %7447 = vmatprep.subr.mxu0 0.0
        %7448 = vmatpush1.msra.mxu0 %v6714
        %7449 = vmatprep.subr.mxu0 0.0
        %7450 = vmatpush1.msra.mxu0 %v6715
        %7451 = vmatprep.subr.mxu0 0.0
        %7452 = vmatpush1.msra.mxu0 %v6716
        %7453 = vmatprep.subr.mxu0 0.0
        %7454 = vmatpush1.msra.mxu0 %v6717
        %7455 = vmatprep.subr.mxu0 0.0
        %7456 = vmatpush1.msra.mxu0 %v6718
        %7457 = vmatprep.subr.mxu0 0.0
        %7458 = vmatpush1.msra.mxu0 %v6719
        %7459 = vmatprep.subr.mxu0 0.0
        %7460 = vmatpush1.msra.mxu0 %v6720
        %7461 = vmatprep.subr.mxu0 0.0
        %7462 = vmatpush1.msra.mxu0 %v6721
        %7463 = vmatprep.subr.mxu0 0.0
        %7464 = vmatpush1.msra.mxu0 %v6722
        %7465 = vmatprep.subr.mxu0 0.0
        %7466 = vmatpush1.msra.mxu0 %v6723
        %7467 = vmatprep.subr.mxu0 0.0
        %7468 = vmatpush1.msra.mxu0 %v6724
        %7469 = vmatprep.subr.mxu0 0.0
        %7470 = vmatpush1.msra.mxu0 %v6725
        %7471 = vmatprep.subr.mxu0 0.0
        %7472 = vmatpush1.msra.mxu0 %v6726
        %7473 = vmatprep.subr.mxu0 0.0
        %7474 = vmatpush1.msra.mxu0 %v6727
        %7475 = vmatprep.subr.mxu0 0.0
        %7476 = vmatpush1.msra.mxu0 %v6728
        %7477 = vmatprep.subr.mxu0 0.0
        %7478 = vmatpush1.msra.mxu0 %v6729
        %7479 = vmatprep.subr.mxu0 0.0
        %7480 = vmatpush1.msra.mxu0 %v6730
        %7481 = vmatprep.subr.mxu0 0.0
        %7482 = vmatpush1.msra.mxu0 %v6731
        %7483 = vmatprep.subr.mxu0 0.0
        %7484 = vmatpush1.msra.mxu0 %v6732
        %7485 = vmatprep.subr.mxu0 0.0
        %7486 = vmatpush1.msra.mxu0 %v6733
        %7487 = vmatprep.subr.mxu0 0.0
        %7488 = vmatpush1.msra.mxu0 %v6734
        %7489 = vmatprep.subr.mxu0 0.0
        %7490 = vmatpush1.msra.mxu0 %v6735
        %7491 = vmatprep.subr.mxu0 0.0
        %7492 = vmatpush1.msra.mxu0 %v6736
        %7493 = vmatprep.subr.mxu0 0.0
        %7494 = vmatpush1.msra.mxu0 %v6737
        %7495 = vmatprep.subr.mxu0 0.0
        %7496 = vmatpush1.msra.mxu0 %v6738
        %7497 = vmatprep.subr.mxu0 0.0
        %7498 = vmatpush1.msra.mxu0 %v6739
        %7499 = vmatprep.subr.mxu0 0.0
        %7500 = vmatpush1.msra.mxu0 %v6740
        %7501 = vmatprep.subr.mxu0 0.0
        %7502 = vmatpush1.msra.mxu0 %v6741
        %7503 = vmatprep.subr.mxu0 0.0
        %7504 = vmatpush1.msra.mxu0 %v6742
        %7505 = vmatprep.mubr.f32.mxu0 %v6551
        %7506 = vmatmul.mubr.f32.gmra.mrb[0].mxu0 %v6519
        %v7507 = vpop.f32.mrb[0].mxu0
        %v7508 = vadd.f32 %v7283, %v7507
        %v7509 = vpop.f32.mrb[0].mxu0
        %7510 = vmatprep.mubr.f32.mxu0 %v6552
        %7511 = vmatmul.mubr.f32.gmra.mrb[0].mxu0 %v6520
        %v7512 = vpop.f32.mrb[0].mxu0
        %v7513 = vadd.f32 %v7288, %v7512
        %v7514 = vpop.f32.mrb[0].mxu0
        %7515 = vmatprep.mubr.f32.mxu0 %v6553
        %7516 = vmatmul.mubr.f32.gmra.mrb[0].mxu0 %v6521
        %v7517 = vpop.f32.mrb[0].mxu0
        %v7518 = vadd.f32 %v7293, %v7517
        %v7519 = vpop.f32.mrb[0].mxu0
        %7520 = vmatprep.mubr.f32.mxu0 %v6554
        %7521 = vmatmul.mubr.f32.gmra.mrb[0].mxu0 %v6522
        %v7522 = vpop.f32.mrb[0].mxu0
        %v7523 = vadd.f32 %v7298, %v7522
        %v7524 = vpop.f32.mrb[0].mxu0
        %7525 = vmatprep.mubr.f32.mxu0 %v6555
        %7526 = vmatmul.mubr.f32.gmra.mrb[0].mxu0 %v6523
        %v7527 = vpop.f32.mrb[0].mxu0
        %v7528 = vadd.f32 %v7303, %v7527
        %v7529 = vpop.f32.mrb[0].mxu0
        %7530 = vmatprep.mubr.f32.mxu0 %v6556
        %7531 = vmatmul.mubr.f32.gmra.mrb[0].mxu0 %v6524
        %v7532 = vpop.f32.mrb[0].mxu0
        %v7533 = vadd.f32 %v7308, %v7532
        %v7534 = vpop.f32.mrb[0].mxu0
        %7535 = vmatprep.mubr.f32.mxu0 %v6557
        %7536 = vmatmul.mubr.f32.gmra.mrb[0].mxu0 %v6525
        %v7537 = vpop.f32.mrb[0].mxu0
        %v7538 = vadd.f32 %v7313, %v7537
        %v7539 = vpop.f32.mrb[0].mxu0
        %7540 = vmatprep.mubr.f32.mxu0 %v6558
        %7541 = vmatmul.mubr.f32.gmra.mrb[0].mxu0 %v6526
        %v7542 = vpop.f32.mrb[0].mxu0
        %v7543 = vadd.f32 %v7318, %v7542
        %v7544 = vpop.f32.mrb[0].mxu0
        %7545 = vmatprep.mubr.f32.mxu0 %v6559
        %7546 = vmatmul.mubr.f32.gmra.mrb[0].mxu0 %v6527
        %v7547 = vpop.f32.mrb[0].mxu0
        %v7548 = vadd.f32 %v7323, %v7547
        %v7549 = vpop.f32.mrb[0].mxu0
        %7550 = vmatprep.mubr.f32.mxu0 %v6560
        %7551 = vmatmul.mubr.f32.gmra.mrb[0].mxu0 %v6528
        %v7552 = vpop.f32.mrb[0].mxu0
        %v7553 = vadd.f32 %v7328, %v7552
        %v7554 = vpop.f32.mrb[0].mxu0
        %7555 = vmatprep.mubr.f32.mxu0 %v6561
        %7556 = vmatmul.mubr.f32.gmra.mrb[0].mxu0 %v6529
        %v7557 = vpop.f32.mrb[0].mxu0
        %v7558 = vadd.f32 %v7333, %v7557
        %v7559 = vpop.f32.mrb[0].mxu0
        %7560 = vmatprep.mubr.f32.mxu0 %v6562
        %7561 = vmatmul.mubr.f32.gmra.mrb[0].mxu0 %v6530
        %v7562 = vpop.f32.mrb[0].mxu0
        %v7563 = vadd.f32 %v7338, %v7562
        %v7564 = vpop.f32.mrb[0].mxu0
        %7565 = vmatprep.mubr.f32.mxu0 %v6563
        %7566 = vmatmul.mubr.f32.gmra.mrb[0].mxu0 %v6531
        %v7567 = vpop.f32.mrb[0].mxu0
        %v7568 = vadd.f32 %v7343, %v7567
        %v7569 = vpop.f32.mrb[0].mxu0
        %7570 = vmatprep.mubr.f32.mxu0 %v6564
        %7571 = vmatmul.mubr.f32.gmra.mrb[0].mxu0 %v6532
        %v7572 = vpop.f32.mrb[0].mxu0
        %v7573 = vadd.f32 %v7348, %v7572
        %v7574 = vpop.f32.mrb[0].mxu0
        %7575 = vmatprep.mubr.f32.mxu0 %v6565
        %7576 = vmatmul.mubr.f32.gmra.mrb[0].mxu0 %v6533
        %v7577 = vpop.f32.mrb[0].mxu0
        %v7578 = vadd.f32 %v7353, %v7577
        %v7579 = vpop.f32.mrb[0].mxu0
        %7580 = vmatprep.mubr.f32.mxu0 %v6566
        %7581 = vmatmul.mubr.f32.gmra.mrb[0].mxu0 %v6534
        %v7582 = vpop.f32.mrb[0].mxu0
        %v7583 = vadd.f32 %v7358, %v7582
        %v7584 = vpop.f32.mrb[0].mxu0
        %7585 = vmatprep.mubr.f32.mxu0 %v6567
        %7586 = vmatmul.mubr.f32.gmra.mrb[0].mxu0 %v6535
        %v7587 = vpop.f32.mrb[0].mxu0
        %v7588 = vadd.f32 %v7363, %v7587
        %v7589 = vpop.f32.mrb[0].mxu0
        %7590 = vmatprep.mubr.f32.mxu0 %v6568
        %7591 = vmatmul.mubr.f32.gmra.mrb[0].mxu0 %v6536
        %v7592 = vpop.f32.mrb[0].mxu0
        %v7593 = vadd.f32 %v7368, %v7592
        %v7594 = vpop.f32.mrb[0].mxu0
        %7595 = vmatprep.mubr.f32.mxu0 %v6569
        %7596 = vmatmul.mubr.f32.gmra.mrb[0].mxu0 %v6537
        %v7597 = vpop.f32.mrb[0].mxu0
        %v7598 = vadd.f32 %v7373, %v7597
        %v7599 = vpop.f32.mrb[0].mxu0
        %7600 = vmatprep.mubr.f32.mxu0 %v6570
        %7601 = vmatmul.mubr.f32.gmra.mrb[0].mxu0 %v6538
        %v7602 = vpop.f32.mrb[0].mxu0
        %v7603 = vadd.f32 %v7378, %v7602
        %v7604 = vpop.f32.mrb[0].mxu0
        %7605 = vmatprep.mubr.f32.mxu0 %v6571
        %7606 = vmatmul.mubr.f32.gmra.mrb[0].mxu0 %v6539
        %v7607 = vpop.f32.mrb[0].mxu0
        %v7608 = vadd.f32 %v7383, %v7607
        %v7609 = vpop.f32.mrb[0].mxu0
        %7610 = vmatprep.mubr.f32.mxu0 %v6572
        %7611 = vmatmul.mubr.f32.gmra.mrb[0].mxu0 %v6540
        %v7612 = vpop.f32.mrb[0].mxu0
        %v7613 = vadd.f32 %v7388, %v7612
        %v7614 = vpop.f32.mrb[0].mxu0
        %7615 = vmatprep.mubr.f32.mxu0 %v6573
        %7616 = vmatmul.mubr.f32.gmra.mrb[0].mxu0 %v6541
        %v7617 = vpop.f32.mrb[0].mxu0
        %v7618 = vadd.f32 %v7393, %v7617
        %v7619 = vpop.f32.mrb[0].mxu0
        %7620 = vmatprep.mubr.f32.mxu0 %v6574
        %7621 = vmatmul.mubr.f32.gmra.mrb[0].mxu0 %v6542
        %v7622 = vpop.f32.mrb[0].mxu0
        %v7623 = vadd.f32 %v7398, %v7622
        %v7624 = vpop.f32.mrb[0].mxu0
        %7625 = vmatprep.mubr.f32.mxu0 %v6575
        %7626 = vmatmul.mubr.f32.gmra.mrb[0].mxu0 %v6543
        %v7627 = vpop.f32.mrb[0].mxu0
        %v7628 = vadd.f32 %v7403, %v7627
        %v7629 = vpop.f32.mrb[0].mxu0
        %7630 = vmatprep.mubr.f32.mxu0 %v6576
        %7631 = vmatmul.mubr.f32.gmra.mrb[0].mxu0 %v6544
        %v7632 = vpop.f32.mrb[0].mxu0
        %v7633 = vadd.f32 %v7408, %v7632
        %v7634 = vpop.f32.mrb[0].mxu0
        %7635 = vmatprep.mubr.f32.mxu0 %v6577
        %7636 = vmatmul.mubr.f32.gmra.mrb[0].mxu0 %v6545
        %v7637 = vpop.f32.mrb[0].mxu0
        %v7638 = vadd.f32 %v7413, %v7637
        %v7639 = vpop.f32.mrb[0].mxu0
        %7640 = vmatprep.mubr.f32.mxu0 %v6578
        %7641 = vmatmul.mubr.f32.gmra.mrb[0].mxu0 %v6546
        %v7642 = vpop.f32.mrb[0].mxu0
        %v7643 = vadd.f32 %v7418, %v7642
        %v7644 = vpop.f32.mrb[0].mxu0
        %7645 = vmatprep.mubr.f32.mxu0 %v6579
        %7646 = vmatmul.mubr.f32.gmra.mrb[0].mxu0 %v6547
        %v7647 = vpop.f32.mrb[0].mxu0
        %v7648 = vadd.f32 %v7423, %v7647
        %v7649 = vpop.f32.mrb[0].mxu0
        %7650 = vmatprep.mubr.f32.mxu0 %v6580
        %7651 = vmatmul.mubr.f32.gmra.mrb[0].mxu0 %v6548
        %v7652 = vpop.f32.mrb[0].mxu0
        %v7653 = vadd.f32 %v7428, %v7652
        %v7654 = vpop.f32.mrb[0].mxu0
        %7655 = vmatprep.mubr.f32.mxu0 %v6581
        %7656 = vmatmul.mubr.f32.gmra.mrb[0].mxu0 %v6549
        %v7657 = vpop.f32.mrb[0].mxu0
        %v7658 = vadd.f32 %v7433, %v7657
        %v7659 = vpop.f32.mrb[0].mxu0
        %7660 = vmatprep.mubr.f32.mxu0 %v6582
        %7661 = vmatmul.mubr.f32.gmra.mrb[0].mxu0 %v6550
        %v7662 = vpop.f32.mrb[0].mxu0
        %v7663 = vadd.f32 %v7438, %v7662
        %v7664 = vpop.f32.mrb[0].mxu0
        %7665 = vdwg.mxu0
        %7666 = vmatprep.subr.mxu0 0.0
        %7667 = vmatpush1.msra.mxu0 %v6743
        %7668 = vmatprep.subr.mxu0 0.0
        %7669 = vmatpush1.msra.mxu0 %v6744
        %7670 = vmatprep.subr.mxu0 0.0
        %7671 = vmatpush1.msra.mxu0 %v6745
        %7672 = vmatprep.subr.mxu0 0.0
        %7673 = vmatpush1.msra.mxu0 %v6746
        %7674 = vmatprep.subr.mxu0 0.0
        %7675 = vmatpush1.msra.mxu0 %v6747
        %7676 = vmatprep.subr.mxu0 0.0
        %7677 = vmatpush1.msra.mxu0 %v6748
        %7678 = vmatprep.subr.mxu0 0.0
        %7679 = vmatpush1.msra.mxu0 %v6749
        %7680 = vmatprep.subr.mxu0 0.0
        %7681 = vmatpush1.msra.mxu0 %v6750
        %7682 = vmatprep.subr.mxu0 0.0
        %7683 = vmatpush1.msra.mxu0 %v6751
        %7684 = vmatprep.subr.mxu0 0.0
        %7685 = vmatpush1.msra.mxu0 %v6752
        %7686 = vmatprep.subr.mxu0 0.0
        %7687 = vmatpush1.msra.mxu0 %v6753
        %7688 = vmatprep.subr.mxu0 0.0
        %7689 = vmatpush1.msra.mxu0 %v6754
        %7690 = vmatprep.subr.mxu0 0.0
        %7691 = vmatpush1.msra.mxu0 %v6755
        %7692 = vmatprep.subr.mxu0 0.0
        %7693 = vmatpush1.msra.mxu0 %v6756
        %7694 = vmatprep.subr.mxu0 0.0
        %7695 = vmatpush1.msra.mxu0 %v6757
        %7696 = vmatprep.subr.mxu0 0.0
        %7697 = vmatpush1.msra.mxu0 %v6758
        %7698 = vmatprep.subr.mxu0 0.0
        %7699 = vmatpush1.msra.mxu0 0.0
        %7700 = vmatprep.subr.mxu0 0.0
        %7701 = vmatpush1.msra.mxu0 0.0
        %7702 = vmatprep.subr.mxu0 0.0
        %7703 = vmatpush1.msra.mxu0 0.0
        %7704 = vmatprep.subr.mxu0 0.0
        %7705 = vmatpush1.msra.mxu0 0.0
        %7706 = vmatprep.subr.mxu0 0.0
        %7707 = vmatpush1.msra.mxu0 0.0
        %7708 = vmatprep.subr.mxu0 0.0
        %7709 = vmatpush1.msra.mxu0 0.0
        %7710 = vmatprep.subr.mxu0 0.0
        %7711 = vmatpush1.msra.mxu0 0.0
        %7712 = vmatprep.subr.mxu0 0.0
        %7713 = vmatpush1.msra.mxu0 0.0
        %7714 = vmatprep.subr.mxu0 0.0
        %7715 = vmatpush1.msra.mxu0 0.0
        %7716 = vmatprep.subr.mxu0 0.0
        %7717 = vmatpush1.msra.mxu0 0.0
        %7718 = vmatprep.subr.mxu0 0.0
        %7719 = vmatpush1.msra.mxu0 0.0
        %7720 = vmatprep.subr.mxu0 0.0
        %7721 = vmatpush1.msra.mxu0 0.0
        %7722 = vmatprep.subr.mxu0 0.0
        %7723 = vmatpush1.msra.mxu0 0.0
        %7724 = vmatprep.subr.mxu0 0.0
        %7725 = vmatpush1.msra.mxu0 0.0
        %7726 = vmatprep.subr.mxu0 0.0
        %7727 = vmatpush1.msra.mxu0 0.0
        %7728 = vmatprep.subr.mxu0 0.0
        %7729 = vmatpush1.msra.mxu0 0.0
        %7730 = vmatprep.mubr.f32.mxu0 0.0
        %7731 = vmatmul.mubr.f32.gmra.mrb[0].mxu0 %v6583
        %v7732 = vpop.f32.mrb[0].mxu0
        %v7733 = vadd.f32 %v7508, %v7732
        %v7734 = vpop.f32.mrb[0].mxu0
        %7735 = vmatprep.mubr.f32.mxu0 0.0
        %7736 = vmatmul.mubr.f32.gmra.mrb[0].mxu0 %v6584
        %v7737 = vpop.f32.mrb[0].mxu0
        %v7738 = vadd.f32 %v7513, %v7737
        %v7739 = vpop.f32.mrb[0].mxu0
        %7740 = vmatprep.mubr.f32.mxu0 0.0
        %7741 = vmatmul.mubr.f32.gmra.mrb[0].mxu0 %v6585
        %v7742 = vpop.f32.mrb[0].mxu0
        %v7743 = vadd.f32 %v7518, %v7742
        %v7744 = vpop.f32.mrb[0].mxu0
        %7745 = vmatprep.mubr.f32.mxu0 0.0
        %7746 = vmatmul.mubr.f32.gmra.mrb[0].mxu0 %v6586
        %v7747 = vpop.f32.mrb[0].mxu0
        %v7748 = vadd.f32 %v7523, %v7747
        %v7749 = vpop.f32.mrb[0].mxu0
        %7750 = vmatprep.mubr.f32.mxu0 0.0
        %7751 = vmatmul.mubr.f32.gmra.mrb[0].mxu0 %v6587
        %v7752 = vpop.f32.mrb[0].mxu0
        %v7753 = vadd.f32 %v7528, %v7752
        %v7754 = vpop.f32.mrb[0].mxu0
        %7755 = vmatprep.mubr.f32.mxu0 0.0
        %7756 = vmatmul.mubr.f32.gmra.mrb[0].mxu0 %v6588
        %v7757 = vpop.f32.mrb[0].mxu0
        %v7758 = vadd.f32 %v7533, %v7757
        %v7759 = vpop.f32.mrb[0].mxu0
        %7760 = vmatprep.mubr.f32.mxu0 0.0
        %7761 = vmatmul.mubr.f32.gmra.mrb[0].mxu0 %v6589
        %v7762 = vpop.f32.mrb[0].mxu0
        %v7763 = vadd.f32 %v7538, %v7762
        %v7764 = vpop.f32.mrb[0].mxu0
        %7765 = vmatprep.mubr.f32.mxu0 0.0
        %7766 = vmatmul.mubr.f32.gmra.mrb[0].mxu0 %v6590
        %v7767 = vpop.f32.mrb[0].mxu0
        %v7768 = vadd.f32 %v7543, %v7767
        %v7769 = vpop.f32.mrb[0].mxu0
        %7770 = vmatprep.mubr.f32.mxu0 0.0
        %7771 = vmatmul.mubr.f32.gmra.mrb[0].mxu0 %v6591
        %v7772 = vpop.f32.mrb[0].mxu0
        %v7773 = vadd.f32 %v7548, %v7772
        %v7774 = vpop.f32.mrb[0].mxu0
        %7775 = vmatprep.mubr.f32.mxu0 0.0
        %7776 = vmatmul.mubr.f32.gmra.mrb[0].mxu0 %v6592
        %v7777 = vpop.f32.mrb[0].mxu0
        %v7778 = vadd.f32 %v7553, %v7777
        %v7779 = vpop.f32.mrb[0].mxu0
        %7780 = vmatprep.mubr.f32.mxu0 0.0
        %7781 = vmatmul.mubr.f32.gmra.mrb[0].mxu0 %v6593
        %v7782 = vpop.f32.mrb[0].mxu0
        %v7783 = vadd.f32 %v7558, %v7782
        %v7784 = vpop.f32.mrb[0].mxu0
        %7785 = vmatprep.mubr.f32.mxu0 0.0
        %7786 = vmatmul.mubr.f32.gmra.mrb[0].mxu0 %v6594
        %v7787 = vpop.f32.mrb[0].mxu0
        %v7788 = vadd.f32 %v7563, %v7787
        %v7789 = vpop.f32.mrb[0].mxu0
        %7790 = vmatprep.mubr.f32.mxu0 0.0
        %7791 = vmatmul.mubr.f32.gmra.mrb[0].mxu0 %v6595
        %v7792 = vpop.f32.mrb[0].mxu0
        %v7793 = vadd.f32 %v7568, %v7792
        %v7794 = vpop.f32.mrb[0].mxu0
        %7795 = vmatprep.mubr.f32.mxu0 0.0
        %7796 = vmatmul.mubr.f32.gmra.mrb[0].mxu0 %v6596
        %v7797 = vpop.f32.mrb[0].mxu0
        %v7798 = vadd.f32 %v7573, %v7797
        %v7799 = vpop.f32.mrb[0].mxu0
        %7800 = vmatprep.mubr.f32.mxu0 0.0
        %7801 = vmatmul.mubr.f32.gmra.mrb[0].mxu0 %v6597
        %v7802 = vpop.f32.mrb[0].mxu0
        %v7803 = vadd.f32 %v7578, %v7802
        %v7804 = vpop.f32.mrb[0].mxu0
        %7805 = vmatprep.mubr.f32.mxu0 0.0
        %7806 = vmatmul.mubr.f32.gmra.mrb[0].mxu0 %v6598
        %v7807 = vpop.f32.mrb[0].mxu0
        %v7808 = vadd.f32 %v7583, %v7807
        %v7809 = vpop.f32.mrb[0].mxu0
        %7810 = vmatprep.mubr.f32.mxu0 0.0
        %7811 = vmatmul.mubr.f32.gmra.mrb[0].mxu0 %v6599
        %v7812 = vpop.f32.mrb[0].mxu0
        %v7813 = vadd.f32 %v7588, %v7812
        %v7814 = vpop.f32.mrb[0].mxu0
        %7815 = vmatprep.mubr.f32.mxu0 0.0
        %7816 = vmatmul.mubr.f32.gmra.mrb[0].mxu0 %v6600
        %v7817 = vpop.f32.mrb[0].mxu0
        %v7818 = vadd.f32 %v7593, %v7817
        %v7819 = vpop.f32.mrb[0].mxu0
        %7820 = vmatprep.mubr.f32.mxu0 0.0
        %7821 = vmatmul.mubr.f32.gmra.mrb[0].mxu0 %v6601
        %v7822 = vpop.f32.mrb[0].mxu0
        %v7823 = vadd.f32 %v7598, %v7822
        %v7824 = vpop.f32.mrb[0].mxu0
        %7825 = vmatprep.mubr.f32.mxu0 0.0
        %7826 = vmatmul.mubr.f32.gmra.mrb[0].mxu0 %v6602
        %v7827 = vpop.f32.mrb[0].mxu0
        %v7828 = vadd.f32 %v7603, %v7827
        %v7829 = vpop.f32.mrb[0].mxu0
        %7830 = vmatprep.mubr.f32.mxu0 0.0
        %7831 = vmatmul.mubr.f32.gmra.mrb[0].mxu0 %v6603
        %v7832 = vpop.f32.mrb[0].mxu0
        %v7833 = vadd.f32 %v7608, %v7832
        %v7834 = vpop.f32.mrb[0].mxu0
        %7835 = vmatprep.mubr.f32.mxu0 0.0
        %7836 = vmatmul.mubr.f32.gmra.mrb[0].mxu0 %v6604
        %v7837 = vpop.f32.mrb[0].mxu0
        %v7838 = vadd.f32 %v7613, %v7837
        %v7839 = vpop.f32.mrb[0].mxu0
        %7840 = vmatprep.mubr.f32.mxu0 0.0
        %7841 = vmatmul.mubr.f32.gmra.mrb[0].mxu0 %v6605
        %v7842 = vpop.f32.mrb[0].mxu0
        %v7843 = vadd.f32 %v7618, %v7842
        %v7844 = vpop.f32.mrb[0].mxu0
        %7845 = vmatprep.mubr.f32.mxu0 0.0
        %7846 = vmatmul.mubr.f32.gmra.mrb[0].mxu0 %v6606
        %v7847 = vpop.f32.mrb[0].mxu0
        %v7848 = vadd.f32 %v7623, %v7847
        %v7849 = vpop.f32.mrb[0].mxu0
        %7850 = vmatprep.mubr.f32.mxu0 0.0
        %7851 = vmatmul.mubr.f32.gmra.mrb[0].mxu0 %v6607
        %v7852 = vpop.f32.mrb[0].mxu0
        %v7853 = vadd.f32 %v7628, %v7852
        %v7854 = vpop.f32.mrb[0].mxu0
        %7855 = vmatprep.mubr.f32.mxu0 0.0
        %7856 = vmatmul.mubr.f32.gmra.mrb[0].mxu0 %v6608
        %v7857 = vpop.f32.mrb[0].mxu0
        %v7858 = vadd.f32 %v7633, %v7857
        %v7859 = vpop.f32.mrb[0].mxu0
        %7860 = vmatprep.mubr.f32.mxu0 0.0
        %7861 = vmatmul.mubr.f32.gmra.mrb[0].mxu0 %v6609
        %v7862 = vpop.f32.mrb[0].mxu0
        %v7863 = vadd.f32 %v7638, %v7862
        %v7864 = vpop.f32.mrb[0].mxu0
        %7865 = vmatprep.mubr.f32.mxu0 0.0
        %7866 = vmatmul.mubr.f32.gmra.mrb[0].mxu0 %v6610
        %v7867 = vpop.f32.mrb[0].mxu0
        %v7868 = vadd.f32 %v7643, %v7867
        %v7869 = vpop.f32.mrb[0].mxu0
        %7870 = vmatprep.mubr.f32.mxu0 0.0
        %7871 = vmatmul.mubr.f32.gmra.mrb[0].mxu0 %v6611
        %v7872 = vpop.f32.mrb[0].mxu0
        %v7873 = vadd.f32 %v7648, %v7872
        %v7874 = vpop.f32.mrb[0].mxu0
        %7875 = vmatprep.mubr.f32.mxu0 0.0
        %7876 = vmatmul.mubr.f32.gmra.mrb[0].mxu0 %v6612
        %v7877 = vpop.f32.mrb[0].mxu0
        %v7878 = vadd.f32 %v7653, %v7877
        %v7879 = vpop.f32.mrb[0].mxu0
        %7880 = vmatprep.mubr.f32.mxu0 0.0
        %7881 = vmatmul.mubr.f32.gmra.mrb[0].mxu0 %v6613
        %v7882 = vpop.f32.mrb[0].mxu0
        %v7883 = vadd.f32 %v7658, %v7882
        %v7884 = vpop.f32.mrb[0].mxu0
        %7885 = vmatprep.mubr.f32.mxu0 0.0
        %7886 = vmatmul.mubr.f32.gmra.mrb[0].mxu0 %v6614
        %v7887 = vpop.f32.mrb[0].mxu0
        %v7888 = vadd.f32 %v7663, %v7887
        %v7889 = vpop.f32.mrb[0].mxu0
        %7890 = vdwg.mxu0
        %v7891 = vmax.f32 %v7733, 0.0
        %v7892 = vmax.f32 %v7738, 0.0
        %v7893 = vmax.f32 %v7743, 0.0
        %v7894 = vmax.f32 %v7748, 0.0
        %v7895 = vmax.f32 %v7753, 0.0
        %v7896 = vmax.f32 %v7758, 0.0
        %v7897 = vmax.f32 %v7763, 0.0
        %v7898 = vmax.f32 %v7768, 0.0
        %v7899 = vmax.f32 %v7773, 0.0
        %v7900 = vmax.f32 %v7778, 0.0
        %v7901 = vmax.f32 %v7783, 0.0
        %v7902 = vmax.f32 %v7788, 0.0
        %v7903 = vmax.f32 %v7793, 0.0
        %v7904 = vmax.f32 %v7798, 0.0
        %v7905 = vmax.f32 %v7803, 0.0
        %v7906 = vmax.f32 %v7808, 0.0
        %v7907 = vmax.f32 %v7813, 0.0
        %v7908 = vmax.f32 %v7818, 0.0
        %v7909 = vmax.f32 %v7823, 0.0
        %v7910 = vmax.f32 %v7828, 0.0
        %v7911 = vmax.f32 %v7833, 0.0
        %v7912 = vmax.f32 %v7838, 0.0
        %v7913 = vmax.f32 %v7843, 0.0
        %v7914 = vmax.f32 %v7848, 0.0
        %v7915 = vmax.f32 %v7853, 0.0
        %v7916 = vmax.f32 %v7858, 0.0
        %v7917 = vmax.f32 %v7863, 0.0
        %v7918 = vmax.f32 %v7868, 0.0
        %v7919 = vmax.f32 %v7873, 0.0
        %v7920 = vmax.f32 %v7878, 0.0
        %v7921 = vmax.f32 %v7883, 0.0
        %v7922 = vmax.f32 %v7888, 0.0
        %v7923 = vld [vmem:[%s12] sm:$0xff]
        %v7924 = vld [vmem:[%s12 + $0x8] sm:$0xff]
        %v7925 = vld [vmem:[%s12 + $0x10] sm:$0xff]
        %v7926 = vld [vmem:[%s12 + $0x18] sm:$0xff]
        %v7927 = vld [vmem:[%s12 + $0x20] sm:$0xff]
        %v7928 = vld [vmem:[%s12 + $0x28] sm:$0xff]
        %v7929 = vld [vmem:[%s12 + $0x30] sm:$0xff]
        %v7930 = vld [vmem:[%s12 + $0x38] sm:$0xff]
        %v7931 = vld [vmem:[%s12 + $0x40] sm:$0xff]
        %v7932 = vld [vmem:[%s12 + $0x48] sm:$0xff]
        %v7933 = vld [vmem:[%s12 + $0x50] sm:$0xff]
        %v7934 = vld [vmem:[%s12 + $0x58] sm:$0xff]
        %v7935 = vld [vmem:[%s12 + $0x60] sm:$0xff]
        %v7936 = vld [vmem:[%s12 + $0x68] sm:$0xff]
        %v7937 = vld [vmem:[%s12 + $0x70] sm:$0xff]
        %v7938 = vld [vmem:[%s12 + $0x78] sm:$0xff]
        %v7939 = vld [vmem:[%s13] sm:$0x1]
        %v7941 = vlaneseq
        %v7942 = vshrl.u32 %v7941, 7
        %v7943 = vsub.s32 0, %v7942
        %v7944 = vrot.slane %v7939, %v7943
        %7946 = vmatprep.subr.mxu0 0.0
        %7947 = vmatpush1.msra.mxu0 %v7923
        %7948 = vmatprep.subr.mxu0 0.0
        %7949 = vmatpush1.msra.mxu0 %v7924
        %7950 = vmatprep.subr.mxu0 0.0
        %7951 = vmatpush1.msra.mxu0 %v7925
        %7952 = vmatprep.subr.mxu0 0.0
        %7953 = vmatpush1.msra.mxu0 %v7926
        %7954 = vmatprep.subr.mxu0 0.0
        %7955 = vmatpush1.msra.mxu0 %v7927
        %7956 = vmatprep.subr.mxu0 0.0
        %7957 = vmatpush1.msra.mxu0 %v7928
        %7958 = vmatprep.subr.mxu0 0.0
        %7959 = vmatpush1.msra.mxu0 %v7929
        %7960 = vmatprep.subr.mxu0 0.0
        %7961 = vmatpush1.msra.mxu0 %v7930
        %7962 = vmatprep.subr.mxu0 0.0
        %7963 = vmatpush1.msra.mxu0 %v7931
        %7964 = vmatprep.subr.mxu0 0.0
        %7965 = vmatpush1.msra.mxu0 %v7932
        %7966 = vmatprep.subr.mxu0 0.0
        %7967 = vmatpush1.msra.mxu0 %v7933
        %7968 = vmatprep.subr.mxu0 0.0
        %7969 = vmatpush1.msra.mxu0 %v7934
        %7970 = vmatprep.subr.mxu0 0.0
        %7971 = vmatpush1.msra.mxu0 %v7935
        %7972 = vmatprep.subr.mxu0 0.0
        %7973 = vmatpush1.msra.mxu0 %v7936
        %7974 = vmatprep.subr.mxu0 0.0
        %7975 = vmatpush1.msra.mxu0 %v7937
        %7976 = vmatprep.subr.mxu0 0.0
        %7977 = vmatpush1.msra.mxu0 %v7938
        %7978 = vmatprep.subr.mxu0 0.0
        %7979 = vmatpush1.msra.mxu0 0.0
        %7980 = vmatprep.subr.mxu0 0.0
        %7981 = vmatpush1.msra.mxu0 0.0
        %7982 = vmatprep.subr.mxu0 0.0
        %7983 = vmatpush1.msra.mxu0 0.0
        %7984 = vmatprep.subr.mxu0 0.0
        %7985 = vmatpush1.msra.mxu0 0.0
        %7986 = vmatprep.subr.mxu0 0.0
        %7987 = vmatpush1.msra.mxu0 0.0
        %7988 = vmatprep.subr.mxu0 0.0
        %7989 = vmatpush1.msra.mxu0 0.0
        %7990 = vmatprep.subr.mxu0 0.0
        %7991 = vmatpush1.msra.mxu0 0.0
        %7992 = vmatprep.subr.mxu0 0.0
        %7993 = vmatpush1.msra.mxu0 0.0
        %7994 = vmatprep.subr.mxu0 0.0
        %7995 = vmatpush1.msra.mxu0 0.0
        %7996 = vmatprep.subr.mxu0 0.0
        %7997 = vmatpush1.msra.mxu0 0.0
        %7998 = vmatprep.subr.mxu0 0.0
        %7999 = vmatpush1.msra.mxu0 0.0
        %8000 = vmatprep.subr.mxu0 0.0
        %8001 = vmatpush1.msra.mxu0 0.0
        %8002 = vmatprep.subr.mxu0 0.0
        %8003 = vmatpush1.msra.mxu0 0.0
        %8004 = vmatprep.subr.mxu0 0.0
        %8005 = vmatpush1.msra.mxu0 0.0
        %8006 = vmatprep.subr.mxu0 0.0
        %8007 = vmatpush1.msra.mxu0 0.0
        %8008 = vmatprep.subr.mxu0 0.0
        %8009 = vmatpush1.msra.mxu0 0.0
        %8010 = vmatprep.mubr.f32.mxu0 0.0
        %8011 = vmatmul.mubr.f32.gmra.mrb[0].mxu0 %v7891
        %v8012 = vpop.f32.mrb[0].mxu0
        %v8013 = vadd.f32 %v7944, %v8012
        %v8014 = vpop.f32.mrb[0].mxu0
        %8015 = vmatprep.mubr.f32.mxu0 0.0
        %8016 = vmatmul.mubr.f32.gmra.mrb[0].mxu0 %v7892
        %v8017 = vpop.f32.mrb[0].mxu0
        %v8018 = vadd.f32 %v7944, %v8017
        %v8019 = vpop.f32.mrb[0].mxu0
        %8020 = vmatprep.mubr.f32.mxu0 0.0
        %8021 = vmatmul.mubr.f32.gmra.mrb[0].mxu0 %v7893
        %v8022 = vpop.f32.mrb[0].mxu0
        %v8023 = vadd.f32 %v7944, %v8022
        %v8024 = vpop.f32.mrb[0].mxu0
        %8025 = vmatprep.mubr.f32.mxu0 0.0
        %8026 = vmatmul.mubr.f32.gmra.mrb[0].mxu0 %v7894
        %v8027 = vpop.f32.mrb[0].mxu0
        %v8028 = vadd.f32 %v7944, %v8027
        %v8029 = vpop.f32.mrb[0].mxu0
        %8030 = vmatprep.mubr.f32.mxu0 0.0
        %8031 = vmatmul.mubr.f32.gmra.mrb[0].mxu0 %v7895
        %v8032 = vpop.f32.mrb[0].mxu0
        %v8033 = vadd.f32 %v7944, %v8032
        %v8034 = vpop.f32.mrb[0].mxu0
        %8035 = vmatprep.mubr.f32.mxu0 0.0
        %8036 = vmatmul.mubr.f32.gmra.mrb[0].mxu0 %v7896
        %v8037 = vpop.f32.mrb[0].mxu0
        %v8038 = vadd.f32 %v7944, %v8037
        %v8039 = vpop.f32.mrb[0].mxu0
        %8040 = vmatprep.mubr.f32.mxu0 0.0
        %8041 = vmatmul.mubr.f32.gmra.mrb[0].mxu0 %v7897
        %v8042 = vpop.f32.mrb[0].mxu0
        %v8043 = vadd.f32 %v7944, %v8042
        %v8044 = vpop.f32.mrb[0].mxu0
        %8045 = vmatprep.mubr.f32.mxu0 0.0
        %8046 = vmatmul.mubr.f32.gmra.mrb[0].mxu0 %v7898
        %v8047 = vpop.f32.mrb[0].mxu0
        %v8048 = vadd.f32 %v7944, %v8047
        %v8049 = vpop.f32.mrb[0].mxu0
        %8050 = vmatprep.mubr.f32.mxu0 0.0
        %8051 = vmatmul.mubr.f32.gmra.mrb[0].mxu0 %v7899
        %v8052 = vpop.f32.mrb[0].mxu0
        %v8053 = vadd.f32 %v7944, %v8052
        %v8054 = vpop.f32.mrb[0].mxu0
        %8055 = vmatprep.mubr.f32.mxu0 0.0
        %8056 = vmatmul.mubr.f32.gmra.mrb[0].mxu0 %v7900
        %v8057 = vpop.f32.mrb[0].mxu0
        %v8058 = vadd.f32 %v7944, %v8057
        %v8059 = vpop.f32.mrb[0].mxu0
        %8060 = vmatprep.mubr.f32.mxu0 0.0
        %8061 = vmatmul.mubr.f32.gmra.mrb[0].mxu0 %v7901
        %v8062 = vpop.f32.mrb[0].mxu0
        %v8063 = vadd.f32 %v7944, %v8062
        %v8064 = vpop.f32.mrb[0].mxu0
        %8065 = vmatprep.mubr.f32.mxu0 0.0
        %8066 = vmatmul.mubr.f32.gmra.mrb[0].mxu0 %v7902
        %v8067 = vpop.f32.mrb[0].mxu0
        %v8068 = vadd.f32 %v7944, %v8067
        %v8069 = vpop.f32.mrb[0].mxu0
        %8070 = vmatprep.mubr.f32.mxu0 0.0
        %8071 = vmatmul.mubr.f32.gmra.mrb[0].mxu0 %v7903
        %v8072 = vpop.f32.mrb[0].mxu0
        %v8073 = vadd.f32 %v7944, %v8072
        %v8074 = vpop.f32.mrb[0].mxu0
        %8075 = vmatprep.mubr.f32.mxu0 0.0
        %8076 = vmatmul.mubr.f32.gmra.mrb[0].mxu0 %v7904
        %v8077 = vpop.f32.mrb[0].mxu0
        %v8078 = vadd.f32 %v7944, %v8077
        %v8079 = vpop.f32.mrb[0].mxu0
        %8080 = vmatprep.mubr.f32.mxu0 0.0
        %8081 = vmatmul.mubr.f32.gmra.mrb[0].mxu0 %v7905
        %v8082 = vpop.f32.mrb[0].mxu0
        %v8083 = vadd.f32 %v7944, %v8082
        %v8084 = vpop.f32.mrb[0].mxu0
        %8085 = vmatprep.mubr.f32.mxu0 0.0
        %8086 = vmatmul.mubr.f32.gmra.mrb[0].mxu0 %v7906
        %v8087 = vpop.f32.mrb[0].mxu0
        %v8088 = vadd.f32 %v7944, %v8087
        %v8089 = vpop.f32.mrb[0].mxu0
        %8090 = vmatprep.mubr.f32.mxu0 0.0
        %8091 = vmatmul.mubr.f32.gmra.mrb[0].mxu0 %v7907
        %v8092 = vpop.f32.mrb[0].mxu0
        %v8093 = vadd.f32 %v7944, %v8092
        %v8094 = vpop.f32.mrb[0].mxu0
        %8095 = vmatprep.mubr.f32.mxu0 0.0
        %8096 = vmatmul.mubr.f32.gmra.mrb[0].mxu0 %v7908
        %v8097 = vpop.f32.mrb[0].mxu0
        %v8098 = vadd.f32 %v7944, %v8097
        %v8099 = vpop.f32.mrb[0].mxu0
        %8100 = vmatprep.mubr.f32.mxu0 0.0
        %8101 = vmatmul.mubr.f32.gmra.mrb[0].mxu0 %v7909
        %v8102 = vpop.f32.mrb[0].mxu0
        %v8103 = vadd.f32 %v7944, %v8102
        %v8104 = vpop.f32.mrb[0].mxu0
        %8105 = vmatprep.mubr.f32.mxu0 0.0
        %8106 = vmatmul.mubr.f32.gmra.mrb[0].mxu0 %v7910
        %v8107 = vpop.f32.mrb[0].mxu0
        %v8108 = vadd.f32 %v7944, %v8107
        %v8109 = vpop.f32.mrb[0].mxu0
        %8110 = vmatprep.mubr.f32.mxu0 0.0
        %8111 = vmatmul.mubr.f32.gmra.mrb[0].mxu0 %v7911
        %v8112 = vpop.f32.mrb[0].mxu0
        %v8113 = vadd.f32 %v7944, %v8112
        %v8114 = vpop.f32.mrb[0].mxu0
        %8115 = vmatprep.mubr.f32.mxu0 0.0
        %8116 = vmatmul.mubr.f32.gmra.mrb[0].mxu0 %v7912
        %v8117 = vpop.f32.mrb[0].mxu0
        %v8118 = vadd.f32 %v7944, %v8117
        %v8119 = vpop.f32.mrb[0].mxu0
        %8120 = vmatprep.mubr.f32.mxu0 0.0
        %8121 = vmatmul.mubr.f32.gmra.mrb[0].mxu0 %v7913
        %v8122 = vpop.f32.mrb[0].mxu0
        %v8123 = vadd.f32 %v7944, %v8122
        %v8124 = vpop.f32.mrb[0].mxu0
        %8125 = vmatprep.mubr.f32.mxu0 0.0
        %8126 = vmatmul.mubr.f32.gmra.mrb[0].mxu0 %v7914
        %v8127 = vpop.f32.mrb[0].mxu0
        %v8128 = vadd.f32 %v7944, %v8127
        %v8129 = vpop.f32.mrb[0].mxu0
        %8130 = vmatprep.mubr.f32.mxu0 0.0
        %8131 = vmatmul.mubr.f32.gmra.mrb[0].mxu0 %v7915
        %v8132 = vpop.f32.mrb[0].mxu0
        %v8133 = vadd.f32 %v7944, %v8132
        %v8134 = vpop.f32.mrb[0].mxu0
        %8135 = vmatprep.mubr.f32.mxu0 0.0
        %8136 = vmatmul.mubr.f32.gmra.mrb[0].mxu0 %v7916
        %v8137 = vpop.f32.mrb[0].mxu0
        %v8138 = vadd.f32 %v7944, %v8137
        %v8139 = vpop.f32.mrb[0].mxu0
        %8140 = vmatprep.mubr.f32.mxu0 0.0
        %8141 = vmatmul.mubr.f32.gmra.mrb[0].mxu0 %v7917
        %v8142 = vpop.f32.mrb[0].mxu0
        %v8143 = vadd.f32 %v7944, %v8142
        %v8144 = vpop.f32.mrb[0].mxu0
        %8145 = vmatprep.mubr.f32.mxu0 0.0
        %8146 = vmatmul.mubr.f32.gmra.mrb[0].mxu0 %v7918
        %v8147 = vpop.f32.mrb[0].mxu0
        %v8148 = vadd.f32 %v7944, %v8147
        %v8149 = vpop.f32.mrb[0].mxu0
        %8150 = vmatprep.mubr.f32.mxu0 0.0
        %8151 = vmatmul.mubr.f32.gmra.mrb[0].mxu0 %v7919
        %v8152 = vpop.f32.mrb[0].mxu0
        %v8153 = vadd.f32 %v7944, %v8152
        %v8154 = vpop.f32.mrb[0].mxu0
        %8155 = vmatprep.mubr.f32.mxu0 0.0
        %8156 = vmatmul.mubr.f32.gmra.mrb[0].mxu0 %v7920
        %v8157 = vpop.f32.mrb[0].mxu0
        %v8158 = vadd.f32 %v7944, %v8157
        %v8159 = vpop.f32.mrb[0].mxu0
        %8160 = vmatprep.mubr.f32.mxu0 0.0
        %8161 = vmatmul.mubr.f32.gmra.mrb[0].mxu0 %v7921
        %v8162 = vpop.f32.mrb[0].mxu0
        %v8163 = vadd.f32 %v7944, %v8162
        %v8164 = vpop.f32.mrb[0].mxu0
        %8165 = vmatprep.mubr.f32.mxu0 0.0
        %8166 = vmatmul.mubr.f32.gmra.mrb[0].mxu0 %v7922
        %v8167 = vpop.f32.mrb[0].mxu0
        %v8168 = vadd.f32 %v7944, %v8167
        %v8169 = vpop.f32.mrb[0].mxu0
        %8170 = vdwg.mxu0
        %v8171 = vsub.f32 0.0, %v8013
        %v8172 = vsub.f32 0.0, %v8018
        %v8173 = vsub.f32 0.0, %v8023
        %v8174 = vsub.f32 0.0, %v8028
        %v8175 = vsub.f32 0.0, %v8033
        %v8176 = vsub.f32 0.0, %v8038
        %v8177 = vsub.f32 0.0, %v8043
        %v8178 = vsub.f32 0.0, %v8048
        %v8179 = vsub.f32 0.0, %v8053
        %v8180 = vsub.f32 0.0, %v8058
        %v8181 = vsub.f32 0.0, %v8063
        %v8182 = vsub.f32 0.0, %v8068
        %v8183 = vsub.f32 0.0, %v8073
        %v8184 = vsub.f32 0.0, %v8078
        %v8185 = vsub.f32 0.0, %v8083
        %v8186 = vsub.f32 0.0, %v8088
        %v8187 = vsub.f32 0.0, %v8093
        %v8188 = vsub.f32 0.0, %v8098
        %v8189 = vsub.f32 0.0, %v8103
        %v8190 = vsub.f32 0.0, %v8108
        %v8191 = vsub.f32 0.0, %v8113
        %v8192 = vsub.f32 0.0, %v8118
        %v8193 = vsub.f32 0.0, %v8123
        %v8194 = vsub.f32 0.0, %v8128
        %v8195 = vsub.f32 0.0, %v8133
        %v8196 = vsub.f32 0.0, %v8138
        %v8197 = vsub.f32 0.0, %v8143
        %v8198 = vsub.f32 0.0, %v8148
        %v8199 = vsub.f32 0.0, %v8153
        %v8200 = vsub.f32 0.0, %v8158
        %v8201 = vsub.f32 0.0, %v8163
        %v8202 = vsub.f32 0.0, %v8168
        %v8203 = vmul.f32 %v8171, 1.442695
        %v8204 = vpow.pop %v8203
        %v8205 = vmul.f32 %v8172, 1.442695
        %v8206 = vpow.pop %v8205
        %v8207 = vmul.f32 %v8173, 1.442695
        %v8208 = vpow.pop %v8207
        %v8209 = vmul.f32 %v8174, 1.442695
        %v8210 = vpow.pop %v8209
        %v8211 = vmul.f32 %v8175, 1.442695
        %v8212 = vpow.pop %v8211
        %v8213 = vmul.f32 %v8176, 1.442695
        %v8214 = vpow.pop %v8213
        %v8215 = vmul.f32 %v8177, 1.442695
        %v8216 = vpow.pop %v8215
        %v8217 = vmul.f32 %v8178, 1.442695
        %v8218 = vpow.pop %v8217
        %v8219 = vmul.f32 %v8179, 1.442695
        %v8220 = vpow.pop %v8219
        %v8221 = vmul.f32 %v8180, 1.442695
        %v8222 = vpow.pop %v8221
        %v8223 = vmul.f32 %v8181, 1.442695
        %v8224 = vpow.pop %v8223
        %v8225 = vmul.f32 %v8182, 1.442695
        %v8226 = vpow.pop %v8225
        %v8227 = vmul.f32 %v8183, 1.442695
        %v8228 = vpow.pop %v8227
        %v8229 = vmul.f32 %v8184, 1.442695
        %v8230 = vpow.pop %v8229
        %v8231 = vmul.f32 %v8185, 1.442695
        %v8232 = vpow.pop %v8231
        %v8233 = vmul.f32 %v8186, 1.442695
        %v8234 = vpow.pop %v8233
        %v8235 = vmul.f32 %v8187, 1.442695
        %v8236 = vpow.pop %v8235
        %v8237 = vmul.f32 %v8188, 1.442695
        %v8238 = vpow.pop %v8237
        %v8239 = vmul.f32 %v8189, 1.442695
        %v8240 = vpow.pop %v8239
        %v8241 = vmul.f32 %v8190, 1.442695
        %v8242 = vpow.pop %v8241
        %v8243 = vmul.f32 %v8191, 1.442695
        %v8244 = vpow.pop %v8243
        %v8245 = vmul.f32 %v8192, 1.442695
        %v8246 = vpow.pop %v8245
        %v8247 = vmul.f32 %v8193, 1.442695
        %v8248 = vpow.pop %v8247
        %v8249 = vmul.f32 %v8194, 1.442695
        %v8250 = vpow.pop %v8249
        %v8251 = vmul.f32 %v8195, 1.442695
        %v8252 = vpow.pop %v8251
        %v8253 = vmul.f32 %v8196, 1.442695
        %v8254 = vpow.pop %v8253
        %v8255 = vmul.f32 %v8197, 1.442695
        %v8256 = vpow.pop %v8255
        %v8257 = vmul.f32 %v8198, 1.442695
        %v8258 = vpow.pop %v8257
        %v8259 = vmul.f32 %v8199, 1.442695
        %v8260 = vpow.pop %v8259
        %v8261 = vmul.f32 %v8200, 1.442695
        %v8262 = vpow.pop %v8261
        %v8263 = vmul.f32 %v8201, 1.442695
        %v8264 = vpow.pop %v8263
        %v8265 = vmul.f32 %v8202, 1.442695
        %v8266 = vpow.pop %v8265
        %v8267 = vadd.f32 %v8204, 1.0
        %v8268 = vadd.f32 %v8206, 1.0
        %v8269 = vadd.f32 %v8208, 1.0
        %v8270 = vadd.f32 %v8210, 1.0
        %v8271 = vadd.f32 %v8212, 1.0
        %v8272 = vadd.f32 %v8214, 1.0
        %v8273 = vadd.f32 %v8216, 1.0
        %v8274 = vadd.f32 %v8218, 1.0
        %v8275 = vadd.f32 %v8220, 1.0
        %v8276 = vadd.f32 %v8222, 1.0
        %v8277 = vadd.f32 %v8224, 1.0
        %v8278 = vadd.f32 %v8226, 1.0
        %v8279 = vadd.f32 %v8228, 1.0
        %v8280 = vadd.f32 %v8230, 1.0
        %v8281 = vadd.f32 %v8232, 1.0
        %v8282 = vadd.f32 %v8234, 1.0
        %v8283 = vadd.f32 %v8236, 1.0
        %v8284 = vadd.f32 %v8238, 1.0
        %v8285 = vadd.f32 %v8240, 1.0
        %v8286 = vadd.f32 %v8242, 1.0
        %v8287 = vadd.f32 %v8244, 1.0
        %v8288 = vadd.f32 %v8246, 1.0
        %v8289 = vadd.f32 %v8248, 1.0
        %v8290 = vadd.f32 %v8250, 1.0
        %v8291 = vadd.f32 %v8252, 1.0
        %v8292 = vadd.f32 %v8254, 1.0
        %v8293 = vadd.f32 %v8256, 1.0
        %v8294 = vadd.f32 %v8258, 1.0
        %v8295 = vadd.f32 %v8260, 1.0
        %v8296 = vadd.f32 %v8262, 1.0
        %v8297 = vadd.f32 %v8264, 1.0
        %v8298 = vadd.f32 %v8266, 1.0
        %v8299 = vrcp.pop %v8267
        %v8300 = vmul.f32 1.0, %v8299
        %v8301 = vrcp.pop %v8268
        %v8302 = vmul.f32 1.0, %v8301
        %v8303 = vrcp.pop %v8269
        %v8304 = vmul.f32 1.0, %v8303
        %v8305 = vrcp.pop %v8270
        %v8306 = vmul.f32 1.0, %v8305
        %v8307 = vrcp.pop %v8271
        %v8308 = vmul.f32 1.0, %v8307
        %v8309 = vrcp.pop %v8272
        %v8310 = vmul.f32 1.0, %v8309
        %v8311 = vrcp.pop %v8273
        %v8312 = vmul.f32 1.0, %v8311
        %v8313 = vrcp.pop %v8274
        %v8314 = vmul.f32 1.0, %v8313
        %v8315 = vrcp.pop %v8275
        %v8316 = vmul.f32 1.0, %v8315
        %v8317 = vrcp.pop %v8276
        %v8318 = vmul.f32 1.0, %v8317
        %v8319 = vrcp.pop %v8277
        %v8320 = vmul.f32 1.0, %v8319
        %v8321 = vrcp.pop %v8278
        %v8322 = vmul.f32 1.0, %v8321
        %v8323 = vrcp.pop %v8279
        %v8324 = vmul.f32 1.0, %v8323
        %v8325 = vrcp.pop %v8280
        %v8326 = vmul.f32 1.0, %v8325
        %v8327 = vrcp.pop %v8281
        %v8328 = vmul.f32 1.0, %v8327
        %v8329 = vrcp.pop %v8282
        %v8330 = vmul.f32 1.0, %v8329
        %v8331 = vrcp.pop %v8283
        %v8332 = vmul.f32 1.0, %v8331
        %v8333 = vrcp.pop %v8284
        %v8334 = vmul.f32 1.0, %v8333
        %v8335 = vrcp.pop %v8285
        %v8336 = vmul.f32 1.0, %v8335
        %v8337 = vrcp.pop %v8286
        %v8338 = vmul.f32 1.0, %v8337
        %v8339 = vrcp.pop %v8287
        %v8340 = vmul.f32 1.0, %v8339
        %v8341 = vrcp.pop %v8288
        %v8342 = vmul.f32 1.0, %v8341
        %v8343 = vrcp.pop %v8289
        %v8344 = vmul.f32 1.0, %v8343
        %v8345 = vrcp.pop %v8290
        %v8346 = vmul.f32 1.0, %v8345
        %v8347 = vrcp.pop %v8291
        %v8348 = vmul.f32 1.0, %v8347
        %v8349 = vrcp.pop %v8292
        %v8350 = vmul.f32 1.0, %v8349
        %v8351 = vrcp.pop %v8293
        %v8352 = vmul.f32 1.0, %v8351
        %v8353 = vrcp.pop %v8294
        %v8354 = vmul.f32 1.0, %v8353
        %v8355 = vrcp.pop %v8295
        %v8356 = vmul.f32 1.0, %v8355
        %v8357 = vrcp.pop %v8296
        %v8358 = vmul.f32 1.0, %v8357
        %v8359 = vrcp.pop %v8297
        %v8360 = vmul.f32 1.0, %v8359
        %v8361 = vrcp.pop %v8298
        %v8362 = vmul.f32 1.0, %v8361
        %vm8363 = vcmask 23552
        %8364 = vst.msk [vmem:[%s547] sm:$0xff] %vm8363, %v8300
        %8365 = vst.msk [vmem:[%s547 + $0x8] sm:$0xff] %vm8363, %v8302
        %8366 = vst.msk [vmem:[%s547 + $0x10] sm:$0xff] %vm8363, %v8304
        %8367 = vst.msk [vmem:[%s547 + $0x18] sm:$0xff] %vm8363, %v8306
        %8368 = vst.msk [vmem:[%s547 + $0x20] sm:$0xff] %vm8363, %v8308
        %8369 = vst.msk [vmem:[%s547 + $0x28] sm:$0xff] %vm8363, %v8310
        %8370 = vst.msk [vmem:[%s547 + $0x30] sm:$0xff] %vm8363, %v8312
        %8371 = vst.msk [vmem:[%s547 + $0x38] sm:$0xff] %vm8363, %v8314
        %8372 = vst.msk [vmem:[%s547 + $0x40] sm:$0xff] %vm8363, %v8316
        %8373 = vst.msk [vmem:[%s547 + $0x48] sm:$0xff] %vm8363, %v8318
        %8374 = vst.msk [vmem:[%s547 + $0x50] sm:$0xff] %vm8363, %v8320
        %8375 = vst.msk [vmem:[%s547 + $0x58] sm:$0xff] %vm8363, %v8322
        %8376 = vst.msk [vmem:[%s547 + $0x60] sm:$0xff] %vm8363, %v8324
        %8377 = vst.msk [vmem:[%s547 + $0x68] sm:$0xff] %vm8363, %v8326
        %8378 = vst.msk [vmem:[%s547 + $0x70] sm:$0xff] %vm8363, %v8328
        %8379 = vst.msk [vmem:[%s547 + $0x78] sm:$0xff] %vm8363, %v8330
        %8380 = vst.msk [vmem:[%s547 + $0x80] sm:$0xff] %vm8363, %v8332
        %8381 = vst.msk [vmem:[%s547 + $0x88] sm:$0xff] %vm8363, %v8334
        %8382 = vst.msk [vmem:[%s547 + $0x90] sm:$0xff] %vm8363, %v8336
        %8383 = vst.msk [vmem:[%s547 + $0x98] sm:$0xff] %vm8363, %v8338
        %8384 = vst.msk [vmem:[%s547 + $0xa0] sm:$0xff] %vm8363, %v8340
        %8385 = vst.msk [vmem:[%s547 + $0xa8] sm:$0xff] %vm8363, %v8342
        %8386 = vst.msk [vmem:[%s547 + $0xb0] sm:$0xff] %vm8363, %v8344
        %8387 = vst.msk [vmem:[%s547 + $0xb8] sm:$0xff] %vm8363, %v8346
        %8388 = vst.msk [vmem:[%s547 + $0xc0] sm:$0xff] %vm8363, %v8348
        %8389 = vst.msk [vmem:[%s547 + $0xc8] sm:$0xff] %vm8363, %v8350
        %8390 = vst.msk [vmem:[%s547 + $0xd0] sm:$0xff] %vm8363, %v8352
        %8391 = vst.msk [vmem:[%s547 + $0xd8] sm:$0xff] %vm8363, %v8354
        %8392 = vst.msk [vmem:[%s547 + $0xe0] sm:$0xff] %vm8363, %v8356
        %8393 = vst.msk [vmem:[%s547 + $0xe8] sm:$0xff] %vm8363, %v8358
        %8394 = vst.msk [vmem:[%s547 + $0xf0] sm:$0xff] %vm8363, %v8360
        %8395 = vst.msk [vmem:[%s547 + $0xf8] sm:$0xff] %vm8363, %v8362
        %p8396 = scmp.lt.s32.totalorder %s32, 1
        %s8397 = scalar_select %p8396, %s32, 1
        %s8398 = smul.addr %s8397, 32
        %s8399 = smul.addr %s8398, 8
        %s8400 = scalar_lea.vmem %s14, %s8399
        // Predicated region
        $region97: #{tpu_custom_call.1} parent=75 // pred_check
          %p8401 = pneg %p349
        $region98: #{tpu_custom_call.1} parent=75 // pred_check_branch
          %8403 = sbr.rel (%p8401) target = $region100
        $region99: #{tpu_custom_call.1} parent=75 // pred_region
          _
        $region100: #{tpu_custom_call.1} parent=75 // pred_fallthru
          _
      $region76: #{tpu_custom_call.1} parent=5 // pred_fallthru
        _
      %p8404 = scmp.le.s32.totalorder 2, %s27
      // Predicated region
      $region101: #{tpu_custom_call.1} parent=5 // pred_check
        %p8405 = pneg %p8404
      $region102: #{tpu_custom_call.1} parent=5 // pred_check_branch
        %8407 = sbr.rel (%p8405) target = $region104
      $region103: #{tpu_custom_call.1} parent=5 // pred_region
        %s8408 = ssub.s32 %s27, 2
        // Predicated region
        $region105: #{tpu_custom_call.1} parent=103 // pred_check
          %p8409 = pneg %p355
        $region106: #{tpu_custom_call.1} parent=103 // pred_check_branch
          %8411 = sbr.rel (%p8409) target = $region108
        $region107: #{tpu_custom_call.1} parent=103 // pred_region
          %p8412 = scmp.lt.s32.totalorder %s33, 1
          %s8413 = scalar_select %p8412, %s33, 1
          %s8414 = smul.addr %s8413, 32
          %s8415 = smul.addr %s8414, 8
          %s8416 = scalar_lea.vmem %s14, %s8415
        $region108: #{tpu_custom_call.1} parent=103 // pred_fallthru
          _
      $region104: #{tpu_custom_call.1} parent=5 // pred_fallthru
        _
    $region6: #{tpu_custom_call.1} parent=1 // loop_footer
      %s31 = sadd.s32 1, %s27
    $region7: #{tpu_custom_call.1} parent=1 // loop_footer_branch
      %26 = sbr.rel target = $region3
    $region8: #{tpu_custom_call.1} parent=1 // loop_exit
      _
    %8417 = vsyncpa [#allocation6], 1
    %s8418 = scalar_lea.sflag [#allocation6], 1
    %8419 = vsyncpa %s8418, 1
    %8420 = vsyncpa [#allocation8], 1
    %8421 = vsyncpa [#allocation11], 1

</llo_original>
